<compile_context>
chip_gen: v6e
topology: v6e:2x2x1
jax: 0.10.0
libtpu: 0.0.40
codegen_flags: <defaults>
</compile_context>

<pallas_src>
import jax
import jax.numpy as jnp
import numpy as np
from jax.experimental import pallas as pl
from jax.experimental.pallas import tpu as pltpu

BN_EPS = 1e-3
C_IN = 160      # Mixed_4a input channels
C_MID = 64
C_OUT_BR = 96   # per-branch output channels


def _cdiv(a, b):
    return -(-a // b)


def _round_up(a, b):
    return _cdiv(a, b) * b


def _fold_bn(w_oihw, gamma, beta, mean, var):
    """Fold eval-mode BatchNorm into the (bias-free) conv preceding it."""
    scale = gamma / jnp.sqrt(var + BN_EPS)
    w = (w_oihw * scale[:, None, None, None]).astype(jnp.float32)
    b = (beta - mean * scale).astype(jnp.float32)
    return w, b


def mixed_4a(x_nchw, params):
    """Mixed_4a forward.

    x_nchw : (N, 160, H, W) float32
    params : list of 6 tuples (w_oihw, gamma, beta, running_mean, running_var) for
             [branch0 1x1, branch0 3x3, branch1 1x1, branch1 1x7, branch1 7x1,
              branch1 3x3]
    returns: (N, 192, H-2, W-2) float32
    """
    n, c, h, w = x_nchw.shape
    assert c == C_IN
    ho, wo = h - 2, w - 2

    # ---- glue: fold BN, reshape weights to matmul form ----
    (w0a, b0a), (w0b, b0b), (w1a, b1a), (w1b, b1b), (w1c, b1c), (w1d, b1d) = [
        _fold_bn(*p) for p in params]

    w0a_m = w0a.reshape(C_MID, C_IN).T                  # (160, 64)
    w1a_m = w1a.reshape(C_MID, C_IN).T                  # (160, 64)
    w0b_m = jnp.transpose(w0b, (2, 3, 1, 0))            # (3, 3, 64, 96)
    w1d_m = jnp.transpose(w1d, (2, 3, 1, 0))            # (3, 3, 64, 96)
    w1b_m = jnp.transpose(w1b[:, :, 0, :], (2, 1, 0))   # (7, 64, 64)  [kw, cin, cout]
    w1c_m = jnp.transpose(w1c[:, :, :, 0], (2, 1, 0))   # (7, 64, 64)  [kh, cin, cout]
    b0a_m, b0b_m = b0a.reshape(1, C_MID), b0b.reshape(1, C_OUT_BR)
    b1a_m, b1b_m = b1a.reshape(1, C_MID), b1b.reshape(1, C_MID)
    b1c_m, b1d_m = b1c.reshape(1, C_MID), b1d.reshape(1, C_OUT_BR)

    # ---- canvas geometry ----
    # The valid image lives at canvas rows [3, 3+H) and cols [3, 3+W); the margins hold
    # the zero padding the 1x7 / 7x1 convs rely on.
    WC = _round_up(w + 6, 8)      # core width processed per band (sublane aligned)
    WA = WC + 8                   # allocated width (room for static col offsets 0..6)
    TR = max(1, _cdiv(128, WC))   # rows per band -> matmul M = TR*WC ~ 128..160
    NB = _cdiv(h + 6, TR)         # number of row bands
    R = NB * TR + 8               # allocated rows (room for row offsets up to +6)
    M = TR * WC

    x_nhwc = jnp.transpose(x_nchw, (0, 2, 3, 1)).astype(jnp.float32)
    xc = jnp.pad(x_nhwc, ((0, 0), (3, R - h - 3), (3, WA - w - 3), (0, 0)))

    # column mask: 1.0 on the valid image columns, 0.0 on the horizontal pad.  Applied
    # to the branch-1 1x1 output so the 1x7 conv sees exact zero padding.
    colmask = ((jnp.arange(WC) >= 3) & (jnp.arange(WC) < 3 + w)).astype(jnp.float32)
    mask = jnp.tile(colmask, TR).reshape(M, 1)

    def kernel(xc_ref, w0a_ref, b0a_ref, w0b_ref, b0b_ref,
               w1a_ref, b1a_ref, w1b_ref, b1b_ref,
               w1c_ref, b1c_ref, w1d_ref, b1d_ref, mask_ref,
               out0_ref, out1_ref,
               c1, c2, fc):
        # xc_ref : (1, R, WA, 160)   zero-padded input canvas for this image
        # c1, c2 : (R, WA, 64)       activation canvases (reused across stages)
        # fc     : (R, WA, 96)       final-conv canvas (reused across branches)
        msk = mask_ref[...]                                   # (M, 1)

        def load(ref, r, dc):
            return ref[pl.ds(r, TR), pl.ds(dc, WC), :]

        def load_x(r, dc):
            return xc_ref[0, pl.ds(r, TR), pl.ds(dc, WC), :]

        def conv_stage(load_fn, taps, bias_ref, dst_ref, c_out, use_mask=False):
            """taps: list of (drow, dcol, weight_fn).  One band = (M, c_out) output."""
            def band(bi, carry):
                r0 = bi * TR
                acc = jnp.zeros((M, c_out), jnp.float32)
                for dr, dc, wfn in taps:
                    slab = load_fn(r0 + dr, dc)               # (TR, WC, c_in)
                    acc = acc + jnp.dot(slab.reshape(M, slab.shape[-1]), wfn(),
                                        preferred_element_type=jnp.float32)
                y = jnp.maximum(acc + bias_ref[...], 0.0)
                if use_mask:
                    y = y * msk
                dst_ref[pl.ds(r0, TR), pl.ds(0, WC), :] = y.reshape(TR, WC, c_out)
                return carry
            jax.lax.fori_loop(0, NB, band, 0)

        taps_3x3_b0 = [(kh, kw, (lambda kh=kh, kw=kw: w0b_ref[kh, kw]))
                       for kh in range(3) for kw in range(3)]
        taps_3x3_b1 = [(kh, kw, (lambda kh=kh, kw=kw: w1d_ref[kh, kw]))
                       for kh in range(3) for kw in range(3)]
        taps_1x7 = [(0, kw, (lambda kw=kw: w1b_ref[kw])) for kw in range(7)]
        taps_7x1 = [(kh, 0, (lambda kh=kh: w1c_ref[kh])) for kh in range(7)]

        # ---------------- branch 0 ----------------
        conv_stage(load_x, [(0, 0, lambda: w0a_ref[...])], b0a_ref, c1, C_MID)
        conv_stage(lambda r, dc: load(c1, r, dc), taps_3x3_b0, b0b_ref, fc, C_OUT_BR)
        out0_ref[0] = fc[pl.ds(3, ho), pl.ds(3, wo), :]

        # ---------------- branch 1 ----------------
        # 1x1 conv (masked so the 1x7 sees exact zero padding on the columns)
        conv_stage(load_x, [(0, 0, lambda: w1a_ref[...])], b1a_ref, c1, C_MID,
                   use_mask=True)
        # 1x7 conv, pad (0, 3)  (output stored column-shifted by -3 on the canvas)
        conv_stage(lambda r, dc: load(c1, r, dc), taps_1x7, b1b_ref, c2, C_MID)
        # exact zero padding rows for the 7x1 conv
        c2[pl.ds(0, 3), :, :] = jnp.zeros((3, WA, C_MID), jnp.float32)
        c2[pl.ds(3 + h, 3), :, :] = jnp.zeros((3, WA, C_MID), jnp.float32)
        # 7x1 conv, pad (3, 0)  (output stored row-shifted by -3 as well)
        conv_stage(lambda r, dc: load(c2, r, dc), taps_7x1, b1c_ref, c1, C_MID)
        # final 3x3 VALID conv
        conv_stage(lambda r, dc: load(c1, r, dc), taps_3x3_b1, b1d_ref, fc, C_OUT_BR)
        out1_ref[0] = fc[pl.ds(0, ho), pl.ds(0, wo), :]

    def _full_spec(arr):
        nd = arr.ndim
        return pl.BlockSpec(arr.shape, lambda b, nd=nd: (0,) * nd)

    out0, out1 = pl.pallas_call(
        kernel,
        out_shape=(
            jax.ShapeDtypeStruct((n, ho, wo, C_OUT_BR), jnp.float32),
            jax.ShapeDtypeStruct((n, ho, wo, C_OUT_BR), jnp.float32),
        ),
        grid=(n,),
        in_specs=[
            pl.BlockSpec((1, R, WA, C_IN), lambda b: (b, 0, 0, 0)),
            _full_spec(w0a_m), _full_spec(b0a_m),
            _full_spec(w0b_m), _full_spec(b0b_m),
            _full_spec(w1a_m), _full_spec(b1a_m),
            _full_spec(w1b_m), _full_spec(b1b_m),
            _full_spec(w1c_m), _full_spec(b1c_m),
            _full_spec(w1d_m), _full_spec(b1d_m),
            _full_spec(mask),
        ],
        out_specs=(
            pl.BlockSpec((1, ho, wo, C_OUT_BR), lambda b: (b, 0, 0, 0)),
            pl.BlockSpec((1, ho, wo, C_OUT_BR), lambda b: (b, 0, 0, 0)),
        ),
        scratch_shapes=[
            pltpu.VMEM((R, WA, C_MID), jnp.float32),
            pltpu.VMEM((R, WA, C_MID), jnp.float32),
            pltpu.VMEM((R, WA, C_OUT_BR), jnp.float32),
        ],
        compiler_params=pltpu.CompilerParams(
            dimension_semantics=("parallel",),
            vmem_limit_bytes=64 * 1024 * 1024,
        ),
    )(xc, w0a_m, b0a_m, w0b_m, b0b_m, w1a_m, b1a_m, w1b_m, b1b_m,
      w1c_m, b1c_m, w1d_m, b1d_m, mask)

    # channel concat (branch0 first, like torch.cat) fused with NHWC -> NCHW transpose.
    return jnp.concatenate(
        [jnp.transpose(out0, (0, 3, 1, 2)), jnp.transpose(out1, (0, 3, 1, 2))],
        axis=1)


# ----------------------------- plain-JAX reference -----------------------------
def _basic_conv_ref(x, w, gamma, beta, mean, var, padding):
    y = jax.lax.conv_general_dilated(
        x, w, window_strides=(1, 1), padding=padding,
        dimension_numbers=("NCHW", "OIHW", "NCHW"),
        precision=jax.lax.Precision.HIGHEST)
    scale = (gamma / jnp.sqrt(var + BN_EPS)).reshape(1, -1, 1, 1)
    bias = (beta - mean * gamma / jnp.sqrt(var + BN_EPS)).reshape(1, -1, 1, 1)
    return jnp.maximum(y * scale + bias, 0.0)


def _reference(x, params):
    p0a, p0b, p1a, p1b, p1c, p1d = params
    x0 = _basic_conv_ref(x, *p0a, padding="VALID")
    x0 = _basic_conv_ref(x0, *p0b, padding="VALID")
    x1 = _basic_conv_ref(x, *p1a, padding="VALID")
    x1 = _basic_conv_ref(x1, *p1b, padding=((0, 0), (3, 3)))
    x1 = _basic_conv_ref(x1, *p1c, padding=((3, 3), (0, 0)))
    x1 = _basic_conv_ref(x1, *p1d, padding="VALID")
    return jnp.concatenate([x0, x1], axis=1)


if __name__ == "__main__":
    key = jax.random.PRNGKey(0)
    keys = jax.random.split(key, 8)

    N, H, W = 2, 11, 11         # small spatial; channels fixed at 160 by the module
    x = jax.random.normal(keys[0], (N, C_IN, H, W), dtype=jnp.float32)

    def make_conv_params(k, cout, cin, kh, kw):
        k1, k2, k3, k4, k5 = jax.random.split(k, 5)
        wgt = jax.random.normal(k1, (cout, cin, kh, kw), jnp.float32) * 0.08
        gamma = 1.0 + 0.1 * jax.random.normal(k2, (cout,), jnp.float32)
        beta = 0.1 * jax.random.normal(k3, (cout,), jnp.float32)
        # TODO(synk): PyTorch-default train-mode BN would use batch statistics; this
        # implements inference-mode BN with running statistics folded into the conv.
        mean = 0.1 * jax.random.normal(k4, (cout,), jnp.float32)
        var = 0.5 + jnp.abs(jax.random.normal(k5, (cout,), jnp.float32)) * 0.5
        return (wgt, gamma, beta, mean, var)

    params = [
        make_conv_params(keys[1], 64, 160, 1, 1),   # branch0: 1x1
        make_conv_params(keys[2], 96, 64, 3, 3),    # branch0: 3x3
        make_conv_params(keys[3], 64, 160, 1, 1),   # branch1: 1x1
        make_conv_params(keys[4], 64, 64, 1, 7),    # branch1: 1x7
        make_conv_params(keys[5], 64, 64, 7, 1),    # branch1: 7x1
        make_conv_params(keys[6], 96, 64, 3, 3),    # branch1: 3x3
    ]

    out = jax.jit(mixed_4a)(x, params)
    out = jax.block_until_ready(out)

    ref = _reference(x, params)
    assert out.shape == (N, 2 * C_OUT_BR, H - 2, W - 2)
    np.testing.assert_allclose(np.asarray(out), np.asarray(ref), rtol=1e-3, atol=1e-3)
    print("KERNEL_OK")
</pallas_src>

<mosaic_0001>
module attributes {stable_mosaic.version = 11 : i64} {
  func.func @kernel(%arg0: i32, %arg1: memref<1x26x32x160xf32, #tpu.memory_space<vmem>>, %arg2: memref<160x64xf32, #tpu.memory_space<vmem>>, %arg3: memref<1x64xf32, #tpu.memory_space<vmem>>, %arg4: memref<3x3x64x96xf32, #tpu.memory_space<vmem>>, %arg5: memref<1x96xf32, #tpu.memory_space<vmem>>, %arg6: memref<160x64xf32, #tpu.memory_space<vmem>>, %arg7: memref<1x64xf32, #tpu.memory_space<vmem>>, %arg8: memref<7x64x64xf32, #tpu.memory_space<vmem>>, %arg9: memref<1x64xf32, #tpu.memory_space<vmem>>, %arg10: memref<7x64x64xf32, #tpu.memory_space<vmem>>, %arg11: memref<1x64xf32, #tpu.memory_space<vmem>>, %arg12: memref<3x3x64x96xf32, #tpu.memory_space<vmem>>, %arg13: memref<1x96xf32, #tpu.memory_space<vmem>>, %arg14: memref<144x1xf32, #tpu.memory_space<vmem>>, %arg15: memref<1x9x9x96xf32, #tpu.memory_space<vmem>>, %arg16: memref<1x9x9x96xf32, #tpu.memory_space<vmem>>, %arg17: memref<26x32x64xf32, #tpu.memory_space<vmem>>, %arg18: memref<26x32x64xf32, #tpu.memory_space<vmem>>, %arg19: memref<26x32x96xf32, #tpu.memory_space<vmem>>) attributes {dimension_semantics = [#tpu.dimension_semantics<parallel>], iteration_bounds = array<i64: 2>, scalar_prefetch = 0 : i64, scratch_operands = 3 : i64, tpu.core_type = #tpu.core_type<tc>, window_params = [{transform_indices = @transform_0, window_bounds = array<i64: 1, 26, 32, 160>}, {pipeline_mode = #tpu.pipeline_mode<synchronous>, transform_indices = @transform_1, window_bounds = array<i64: 160, 64>}, {pipeline_mode = #tpu.pipeline_mode<synchronous>, transform_indices = @transform_2, window_bounds = array<i64: 1, 64>}, {pipeline_mode = #tpu.pipeline_mode<synchronous>, transform_indices = @transform_3, window_bounds = array<i64: 3, 3, 64, 96>}, {pipeline_mode = #tpu.pipeline_mode<synchronous>, transform_indices = @transform_4, window_bounds = array<i64: 1, 96>}, {pipeline_mode = #tpu.pipeline_mode<synchronous>, transform_indices = @transform_5, window_bounds = array<i64: 160, 64>}, {pipeline_mode = #tpu.pipeline_mode<synchronous>, transform_indices = @transform_6, window_bounds = array<i64: 1, 64>}, {pipeline_mode = #tpu.pipeline_mode<synchronous>, transform_indices = @transform_7, window_bounds = array<i64: 7, 64, 64>}, {pipeline_mode = #tpu.pipeline_mode<synchronous>, transform_indices = @transform_8, window_bounds = array<i64: 1, 64>}, {pipeline_mode = #tpu.pipeline_mode<synchronous>, transform_indices = @transform_9, window_bounds = array<i64: 7, 64, 64>}, {pipeline_mode = #tpu.pipeline_mode<synchronous>, transform_indices = @transform_10, window_bounds = array<i64: 1, 64>}, {pipeline_mode = #tpu.pipeline_mode<synchronous>, transform_indices = @transform_11, window_bounds = array<i64: 3, 3, 64, 96>}, {pipeline_mode = #tpu.pipeline_mode<synchronous>, transform_indices = @transform_12, window_bounds = array<i64: 1, 96>}, {pipeline_mode = #tpu.pipeline_mode<synchronous>, transform_indices = @transform_13, window_bounds = array<i64: 144, 1>}, {transform_indices = @transform_14, window_bounds = array<i64: 1, 9, 9, 96>}, {transform_indices = @transform_15, window_bounds = array<i64: 1, 9, 9, 96>}]} {
    %c0 = arith.constant 0 : index
    %c0_0 = arith.constant 0 : index
    %0 = vector.load %arg14[%c0, %c0_0] : memref<144x1xf32, #tpu.memory_space<vmem>>, vector<144x1xf32>
    %c0_i32 = arith.constant 0 : i32
    %c3_i32 = arith.constant 3 : i32
    %1 = arith.addi %c0_i32, %c3_i32 : i32
    %c1_i32 = arith.constant 1 : i32
    scf.for %arg20 = %c0_i32 to %1 step %c1_i32  : i32 {
      %c6_i32 = arith.constant 6 : i32
      %19 = arith.muli %arg20, %c6_i32 : i32
      %cst_41 = arith.constant 0.000000e+00 : f32
      %20 = vector.broadcast %cst_41 : f32 to vector<144x64xf32>
      %c0_i32_42 = arith.constant 0 : i32
      %21 = arith.addi %19, %c0_i32_42 : i32
      %c0_43 = arith.constant 0 : index
      %22 = arith.index_cast %21 : i32 to index
      %c0_44 = arith.constant 0 : index
      %c0_45 = arith.constant 0 : index
      %23 = vector.load %arg1[%c0_43, %22, %c0_44, %c0_45] : memref<1x26x32x160xf32, #tpu.memory_space<vmem>>, vector<1x6x24x160xf32>
      %24 = vector.shape_cast %23 : vector<1x6x24x160xf32> to vector<6x24x160xf32>
      %25 = vector.shape_cast %24 : vector<6x24x160xf32> to vector<144x160xf32>
      %c0_46 = arith.constant 0 : index
      %c0_47 = arith.constant 0 : index
      %26 = vector.load %arg2[%c0_46, %c0_47] : memref<160x64xf32, #tpu.memory_space<vmem>>, vector<160x64xf32>
      %cst_48 = arith.constant dense<0.000000e+00> : vector<144x64xf32>
      %27 = tpu.matmul %25, %26, %cst_48 {dimension_numbers = #tpu.dot_dimension_numbers<[1], [0], [0], [1], [0, 0, 1, 1], [], []>} : vector<144x160xf32>, vector<160x64xf32>, vector<144x64xf32> -> vector<144x64xf32>
      %28 = arith.addf %20, %27 : vector<144x64xf32>
      %c0_49 = arith.constant 0 : index
      %c0_50 = arith.constant 0 : index
      %29 = vector.load %arg3[%c0_49, %c0_50] : memref<1x64xf32, #tpu.memory_space<vmem>>, vector<1x64xf32>
      %30 = vector.broadcast %29 : vector<1x64xf32> to vector<144x64xf32>
      %31 = arith.addf %28, %30 : vector<144x64xf32>
      %cst_51 = arith.constant 0.000000e+00 : f32
      %32 = vector.broadcast %cst_51 : f32 to vector<144x64xf32>
      %33 = arith.maximumf %31, %32 : vector<144x64xf32>
      %34 = vector.shape_cast %33 : vector<144x64xf32> to vector<6x24x64xf32>
      %35 = arith.index_cast %19 : i32 to index
      %c0_52 = arith.constant 0 : index
      %c0_53 = arith.constant 0 : index
      %36 = vector.load %arg17[%35, %c0_52, %c0_53] : memref<26x32x64xf32, #tpu.memory_space<vmem>>, vector<6x24x64xf32>
      tpu.vector_store %arg17[%35, %c0_52, %c0_53], %34 {strides = array<i32>} : memref<26x32x64xf32, #tpu.memory_space<vmem>>, vector<6x24x64xf32>,
    }
    %c3_i32_1 = arith.constant 3 : i32
    %c0_i32_2 = arith.constant 0 : i32
    %c3_i32_3 = arith.constant 3 : i32
    %2 = arith.addi %c0_i32_2, %c3_i32_3 : i32
    %c1_i32_4 = arith.constant 1 : i32
    scf.for %arg20 = %c0_i32_2 to %2 step %c1_i32_4  : i32 {
      %c6_i32 = arith.constant 6 : i32
      %19 = arith.muli %arg20, %c6_i32 : i32
      %cst_41 = arith.constant 0.000000e+00 : f32
      %20 = vector.broadcast %cst_41 : f32 to vector<144x96xf32>
      %c0_i32_42 = arith.constant 0 : i32
      %21 = arith.addi %19, %c0_i32_42 : i32
      %22 = arith.index_cast %21 : i32 to index
      %c0_43 = arith.constant 0 : index
      %c0_44 = arith.constant 0 : index
      %23 = vector.load %arg17[%22, %c0_43, %c0_44] : memref<26x32x64xf32, #tpu.memory_space<vmem>>, vector<6x24x64xf32>
      %24 = vector.shape_cast %23 : vector<6x24x64xf32> to vector<144x64xf32>
      %c0_45 = arith.constant 0 : index
      %c0_46 = arith.constant 0 : index
      %c0_47 = arith.constant 0 : index
      %c0_48 = arith.constant 0 : index
      %25 = vector.load %arg4[%c0_45, %c0_46, %c0_47, %c0_48] : memref<3x3x64x96xf32, #tpu.memory_space<vmem>>, vector<1x1x64x96xf32>
      %26 = vector.shape_cast %25 : vector<1x1x64x96xf32> to vector<64x96xf32>
      %cst_49 = arith.constant dense<0.000000e+00> : vector<144x96xf32>
      %27 = tpu.matmul %24, %26, %cst_49 {dimension_numbers = #tpu.dot_dimension_numbers<[1], [0], [0], [1], [0, 0, 1, 1], [], []>} : vector<144x64xf32>, vector<64x96xf32>, vector<144x96xf32> -> vector<144x96xf32>
      %28 = arith.addf %20, %27 : vector<144x96xf32>
      %c0_i32_50 = arith.constant 0 : i32
      %29 = arith.addi %19, %c0_i32_50 : i32
      %30 = arith.index_cast %29 : i32 to index
      %c1 = arith.constant 1 : index
      %c0_51 = arith.constant 0 : index
      %31 = vector.load %arg17[%30, %c1, %c0_51] : memref<26x32x64xf32, #tpu.memory_space<vmem>>, vector<6x24x64xf32>
      %32 = vector.shape_cast %31 : vector<6x24x64xf32> to vector<144x64xf32>
      %c0_52 = arith.constant 0 : index
      %c1_53 = arith.constant 1 : index
      %c0_54 = arith.constant 0 : index
      %c0_55 = arith.constant 0 : index
      %33 = vector.load %arg4[%c0_52, %c1_53, %c0_54, %c0_55] : memref<3x3x64x96xf32, #tpu.memory_space<vmem>>, vector<1x1x64x96xf32>
      %34 = vector.shape_cast %33 : vector<1x1x64x96xf32> to vector<64x96xf32>
      %cst_56 = arith.constant dense<0.000000e+00> : vector<144x96xf32>
      %35 = tpu.matmul %32, %34, %cst_56 {dimension_numbers = #tpu.dot_dimension_numbers<[1], [0], [0], [1], [0, 0, 1, 1], [], []>} : vector<144x64xf32>, vector<64x96xf32>, vector<144x96xf32> -> vector<144x96xf32>
      %36 = arith.addf %28, %35 : vector<144x96xf32>
      %c0_i32_57 = arith.constant 0 : i32
      %37 = arith.addi %19, %c0_i32_57 : i32
      %38 = arith.index_cast %37 : i32 to index
      %c2 = arith.constant 2 : index
      %c0_58 = arith.constant 0 : index
      %39 = vector.load %arg17[%38, %c2, %c0_58] : memref<26x32x64xf32, #tpu.memory_space<vmem>>, vector<6x24x64xf32>
      %40 = vector.shape_cast %39 : vector<6x24x64xf32> to vector<144x64xf32>
      %c0_59 = arith.constant 0 : index
      %c2_60 = arith.constant 2 : index
      %c0_61 = arith.constant 0 : index
      %c0_62 = arith.constant 0 : index
      %41 = vector.load %arg4[%c0_59, %c2_60, %c0_61, %c0_62] : memref<3x3x64x96xf32, #tpu.memory_space<vmem>>, vector<1x1x64x96xf32>
      %42 = vector.shape_cast %41 : vector<1x1x64x96xf32> to vector<64x96xf32>
      %cst_63 = arith.constant dense<0.000000e+00> : vector<144x96xf32>
      %43 = tpu.matmul %40, %42, %cst_63 {dimension_numbers = #tpu.dot_dimension_numbers<[1], [0], [0], [1], [0, 0, 1, 1], [], []>} : vector<144x64xf32>, vector<64x96xf32>, vector<144x96xf32> -> vector<144x96xf32>
      %44 = arith.addf %36, %43 : vector<144x96xf32>
      %c1_i32_64 = arith.constant 1 : i32
      %45 = arith.addi %19, %c1_i32_64 : i32
      %46 = arith.index_cast %45 : i32 to index
      %c0_65 = arith.constant 0 : index
      %c0_66 = arith.constant 0 : index
      %47 = vector.load %arg17[%46, %c0_65, %c0_66] : memref<26x32x64xf32, #tpu.memory_space<vmem>>, vector<6x24x64xf32>
      %48 = vector.shape_cast %47 : vector<6x24x64xf32> to vector<144x64xf32>
      %c1_67 = arith.constant 1 : index
      %c0_68 = arith.constant 0 : index
      %c0_69 = arith.constant 0 : index
      %c0_70 = arith.constant 0 : index
      %49 = vector.load %arg4[%c1_67, %c0_68, %c0_69, %c0_70] : memref<3x3x64x96xf32, #tpu.memory_space<vmem>>, vector<1x1x64x96xf32>
      %50 = vector.shape_cast %49 : vector<1x1x64x96xf32> to vector<64x96xf32>
      %cst_71 = arith.constant dense<0.000000e+00> : vector<144x96xf32>
      %51 = tpu.matmul %48, %50, %cst_71 {dimension_numbers = #tpu.dot_dimension_numbers<[1], [0], [0], [1], [0, 0, 1, 1], [], []>} : vector<144x64xf32>, vector<64x96xf32>, vector<144x96xf32> -> vector<144x96xf32>
      %52 = arith.addf %44, %51 : vector<144x96xf32>
      %c1_i32_72 = arith.constant 1 : i32
      %53 = arith.addi %19, %c1_i32_72 : i32
      %54 = arith.index_cast %53 : i32 to index
      %c1_73 = arith.constant 1 : index
      %c0_74 = arith.constant 0 : index
      %55 = vector.load %arg17[%54, %c1_73, %c0_74] : memref<26x32x64xf32, #tpu.memory_space<vmem>>, vector<6x24x64xf32>
      %56 = vector.shape_cast %55 : vector<6x24x64xf32> to vector<144x64xf32>
      %c1_75 = arith.constant 1 : index
      %c1_76 = arith.constant 1 : index
      %c0_77 = arith.constant 0 : index
      %c0_78 = arith.constant 0 : index
      %57 = vector.load %arg4[%c1_75, %c1_76, %c0_77, %c0_78] : memref<3x3x64x96xf32, #tpu.memory_space<vmem>>, vector<1x1x64x96xf32>
      %58 = vector.shape_cast %57 : vector<1x1x64x96xf32> to vector<64x96xf32>
      %cst_79 = arith.constant dense<0.000000e+00> : vector<144x96xf32>
      %59 = tpu.matmul %56, %58, %cst_79 {dimension_numbers = #tpu.dot_dimension_numbers<[1], [0], [0], [1], [0, 0, 1, 1], [], []>} : vector<144x64xf32>, vector<64x96xf32>, vector<144x96xf32> -> vector<144x96xf32>
      %60 = arith.addf %52, %59 : vector<144x96xf32>
      %c1_i32_80 = arith.constant 1 : i32
      %61 = arith.addi %19, %c1_i32_80 : i32
      %62 = arith.index_cast %61 : i32 to index
      %c2_81 = arith.constant 2 : index
      %c0_82 = arith.constant 0 : index
      %63 = vector.load %arg17[%62, %c2_81, %c0_82] : memref<26x32x64xf32, #tpu.memory_space<vmem>>, vector<6x24x64xf32>
      %64 = vector.shape_cast %63 : vector<6x24x64xf32> to vector<144x64xf32>
      %c1_83 = arith.constant 1 : index
      %c2_84 = arith.constant 2 : index
      %c0_85 = arith.constant 0 : index
      %c0_86 = arith.constant 0 : index
      %65 = vector.load %arg4[%c1_83, %c2_84, %c0_85, %c0_86] : memref<3x3x64x96xf32, #tpu.memory_space<vmem>>, vector<1x1x64x96xf32>
      %66 = vector.shape_cast %65 : vector<1x1x64x96xf32> to vector<64x96xf32>
      %cst_87 = arith.constant dense<0.000000e+00> : vector<144x96xf32>
      %67 = tpu.matmul %64, %66, %cst_87 {dimension_numbers = #tpu.dot_dimension_numbers<[1], [0], [0], [1], [0, 0, 1, 1], [], []>} : vector<144x64xf32>, vector<64x96xf32>, vector<144x96xf32> -> vector<144x96xf32>
      %68 = arith.addf %60, %67 : vector<144x96xf32>
      %c2_i32 = arith.constant 2 : i32
      %69 = arith.addi %19, %c2_i32 : i32
      %70 = arith.index_cast %69 : i32 to index
      %c0_88 = arith.constant 0 : index
      %c0_89 = arith.constant 0 : index
      %71 = vector.load %arg17[%70, %c0_88, %c0_89] : memref<26x32x64xf32, #tpu.memory_space<vmem>>, vector<6x24x64xf32>
      %72 = vector.shape_cast %71 : vector<6x24x64xf32> to vector<144x64xf32>
      %c2_90 = arith.constant 2 : index
      %c0_91 = arith.constant 0 : index
      %c0_92 = arith.constant 0 : index
      %c0_93 = arith.constant 0 : index
      %73 = vector.load %arg4[%c2_90, %c0_91, %c0_92, %c0_93] : memref<3x3x64x96xf32, #tpu.memory_space<vmem>>, vector<1x1x64x96xf32>
      %74 = vector.shape_cast %73 : vector<1x1x64x96xf32> to vector<64x96xf32>
      %cst_94 = arith.constant dense<0.000000e+00> : vector<144x96xf32>
      %75 = tpu.matmul %72, %74, %cst_94 {dimension_numbers = #tpu.dot_dimension_numbers<[1], [0], [0], [1], [0, 0, 1, 1], [], []>} : vector<144x64xf32>, vector<64x96xf32>, vector<144x96xf32> -> vector<144x96xf32>
      %76 = arith.addf %68, %75 : vector<144x96xf32>
      %c2_i32_95 = arith.constant 2 : i32
      %77 = arith.addi %19, %c2_i32_95 : i32
      %78 = arith.index_cast %77 : i32 to index
      %c1_96 = arith.constant 1 : index
      %c0_97 = arith.constant 0 : index
      %79 = vector.load %arg17[%78, %c1_96, %c0_97] : memref<26x32x64xf32, #tpu.memory_space<vmem>>, vector<6x24x64xf32>
      %80 = vector.shape_cast %79 : vector<6x24x64xf32> to vector<144x64xf32>
      %c2_98 = arith.constant 2 : index
      %c1_99 = arith.constant 1 : index
      %c0_100 = arith.constant 0 : index
      %c0_101 = arith.constant 0 : index
      %81 = vector.load %arg4[%c2_98, %c1_99, %c0_100, %c0_101] : memref<3x3x64x96xf32, #tpu.memory_space<vmem>>, vector<1x1x64x96xf32>
      %82 = vector.shape_cast %81 : vector<1x1x64x96xf32> to vector<64x96xf32>
      %cst_102 = arith.constant dense<0.000000e+00> : vector<144x96xf32>
      %83 = tpu.matmul %80, %82, %cst_102 {dimension_numbers = #tpu.dot_dimension_numbers<[1], [0], [0], [1], [0, 0, 1, 1], [], []>} : vector<144x64xf32>, vector<64x96xf32>, vector<144x96xf32> -> vector<144x96xf32>
      %84 = arith.addf %76, %83 : vector<144x96xf32>
      %c2_i32_103 = arith.constant 2 : i32
      %85 = arith.addi %19, %c2_i32_103 : i32
      %86 = arith.index_cast %85 : i32 to index
      %c2_104 = arith.constant 2 : index
      %c0_105 = arith.constant 0 : index
      %87 = vector.load %arg17[%86, %c2_104, %c0_105] : memref<26x32x64xf32, #tpu.memory_space<vmem>>, vector<6x24x64xf32>
      %88 = vector.shape_cast %87 : vector<6x24x64xf32> to vector<144x64xf32>
      %c2_106 = arith.constant 2 : index
      %c2_107 = arith.constant 2 : index
      %c0_108 = arith.constant 0 : index
      %c0_109 = arith.constant 0 : index
      %89 = vector.load %arg4[%c2_106, %c2_107, %c0_108, %c0_109] : memref<3x3x64x96xf32, #tpu.memory_space<vmem>>, vector<1x1x64x96xf32>
      %90 = vector.shape_cast %89 : vector<1x1x64x96xf32> to vector<64x96xf32>
      %cst_110 = arith.constant dense<0.000000e+00> : vector<144x96xf32>
      %91 = tpu.matmul %88, %90, %cst_110 {dimension_numbers = #tpu.dot_dimension_numbers<[1], [0], [0], [1], [0, 0, 1, 1], [], []>} : vector<144x64xf32>, vector<64x96xf32>, vector<144x96xf32> -> vector<144x96xf32>
      %92 = arith.addf %84, %91 : vector<144x96xf32>
      %c0_111 = arith.constant 0 : index
      %c0_112 = arith.constant 0 : index
      %93 = vector.load %arg5[%c0_111, %c0_112] : memref<1x96xf32, #tpu.memory_space<vmem>>, vector<1x96xf32>
      %94 = vector.broadcast %93 : vector<1x96xf32> to vector<144x96xf32>
      %95 = arith.addf %92, %94 : vector<144x96xf32>
      %cst_113 = arith.constant 0.000000e+00 : f32
      %96 = vector.broadcast %cst_113 : f32 to vector<144x96xf32>
      %97 = arith.maximumf %95, %96 : vector<144x96xf32>
      %98 = vector.shape_cast %97 : vector<144x96xf32> to vector<6x24x96xf32>
      %99 = arith.index_cast %19 : i32 to index
      %c0_114 = arith.constant 0 : index
      %c0_115 = arith.constant 0 : index
      %100 = vector.load %arg19[%99, %c0_114, %c0_115] : memref<26x32x96xf32, #tpu.memory_space<vmem>>, vector<6x24x96xf32>
      tpu.vector_store %arg19[%99, %c0_114, %c0_115], %98 {strides = array<i32>} : memref<26x32x96xf32, #tpu.memory_space<vmem>>, vector<6x24x96xf32>,
    }
    %c3_i32_5 = arith.constant 3 : i32
    %c3 = arith.constant 3 : index
    %c3_6 = arith.constant 3 : index
    %c0_7 = arith.constant 0 : index
    %3 = vector.load %arg19[%c3, %c3_6, %c0_7] : memref<26x32x96xf32, #tpu.memory_space<vmem>>, vector<9x9x96xf32>
    %c0_8 = arith.constant 0 : index
    %c0_9 = arith.constant 0 : index
    %c0_10 = arith.constant 0 : index
    %c0_11 = arith.constant 0 : index
    %4 = vector.load %arg15[%c0_8, %c0_9, %c0_10, %c0_11] : memref<1x9x9x96xf32, #tpu.memory_space<vmem>>, vector<1x9x9x96xf32>
    %5 = vector.shape_cast %4 : vector<1x9x9x96xf32> to vector<9x9x96xf32>
    %6 = vector.shape_cast %3 : vector<9x9x96xf32> to vector<1x9x9x96xf32>
    tpu.vector_store %arg15[%c0_8, %c0_9, %c0_10, %c0_11], %6 {strides = array<i32>} : memref<1x9x9x96xf32, #tpu.memory_space<vmem>>, vector<1x9x9x96xf32>,
    %c0_i32_12 = arith.constant 0 : i32
    %c3_i32_13 = arith.constant 3 : i32
    %7 = arith.addi %c0_i32_12, %c3_i32_13 : i32
    %c1_i32_14 = arith.constant 1 : i32
    scf.for %arg20 = %c0_i32_12 to %7 step %c1_i32_14  : i32 {
      %c6_i32 = arith.constant 6 : i32
      %19 = arith.muli %arg20, %c6_i32 : i32
      %cst_41 = arith.constant 0.000000e+00 : f32
      %20 = vector.broadcast %cst_41 : f32 to vector<144x64xf32>
      %c0_i32_42 = arith.constant 0 : i32
      %21 = arith.addi %19, %c0_i32_42 : i32
      %c0_43 = arith.constant 0 : index
      %22 = arith.index_cast %21 : i32 to index
      %c0_44 = arith.constant 0 : index
      %c0_45 = arith.constant 0 : index
      %23 = vector.load %arg1[%c0_43, %22, %c0_44, %c0_45] : memref<1x26x32x160xf32, #tpu.memory_space<vmem>>, vector<1x6x24x160xf32>
      %24 = vector.shape_cast %23 : vector<1x6x24x160xf32> to vector<6x24x160xf32>
      %25 = vector.shape_cast %24 : vector<6x24x160xf32> to vector<144x160xf32>
      %c0_46 = arith.constant 0 : index
      %c0_47 = arith.constant 0 : index
      %26 = vector.load %arg6[%c0_46, %c0_47] : memref<160x64xf32, #tpu.memory_space<vmem>>, vector<160x64xf32>
      %cst_48 = arith.constant dense<0.000000e+00> : vector<144x64xf32>
      %27 = tpu.matmul %25, %26, %cst_48 {dimension_numbers = #tpu.dot_dimension_numbers<[1], [0], [0], [1], [0, 0, 1, 1], [], []>} : vector<144x160xf32>, vector<160x64xf32>, vector<144x64xf32> -> vector<144x64xf32>
      %28 = arith.addf %20, %27 : vector<144x64xf32>
      %c0_49 = arith.constant 0 : index
      %c0_50 = arith.constant 0 : index
      %29 = vector.load %arg7[%c0_49, %c0_50] : memref<1x64xf32, #tpu.memory_space<vmem>>, vector<1x64xf32>
      %30 = vector.broadcast %29 : vector<1x64xf32> to vector<144x64xf32>
      %31 = arith.addf %28, %30 : vector<144x64xf32>
      %cst_51 = arith.constant 0.000000e+00 : f32
      %32 = vector.broadcast %cst_51 : f32 to vector<144x64xf32>
      %33 = arith.maximumf %31, %32 : vector<144x64xf32>
      %34 = vector.broadcast %0 : vector<144x1xf32> to vector<144x64xf32>
      %35 = arith.mulf %33, %34 : vector<144x64xf32>
      %36 = vector.shape_cast %35 : vector<144x64xf32> to vector<6x24x64xf32>
      %37 = arith.index_cast %19 : i32 to index
      %c0_52 = arith.constant 0 : index
      %c0_53 = arith.constant 0 : index
      %38 = vector.load %arg17[%37, %c0_52, %c0_53] : memref<26x32x64xf32, #tpu.memory_space<vmem>>, vector<6x24x64xf32>
      tpu.vector_store %arg17[%37, %c0_52, %c0_53], %36 {strides = array<i32>} : memref<26x32x64xf32, #tpu.memory_space<vmem>>, vector<6x24x64xf32>,
    }
    %c3_i32_15 = arith.constant 3 : i32
    %c0_i32_16 = arith.constant 0 : i32
    %c3_i32_17 = arith.constant 3 : i32
    %8 = arith.addi %c0_i32_16, %c3_i32_17 : i32
    %c1_i32_18 = arith.constant 1 : i32
    scf.for %arg20 = %c0_i32_16 to %8 step %c1_i32_18  : i32 {
      %c6_i32 = arith.constant 6 : i32
      %19 = arith.muli %arg20, %c6_i32 : i32
      %cst_41 = arith.constant 0.000000e+00 : f32
      %20 = vector.broadcast %cst_41 : f32 to vector<144x64xf32>
      %c0_i32_42 = arith.constant 0 : i32
      %21 = arith.addi %19, %c0_i32_42 : i32
      %22 = arith.index_cast %21 : i32 to index
      %c0_43 = arith.constant 0 : index
      %c0_44 = arith.constant 0 : index
      %23 = vector.load %arg17[%22, %c0_43, %c0_44] : memref<26x32x64xf32, #tpu.memory_space<vmem>>, vector<6x24x64xf32>
      %24 = vector.shape_cast %23 : vector<6x24x64xf32> to vector<144x64xf32>
      %c0_45 = arith.constant 0 : index
      %c0_46 = arith.constant 0 : index
      %c0_47 = arith.constant 0 : index
      %25 = vector.load %arg8[%c0_45, %c0_46, %c0_47] : memref<7x64x64xf32, #tpu.memory_space<vmem>>, vector<1x64x64xf32>
      %26 = vector.shape_cast %25 : vector<1x64x64xf32> to vector<64x64xf32>
      %cst_48 = arith.constant dense<0.000000e+00> : vector<144x64xf32>
      %27 = tpu.matmul %24, %26, %cst_48 {dimension_numbers = #tpu.dot_dimension_numbers<[1], [0], [0], [1], [0, 0, 1, 1], [], []>} : vector<144x64xf32>, vector<64x64xf32>, vector<144x64xf32> -> vector<144x64xf32>
      %28 = arith.addf %20, %27 : vector<144x64xf32>
      %c0_i32_49 = arith.constant 0 : i32
      %29 = arith.addi %19, %c0_i32_49 : i32
      %30 = arith.index_cast %29 : i32 to index
      %c1 = arith.constant 1 : index
      %c0_50 = arith.constant 0 : index
      %31 = vector.load %arg17[%30, %c1, %c0_50] : memref<26x32x64xf32, #tpu.memory_space<vmem>>, vector<6x24x64xf32>
      %32 = vector.shape_cast %31 : vector<6x24x64xf32> to vector<144x64xf32>
      %c1_51 = arith.constant 1 : index
      %c0_52 = arith.constant 0 : index
      %c0_53 = arith.constant 0 : index
      %33 = vector.load %arg8[%c1_51, %c0_52, %c0_53] : memref<7x64x64xf32, #tpu.memory_space<vmem>>, vector<1x64x64xf32>
      %34 = vector.shape_cast %33 : vector<1x64x64xf32> to vector<64x64xf32>
      %cst_54 = arith.constant dense<0.000000e+00> : vector<144x64xf32>
      %35 = tpu.matmul %32, %34, %cst_54 {dimension_numbers = #tpu.dot_dimension_numbers<[1], [0], [0], [1], [0, 0, 1, 1], [], []>} : vector<144x64xf32>, vector<64x64xf32>, vector<144x64xf32> -> vector<144x64xf32>
      %36 = arith.addf %28, %35 : vector<144x64xf32>
      %c0_i32_55 = arith.constant 0 : i32
      %37 = arith.addi %19, %c0_i32_55 : i32
      %38 = arith.index_cast %37 : i32 to index
      %c2 = arith.constant 2 : index
      %c0_56 = arith.constant 0 : index
      %39 = vector.load %arg17[%38, %c2, %c0_56] : memref<26x32x64xf32, #tpu.memory_space<vmem>>, vector<6x24x64xf32>
      %40 = vector.shape_cast %39 : vector<6x24x64xf32> to vector<144x64xf32>
      %c2_57 = arith.constant 2 : index
      %c0_58 = arith.constant 0 : index
      %c0_59 = arith.constant 0 : index
      %41 = vector.load %arg8[%c2_57, %c0_58, %c0_59] : memref<7x64x64xf32, #tpu.memory_space<vmem>>, vector<1x64x64xf32>
      %42 = vector.shape_cast %41 : vector<1x64x64xf32> to vector<64x64xf32>
      %cst_60 = arith.constant dense<0.000000e+00> : vector<144x64xf32>
      %43 = tpu.matmul %40, %42, %cst_60 {dimension_numbers = #tpu.dot_dimension_numbers<[1], [0], [0], [1], [0, 0, 1, 1], [], []>} : vector<144x64xf32>, vector<64x64xf32>, vector<144x64xf32> -> vector<144x64xf32>
      %44 = arith.addf %36, %43 : vector<144x64xf32>
      %c0_i32_61 = arith.constant 0 : i32
      %45 = arith.addi %19, %c0_i32_61 : i32
      %46 = arith.index_cast %45 : i32 to index
      %c3_62 = arith.constant 3 : index
      %c0_63 = arith.constant 0 : index
      %47 = vector.load %arg17[%46, %c3_62, %c0_63] : memref<26x32x64xf32, #tpu.memory_space<vmem>>, vector<6x24x64xf32>
      %48 = vector.shape_cast %47 : vector<6x24x64xf32> to vector<144x64xf32>
      %c3_64 = arith.constant 3 : index
      %c0_65 = arith.constant 0 : index
      %c0_66 = arith.constant 0 : index
      %49 = vector.load %arg8[%c3_64, %c0_65, %c0_66] : memref<7x64x64xf32, #tpu.memory_space<vmem>>, vector<1x64x64xf32>
      %50 = vector.shape_cast %49 : vector<1x64x64xf32> to vector<64x64xf32>
      %cst_67 = arith.constant dense<0.000000e+00> : vector<144x64xf32>
      %51 = tpu.matmul %48, %50, %cst_67 {dimension_numbers = #tpu.dot_dimension_numbers<[1], [0], [0], [1], [0, 0, 1, 1], [], []>} : vector<144x64xf32>, vector<64x64xf32>, vector<144x64xf32> -> vector<144x64xf32>
      %52 = arith.addf %44, %51 : vector<144x64xf32>
      %c0_i32_68 = arith.constant 0 : i32
      %53 = arith.addi %19, %c0_i32_68 : i32
      %54 = arith.index_cast %53 : i32 to index
      %c4 = arith.constant 4 : index
      %c0_69 = arith.constant 0 : index
      %55 = vector.load %arg17[%54, %c4, %c0_69] : memref<26x32x64xf32, #tpu.memory_space<vmem>>, vector<6x24x64xf32>
      %56 = vector.shape_cast %55 : vector<6x24x64xf32> to vector<144x64xf32>
      %c4_70 = arith.constant 4 : index
      %c0_71 = arith.constant 0 : index
      %c0_72 = arith.constant 0 : index
      %57 = vector.load %arg8[%c4_70, %c0_71, %c0_72] : memref<7x64x64xf32, #tpu.memory_space<vmem>>, vector<1x64x64xf32>
      %58 = vector.shape_cast %57 : vector<1x64x64xf32> to vector<64x64xf32>
      %cst_73 = arith.constant dense<0.000000e+00> : vector<144x64xf32>
      %59 = tpu.matmul %56, %58, %cst_73 {dimension_numbers = #tpu.dot_dimension_numbers<[1], [0], [0], [1], [0, 0, 1, 1], [], []>} : vector<144x64xf32>, vector<64x64xf32>, vector<144x64xf32> -> vector<144x64xf32>
      %60 = arith.addf %52, %59 : vector<144x64xf32>
      %c0_i32_74 = arith.constant 0 : i32
      %61 = arith.addi %19, %c0_i32_74 : i32
      %62 = arith.index_cast %61 : i32 to index
      %c5 = arith.constant 5 : index
      %c0_75 = arith.constant 0 : index
      %63 = vector.load %arg17[%62, %c5, %c0_75] : memref<26x32x64xf32, #tpu.memory_space<vmem>>, vector<6x24x64xf32>
      %64 = vector.shape_cast %63 : vector<6x24x64xf32> to vector<144x64xf32>
      %c5_76 = arith.constant 5 : index
      %c0_77 = arith.constant 0 : index
      %c0_78 = arith.constant 0 : index
      %65 = vector.load %arg8[%c5_76, %c0_77, %c0_78] : memref<7x64x64xf32, #tpu.memory_space<vmem>>, vector<1x64x64xf32>
      %66 = vector.shape_cast %65 : vector<1x64x64xf32> to vector<64x64xf32>
      %cst_79 = arith.constant dense<0.000000e+00> : vector<144x64xf32>
      %67 = tpu.matmul %64, %66, %cst_79 {dimension_numbers = #tpu.dot_dimension_numbers<[1], [0], [0], [1], [0, 0, 1, 1], [], []>} : vector<144x64xf32>, vector<64x64xf32>, vector<144x64xf32> -> vector<144x64xf32>
      %68 = arith.addf %60, %67 : vector<144x64xf32>
      %c0_i32_80 = arith.constant 0 : i32
      %69 = arith.addi %19, %c0_i32_80 : i32
      %70 = arith.index_cast %69 : i32 to index
      %c6 = arith.constant 6 : index
      %c0_81 = arith.constant 0 : index
      %71 = vector.load %arg17[%70, %c6, %c0_81] : memref<26x32x64xf32, #tpu.memory_space<vmem>>, vector<6x24x64xf32>
      %72 = vector.shape_cast %71 : vector<6x24x64xf32> to vector<144x64xf32>
      %c6_82 = arith.constant 6 : index
      %c0_83 = arith.constant 0 : index
      %c0_84 = arith.constant 0 : index
      %73 = vector.load %arg8[%c6_82, %c0_83, %c0_84] : memref<7x64x64xf32, #tpu.memory_space<vmem>>, vector<1x64x64xf32>
      %74 = vector.shape_cast %73 : vector<1x64x64xf32> to vector<64x64xf32>
      %cst_85 = arith.constant dense<0.000000e+00> : vector<144x64xf32>
      %75 = tpu.matmul %72, %74, %cst_85 {dimension_numbers = #tpu.dot_dimension_numbers<[1], [0], [0], [1], [0, 0, 1, 1], [], []>} : vector<144x64xf32>, vector<64x64xf32>, vector<144x64xf32> -> vector<144x64xf32>
      %76 = arith.addf %68, %75 : vector<144x64xf32>
      %c0_86 = arith.constant 0 : index
      %c0_87 = arith.constant 0 : index
      %77 = vector.load %arg9[%c0_86, %c0_87] : memref<1x64xf32, #tpu.memory_space<vmem>>, vector<1x64xf32>
      %78 = vector.broadcast %77 : vector<1x64xf32> to vector<144x64xf32>
      %79 = arith.addf %76, %78 : vector<144x64xf32>
      %cst_88 = arith.constant 0.000000e+00 : f32
      %80 = vector.broadcast %cst_88 : f32 to vector<144x64xf32>
      %81 = arith.maximumf %79, %80 : vector<144x64xf32>
      %82 = vector.shape_cast %81 : vector<144x64xf32> to vector<6x24x64xf32>
      %83 = arith.index_cast %19 : i32 to index
      %c0_89 = arith.constant 0 : index
      %c0_90 = arith.constant 0 : index
      %84 = vector.load %arg18[%83, %c0_89, %c0_90] : memref<26x32x64xf32, #tpu.memory_space<vmem>>, vector<6x24x64xf32>
      tpu.vector_store %arg18[%83, %c0_89, %c0_90], %82 {strides = array<i32>} : memref<26x32x64xf32, #tpu.memory_space<vmem>>, vector<6x24x64xf32>,
    }
    %c3_i32_19 = arith.constant 3 : i32
    %cst = arith.constant 0.000000e+00 : f32
    %9 = vector.broadcast %cst : f32 to vector<3x32x64xf32>
    %c0_20 = arith.constant 0 : index
    %c0_21 = arith.constant 0 : index
    %c0_22 = arith.constant 0 : index
    %10 = vector.load %arg18[%c0_20, %c0_21, %c0_22] : memref<26x32x64xf32, #tpu.memory_space<vmem>>, vector<3x32x64xf32>
    tpu.vector_store %arg18[%c0_20, %c0_21, %c0_22], %9 {strides = array<i32>} : memref<26x32x64xf32, #tpu.memory_space<vmem>>, vector<3x32x64xf32>,
    %cst_23 = arith.constant 0.000000e+00 : f32
    %11 = vector.broadcast %cst_23 : f32 to vector<3x32x64xf32>
    %c14 = arith.constant 14 : index
    %c0_24 = arith.constant 0 : index
    %c0_25 = arith.constant 0 : index
    %12 = vector.load %arg18[%c14, %c0_24, %c0_25] : memref<26x32x64xf32, #tpu.memory_space<vmem>>, vector<3x32x64xf32>
    tpu.vector_store %arg18[%c14, %c0_24, %c0_25], %11 {strides = array<i32>} : memref<26x32x64xf32, #tpu.memory_space<vmem>>, vector<3x32x64xf32>,
    %c0_i32_26 = arith.constant 0 : i32
    %c3_i32_27 = arith.constant 3 : i32
    %13 = arith.addi %c0_i32_26, %c3_i32_27 : i32
    %c1_i32_28 = arith.constant 1 : i32
    scf.for %arg20 = %c0_i32_26 to %13 step %c1_i32_28  : i32 {
      %c6_i32 = arith.constant 6 : i32
      %19 = arith.muli %arg20, %c6_i32 : i32
      %cst_41 = arith.constant 0.000000e+00 : f32
      %20 = vector.broadcast %cst_41 : f32 to vector<144x64xf32>
      %c0_i32_42 = arith.constant 0 : i32
      %21 = arith.addi %19, %c0_i32_42 : i32
      %22 = arith.index_cast %21 : i32 to index
      %c0_43 = arith.constant 0 : index
      %c0_44 = arith.constant 0 : index
      %23 = vector.load %arg18[%22, %c0_43, %c0_44] : memref<26x32x64xf32, #tpu.memory_space<vmem>>, vector<6x24x64xf32>
      %24 = vector.shape_cast %23 : vector<6x24x64xf32> to vector<144x64xf32>
      %c0_45 = arith.constant 0 : index
      %c0_46 = arith.constant 0 : index
      %c0_47 = arith.constant 0 : index
      %25 = vector.load %arg10[%c0_45, %c0_46, %c0_47] : memref<7x64x64xf32, #tpu.memory_space<vmem>>, vector<1x64x64xf32>
      %26 = vector.shape_cast %25 : vector<1x64x64xf32> to vector<64x64xf32>
      %cst_48 = arith.constant dense<0.000000e+00> : vector<144x64xf32>
      %27 = tpu.matmul %24, %26, %cst_48 {dimension_numbers = #tpu.dot_dimension_numbers<[1], [0], [0], [1], [0, 0, 1, 1], [], []>} : vector<144x64xf32>, vector<64x64xf32>, vector<144x64xf32> -> vector<144x64xf32>
      %28 = arith.addf %20, %27 : vector<144x64xf32>
      %c1_i32_49 = arith.constant 1 : i32
      %29 = arith.addi %19, %c1_i32_49 : i32
      %30 = arith.index_cast %29 : i32 to index
      %c0_50 = arith.constant 0 : index
      %c0_51 = arith.constant 0 : index
      %31 = vector.load %arg18[%30, %c0_50, %c0_51] : memref<26x32x64xf32, #tpu.memory_space<vmem>>, vector<6x24x64xf32>
      %32 = vector.shape_cast %31 : vector<6x24x64xf32> to vector<144x64xf32>
      %c1 = arith.constant 1 : index
      %c0_52 = arith.constant 0 : index
      %c0_53 = arith.constant 0 : index
      %33 = vector.load %arg10[%c1, %c0_52, %c0_53] : memref<7x64x64xf32, #tpu.memory_space<vmem>>, vector<1x64x64xf32>
      %34 = vector.shape_cast %33 : vector<1x64x64xf32> to vector<64x64xf32>
      %cst_54 = arith.constant dense<0.000000e+00> : vector<144x64xf32>
      %35 = tpu.matmul %32, %34, %cst_54 {dimension_numbers = #tpu.dot_dimension_numbers<[1], [0], [0], [1], [0, 0, 1, 1], [], []>} : vector<144x64xf32>, vector<64x64xf32>, vector<144x64xf32> -> vector<144x64xf32>
      %36 = arith.addf %28, %35 : vector<144x64xf32>
      %c2_i32 = arith.constant 2 : i32
      %37 = arith.addi %19, %c2_i32 : i32
      %38 = arith.index_cast %37 : i32 to index
      %c0_55 = arith.constant 0 : index
      %c0_56 = arith.constant 0 : index
      %39 = vector.load %arg18[%38, %c0_55, %c0_56] : memref<26x32x64xf32, #tpu.memory_space<vmem>>, vector<6x24x64xf32>
      %40 = vector.shape_cast %39 : vector<6x24x64xf32> to vector<144x64xf32>
      %c2 = arith.constant 2 : index
      %c0_57 = arith.constant 0 : index
      %c0_58 = arith.constant 0 : index
      %41 = vector.load %arg10[%c2, %c0_57, %c0_58] : memref<7x64x64xf32, #tpu.memory_space<vmem>>, vector<1x64x64xf32>
      %42 = vector.shape_cast %41 : vector<1x64x64xf32> to vector<64x64xf32>
      %cst_59 = arith.constant dense<0.000000e+00> : vector<144x64xf32>
      %43 = tpu.matmul %40, %42, %cst_59 {dimension_numbers = #tpu.dot_dimension_numbers<[1], [0], [0], [1], [0, 0, 1, 1], [], []>} : vector<144x64xf32>, vector<64x64xf32>, vector<144x64xf32> -> vector<144x64xf32>
      %44 = arith.addf %36, %43 : vector<144x64xf32>
      %c3_i32_60 = arith.constant 3 : i32
      %45 = arith.addi %19, %c3_i32_60 : i32
      %46 = arith.index_cast %45 : i32 to index
      %c0_61 = arith.constant 0 : index
      %c0_62 = arith.constant 0 : index
      %47 = vector.load %arg18[%46, %c0_61, %c0_62] : memref<26x32x64xf32, #tpu.memory_space<vmem>>, vector<6x24x64xf32>
      %48 = vector.shape_cast %47 : vector<6x24x64xf32> to vector<144x64xf32>
      %c3_63 = arith.constant 3 : index
      %c0_64 = arith.constant 0 : index
      %c0_65 = arith.constant 0 : index
      %49 = vector.load %arg10[%c3_63, %c0_64, %c0_65] : memref<7x64x64xf32, #tpu.memory_space<vmem>>, vector<1x64x64xf32>
      %50 = vector.shape_cast %49 : vector<1x64x64xf32> to vector<64x64xf32>
      %cst_66 = arith.constant dense<0.000000e+00> : vector<144x64xf32>
      %51 = tpu.matmul %48, %50, %cst_66 {dimension_numbers = #tpu.dot_dimension_numbers<[1], [0], [0], [1], [0, 0, 1, 1], [], []>} : vector<144x64xf32>, vector<64x64xf32>, vector<144x64xf32> -> vector<144x64xf32>
      %52 = arith.addf %44, %51 : vector<144x64xf32>
      %c4_i32 = arith.constant 4 : i32
      %53 = arith.addi %19, %c4_i32 : i32
      %54 = arith.index_cast %53 : i32 to index
      %c0_67 = arith.constant 0 : index
      %c0_68 = arith.constant 0 : index
      %55 = vector.load %arg18[%54, %c0_67, %c0_68] : memref<26x32x64xf32, #tpu.memory_space<vmem>>, vector<6x24x64xf32>
      %56 = vector.shape_cast %55 : vector<6x24x64xf32> to vector<144x64xf32>
      %c4 = arith.constant 4 : index
      %c0_69 = arith.constant 0 : index
      %c0_70 = arith.constant 0 : index
      %57 = vector.load %arg10[%c4, %c0_69, %c0_70] : memref<7x64x64xf32, #tpu.memory_space<vmem>>, vector<1x64x64xf32>
      %58 = vector.shape_cast %57 : vector<1x64x64xf32> to vector<64x64xf32>
      %cst_71 = arith.constant dense<0.000000e+00> : vector<144x64xf32>
      %59 = tpu.matmul %56, %58, %cst_71 {dimension_numbers = #tpu.dot_dimension_numbers<[1], [0], [0], [1], [0, 0, 1, 1], [], []>} : vector<144x64xf32>, vector<64x64xf32>, vector<144x64xf32> -> vector<144x64xf32>
      %60 = arith.addf %52, %59 : vector<144x64xf32>
      %c5_i32 = arith.constant 5 : i32
      %61 = arith.addi %19, %c5_i32 : i32
      %62 = arith.index_cast %61 : i32 to index
      %c0_72 = arith.constant 0 : index
      %c0_73 = arith.constant 0 : index
      %63 = vector.load %arg18[%62, %c0_72, %c0_73] : memref<26x32x64xf32, #tpu.memory_space<vmem>>, vector<6x24x64xf32>
      %64 = vector.shape_cast %63 : vector<6x24x64xf32> to vector<144x64xf32>
      %c5 = arith.constant 5 : index
      %c0_74 = arith.constant 0 : index
      %c0_75 = arith.constant 0 : index
      %65 = vector.load %arg10[%c5, %c0_74, %c0_75] : memref<7x64x64xf32, #tpu.memory_space<vmem>>, vector<1x64x64xf32>
      %66 = vector.shape_cast %65 : vector<1x64x64xf32> to vector<64x64xf32>
      %cst_76 = arith.constant dense<0.000000e+00> : vector<144x64xf32>
      %67 = tpu.matmul %64, %66, %cst_76 {dimension_numbers = #tpu.dot_dimension_numbers<[1], [0], [0], [1], [0, 0, 1, 1], [], []>} : vector<144x64xf32>, vector<64x64xf32>, vector<144x64xf32> -> vector<144x64xf32>
      %68 = arith.addf %60, %67 : vector<144x64xf32>
      %c6_i32_77 = arith.constant 6 : i32
      %69 = arith.addi %19, %c6_i32_77 : i32
      %70 = arith.index_cast %69 : i32 to index
      %c0_78 = arith.constant 0 : index
      %c0_79 = arith.constant 0 : index
      %71 = vector.load %arg18[%70, %c0_78, %c0_79] : memref<26x32x64xf32, #tpu.memory_space<vmem>>, vector<6x24x64xf32>
      %72 = vector.shape_cast %71 : vector<6x24x64xf32> to vector<144x64xf32>
      %c6 = arith.constant 6 : index
      %c0_80 = arith.constant 0 : index
      %c0_81 = arith.constant 0 : index
      %73 = vector.load %arg10[%c6, %c0_80, %c0_81] : memref<7x64x64xf32, #tpu.memory_space<vmem>>, vector<1x64x64xf32>
      %74 = vector.shape_cast %73 : vector<1x64x64xf32> to vector<64x64xf32>
      %cst_82 = arith.constant dense<0.000000e+00> : vector<144x64xf32>
      %75 = tpu.matmul %72, %74, %cst_82 {dimension_numbers = #tpu.dot_dimension_numbers<[1], [0], [0], [1], [0, 0, 1, 1], [], []>} : vector<144x64xf32>, vector<64x64xf32>, vector<144x64xf32> -> vector<144x64xf32>
      %76 = arith.addf %68, %75 : vector<144x64xf32>
      %c0_83 = arith.constant 0 : index
      %c0_84 = arith.constant 0 : index
      %77 = vector.load %arg11[%c0_83, %c0_84] : memref<1x64xf32, #tpu.memory_space<vmem>>, vector<1x64xf32>
      %78 = vector.broadcast %77 : vector<1x64xf32> to vector<144x64xf32>
      %79 = arith.addf %76, %78 : vector<144x64xf32>
      %cst_85 = arith.constant 0.000000e+00 : f32
      %80 = vector.broadcast %cst_85 : f32 to vector<144x64xf32>
      %81 = arith.maximumf %79, %80 : vector<144x64xf32>
      %82 = vector.shape_cast %81 : vector<144x64xf32> to vector<6x24x64xf32>
      %83 = arith.index_cast %19 : i32 to index
      %c0_86 = arith.constant 0 : index
      %c0_87 = arith.constant 0 : index
      %84 = vector.load %arg17[%83, %c0_86, %c0_87] : memref<26x32x64xf32, #tpu.memory_space<vmem>>, vector<6x24x64xf32>
      tpu.vector_store %arg17[%83, %c0_86, %c0_87], %82 {strides = array<i32>} : memref<26x32x64xf32, #tpu.memory_space<vmem>>, vector<6x24x64xf32>,
    }
    %c3_i32_29 = arith.constant 3 : i32
    %c0_i32_30 = arith.constant 0 : i32
    %c3_i32_31 = arith.constant 3 : i32
    %14 = arith.addi %c0_i32_30, %c3_i32_31 : i32
    %c1_i32_32 = arith.constant 1 : i32
    scf.for %arg20 = %c0_i32_30 to %14 step %c1_i32_32  : i32 {
      %c6_i32 = arith.constant 6 : i32
      %19 = arith.muli %arg20, %c6_i32 : i32
      %cst_41 = arith.constant 0.000000e+00 : f32
      %20 = vector.broadcast %cst_41 : f32 to vector<144x96xf32>
      %c0_i32_42 = arith.constant 0 : i32
      %21 = arith.addi %19, %c0_i32_42 : i32
      %22 = arith.index_cast %21 : i32 to index
      %c0_43 = arith.constant 0 : index
      %c0_44 = arith.constant 0 : index
      %23 = vector.load %arg17[%22, %c0_43, %c0_44] : memref<26x32x64xf32, #tpu.memory_space<vmem>>, vector<6x24x64xf32>
      %24 = vector.shape_cast %23 : vector<6x24x64xf32> to vector<144x64xf32>
      %c0_45 = arith.constant 0 : index
      %c0_46 = arith.constant 0 : index
      %c0_47 = arith.constant 0 : index
      %c0_48 = arith.constant 0 : index
      %25 = vector.load %arg12[%c0_45, %c0_46, %c0_47, %c0_48] : memref<3x3x64x96xf32, #tpu.memory_space<vmem>>, vector<1x1x64x96xf32>
      %26 = vector.shape_cast %25 : vector<1x1x64x96xf32> to vector<64x96xf32>
      %cst_49 = arith.constant dense<0.000000e+00> : vector<144x96xf32>
      %27 = tpu.matmul %24, %26, %cst_49 {dimension_numbers = #tpu.dot_dimension_numbers<[1], [0], [0], [1], [0, 0, 1, 1], [], []>} : vector<144x64xf32>, vector<64x96xf32>, vector<144x96xf32> -> vector<144x96xf32>
      %28 = arith.addf %20, %27 : vector<144x96xf32>
      %c0_i32_50 = arith.constant 0 : i32
      %29 = arith.addi %19, %c0_i32_50 : i32
      %30 = arith.index_cast %29 : i32 to index
      %c1 = arith.constant 1 : index
      %c0_51 = arith.constant 0 : index
      %31 = vector.load %arg17[%30, %c1, %c0_51] : memref<26x32x64xf32, #tpu.memory_space<vmem>>, vector<6x24x64xf32>
      %32 = vector.shape_cast %31 : vector<6x24x64xf32> to vector<144x64xf32>
      %c0_52 = arith.constant 0 : index
      %c1_53 = arith.constant 1 : index
      %c0_54 = arith.constant 0 : index
      %c0_55 = arith.constant 0 : index
      %33 = vector.load %arg12[%c0_52, %c1_53, %c0_54, %c0_55] : memref<3x3x64x96xf32, #tpu.memory_space<vmem>>, vector<1x1x64x96xf32>
      %34 = vector.shape_cast %33 : vector<1x1x64x96xf32> to vector<64x96xf32>
      %cst_56 = arith.constant dense<0.000000e+00> : vector<144x96xf32>
      %35 = tpu.matmul %32, %34, %cst_56 {dimension_numbers = #tpu.dot_dimension_numbers<[1], [0], [0], [1], [0, 0, 1, 1], [], []>} : vector<144x64xf32>, vector<64x96xf32>, vector<144x96xf32> -> vector<144x96xf32>
      %36 = arith.addf %28, %35 : vector<144x96xf32>
      %c0_i32_57 = arith.constant 0 : i32
      %37 = arith.addi %19, %c0_i32_57 : i32
      %38 = arith.index_cast %37 : i32 to index
      %c2 = arith.constant 2 : index
      %c0_58 = arith.constant 0 : index
      %39 = vector.load %arg17[%38, %c2, %c0_58] : memref<26x32x64xf32, #tpu.memory_space<vmem>>, vector<6x24x64xf32>
      %40 = vector.shape_cast %39 : vector<6x24x64xf32> to vector<144x64xf32>
      %c0_59 = arith.constant 0 : index
      %c2_60 = arith.constant 2 : index
      %c0_61 = arith.constant 0 : index
      %c0_62 = arith.constant 0 : index
      %41 = vector.load %arg12[%c0_59, %c2_60, %c0_61, %c0_62] : memref<3x3x64x96xf32, #tpu.memory_space<vmem>>, vector<1x1x64x96xf32>
      %42 = vector.shape_cast %41 : vector<1x1x64x96xf32> to vector<64x96xf32>
      %cst_63 = arith.constant dense<0.000000e+00> : vector<144x96xf32>
      %43 = tpu.matmul %40, %42, %cst_63 {dimension_numbers = #tpu.dot_dimension_numbers<[1], [0], [0], [1], [0, 0, 1, 1], [], []>} : vector<144x64xf32>, vector<64x96xf32>, vector<144x96xf32> -> vector<144x96xf32>
      %44 = arith.addf %36, %43 : vector<144x96xf32>
      %c1_i32_64 = arith.constant 1 : i32
      %45 = arith.addi %19, %c1_i32_64 : i32
      %46 = arith.index_cast %45 : i32 to index
      %c0_65 = arith.constant 0 : index
      %c0_66 = arith.constant 0 : index
      %47 = vector.load %arg17[%46, %c0_65, %c0_66] : memref<26x32x64xf32, #tpu.memory_space<vmem>>, vector<6x24x64xf32>
      %48 = vector.shape_cast %47 : vector<6x24x64xf32> to vector<144x64xf32>
      %c1_67 = arith.constant 1 : index
      %c0_68 = arith.constant 0 : index
      %c0_69 = arith.constant 0 : index
      %c0_70 = arith.constant 0 : index
      %49 = vector.load %arg12[%c1_67, %c0_68, %c0_69, %c0_70] : memref<3x3x64x96xf32, #tpu.memory_space<vmem>>, vector<1x1x64x96xf32>
      %50 = vector.shape_cast %49 : vector<1x1x64x96xf32> to vector<64x96xf32>
      %cst_71 = arith.constant dense<0.000000e+00> : vector<144x96xf32>
      %51 = tpu.matmul %48, %50, %cst_71 {dimension_numbers = #tpu.dot_dimension_numbers<[1], [0], [0], [1], [0, 0, 1, 1], [], []>} : vector<144x64xf32>, vector<64x96xf32>, vector<144x96xf32> -> vector<144x96xf32>
      %52 = arith.addf %44, %51 : vector<144x96xf32>
      %c1_i32_72 = arith.constant 1 : i32
      %53 = arith.addi %19, %c1_i32_72 : i32
      %54 = arith.index_cast %53 : i32 to index
      %c1_73 = arith.constant 1 : index
      %c0_74 = arith.constant 0 : index
      %55 = vector.load %arg17[%54, %c1_73, %c0_74] : memref<26x32x64xf32, #tpu.memory_space<vmem>>, vector<6x24x64xf32>
      %56 = vector.shape_cast %55 : vector<6x24x64xf32> to vector<144x64xf32>
      %c1_75 = arith.constant 1 : index
      %c1_76 = arith.constant 1 : index
      %c0_77 = arith.constant 0 : index
      %c0_78 = arith.constant 0 : index
      %57 = vector.load %arg12[%c1_75, %c1_76, %c0_77, %c0_78] : memref<3x3x64x96xf32, #tpu.memory_space<vmem>>, vector<1x1x64x96xf32>
      %58 = vector.shape_cast %57 : vector<1x1x64x96xf32> to vector<64x96xf32>
      %cst_79 = arith.constant dense<0.000000e+00> : vector<144x96xf32>
      %59 = tpu.matmul %56, %58, %cst_79 {dimension_numbers = #tpu.dot_dimension_numbers<[1], [0], [0], [1], [0, 0, 1, 1], [], []>} : vector<144x64xf32>, vector<64x96xf32>, vector<144x96xf32> -> vector<144x96xf32>
      %60 = arith.addf %52, %59 : vector<144x96xf32>
      %c1_i32_80 = arith.constant 1 : i32
      %61 = arith.addi %19, %c1_i32_80 : i32
      %62 = arith.index_cast %61 : i32 to index
      %c2_81 = arith.constant 2 : index
      %c0_82 = arith.constant 0 : index
      %63 = vector.load %arg17[%62, %c2_81, %c0_82] : memref<26x32x64xf32, #tpu.memory_space<vmem>>, vector<6x24x64xf32>
      %64 = vector.shape_cast %63 : vector<6x24x64xf32> to vector<144x64xf32>
      %c1_83 = arith.constant 1 : index
      %c2_84 = arith.constant 2 : index
      %c0_85 = arith.constant 0 : index
      %c0_86 = arith.constant 0 : index
      %65 = vector.load %arg12[%c1_83, %c2_84, %c0_85, %c0_86] : memref<3x3x64x96xf32, #tpu.memory_space<vmem>>, vector<1x1x64x96xf32>
      %66 = vector.shape_cast %65 : vector<1x1x64x96xf32> to vector<64x96xf32>
      %cst_87 = arith.constant dense<0.000000e+00> : vector<144x96xf32>
      %67 = tpu.matmul %64, %66, %cst_87 {dimension_numbers = #tpu.dot_dimension_numbers<[1], [0], [0], [1], [0, 0, 1, 1], [], []>} : vector<144x64xf32>, vector<64x96xf32>, vector<144x96xf32> -> vector<144x96xf32>
      %68 = arith.addf %60, %67 : vector<144x96xf32>
      %c2_i32 = arith.constant 2 : i32
      %69 = arith.addi %19, %c2_i32 : i32
      %70 = arith.index_cast %69 : i32 to index
      %c0_88 = arith.constant 0 : index
      %c0_89 = arith.constant 0 : index
      %71 = vector.load %arg17[%70, %c0_88, %c0_89] : memref<26x32x64xf32, #tpu.memory_space<vmem>>, vector<6x24x64xf32>
      %72 = vector.shape_cast %71 : vector<6x24x64xf32> to vector<144x64xf32>
      %c2_90 = arith.constant 2 : index
      %c0_91 = arith.constant 0 : index
      %c0_92 = arith.constant 0 : index
      %c0_93 = arith.constant 0 : index
      %73 = vector.load %arg12[%c2_90, %c0_91, %c0_92, %c0_93] : memref<3x3x64x96xf32, #tpu.memory_space<vmem>>, vector<1x1x64x96xf32>
      %74 = vector.shape_cast %73 : vector<1x1x64x96xf32> to vector<64x96xf32>
      %cst_94 = arith.constant dense<0.000000e+00> : vector<144x96xf32>
      %75 = tpu.matmul %72, %74, %cst_94 {dimension_numbers = #tpu.dot_dimension_numbers<[1], [0], [0], [1], [0, 0, 1, 1], [], []>} : vector<144x64xf32>, vector<64x96xf32>, vector<144x96xf32> -> vector<144x96xf32>
      %76 = arith.addf %68, %75 : vector<144x96xf32>
      %c2_i32_95 = arith.constant 2 : i32
      %77 = arith.addi %19, %c2_i32_95 : i32
      %78 = arith.index_cast %77 : i32 to index
      %c1_96 = arith.constant 1 : index
      %c0_97 = arith.constant 0 : index
      %79 = vector.load %arg17[%78, %c1_96, %c0_97] : memref<26x32x64xf32, #tpu.memory_space<vmem>>, vector<6x24x64xf32>
      %80 = vector.shape_cast %79 : vector<6x24x64xf32> to vector<144x64xf32>
      %c2_98 = arith.constant 2 : index
      %c1_99 = arith.constant 1 : index
      %c0_100 = arith.constant 0 : index
      %c0_101 = arith.constant 0 : index
      %81 = vector.load %arg12[%c2_98, %c1_99, %c0_100, %c0_101] : memref<3x3x64x96xf32, #tpu.memory_space<vmem>>, vector<1x1x64x96xf32>
      %82 = vector.shape_cast %81 : vector<1x1x64x96xf32> to vector<64x96xf32>
      %cst_102 = arith.constant dense<0.000000e+00> : vector<144x96xf32>
      %83 = tpu.matmul %80, %82, %cst_102 {dimension_numbers = #tpu.dot_dimension_numbers<[1], [0], [0], [1], [0, 0, 1, 1], [], []>} : vector<144x64xf32>, vector<64x96xf32>, vector<144x96xf32> -> vector<144x96xf32>
      %84 = arith.addf %76, %83 : vector<144x96xf32>
      %c2_i32_103 = arith.constant 2 : i32
      %85 = arith.addi %19, %c2_i32_103 : i32
      %86 = arith.index_cast %85 : i32 to index
      %c2_104 = arith.constant 2 : index
      %c0_105 = arith.constant 0 : index
      %87 = vector.load %arg17[%86, %c2_104, %c0_105] : memref<26x32x64xf32, #tpu.memory_space<vmem>>, vector<6x24x64xf32>
      %88 = vector.shape_cast %87 : vector<6x24x64xf32> to vector<144x64xf32>
      %c2_106 = arith.constant 2 : index
      %c2_107 = arith.constant 2 : index
      %c0_108 = arith.constant 0 : index
      %c0_109 = arith.constant 0 : index
      %89 = vector.load %arg12[%c2_106, %c2_107, %c0_108, %c0_109] : memref<3x3x64x96xf32, #tpu.memory_space<vmem>>, vector<1x1x64x96xf32>
      %90 = vector.shape_cast %89 : vector<1x1x64x96xf32> to vector<64x96xf32>
      %cst_110 = arith.constant dense<0.000000e+00> : vector<144x96xf32>
      %91 = tpu.matmul %88, %90, %cst_110 {dimension_numbers = #tpu.dot_dimension_numbers<[1], [0], [0], [1], [0, 0, 1, 1], [], []>} : vector<144x64xf32>, vector<64x96xf32>, vector<144x96xf32> -> vector<144x96xf32>
      %92 = arith.addf %84, %91 : vector<144x96xf32>
      %c0_111 = arith.constant 0 : index
      %c0_112 = arith.constant 0 : index
      %93 = vector.load %arg13[%c0_111, %c0_112] : memref<1x96xf32, #tpu.memory_space<vmem>>, vector<1x96xf32>
      %94 = vector.broadcast %93 : vector<1x96xf32> to vector<144x96xf32>
      %95 = arith.addf %92, %94 : vector<144x96xf32>
      %cst_113 = arith.constant 0.000000e+00 : f32
      %96 = vector.broadcast %cst_113 : f32 to vector<144x96xf32>
      %97 = arith.maximumf %95, %96 : vector<144x96xf32>
      %98 = vector.shape_cast %97 : vector<144x96xf32> to vector<6x24x96xf32>
      %99 = arith.index_cast %19 : i32 to index
      %c0_114 = arith.constant 0 : index
      %c0_115 = arith.constant 0 : index
      %100 = vector.load %arg19[%99, %c0_114, %c0_115] : memref<26x32x96xf32, #tpu.memory_space<vmem>>, vector<6x24x96xf32>
      tpu.vector_store %arg19[%99, %c0_114, %c0_115], %98 {strides = array<i32>} : memref<26x32x96xf32, #tpu.memory_space<vmem>>, vector<6x24x96xf32>,
    }
    %c3_i32_33 = arith.constant 3 : i32
    %c0_34 = arith.constant 0 : index
    %c0_35 = arith.constant 0 : index
    %c0_36 = arith.constant 0 : index
    %15 = vector.load %arg19[%c0_34, %c0_35, %c0_36] : memref<26x32x96xf32, #tpu.memory_space<vmem>>, vector<9x9x96xf32>
    %c0_37 = arith.constant 0 : index
    %c0_38 = arith.constant 0 : index
    %c0_39 = arith.constant 0 : index
    %c0_40 = arith.constant 0 : index
    %16 = vector.load %arg16[%c0_37, %c0_38, %c0_39, %c0_40] : memref<1x9x9x96xf32, #tpu.memory_space<vmem>>, vector<1x9x9x96xf32>
    %17 = vector.shape_cast %16 : vector<1x9x9x96xf32> to vector<9x9x96xf32>
    %18 = vector.shape_cast %15 : vector<9x9x96xf32> to vector<1x9x9x96xf32>
    tpu.vector_store %arg16[%c0_37, %c0_38, %c0_39, %c0_40], %18 {strides = array<i32>} : memref<1x9x9x96xf32, #tpu.memory_space<vmem>>, vector<1x9x9x96xf32>,
    return
  }
  func.func @transform_0(%arg0: i32) -> (i32, i32, i32, i32) {
    %c0_i32 = arith.constant 0 : i32
    %c0_i32_0 = arith.constant 0 : i32
    %c0_i32_1 = arith.constant 0 : i32
    %c0_i32_2 = arith.constant 0 : i32
    return %arg0, %c0_i32, %c0_i32_0, %c0_i32_1 : i32, i32, i32, i32
  }
  func.func @transform_1(%arg0: i32) -> (i32, i32) {
    %c0_i32 = arith.constant 0 : i32
    %c0_i32_0 = arith.constant 0 : i32
    %c0_i32_1 = arith.constant 0 : i32
    return %c0_i32, %c0_i32_0 : i32, i32
  }
  func.func @transform_2(%arg0: i32) -> (i32, i32) {
    %c0_i32 = arith.constant 0 : i32
    %c0_i32_0 = arith.constant 0 : i32
    %c0_i32_1 = arith.constant 0 : i32
    return %c0_i32, %c0_i32_0 : i32, i32
  }
  func.func @transform_3(%arg0: i32) -> (i32, i32, i32, i32) {
    %c0_i32 = arith.constant 0 : i32
    %c0_i32_0 = arith.constant 0 : i32
    %c0_i32_1 = arith.constant 0 : i32
    %c0_i32_2 = arith.constant 0 : i32
    %c0_i32_3 = arith.constant 0 : i32
    return %c0_i32, %c0_i32_0, %c0_i32_1, %c0_i32_2 : i32, i32, i32, i32
  }
  func.func @transform_4(%arg0: i32) -> (i32, i32) {
    %c0_i32 = arith.constant 0 : i32
    %c0_i32_0 = arith.constant 0 : i32
    %c0_i32_1 = arith.constant 0 : i32
    return %c0_i32, %c0_i32_0 : i32, i32
  }
  func.func @transform_5(%arg0: i32) -> (i32, i32) {
    %c0_i32 = arith.constant 0 : i32
    %c0_i32_0 = arith.constant 0 : i32
    %c0_i32_1 = arith.constant 0 : i32
    return %c0_i32, %c0_i32_0 : i32, i32
  }
  func.func @transform_6(%arg0: i32) -> (i32, i32) {
    %c0_i32 = arith.constant 0 : i32
    %c0_i32_0 = arith.constant 0 : i32
    %c0_i32_1 = arith.constant 0 : i32
    return %c0_i32, %c0_i32_0 : i32, i32
  }
  func.func @transform_7(%arg0: i32) -> (i32, i32, i32) {
    %c0_i32 = arith.constant 0 : i32
    %c0_i32_0 = arith.constant 0 : i32
    %c0_i32_1 = arith.constant 0 : i32
    %c0_i32_2 = arith.constant 0 : i32
    return %c0_i32, %c0_i32_0, %c0_i32_1 : i32, i32, i32
  }
  func.func @transform_8(%arg0: i32) -> (i32, i32) {
    %c0_i32 = arith.constant 0 : i32
    %c0_i32_0 = arith.constant 0 : i32
    %c0_i32_1 = arith.constant 0 : i32
    return %c0_i32, %c0_i32_0 : i32, i32
  }
  func.func @transform_9(%arg0: i32) -> (i32, i32, i32) {
    %c0_i32 = arith.constant 0 : i32
    %c0_i32_0 = arith.constant 0 : i32
    %c0_i32_1 = arith.constant 0 : i32
    %c0_i32_2 = arith.constant 0 : i32
    return %c0_i32, %c0_i32_0, %c0_i32_1 : i32, i32, i32
  }
  func.func @transform_10(%arg0: i32) -> (i32, i32) {
    %c0_i32 = arith.constant 0 : i32
    %c0_i32_0 = arith.constant 0 : i32
    %c0_i32_1 = arith.constant 0 : i32
    return %c0_i32, %c0_i32_0 : i32, i32
  }
  func.func @transform_11(%arg0: i32) -> (i32, i32, i32, i32) {
    %c0_i32 = arith.constant 0 : i32
    %c0_i32_0 = arith.constant 0 : i32
    %c0_i32_1 = arith.constant 0 : i32
    %c0_i32_2 = arith.constant 0 : i32
    %c0_i32_3 = arith.constant 0 : i32
    return %c0_i32, %c0_i32_0, %c0_i32_1, %c0_i32_2 : i32, i32, i32, i32
  }
  func.func @transform_12(%arg0: i32) -> (i32, i32) {
    %c0_i32 = arith.constant 0 : i32
    %c0_i32_0 = arith.constant 0 : i32
    %c0_i32_1 = arith.constant 0 : i32
    return %c0_i32, %c0_i32_0 : i32, i32
  }
  func.func @transform_13(%arg0: i32) -> (i32, i32) {
    %c0_i32 = arith.constant 0 : i32
    %c0_i32_0 = arith.constant 0 : i32
    %c0_i32_1 = arith.constant 0 : i32
    return %c0_i32, %c0_i32_0 : i32, i32
  }
  func.func @transform_14(%arg0: i32) -> (i32, i32, i32, i32) {
    %c0_i32 = arith.constant 0 : i32
    %c0_i32_0 = arith.constant 0 : i32
    %c0_i32_1 = arith.constant 0 : i32
    %c0_i32_2 = arith.constant 0 : i32
    return %arg0, %c0_i32, %c0_i32_0, %c0_i32_1 : i32, i32, i32, i32
  }
  func.func @transform_15(%arg0: i32) -> (i32, i32, i32, i32) {
    %c0_i32 = arith.constant 0 : i32
    %c0_i32_0 = arith.constant 0 : i32
    %c0_i32_1 = arith.constant 0 : i32
    %c0_i32_2 = arith.constant 0 : i32
    return %arg0, %c0_i32, %c0_i32_0, %c0_i32_1 : i32, i32, i32, i32
  }
}

</mosaic_0001>

<llo_original>
// kernel: tile.8
$region0: #{tile.8}
  #allocation0 [shape = 's32[1]{0}', space=sflag, size = 0x4, scoped, tag = 'scoped memory for tile.8']
  %s0 = inlined_call_operand.vmem [shape: f32[24], index: 0, kind: input, shape index: {}]
  %s1 = inlined_call_operand.vmem [shape: f32[6,24], index: 1, kind: output, shape index: {}]
  // Predicated region
  $region2: #{tile.8} parent=0 // pred_check
    _
  $region3: #{tile.8} parent=0 // pred_check_branch
    %3 = sbr.rel (0) target = $region5
  $region4: #{tile.8} parent=0 // pred_region
    _
  $region5: #{tile.8} parent=0 // pred_fallthru
    _
  %v4 = vld [vmem:[%s0] ss:$0 sm:$0xff]
  %5 = vst [vmem:[%s1] sm:$0xff] %v4

// kernel: tile.0
$region0: #{tile.0}
  %s0 = inlined_call_operand.vmem [shape: f32[6,24], index: 0, kind: input, shape index: {}]
  %s1 = inlined_call_operand.vmem [shape: f32[144,1], index: 1, kind: output, shape index: {}]
  %v2 = vld [vmem:[%s0] sm:$0x3f]
  %vm3 = vcmask 7168
  %4 = vst.msk [vmem:[%s1] ss:$24 sm:$0xf] %vm3, %v2
  %5 = vst.msk [vmem:[%s1] ss:$24 sm:$0x30] %vm3, %v2
  %v6 = vld.sshfl [vmem:[%s0] sm:$0xff pattern:$0x55541230]
  %7 = vrot.lane.b32.xlu0 %v6, 127
  %v8 = vpop.permute.xlu0 %7
  %vm9 = vcmask 7168
  %s10 = scalar_lea.vmem %s1, 1
  %11 = vst.msk [vmem:[%s10] ss:$72 sm:$0x3] %vm9, %v8
  %s12 = scalar_lea.vmem %s1, 97
  %13 = vst.msk [vmem:[%s12] ss:$-24 sm:$0xc] %vm9, %v8
  %s14 = scalar_lea.vmem %s1, 1
  %15 = vst.msk [vmem:[%s14] ss:$24 sm:$0x30] %vm9, %v8
  %v16 = vld.sshfl [vmem:[%s0] sm:$0xff pattern:$0x55541230]
  %17 = vrot.lane.b32.xlu0 %v16, 126
  %v18 = vpop.permute.xlu0 %17
  %vm19 = vcmask 7168
  %s20 = scalar_lea.vmem %s1, 2
  %21 = vst.msk [vmem:[%s20] ss:$72 sm:$0x3] %vm19, %v18
  %s22 = scalar_lea.vmem %s1, 98
  %23 = vst.msk [vmem:[%s22] ss:$-24 sm:$0xc] %vm19, %v18
  %s24 = scalar_lea.vmem %s1, 2
  %25 = vst.msk [vmem:[%s24] ss:$24 sm:$0x30] %vm19, %v18
  %v26 = vld.sshfl [vmem:[%s0] sm:$0xff pattern:$0x55541230]
  %27 = vrot.lane.b32.xlu0 %v26, 125
  %v28 = vpop.permute.xlu0 %27
  %vm29 = vcmask 7168
  %s30 = scalar_lea.vmem %s1, 3
  %31 = vst.msk [vmem:[%s30] ss:$72 sm:$0x3] %vm29, %v28
  %s32 = scalar_lea.vmem %s1, 99
  %33 = vst.msk [vmem:[%s32] ss:$-24 sm:$0xc] %vm29, %v28
  %s34 = scalar_lea.vmem %s1, 3
  %35 = vst.msk [vmem:[%s34] ss:$24 sm:$0x30] %vm29, %v28
  %v36 = vld.sshfl [vmem:[%s0] sm:$0xff pattern:$0x55541230]
  %37 = vrot.lane.b32.xlu0 %v36, 124
  %v38 = vpop.permute.xlu0 %37
  %vm39 = vcmask 7168
  %s40 = scalar_lea.vmem %s1, 4
  %41 = vst.msk [vmem:[%s40] ss:$72 sm:$0x3] %vm39, %v38
  %s42 = scalar_lea.vmem %s1, 100
  %43 = vst.msk [vmem:[%s42] ss:$-24 sm:$0xc] %vm39, %v38
  %s44 = scalar_lea.vmem %s1, 4
  %45 = vst.msk [vmem:[%s44] ss:$24 sm:$0x30] %vm39, %v38
  %v46 = vld.sshfl [vmem:[%s0] sm:$0xff pattern:$0x55541230]
  %47 = vrot.lane.b32.xlu0 %v46, 123
  %v48 = vpop.permute.xlu0 %47
  %vm49 = vcmask 7168
  %s50 = scalar_lea.vmem %s1, 5
  %51 = vst.msk [vmem:[%s50] ss:$72 sm:$0x3] %vm49, %v48
  %s52 = scalar_lea.vmem %s1, 101
  %53 = vst.msk [vmem:[%s52] ss:$-24 sm:$0xc] %vm49, %v48
  %s54 = scalar_lea.vmem %s1, 5
  %55 = vst.msk [vmem:[%s54] ss:$24 sm:$0x30] %vm49, %v48
  %v56 = vld.sshfl [vmem:[%s0] sm:$0xff pattern:$0x55541230]
  %57 = vrot.lane.b32.xlu0 %v56, 122
  %v58 = vpop.permute.xlu0 %57
  %vm59 = vcmask 7168
  %s60 = scalar_lea.vmem %s1, 6
  %61 = vst.msk [vmem:[%s60] ss:$72 sm:$0x3] %vm59, %v58
  %s62 = scalar_lea.vmem %s1, 102
  %63 = vst.msk [vmem:[%s62] ss:$-24 sm:$0xc] %vm59, %v58
  %s64 = scalar_lea.vmem %s1, 6
  %65 = vst.msk [vmem:[%s64] ss:$24 sm:$0x30] %vm59, %v58
  %v66 = vld.sshfl [vmem:[%s0] sm:$0xff pattern:$0x55541230]
  %67 = vrot.lane.b32.xlu0 %v66, 121
  %v68 = vpop.permute.xlu0 %67
  %vm69 = vcmask 7168
  %s70 = scalar_lea.vmem %s1, 7
  %71 = vst.msk [vmem:[%s70] ss:$72 sm:$0x3] %vm69, %v68
  %s72 = scalar_lea.vmem %s1, 103
  %73 = vst.msk [vmem:[%s72] ss:$-24 sm:$0xc] %vm69, %v68
  %s74 = scalar_lea.vmem %s1, 7
  %75 = vst.msk [vmem:[%s74] ss:$24 sm:$0x30] %vm69, %v68
  %v76 = vld.sshfl [vmem:[%s0] sm:$0xff pattern:$0x44452301]
  %77 = vrot.lane.b32.xlu0 %v76, 120
  %v78 = vpop.permute.xlu0 %77
  %vm79 = vcmask 7168
  %s80 = scalar_lea.vmem %s1, 32
  %81 = vst.msk [vmem:[%s80] ss:$-24 sm:$0x3] %vm79, %v78
  %s82 = scalar_lea.vmem %s1, 128
  %83 = vst.msk [vmem:[%s82] ss:$-24 sm:$0xc] %vm79, %v78
  %s84 = scalar_lea.vmem %s1, 224
  %85 = vst.msk [vmem:[%s84] ss:$-24 sm:$0x30] %vm79, %v78
  %v86 = vld.sshfl [vmem:[%s0] sm:$0xff pattern:$0x44452301]
  %87 = vrot.lane.b32.xlu0 %v86, 119
  %v88 = vpop.permute.xlu0 %87
  %vm89 = vcmask 7168
  %s90 = scalar_lea.vmem %s1, 33
  %91 = vst.msk [vmem:[%s90] ss:$-24 sm:$0x3] %vm89, %v88
  %s92 = scalar_lea.vmem %s1, 129
  %93 = vst.msk [vmem:[%s92] ss:$-24 sm:$0xc] %vm89, %v88
  %s94 = scalar_lea.vmem %s1, 225
  %95 = vst.msk [vmem:[%s94] ss:$-24 sm:$0x30] %vm89, %v88
  %v96 = vld.sshfl [vmem:[%s0] sm:$0xff pattern:$0x44452301]
  %97 = vrot.lane.b32.xlu0 %v96, 118
  %v98 = vpop.permute.xlu0 %97
  %vm99 = vcmask 7168
  %s100 = scalar_lea.vmem %s1, 34
  %101 = vst.msk [vmem:[%s100] ss:$-24 sm:$0x3] %vm99, %v98
  %s102 = scalar_lea.vmem %s1, 130
  %103 = vst.msk [vmem:[%s102] ss:$-24 sm:$0xc] %vm99, %v98
  %s104 = scalar_lea.vmem %s1, 226
  %105 = vst.msk [vmem:[%s104] ss:$-24 sm:$0x30] %vm99, %v98
  %v106 = vld.sshfl [vmem:[%s0] sm:$0xff pattern:$0x44452301]
  %107 = vrot.lane.b32.xlu0 %v106, 117
  %v108 = vpop.permute.xlu0 %107
  %vm109 = vcmask 7168
  %s110 = scalar_lea.vmem %s1, 35
  %111 = vst.msk [vmem:[%s110] ss:$-24 sm:$0x3] %vm109, %v108
  %s112 = scalar_lea.vmem %s1, 131
  %113 = vst.msk [vmem:[%s112] ss:$-24 sm:$0xc] %vm109, %v108
  %s114 = scalar_lea.vmem %s1, 227
  %115 = vst.msk [vmem:[%s114] ss:$-24 sm:$0x30] %vm109, %v108
  %v116 = vld.sshfl [vmem:[%s0] sm:$0xff pattern:$0x44452301]
  %117 = vrot.lane.b32.xlu0 %v116, 116
  %v118 = vpop.permute.xlu0 %117
  %vm119 = vcmask 7168
  %s120 = scalar_lea.vmem %s1, 36
  %121 = vst.msk [vmem:[%s120] ss:$-24 sm:$0x3] %vm119, %v118
  %s122 = scalar_lea.vmem %s1, 132
  %123 = vst.msk [vmem:[%s122] ss:$-24 sm:$0xc] %vm119, %v118
  %s124 = scalar_lea.vmem %s1, 228
  %125 = vst.msk [vmem:[%s124] ss:$-24 sm:$0x30] %vm119, %v118
  %v126 = vld.sshfl [vmem:[%s0] sm:$0xff pattern:$0x44452301]
  %127 = vrot.lane.b32.xlu0 %v126, 115
  %v128 = vpop.permute.xlu0 %127
  %vm129 = vcmask 7168
  %s130 = scalar_lea.vmem %s1, 37
  %131 = vst.msk [vmem:[%s130] ss:$-24 sm:$0x3] %vm129, %v128
  %s132 = scalar_lea.vmem %s1, 133
  %133 = vst.msk [vmem:[%s132] ss:$-24 sm:$0xc] %vm129, %v128
  %s134 = scalar_lea.vmem %s1, 229
  %135 = vst.msk [vmem:[%s134] ss:$-24 sm:$0x30] %vm129, %v128
  %v136 = vld.sshfl [vmem:[%s0] sm:$0xff pattern:$0x44452301]
  %137 = vrot.lane.b32.xlu0 %v136, 114
  %v138 = vpop.permute.xlu0 %137
  %vm139 = vcmask 7168
  %s140 = scalar_lea.vmem %s1, 38
  %141 = vst.msk [vmem:[%s140] ss:$-24 sm:$0x3] %vm139, %v138
  %s142 = scalar_lea.vmem %s1, 134
  %143 = vst.msk [vmem:[%s142] ss:$-24 sm:$0xc] %vm139, %v138
  %s144 = scalar_lea.vmem %s1, 230
  %145 = vst.msk [vmem:[%s144] ss:$-24 sm:$0x30] %vm139, %v138
  %v146 = vld.sshfl [vmem:[%s0] sm:$0xff pattern:$0x44452301]
  %147 = vrot.lane.b32.xlu0 %v146, 113
  %v148 = vpop.permute.xlu0 %147
  %vm149 = vcmask 7168
  %s150 = scalar_lea.vmem %s1, 39
  %151 = vst.msk [vmem:[%s150] ss:$-24 sm:$0x3] %vm149, %v148
  %s152 = scalar_lea.vmem %s1, 135
  %153 = vst.msk [vmem:[%s152] ss:$-24 sm:$0xc] %vm149, %v148
  %s154 = scalar_lea.vmem %s1, 231
  %155 = vst.msk [vmem:[%s154] ss:$-24 sm:$0x30] %vm149, %v148
  %v156 = vld.sshfl [vmem:[%s0] sm:$0xff pattern:$0x44453012]
  %157 = vrot.lane.b32.xlu0 %v156, 112
  %v158 = vpop.permute.xlu0 %157
  %vm159 = vcmask 7168
  %s160 = scalar_lea.vmem %s1, 64
  %161 = vst.msk [vmem:[%s160] ss:$-24 sm:$0x7] %vm159, %v158
  %s162 = scalar_lea.vmem %s1, 4294967240
  %163 = vst.msk [vmem:[%s162] ss:$48 sm:$0x18] %vm159, %v158
  %s164 = scalar_lea.vmem %s1, 107
  %165 = vst.msk [vmem:[%s164] sm:$0x20] %vm159, %v158
  %v166 = vld.sshfl [vmem:[%s0] sm:$0xff pattern:$0x44453012]
  %167 = vrot.lane.b32.xlu0 %v166, 111
  %v168 = vpop.permute.xlu0 %167
  %vm169 = vcmask 7168
  %s170 = scalar_lea.vmem %s1, 65
  %171 = vst.msk [vmem:[%s170] ss:$-24 sm:$0x7] %vm169, %v168
  %s172 = scalar_lea.vmem %s1, 4294967241
  %173 = vst.msk [vmem:[%s172] ss:$48 sm:$0x18] %vm169, %v168
  %s174 = scalar_lea.vmem %s1, 108
  %175 = vst.msk [vmem:[%s174] sm:$0x20] %vm169, %v168
  %v176 = vld.sshfl [vmem:[%s0] sm:$0xff pattern:$0x44453012]
  %177 = vrot.lane.b32.xlu0 %v176, 110
  %v178 = vpop.permute.xlu0 %177
  %vm179 = vcmask 7168
  %s180 = scalar_lea.vmem %s1, 66
  %181 = vst.msk [vmem:[%s180] ss:$-24 sm:$0x7] %vm179, %v178
  %s182 = scalar_lea.vmem %s1, 4294967242
  %183 = vst.msk [vmem:[%s182] ss:$48 sm:$0x18] %vm179, %v178
  %s184 = scalar_lea.vmem %s1, 109
  %185 = vst.msk [vmem:[%s184] sm:$0x20] %vm179, %v178
  %v186 = vld.sshfl [vmem:[%s0] sm:$0xff pattern:$0x44453012]
  %187 = vrot.lane.b32.xlu0 %v186, 109
  %v188 = vpop.permute.xlu0 %187
  %vm189 = vcmask 7168
  %s190 = scalar_lea.vmem %s1, 67
  %191 = vst.msk [vmem:[%s190] ss:$-24 sm:$0x7] %vm189, %v188
  %s192 = scalar_lea.vmem %s1, 4294967243
  %193 = vst.msk [vmem:[%s192] ss:$48 sm:$0x18] %vm189, %v188
  %s194 = scalar_lea.vmem %s1, 110
  %195 = vst.msk [vmem:[%s194] sm:$0x20] %vm189, %v188
  %v196 = vld.sshfl [vmem:[%s0] sm:$0xff pattern:$0x44453012]
  %197 = vrot.lane.b32.xlu0 %v196, 108
  %v198 = vpop.permute.xlu0 %197
  %vm199 = vcmask 7168
  %s200 = scalar_lea.vmem %s1, 68
  %201 = vst.msk [vmem:[%s200] ss:$-24 sm:$0x7] %vm199, %v198
  %s202 = scalar_lea.vmem %s1, 4294967244
  %203 = vst.msk [vmem:[%s202] ss:$48 sm:$0x18] %vm199, %v198
  %s204 = scalar_lea.vmem %s1, 111
  %205 = vst.msk [vmem:[%s204] sm:$0x20] %vm199, %v198
  %v206 = vld.sshfl [vmem:[%s0] sm:$0xff pattern:$0x44453012]
  %207 = vrot.lane.b32.xlu0 %v206, 107
  %v208 = vpop.permute.xlu0 %207
  %vm209 = vcmask 7168
  %s210 = scalar_lea.vmem %s1, 69
  %211 = vst.msk [vmem:[%s210] ss:$-24 sm:$0x7] %vm209, %v208
  %s212 = scalar_lea.vmem %s1, 4294967245
  %213 = vst.msk [vmem:[%s212] ss:$48 sm:$0x18] %vm209, %v208
  %s214 = scalar_lea.vmem %s1, 112
  %215 = vst.msk [vmem:[%s214] sm:$0x20] %vm209, %v208
  %v216 = vld.sshfl [vmem:[%s0] sm:$0xff pattern:$0x44453012]
  %217 = vrot.lane.b32.xlu0 %v216, 106
  %v218 = vpop.permute.xlu0 %217
  %vm219 = vcmask 7168
  %s220 = scalar_lea.vmem %s1, 70
  %221 = vst.msk [vmem:[%s220] ss:$-24 sm:$0x7] %vm219, %v218
  %s222 = scalar_lea.vmem %s1, 4294967246
  %223 = vst.msk [vmem:[%s222] ss:$48 sm:$0x18] %vm219, %v218
  %s224 = scalar_lea.vmem %s1, 113
  %225 = vst.msk [vmem:[%s224] sm:$0x20] %vm219, %v218
  %v226 = vld.sshfl [vmem:[%s0] sm:$0xff pattern:$0x44453012]
  %227 = vrot.lane.b32.xlu0 %v226, 105
  %v228 = vpop.permute.xlu0 %227
  %vm229 = vcmask 7168
  %s230 = scalar_lea.vmem %s1, 71
  %231 = vst.msk [vmem:[%s230] ss:$-24 sm:$0x7] %vm229, %v228
  %s232 = scalar_lea.vmem %s1, 4294967247
  %233 = vst.msk [vmem:[%s232] ss:$48 sm:$0x18] %vm229, %v228
  %s234 = scalar_lea.vmem %s1, 114
  %235 = vst.msk [vmem:[%s234] sm:$0x20] %vm229, %v228

// kernel: mixed_4a.1
$region0: #{mixed_4a.1}
  #allocation0 [shape = 'u32[]', space=smem, size = 0x4, offset = 0x4, fixed_abs, tag = 'smem constant byte address 0x4 - core index']
  #allocation1 [shape = 'u32[144,128]{1,0:T(1,128)}', space=vmem, size = 0x12000, scoped, tag = 'internal scratch']
  #allocation2 [shape = 'f32[26,32,64]{2,1,0:T(8,128)}', space=vmem, size = 0x68000, scoped, tag = 'scratch operand']
  #allocation3 [shape = 'f32[26,32,64]{2,1,0:T(8,128)}', space=vmem, size = 0x68000, scoped, tag = 'scratch operand']
  #allocation4 [shape = 'f32[26,32,96]{2,1,0:T(8,128)}', space=vmem, size = 0x68000, scoped, tag = 'scratch operand']
  %s0 = inlined_call_operand.vmem [shape: f32[2,26,32,160], index: 0, kind: input, shape index: {}]
  %s1 = inlined_call_operand.vmem [shape: f32[160,64], index: 1, kind: input, shape index: {}]
  %s2 = inlined_call_operand.vmem [shape: f32[1,64], index: 2, kind: input, shape index: {}]
  %s3 = inlined_call_operand.vmem [shape: f32[3,3,64,96], index: 3, kind: input, shape index: {}]
  %s4 = inlined_call_operand.vmem [shape: f32[1,96], index: 4, kind: input, shape index: {}]
  %s5 = inlined_call_operand.vmem [shape: f32[160,64], index: 5, kind: input, shape index: {}]
  %s6 = inlined_call_operand.vmem [shape: f32[1,64], index: 6, kind: input, shape index: {}]
  %s7 = inlined_call_operand.vmem [shape: f32[7,64,64], index: 7, kind: input, shape index: {}]
  %s8 = inlined_call_operand.vmem [shape: f32[1,64], index: 8, kind: input, shape index: {}]
  %s9 = inlined_call_operand.vmem [shape: f32[7,64,64], index: 9, kind: input, shape index: {}]
  %s10 = inlined_call_operand.vmem [shape: f32[1,64], index: 10, kind: input, shape index: {}]
  %s11 = inlined_call_operand.vmem [shape: f32[3,3,64,96], index: 11, kind: input, shape index: {}]
  %s12 = inlined_call_operand.vmem [shape: f32[1,96], index: 12, kind: input, shape index: {}]
  %s13 = inlined_call_operand.vmem [shape: f32[144,1], index: 13, kind: input, shape index: {}]
  %s14 = inlined_call_operand.vmem [shape: f32[2,9,9,96], index: 14, kind: output, shape index: {0}]
  %s15 = inlined_call_operand.vmem [shape: f32[2,9,9,96], index: 15, kind: output, shape index: {1}]
  %16 = xla_tuple %s14, %s15
  %s17 = sld [smem:[#allocation0]]
  $region139: #{mixed_4a.1} parent=0
    _
  %s19 = ssub.s32 1, %s17
  %s20 = scalar_select 0, %s19, %s17
  loop: start=0, step=1, limit=4
  $region2: #{mixed_4a.1} parent=0 // loop_pre_header
    _
  $region3: #{mixed_4a.1} parent=0 // loop_header
    %s22 = sphi 0, %s26
    %p23 = scmp.ge.s32.totalorder %s22, 4
    %s32 = sphi 0, %s34
    %s35 = sphi 0, %s32
    %s36 = sphi 0, %s35
    %s52 = sphi 0, %s36
    %s56 = sphi 0, %s56
    %s58 = sphi 0, %s56
    %s59 = sphi 0, %s58
    %s73 = sphi 0, %s59
    %s77 = sphi 0, %s77
    %s79 = sphi 0, %s77
    %s80 = sphi 0, %s79
    %s94 = sphi 0, %s80
    %s98 = sphi 0, %s98
    %s100 = sphi 0, %s98
    %s101 = sphi 0, %s100
    %s115 = sphi 0, %s101
    %s119 = sphi 0, %s119
    %s121 = sphi 0, %s119
    %s122 = sphi 0, %s121
    %s136 = sphi 0, %s122
    %s140 = sphi 0, %s140
    %s142 = sphi 0, %s140
    %s143 = sphi 0, %s142
    %s157 = sphi 0, %s143
    %s161 = sphi 0, %s161
    %s163 = sphi 0, %s161
    %s164 = sphi 0, %s163
    %s178 = sphi 0, %s164
    %s182 = sphi 0, %s182
    %s184 = sphi 0, %s182
    %s185 = sphi 0, %s184
    %s199 = sphi 0, %s185
    %s203 = sphi 0, %s203
    %s205 = sphi 0, %s203
    %s206 = sphi 0, %s205
    %s220 = sphi 0, %s206
    %s224 = sphi 0, %s224
    %s226 = sphi 0, %s224
    %s227 = sphi 0, %s226
    %s241 = sphi 0, %s227
    %s245 = sphi 0, %s245
    %s247 = sphi 0, %s245
    %s248 = sphi 0, %s247
    %s262 = sphi 0, %s248
    %s266 = sphi 0, %s266
    %s268 = sphi 0, %s266
    %s269 = sphi 0, %s268
    %s283 = sphi 0, %s269
    %s287 = sphi 0, %s287
    %s289 = sphi 0, %s287
    %s290 = sphi 0, %s289
    %s304 = sphi 0, %s290
    %s308 = sphi 0, %s308
    %s310 = sphi 0, %s308
    %s311 = sphi 0, %s310
    %s325 = sphi 0, %s311
    %s331 = sphi 0, %s333
    %s334 = sphi 0, %s331
    %s335 = sphi 0, %s334
    %s351 = sphi 0, %s335
    %s357 = sphi 0, %s359
    %s360 = sphi 0, %s357
    %s361 = sphi 0, %s360
    %s377 = sphi 0, %s361
  $region4: #{mixed_4a.1} parent=0 // loop_header_branch
    %25 = sbr.rel (%p23) target = $region8
  $region5: #{mixed_4a.1} parent=0 // loop_body
    %s27 = ssub.s32 %s22, 1
    %s28 = ssub.s32 %s22, 2
    %s29 = sadd.s32 %s22, 1
    %s30 = ssub.s32 %s22, %s29
    %p31 = scmp.eq.s32.totalorder %s30, 0
    %s33 = sadd.s32 %s32, 1
    %s34 = scalar_select %p31, %s32, %s33
    %p37 = pneg %p31
    %p38 = scmp.eq.s32.totalorder %s22, 1
    %p39 = por %p37, %p38
    %p40 = scmp.ne.s32.totalorder %s32, %s35
    %p41 = scmp.eq.s32.totalorder %s22, 0
    %p42 = por %p40, %p41
    %p43 = scmp.ne.s32.totalorder %s32, %s35
    %p44 = scmp.eq.s32.totalorder %s27, 1
    %p45 = por %p43, %p44
    %p46 = scmp.ne.s32.totalorder %s35, %s36
    %p47 = scmp.eq.s32.totalorder %s27, 0
    %p48 = por %p46, %p47
    %p49 = scmp.ne.s32.totalorder %s35, %s36
    %p50 = scmp.eq.s32.totalorder %s28, 1
    %p51 = por %p49, %p50
    %p53 = scmp.ne.s32.totalorder %s36, %s52
    %p54 = scmp.eq.s32.totalorder %s28, 0
    %p55 = por %p53, %p54
    %s57 = sadd.s32 %s56, 1
    %p60 = scmp.eq.s32.totalorder %s22, 1
    %p61 = scmp.ne.s32.totalorder %s56, %s58
    %p62 = scmp.eq.s32.totalorder %s22, 0
    %p63 = por %p61, %p62
    %p64 = scmp.ne.s32.totalorder %s56, %s58
    %p65 = scmp.eq.s32.totalorder %s27, 1
    %p66 = por %p64, %p65
    %p67 = scmp.ne.s32.totalorder %s58, %s59
    %p68 = scmp.eq.s32.totalorder %s27, 0
    %p69 = por %p67, %p68
    %p70 = scmp.ne.s32.totalorder %s58, %s59
    %p71 = scmp.eq.s32.totalorder %s28, 1
    %p72 = por %p70, %p71
    %p74 = scmp.ne.s32.totalorder %s59, %s73
    %p75 = scmp.eq.s32.totalorder %s28, 0
    %p76 = por %p74, %p75
    %s78 = sadd.s32 %s77, 1
    %p81 = scmp.eq.s32.totalorder %s22, 1
    %p82 = scmp.ne.s32.totalorder %s77, %s79
    %p83 = scmp.eq.s32.totalorder %s22, 0
    %p84 = por %p82, %p83
    %p85 = scmp.ne.s32.totalorder %s77, %s79
    %p86 = scmp.eq.s32.totalorder %s27, 1
    %p87 = por %p85, %p86
    %p88 = scmp.ne.s32.totalorder %s79, %s80
    %p89 = scmp.eq.s32.totalorder %s27, 0
    %p90 = por %p88, %p89
    %p91 = scmp.ne.s32.totalorder %s79, %s80
    %p92 = scmp.eq.s32.totalorder %s28, 1
    %p93 = por %p91, %p92
    %p95 = scmp.ne.s32.totalorder %s80, %s94
    %p96 = scmp.eq.s32.totalorder %s28, 0
    %p97 = por %p95, %p96
    %s99 = sadd.s32 %s98, 1
    %p102 = scmp.eq.s32.totalorder %s22, 1
    %p103 = scmp.ne.s32.totalorder %s98, %s100
    %p104 = scmp.eq.s32.totalorder %s22, 0
    %p105 = por %p103, %p104
    %p106 = scmp.ne.s32.totalorder %s98, %s100
    %p107 = scmp.eq.s32.totalorder %s27, 1
    %p108 = por %p106, %p107
    %p109 = scmp.ne.s32.totalorder %s100, %s101
    %p110 = scmp.eq.s32.totalorder %s27, 0
    %p111 = por %p109, %p110
    %p112 = scmp.ne.s32.totalorder %s100, %s101
    %p113 = scmp.eq.s32.totalorder %s28, 1
    %p114 = por %p112, %p113
    %p116 = scmp.ne.s32.totalorder %s101, %s115
    %p117 = scmp.eq.s32.totalorder %s28, 0
    %p118 = por %p116, %p117
    %s120 = sadd.s32 %s119, 1
    %p123 = scmp.eq.s32.totalorder %s22, 1
    %p124 = scmp.ne.s32.totalorder %s119, %s121
    %p125 = scmp.eq.s32.totalorder %s22, 0
    %p126 = por %p124, %p125
    %p127 = scmp.ne.s32.totalorder %s119, %s121
    %p128 = scmp.eq.s32.totalorder %s27, 1
    %p129 = por %p127, %p128
    %p130 = scmp.ne.s32.totalorder %s121, %s122
    %p131 = scmp.eq.s32.totalorder %s27, 0
    %p132 = por %p130, %p131
    %p133 = scmp.ne.s32.totalorder %s121, %s122
    %p134 = scmp.eq.s32.totalorder %s28, 1
    %p135 = por %p133, %p134
    %p137 = scmp.ne.s32.totalorder %s122, %s136
    %p138 = scmp.eq.s32.totalorder %s28, 0
    %p139 = por %p137, %p138
    %s141 = sadd.s32 %s140, 1
    %p144 = scmp.eq.s32.totalorder %s22, 1
    %p145 = scmp.ne.s32.totalorder %s140, %s142
    %p146 = scmp.eq.s32.totalorder %s22, 0
    %p147 = por %p145, %p146
    %p148 = scmp.ne.s32.totalorder %s140, %s142
    %p149 = scmp.eq.s32.totalorder %s27, 1
    %p150 = por %p148, %p149
    %p151 = scmp.ne.s32.totalorder %s142, %s143
    %p152 = scmp.eq.s32.totalorder %s27, 0
    %p153 = por %p151, %p152
    %p154 = scmp.ne.s32.totalorder %s142, %s143
    %p155 = scmp.eq.s32.totalorder %s28, 1
    %p156 = por %p154, %p155
    %p158 = scmp.ne.s32.totalorder %s143, %s157
    %p159 = scmp.eq.s32.totalorder %s28, 0
    %p160 = por %p158, %p159
    %s162 = sadd.s32 %s161, 1
    %p165 = scmp.eq.s32.totalorder %s22, 1
    %p166 = scmp.ne.s32.totalorder %s161, %s163
    %p167 = scmp.eq.s32.totalorder %s22, 0
    %p168 = por %p166, %p167
    %p169 = scmp.ne.s32.totalorder %s161, %s163
    %p170 = scmp.eq.s32.totalorder %s27, 1
    %p171 = por %p169, %p170
    %p172 = scmp.ne.s32.totalorder %s163, %s164
    %p173 = scmp.eq.s32.totalorder %s27, 0
    %p174 = por %p172, %p173
    %p175 = scmp.ne.s32.totalorder %s163, %s164
    %p176 = scmp.eq.s32.totalorder %s28, 1
    %p177 = por %p175, %p176
    %p179 = scmp.ne.s32.totalorder %s164, %s178
    %p180 = scmp.eq.s32.totalorder %s28, 0
    %p181 = por %p179, %p180
    %s183 = sadd.s32 %s182, 1
    %p186 = scmp.eq.s32.totalorder %s22, 1
    %p187 = scmp.ne.s32.totalorder %s182, %s184
    %p188 = scmp.eq.s32.totalorder %s22, 0
    %p189 = por %p187, %p188
    %p190 = scmp.ne.s32.totalorder %s182, %s184
    %p191 = scmp.eq.s32.totalorder %s27, 1
    %p192 = por %p190, %p191
    %p193 = scmp.ne.s32.totalorder %s184, %s185
    %p194 = scmp.eq.s32.totalorder %s27, 0
    %p195 = por %p193, %p194
    %p196 = scmp.ne.s32.totalorder %s184, %s185
    %p197 = scmp.eq.s32.totalorder %s28, 1
    %p198 = por %p196, %p197
    %p200 = scmp.ne.s32.totalorder %s185, %s199
    %p201 = scmp.eq.s32.totalorder %s28, 0
    %p202 = por %p200, %p201
    %s204 = sadd.s32 %s203, 1
    %p207 = scmp.eq.s32.totalorder %s22, 1
    %p208 = scmp.ne.s32.totalorder %s203, %s205
    %p209 = scmp.eq.s32.totalorder %s22, 0
    %p210 = por %p208, %p209
    %p211 = scmp.ne.s32.totalorder %s203, %s205
    %p212 = scmp.eq.s32.totalorder %s27, 1
    %p213 = por %p211, %p212
    %p214 = scmp.ne.s32.totalorder %s205, %s206
    %p215 = scmp.eq.s32.totalorder %s27, 0
    %p216 = por %p214, %p215
    %p217 = scmp.ne.s32.totalorder %s205, %s206
    %p218 = scmp.eq.s32.totalorder %s28, 1
    %p219 = por %p217, %p218
    %p221 = scmp.ne.s32.totalorder %s206, %s220
    %p222 = scmp.eq.s32.totalorder %s28, 0
    %p223 = por %p221, %p222
    %s225 = sadd.s32 %s224, 1
    %p228 = scmp.eq.s32.totalorder %s22, 1
    %p229 = scmp.ne.s32.totalorder %s224, %s226
    %p230 = scmp.eq.s32.totalorder %s22, 0
    %p231 = por %p229, %p230
    %p232 = scmp.ne.s32.totalorder %s224, %s226
    %p233 = scmp.eq.s32.totalorder %s27, 1
    %p234 = por %p232, %p233
    %p235 = scmp.ne.s32.totalorder %s226, %s227
    %p236 = scmp.eq.s32.totalorder %s27, 0
    %p237 = por %p235, %p236
    %p238 = scmp.ne.s32.totalorder %s226, %s227
    %p239 = scmp.eq.s32.totalorder %s28, 1
    %p240 = por %p238, %p239
    %p242 = scmp.ne.s32.totalorder %s227, %s241
    %p243 = scmp.eq.s32.totalorder %s28, 0
    %p244 = por %p242, %p243
    %s246 = sadd.s32 %s245, 1
    %p249 = scmp.eq.s32.totalorder %s22, 1
    %p250 = scmp.ne.s32.totalorder %s245, %s247
    %p251 = scmp.eq.s32.totalorder %s22, 0
    %p252 = por %p250, %p251
    %p253 = scmp.ne.s32.totalorder %s245, %s247
    %p254 = scmp.eq.s32.totalorder %s27, 1
    %p255 = por %p253, %p254
    %p256 = scmp.ne.s32.totalorder %s247, %s248
    %p257 = scmp.eq.s32.totalorder %s27, 0
    %p258 = por %p256, %p257
    %p259 = scmp.ne.s32.totalorder %s247, %s248
    %p260 = scmp.eq.s32.totalorder %s28, 1
    %p261 = por %p259, %p260
    %p263 = scmp.ne.s32.totalorder %s248, %s262
    %p264 = scmp.eq.s32.totalorder %s28, 0
    %p265 = por %p263, %p264
    %s267 = sadd.s32 %s266, 1
    %p270 = scmp.eq.s32.totalorder %s22, 1
    %p271 = scmp.ne.s32.totalorder %s266, %s268
    %p272 = scmp.eq.s32.totalorder %s22, 0
    %p273 = por %p271, %p272
    %p274 = scmp.ne.s32.totalorder %s266, %s268
    %p275 = scmp.eq.s32.totalorder %s27, 1
    %p276 = por %p274, %p275
    %p277 = scmp.ne.s32.totalorder %s268, %s269
    %p278 = scmp.eq.s32.totalorder %s27, 0
    %p279 = por %p277, %p278
    %p280 = scmp.ne.s32.totalorder %s268, %s269
    %p281 = scmp.eq.s32.totalorder %s28, 1
    %p282 = por %p280, %p281
    %p284 = scmp.ne.s32.totalorder %s269, %s283
    %p285 = scmp.eq.s32.totalorder %s28, 0
    %p286 = por %p284, %p285
    %s288 = sadd.s32 %s287, 1
    %p291 = scmp.eq.s32.totalorder %s22, 1
    %p292 = scmp.ne.s32.totalorder %s287, %s289
    %p293 = scmp.eq.s32.totalorder %s22, 0
    %p294 = por %p292, %p293
    %p295 = scmp.ne.s32.totalorder %s287, %s289
    %p296 = scmp.eq.s32.totalorder %s27, 1
    %p297 = por %p295, %p296
    %p298 = scmp.ne.s32.totalorder %s289, %s290
    %p299 = scmp.eq.s32.totalorder %s27, 0
    %p300 = por %p298, %p299
    %p301 = scmp.ne.s32.totalorder %s289, %s290
    %p302 = scmp.eq.s32.totalorder %s28, 1
    %p303 = por %p301, %p302
    %p305 = scmp.ne.s32.totalorder %s290, %s304
    %p306 = scmp.eq.s32.totalorder %s28, 0
    %p307 = por %p305, %p306
    %s309 = sadd.s32 %s308, 1
    %p312 = scmp.eq.s32.totalorder %s22, 1
    %p313 = scmp.ne.s32.totalorder %s308, %s310
    %p314 = scmp.eq.s32.totalorder %s22, 0
    %p315 = por %p313, %p314
    %p316 = scmp.ne.s32.totalorder %s308, %s310
    %p317 = scmp.eq.s32.totalorder %s27, 1
    %p318 = por %p316, %p317
    %p319 = scmp.ne.s32.totalorder %s310, %s311
    %p320 = scmp.eq.s32.totalorder %s27, 0
    %p321 = por %p319, %p320
    %p322 = scmp.ne.s32.totalorder %s310, %s311
    %p323 = scmp.eq.s32.totalorder %s28, 1
    %p324 = por %p322, %p323
    %p326 = scmp.ne.s32.totalorder %s311, %s325
    %p327 = scmp.eq.s32.totalorder %s28, 0
    %p328 = por %p326, %p327
    %s329 = ssub.s32 %s22, %s29
    %p330 = scmp.eq.s32.totalorder %s329, 0
    %s332 = sadd.s32 %s331, 1
    %s333 = scalar_select %p330, %s331, %s332
    %p336 = pneg %p330
    %p337 = scmp.eq.s32.totalorder %s22, 1
    %p338 = por %p336, %p337
    %p339 = scmp.ne.s32.totalorder %s331, %s334
    %p340 = scmp.eq.s32.totalorder %s22, 0
    %p341 = por %p339, %p340
    %p342 = scmp.ne.s32.totalorder %s331, %s334
    %p343 = scmp.eq.s32.totalorder %s27, 1
    %p344 = por %p342, %p343
    %p345 = scmp.ne.s32.totalorder %s334, %s335
    %p346 = scmp.eq.s32.totalorder %s27, 0
    %p347 = por %p345, %p346
    %p348 = scmp.ne.s32.totalorder %s334, %s335
    %p349 = scmp.eq.s32.totalorder %s28, 1
    %p350 = por %p348, %p349
    %p352 = scmp.ne.s32.totalorder %s335, %s351
    %p353 = scmp.eq.s32.totalorder %s28, 0
    %p354 = por %p352, %p353
    %s355 = ssub.s32 %s22, %s29
    %p356 = scmp.eq.s32.totalorder %s355, 0
    %s358 = sadd.s32 %s357, 1
    %s359 = scalar_select %p356, %s357, %s358
    %p362 = pneg %p356
    %p363 = scmp.eq.s32.totalorder %s22, 1
    %p364 = por %p362, %p363
    %p365 = scmp.ne.s32.totalorder %s357, %s360
    %p366 = scmp.eq.s32.totalorder %s22, 0
    %p367 = por %p365, %p366
    %p368 = scmp.ne.s32.totalorder %s357, %s360
    %p369 = scmp.eq.s32.totalorder %s27, 1
    %p370 = por %p368, %p369
    %p371 = scmp.ne.s32.totalorder %s360, %s361
    %p372 = scmp.eq.s32.totalorder %s27, 0
    %p373 = por %p371, %p372
    %p374 = scmp.ne.s32.totalorder %s360, %s361
    %p375 = scmp.eq.s32.totalorder %s28, 1
    %p376 = por %p374, %p375
    %p378 = scmp.ne.s32.totalorder %s361, %s377
    %p379 = scmp.eq.s32.totalorder %s28, 0
    %p380 = por %p378, %p379
    %p381 = scmp.le.s32.totalorder 1, %s22
    %p382 = scmp.lt.s32.totalorder %s22, 3
    %p383 = pnand %p381, %p382
    %p384 = pneg %p383
    // Predicated region
    $region9: #{mixed_4a.1} parent=5 // pred_check
      _
    $region10: #{mixed_4a.1} parent=5 // pred_check_branch
      %386 = sbr.rel (%p383) target = $region12
    $region11: #{mixed_4a.1} parent=5 // pred_region
      %s387 = ssub.s32 %s22, 1
      // Predicated region
      $region13: #{mixed_4a.1} parent=11 // pred_check
        %p388 = pneg %p69
      $region14: #{mixed_4a.1} parent=11 // pred_check_branch
        %390 = sbr.rel (%p388) target = $region16
      $region15: #{mixed_4a.1} parent=11 // pred_region
        _
      $region16: #{mixed_4a.1} parent=11 // pred_fallthru
        _
      // Predicated region
      $region17: #{mixed_4a.1} parent=11 // pred_check
        %p391 = pneg %p90
      $region18: #{mixed_4a.1} parent=11 // pred_check_branch
        %393 = sbr.rel (%p391) target = $region20
      $region19: #{mixed_4a.1} parent=11 // pred_region
        _
      $region20: #{mixed_4a.1} parent=11 // pred_fallthru
        _
      // Predicated region
      $region21: #{mixed_4a.1} parent=11 // pred_check
        %p394 = pneg %p111
      $region22: #{mixed_4a.1} parent=11 // pred_check_branch
        %396 = sbr.rel (%p394) target = $region24
      $region23: #{mixed_4a.1} parent=11 // pred_region
        _
      $region24: #{mixed_4a.1} parent=11 // pred_fallthru
        _
      // Predicated region
      $region25: #{mixed_4a.1} parent=11 // pred_check
        %p397 = pneg %p132
      $region26: #{mixed_4a.1} parent=11 // pred_check_branch
        %399 = sbr.rel (%p397) target = $region28
      $region27: #{mixed_4a.1} parent=11 // pred_region
        _
      $region28: #{mixed_4a.1} parent=11 // pred_fallthru
        _
      // Predicated region
      $region29: #{mixed_4a.1} parent=11 // pred_check
        %p400 = pneg %p153
      $region30: #{mixed_4a.1} parent=11 // pred_check_branch
        %402 = sbr.rel (%p400) target = $region32
      $region31: #{mixed_4a.1} parent=11 // pred_region
        _
      $region32: #{mixed_4a.1} parent=11 // pred_fallthru
        _
      // Predicated region
      $region33: #{mixed_4a.1} parent=11 // pred_check
        %p403 = pneg %p174
      $region34: #{mixed_4a.1} parent=11 // pred_check_branch
        %405 = sbr.rel (%p403) target = $region36
      $region35: #{mixed_4a.1} parent=11 // pred_region
        _
      $region36: #{mixed_4a.1} parent=11 // pred_fallthru
        _
      // Predicated region
      $region37: #{mixed_4a.1} parent=11 // pred_check
        %p406 = pneg %p195
      $region38: #{mixed_4a.1} parent=11 // pred_check_branch
        %408 = sbr.rel (%p406) target = $region40
      $region39: #{mixed_4a.1} parent=11 // pred_region
        _
      $region40: #{mixed_4a.1} parent=11 // pred_fallthru
        _
      // Predicated region
      $region41: #{mixed_4a.1} parent=11 // pred_check
        %p409 = pneg %p216
      $region42: #{mixed_4a.1} parent=11 // pred_check_branch
        %411 = sbr.rel (%p409) target = $region44
      $region43: #{mixed_4a.1} parent=11 // pred_region
        _
      $region44: #{mixed_4a.1} parent=11 // pred_fallthru
        _
      // Predicated region
      $region45: #{mixed_4a.1} parent=11 // pred_check
        %p412 = pneg %p237
      $region46: #{mixed_4a.1} parent=11 // pred_check_branch
        %414 = sbr.rel (%p412) target = $region48
      $region47: #{mixed_4a.1} parent=11 // pred_region
        _
      $region48: #{mixed_4a.1} parent=11 // pred_fallthru
        _
      // Predicated region
      $region49: #{mixed_4a.1} parent=11 // pred_check
        %p415 = pneg %p258
      $region50: #{mixed_4a.1} parent=11 // pred_check_branch
        %417 = sbr.rel (%p415) target = $region52
      $region51: #{mixed_4a.1} parent=11 // pred_region
        _
      $region52: #{mixed_4a.1} parent=11 // pred_fallthru
        _
      // Predicated region
      $region53: #{mixed_4a.1} parent=11 // pred_check
        %p418 = pneg %p279
      $region54: #{mixed_4a.1} parent=11 // pred_check_branch
        %420 = sbr.rel (%p418) target = $region56
      $region55: #{mixed_4a.1} parent=11 // pred_region
        _
      $region56: #{mixed_4a.1} parent=11 // pred_fallthru
        _
      // Predicated region
      $region57: #{mixed_4a.1} parent=11 // pred_check
        %p421 = pneg %p300
      $region58: #{mixed_4a.1} parent=11 // pred_check_branch
        %423 = sbr.rel (%p421) target = $region60
      $region59: #{mixed_4a.1} parent=11 // pred_region
        _
      $region60: #{mixed_4a.1} parent=11 // pred_fallthru
        _
      // Predicated region
      $region61: #{mixed_4a.1} parent=11 // pred_check
        %p424 = pneg %p321
      $region62: #{mixed_4a.1} parent=11 // pred_check_branch
        %426 = sbr.rel (%p424) target = $region64
      $region63: #{mixed_4a.1} parent=11 // pred_region
        _
      $region64: #{mixed_4a.1} parent=11 // pred_fallthru
        _
    $region12: #{mixed_4a.1} parent=5 // pred_fallthru
      _
    %p427 = scmp.lt.s32.totalorder %s22, 2
    // Predicated region
    $region65: #{mixed_4a.1} parent=5 // pred_check
      %p428 = pneg %p427
    $region66: #{mixed_4a.1} parent=5 // pred_check_branch
      %430 = sbr.rel (%p428) target = $region68
    $region67: #{mixed_4a.1} parent=5 // pred_region
      // Predicated region
      $region69: #{mixed_4a.1} parent=67 // pred_check
        %p431 = pneg %p42
      $region70: #{mixed_4a.1} parent=67 // pred_check_branch
        %433 = sbr.rel (%p431) target = $region72
      $region71: #{mixed_4a.1} parent=67 // pred_region
        %p434 = scmp.lt.s32.totalorder %s22, 1
        %s435 = scalar_select %p434, %s22, 1
        %s436 = smul.addr %s435, 208
        %s437 = smul.addr %s436, 8
        %s438 = scalar_lea.vmem %s0, %s437
      $region72: #{mixed_4a.1} parent=67 // pred_fallthru
        _
    $region68: #{mixed_4a.1} parent=5 // pred_fallthru
      _
    %p439 = scmp.le.s32.totalorder 1, %s22
    %p440 = scmp.lt.s32.totalorder %s22, 3
    %p441 = pnand %p439, %p440
    %p442 = pneg %p441
    // Predicated region
    $region73: #{mixed_4a.1} parent=5 // pred_check
      _
    $region74: #{mixed_4a.1} parent=5 // pred_check_branch
      %444 = sbr.rel (%p441) target = $region76
    $region75: #{mixed_4a.1} parent=5 // pred_region
      %s445 = ssub.s32 %s22, 1
      %p446 = scmp.lt.s32.totalorder %s27, 1
      %s447 = scalar_select %p446, %s27, 1
      %s448 = smul.addr %s447, 208
      %s449 = smul.addr %s448, 8
      %s450 = scalar_lea.vmem %s0, %s449
      %p451 = pneg %p48
      %p452 = pneg %p45
      %p453 = pneg %p69
      %p454 = pneg %p66
      %p455 = pneg %p90
      %p456 = pneg %p87
      %p457 = pneg %p111
      %p458 = pneg %p108
      %p459 = pneg %p132
      %p460 = pneg %p129
      %p461 = pneg %p153
      %p462 = pneg %p150
      %p463 = pneg %p174
      %p464 = pneg %p171
      %p465 = pneg %p195
      %p466 = pneg %p192
      %p467 = pneg %p216
      %p468 = pneg %p213
      %p469 = pneg %p237
      %p470 = pneg %p234
      %p471 = pneg %p258
      %p472 = pneg %p255
      %p473 = pneg %p279
      %p474 = pneg %p276
      %p475 = pneg %p300
      %p476 = pneg %p297
      %p477 = pneg %p321
      %p478 = pneg %p318
      %p479 = pneg %p347
      %p480 = pneg %p344
      %p481 = scmp.lt.s32.totalorder %s27, 1
      %s482 = scalar_select %p481, %s27, 1
      %s483 = smul.addr %s482, 18
      %s484 = smul.addr %s483, 8
      %s485 = scalar_lea.vmem %s14, %s484
      %p486 = pneg %p373
      %p487 = pneg %p370
      %p488 = scmp.lt.s32.totalorder %s27, 1
      %s489 = scalar_select %p488, %s27, 1
      %s490 = smul.addr %s489, 18
      %s491 = smul.addr %s490, 8
      %s492 = scalar_lea.vmem %s15, %s491
      %p493 = scmp.lt.s32.totalorder %s27, 1
      %s494 = scalar_select %p493, %s27, 1
      %s495 = smul.addr %s494, 208
      %s496 = smul.addr %s495, 8
      %s497 = scalar_lea.vmem %s0, %s496
      %p498 = scmp.lt.s32.totalorder %s27, 1
      %s499 = scalar_select %p498, %s27, 1
      %s500 = smul.addr %s499, 18
      %s501 = smul.addr %s500, 8
      %s502 = scalar_lea.vmem %s14, %s501
      %p503 = scmp.lt.s32.totalorder %s27, 1
      %s504 = scalar_select %p503, %s27, 1
      %s505 = smul.addr %s504, 18
      %s506 = smul.addr %s505, 8
      %s507 = scalar_lea.vmem %s15, %s506
      %v508 = vld [vmem:[%s13] sm:$0xff]
      %v509 = vld [vmem:[%s13 + $0x8] sm:$0xff]
      %v510 = vld [vmem:[%s13 + $0x10] sm:$0xff]
      %v511 = vld [vmem:[%s13 + $0x18] sm:$0xff]
      %v512 = vld [vmem:[%s13 + $0x20] sm:$0xff]
      %v513 = vld [vmem:[%s13 + $0x28] sm:$0xff]
      %v514 = vld [vmem:[%s13 + $0x30] sm:$0xff]
      %v515 = vld [vmem:[%s13 + $0x38] sm:$0xff]
      %v516 = vld [vmem:[%s13 + $0x40] sm:$0xff]
      %v517 = vld [vmem:[%s13 + $0x48] sm:$0xff]
      %v518 = vld [vmem:[%s13 + $0x50] sm:$0xff]
      %v519 = vld [vmem:[%s13 + $0x58] sm:$0xff]
      %v520 = vld [vmem:[%s13 + $0x60] sm:$0xff]
      %v521 = vld [vmem:[%s13 + $0x68] sm:$0xff]
      %v522 = vld [vmem:[%s13 + $0x70] sm:$0xff]
      %v523 = vld [vmem:[%s13 + $0x78] sm:$0xff]
      %v524 = vld [vmem:[%s13 + $0x80] sm:$0xff]
      %v525 = vld [vmem:[%s13 + $0x88] sm:$0xff]
      loop: start=0, step=1, limit=3
      $region77: #{mixed_4a.1} parent=75 // loop_pre_header
        _
      $region78: #{mixed_4a.1} parent=75 // loop_header
        %s527 = sphi 0, %s531
        %p528 = scmp.ge.s32.totalorder %s527, 3
      $region79: #{mixed_4a.1} parent=75 // loop_header_branch
        %530 = sbr.rel (%p528) target = $region83
      $region80: #{mixed_4a.1} parent=75 // loop_body
        %s532 = smul.u32 %s527, 6
        %s533 = smul.u32 %s532, 8
        %s534 = smul.addr %s533, 8
        %s535 = scalar_lea.vmem %s497, %s534
        %v536 = vld [vmem:[%s535] sm:$0xff]
        %v537 = vld [vmem:[%s535 + $0x8] sm:$0xff]
        %v538 = vld [vmem:[%s535 + $0x10] sm:$0xff]
        %v539 = vld [vmem:[%s535 + $0x18] sm:$0xff]
        %v540 = vld [vmem:[%s535 + $0x20] sm:$0xff]
        %v541 = vld [vmem:[%s535 + $0x28] sm:$0xff]
        %v542 = vld [vmem:[%s535 + $0x40] sm:$0xff]
        %v543 = vld [vmem:[%s535 + $0x48] sm:$0xff]
        %v544 = vld [vmem:[%s535 + $0x50] sm:$0xff]
        %v545 = vld [vmem:[%s535 + $0x58] sm:$0xff]
        %v546 = vld [vmem:[%s535 + $0x60] sm:$0xff]
        %v547 = vld [vmem:[%s535 + $0x68] sm:$0xff]
        %v548 = vld [vmem:[%s535 + $0x80] sm:$0xff]
        %v549 = vld [vmem:[%s535 + $0x88] sm:$0xff]
        %v550 = vld [vmem:[%s535 + $0x90] sm:$0xff]
        %v551 = vld [vmem:[%s535 + $0x98] sm:$0xff]
        %v552 = vld [vmem:[%s535 + $0xa0] sm:$0xff]
        %v553 = vld [vmem:[%s535 + $0xa8] sm:$0xff]
        %v554 = vld [vmem:[%s535 + $0xc0] sm:$0xff]
        %v555 = vld [vmem:[%s535 + $0xc8] sm:$0xff]
        %v556 = vld [vmem:[%s535 + $0xd0] sm:$0xff]
        %v557 = vld [vmem:[%s535 + $0xd8] sm:$0xff]
        %v558 = vld [vmem:[%s535 + $0xe0] sm:$0xff]
        %v559 = vld [vmem:[%s535 + $0xe8] sm:$0xff]
        %v560 = vld [vmem:[%s535 + $0x100] sm:$0xff]
        %v561 = vld [vmem:[%s535 + $0x108] sm:$0xff]
        %v562 = vld [vmem:[%s535 + $0x110] sm:$0xff]
        %v563 = vld [vmem:[%s535 + $0x118] sm:$0xff]
        %v564 = vld [vmem:[%s535 + $0x120] sm:$0xff]
        %v565 = vld [vmem:[%s535 + $0x128] sm:$0xff]
        %v566 = vld [vmem:[%s535 + $0x140] sm:$0xff]
        %v567 = vld [vmem:[%s535 + $0x148] sm:$0xff]
        %v568 = vld [vmem:[%s535 + $0x150] sm:$0xff]
        %v569 = vld [vmem:[%s535 + $0x158] sm:$0xff]
        %v570 = vld [vmem:[%s535 + $0x160] sm:$0xff]
        %v571 = vld [vmem:[%s535 + $0x168] sm:$0xff]
        %v572 = vld [vmem:[%s1] sm:$0xff]
        %v573 = vld [vmem:[%s1 + $0x8] sm:$0xff]
        %v574 = vld [vmem:[%s1 + $0x10] sm:$0xff]
        %v575 = vld [vmem:[%s1 + $0x18] sm:$0xff]
        %v576 = vld [vmem:[%s1 + $0x20] sm:$0xff]
        %v577 = vld [vmem:[%s1 + $0x28] sm:$0xff]
        %v578 = vld [vmem:[%s1 + $0x30] sm:$0xff]
        %v579 = vld [vmem:[%s1 + $0x38] sm:$0xff]
        %v580 = vld [vmem:[%s1 + $0x40] sm:$0xff]
        %v581 = vld [vmem:[%s1 + $0x48] sm:$0xff]
        %v582 = vld [vmem:[%s1 + $0x50] sm:$0xff]
        %v583 = vld [vmem:[%s1 + $0x58] sm:$0xff]
        %v584 = vld [vmem:[%s1 + $0x60] sm:$0xff]
        %v585 = vld [vmem:[%s1 + $0x68] sm:$0xff]
        %v586 = vld [vmem:[%s1 + $0x70] sm:$0xff]
        %v587 = vld [vmem:[%s1 + $0x78] sm:$0xff]
        %v588 = vld [vmem:[%s1 + $0x80] sm:$0xff]
        %v589 = vld [vmem:[%s1 + $0x88] sm:$0xff]
        %v590 = vld [vmem:[%s1 + $0x90] sm:$0xff]
        %v591 = vld [vmem:[%s1 + $0x98] sm:$0xff]
        %v592 = vld [vmem:[%s2] sm:$0x1]
        %v594 = vlaneseq
        %v595 = vshrl.u32 %v594, 7
        %v596 = vsub.s32 0, %v595
        %v597 = vrot.slane %v592, %v596
        %vm599 = vcmask 261120
        %v601 = vsel %vm599, %v537, 0
        %v604 = vsel %vm599, %v539, 0
        %v607 = vsel %vm599, %v541, 0
        %v610 = vsel %vm599, %v543, 0
        %v613 = vsel %vm599, %v545, 0
        %v616 = vsel %vm599, %v547, 0
        %v619 = vsel %vm599, %v549, 0
        %v622 = vsel %vm599, %v551, 0
        %v625 = vsel %vm599, %v553, 0
        %v628 = vsel %vm599, %v555, 0
        %v631 = vsel %vm599, %v557, 0
        %v634 = vsel %vm599, %v559, 0
        %v637 = vsel %vm599, %v561, 0
        %v640 = vsel %vm599, %v563, 0
        %v643 = vsel %vm599, %v565, 0
        %v646 = vsel %vm599, %v567, 0
        %v649 = vsel %vm599, %v569, 0
        %v652 = vsel %vm599, %v571, 0
        %654 = vmatprep.subr.mxu0 0.0
        %655 = vmatpush1.msra.mxu0 %v587
        %656 = vmatprep.subr.mxu0 0.0
        %657 = vmatpush1.msra.mxu0 %v586
        %658 = vmatprep.subr.mxu0 0.0
        %659 = vmatpush1.msra.mxu0 %v585
        %660 = vmatprep.subr.mxu0 0.0
        %661 = vmatpush1.msra.mxu0 %v584
        %662 = vmatprep.subr.mxu0 0.0
        %663 = vmatpush1.msra.mxu0 %v583
        %664 = vmatprep.subr.mxu0 0.0
        %665 = vmatpush1.msra.mxu0 %v582
        %666 = vmatprep.subr.mxu0 0.0
        %667 = vmatpush1.msra.mxu0 %v581
        %668 = vmatprep.subr.mxu0 0.0
        %669 = vmatpush1.msra.mxu0 %v580
        %670 = vmatprep.subr.mxu0 0.0
        %671 = vmatpush1.msra.mxu0 %v579
        %672 = vmatprep.subr.mxu0 0.0
        %673 = vmatpush1.msra.mxu0 %v578
        %674 = vmatprep.subr.mxu0 0.0
        %675 = vmatpush1.msra.mxu0 %v577
        %676 = vmatprep.subr.mxu0 0.0
        %677 = vmatpush1.msra.mxu0 %v576
        %678 = vmatprep.subr.mxu0 0.0
        %679 = vmatpush1.msra.mxu0 %v575
        %680 = vmatprep.subr.mxu0 0.0
        %681 = vmatpush1.msra.mxu0 %v574
        %682 = vmatprep.subr.mxu0 0.0
        %683 = vmatpush1.msra.mxu0 %v573
        %684 = vmatprep.subr.mxu0 0.0
        %685 = vmatpush1.msra.mxu0 %v572
        %686 = vmatprep.subr.mxu0 0.0
        %687 = vmatpush2.msra.mxu0 0.0
        %688 = vmatprep.subr.mxu0 0.0
        %689 = vmatpush2.msra.mxu0 0.0
        %690 = vmatprep.subr.mxu0 0.0
        %691 = vmatpush2.msra.mxu0 0.0
        %692 = vmatprep.subr.mxu0 0.0
        %693 = vmatpush2.msra.mxu0 0.0
        %694 = vmatprep.subr.mxu0 0.0
        %695 = vmatpush2.msra.mxu0 0.0
        %696 = vmatprep.subr.mxu0 0.0
        %697 = vmatpush2.msra.mxu0 0.0
        %698 = vmatprep.subr.mxu0 0.0
        %699 = vmatpush2.msra.mxu0 0.0
        %700 = vmatprep.subr.mxu0 0.0
        %701 = vmatpush2.msra.mxu0 0.0
        %702 = vmatprep.subr.mxu0 0.0
        %703 = vmatpush2.msra.mxu0 0.0
        %704 = vmatprep.subr.mxu0 0.0
        %705 = vmatpush2.msra.mxu0 0.0
        %706 = vmatprep.subr.mxu0 0.0
        %707 = vmatpush2.msra.mxu0 0.0
        %708 = vmatprep.subr.mxu0 0.0
        %709 = vmatpush2.msra.mxu0 0.0
        %710 = vmatprep.subr.mxu0 0.0
        %711 = vmatpush2.msra.mxu0 %v591
        %712 = vmatprep.subr.mxu0 0.0
        %713 = vmatpush2.msra.mxu0 %v590
        %714 = vmatprep.subr.mxu0 0.0
        %715 = vmatpush2.msra.mxu0 %v589
        %716 = vmatprep.subr.mxu0 0.0
        %717 = vmatpush2.msra.mxu0 %v588
        %718 = vmatprep.mubr.f32.mxu0 %v601
        %719 = vmatmul.mubr.f32.gmra.mxu0 %v536
        %v720 = vpop.f32.mrf.mxu0
        %v721 = vadd.f32 %v597, %v720
        %v722 = vpop.f32.mrf.mxu0
        %723 = vmatprep.mubr.f32.mxu0 %v604
        %724 = vmatmul.mubr.f32.gmra.mxu0 %v538
        %v725 = vpop.f32.mrf.mxu0
        %v726 = vadd.f32 %v597, %v725
        %v727 = vpop.f32.mrf.mxu0
        %728 = vmatprep.mubr.f32.mxu0 %v607
        %729 = vmatmul.mubr.f32.gmra.mxu0 %v540
        %v730 = vpop.f32.mrf.mxu0
        %v731 = vadd.f32 %v597, %v730
        %v732 = vpop.f32.mrf.mxu0
        %733 = vmatprep.mubr.f32.mxu0 %v610
        %734 = vmatmul.mubr.f32.gmra.mxu0 %v542
        %v735 = vpop.f32.mrf.mxu0
        %v736 = vadd.f32 %v597, %v735
        %v737 = vpop.f32.mrf.mxu0
        %738 = vmatprep.mubr.f32.mxu0 %v613
        %739 = vmatmul.mubr.f32.gmra.mxu0 %v544
        %v740 = vpop.f32.mrf.mxu0
        %v741 = vadd.f32 %v597, %v740
        %v742 = vpop.f32.mrf.mxu0
        %743 = vmatprep.mubr.f32.mxu0 %v616
        %744 = vmatmul.mubr.f32.gmra.mxu0 %v546
        %v745 = vpop.f32.mrf.mxu0
        %v746 = vadd.f32 %v597, %v745
        %v747 = vpop.f32.mrf.mxu0
        %748 = vmatprep.mubr.f32.mxu0 %v619
        %749 = vmatmul.mubr.f32.gmra.mxu0 %v548
        %v750 = vpop.f32.mrf.mxu0
        %v751 = vadd.f32 %v597, %v750
        %v752 = vpop.f32.mrf.mxu0
        %753 = vmatprep.mubr.f32.mxu0 %v622
        %754 = vmatmul.mubr.f32.gmra.mxu0 %v550
        %v755 = vpop.f32.mrf.mxu0
        %v756 = vadd.f32 %v597, %v755
        %v757 = vpop.f32.mrf.mxu0
        %758 = vmatprep.mubr.f32.mxu0 %v625
        %759 = vmatmul.mubr.f32.gmra.mxu0 %v552
        %v760 = vpop.f32.mrf.mxu0
        %v761 = vadd.f32 %v597, %v760
        %v762 = vpop.f32.mrf.mxu0
        %763 = vmatprep.mubr.f32.mxu0 %v628
        %764 = vmatmul.mubr.f32.gmra.mxu0 %v554
        %v765 = vpop.f32.mrf.mxu0
        %v766 = vadd.f32 %v597, %v765
        %v767 = vpop.f32.mrf.mxu0
        %768 = vmatprep.mubr.f32.mxu0 %v631
        %769 = vmatmul.mubr.f32.gmra.mxu0 %v556
        %v770 = vpop.f32.mrf.mxu0
        %v771 = vadd.f32 %v597, %v770
        %v772 = vpop.f32.mrf.mxu0
        %773 = vmatprep.mubr.f32.mxu0 %v634
        %774 = vmatmul.mubr.f32.gmra.mxu0 %v558
        %v775 = vpop.f32.mrf.mxu0
        %v776 = vadd.f32 %v597, %v775
        %v777 = vpop.f32.mrf.mxu0
        %778 = vmatprep.mubr.f32.mxu0 %v637
        %779 = vmatmul.mubr.f32.gmra.mxu0 %v560
        %v780 = vpop.f32.mrf.mxu0
        %v781 = vadd.f32 %v597, %v780
        %v782 = vpop.f32.mrf.mxu0
        %783 = vmatprep.mubr.f32.mxu0 %v640
        %784 = vmatmul.mubr.f32.gmra.mxu0 %v562
        %v785 = vpop.f32.mrf.mxu0
        %v786 = vadd.f32 %v597, %v785
        %v787 = vpop.f32.mrf.mxu0
        %788 = vmatprep.mubr.f32.mxu0 %v643
        %789 = vmatmul.mubr.f32.gmra.mxu0 %v564
        %v790 = vpop.f32.mrf.mxu0
        %v791 = vadd.f32 %v597, %v790
        %v792 = vpop.f32.mrf.mxu0
        %793 = vmatprep.mubr.f32.mxu0 %v646
        %794 = vmatmul.mubr.f32.gmra.mxu0 %v566
        %v795 = vpop.f32.mrf.mxu0
        %v796 = vadd.f32 %v597, %v795
        %v797 = vpop.f32.mrf.mxu0
        %798 = vmatprep.mubr.f32.mxu0 %v649
        %799 = vmatmul.mubr.f32.gmra.mxu0 %v568
        %v800 = vpop.f32.mrf.mxu0
        %v801 = vadd.f32 %v597, %v800
        %v802 = vpop.f32.mrf.mxu0
        %803 = vmatprep.mubr.f32.mxu0 %v652
        %804 = vmatmul.mubr.f32.gmra.mxu0 %v570
        %v805 = vpop.f32.mrf.mxu0
        %v806 = vadd.f32 %v597, %v805
        %v807 = vpop.f32.mrf.mxu0
        %808 = vdwg.mxu0
        %v809 = vmax.f32 %v721, 0.0
        %v810 = vmax.f32 %v726, 0.0
        %v811 = vmax.f32 %v731, 0.0
        %v812 = vmax.f32 %v736, 0.0
        %v813 = vmax.f32 %v741, 0.0
        %v814 = vmax.f32 %v746, 0.0
        %v815 = vmax.f32 %v751, 0.0
        %v816 = vmax.f32 %v756, 0.0
        %v817 = vmax.f32 %v761, 0.0
        %v818 = vmax.f32 %v766, 0.0
        %v819 = vmax.f32 %v771, 0.0
        %v820 = vmax.f32 %v776, 0.0
        %v821 = vmax.f32 %v781, 0.0
        %v822 = vmax.f32 %v786, 0.0
        %v823 = vmax.f32 %v791, 0.0
        %v824 = vmax.f32 %v796, 0.0
        %v825 = vmax.f32 %v801, 0.0
        %v826 = vmax.f32 %v806, 0.0
        %s827 = smul.u32 %s532, 32
        %s828 = scalar_lea.vmem [#allocation2], %s827
        %vm829 = vcmask 523264
        %830 = vst.msk [vmem:[%s828] sm:$0xff] %vm829, %v809
        %831 = vst.msk [vmem:[%s828 + $0x8] sm:$0xff] %vm829, %v810
        %832 = vst.msk [vmem:[%s828 + $0x10] sm:$0xff] %vm829, %v811
        %833 = vst.msk [vmem:[%s828 + $0x20] sm:$0xff] %vm829, %v812
        %834 = vst.msk [vmem:[%s828 + $0x28] sm:$0xff] %vm829, %v813
        %835 = vst.msk [vmem:[%s828 + $0x30] sm:$0xff] %vm829, %v814
        %836 = vst.msk [vmem:[%s828 + $0x40] sm:$0xff] %vm829, %v815
        %837 = vst.msk [vmem:[%s828 + $0x48] sm:$0xff] %vm829, %v816
        %838 = vst.msk [vmem:[%s828 + $0x50] sm:$0xff] %vm829, %v817
        %839 = vst.msk [vmem:[%s828 + $0x60] sm:$0xff] %vm829, %v818
        %840 = vst.msk [vmem:[%s828 + $0x68] sm:$0xff] %vm829, %v819
        %841 = vst.msk [vmem:[%s828 + $0x70] sm:$0xff] %vm829, %v820
        %842 = vst.msk [vmem:[%s828 + $0x80] sm:$0xff] %vm829, %v821
        %843 = vst.msk [vmem:[%s828 + $0x88] sm:$0xff] %vm829, %v822
        %844 = vst.msk [vmem:[%s828 + $0x90] sm:$0xff] %vm829, %v823
        %845 = vst.msk [vmem:[%s828 + $0xa0] sm:$0xff] %vm829, %v824
        %846 = vst.msk [vmem:[%s828 + $0xa8] sm:$0xff] %vm829, %v825
        %847 = vst.msk [vmem:[%s828 + $0xb0] sm:$0xff] %vm829, %v826
      $region81: #{mixed_4a.1} parent=75 // loop_footer
        %s531 = sadd.s32 1, %s527
      $region82: #{mixed_4a.1} parent=75 // loop_footer_branch
        %526 = sbr.rel target = $region78
      $region83: #{mixed_4a.1} parent=75 // loop_exit
        _
      loop: start=0, step=1, limit=3
      $region84: #{mixed_4a.1} parent=75 // loop_pre_header
        _
      $region85: #{mixed_4a.1} parent=75 // loop_header
        %s849 = sphi 0, %s853
        %p850 = scmp.ge.s32.totalorder %s849, 3
      $region86: #{mixed_4a.1} parent=75 // loop_header_branch
        %852 = sbr.rel (%p850) target = $region90
      $region87: #{mixed_4a.1} parent=75 // loop_body
        %s854 = smul.u32 %s849, 6
        %s855 = smul.u32 %s854, 32
        %s856 = scalar_lea.vmem [#allocation2], %s855
        %v857 = vld [vmem:[%s856] sm:$0xff]
        %v858 = vld [vmem:[%s856 + $0x8] sm:$0xff]
        %v859 = vld [vmem:[%s856 + $0x10] sm:$0xff]
        %v860 = vld [vmem:[%s856 + $0x20] sm:$0xff]
        %v861 = vld [vmem:[%s856 + $0x28] sm:$0xff]
        %v862 = vld [vmem:[%s856 + $0x30] sm:$0xff]
        %v863 = vld [vmem:[%s856 + $0x40] sm:$0xff]
        %v864 = vld [vmem:[%s856 + $0x48] sm:$0xff]
        %v865 = vld [vmem:[%s856 + $0x50] sm:$0xff]
        %v866 = vld [vmem:[%s856 + $0x60] sm:$0xff]
        %v867 = vld [vmem:[%s856 + $0x68] sm:$0xff]
        %v868 = vld [vmem:[%s856 + $0x70] sm:$0xff]
        %v869 = vld [vmem:[%s856 + $0x80] sm:$0xff]
        %v870 = vld [vmem:[%s856 + $0x88] sm:$0xff]
        %v871 = vld [vmem:[%s856 + $0x90] sm:$0xff]
        %v872 = vld [vmem:[%s856 + $0xa0] sm:$0xff]
        %v873 = vld [vmem:[%s856 + $0xa8] sm:$0xff]
        %v874 = vld [vmem:[%s856 + $0xb0] sm:$0xff]
        %v875 = vld [vmem:[%s3] sm:$0xff]
        %v876 = vld [vmem:[%s3 + $0x8] sm:$0xff]
        %v877 = vld [vmem:[%s3 + $0x10] sm:$0xff]
        %v878 = vld [vmem:[%s3 + $0x18] sm:$0xff]
        %v879 = vld [vmem:[%s3 + $0x20] sm:$0xff]
        %v880 = vld [vmem:[%s3 + $0x28] sm:$0xff]
        %v881 = vld [vmem:[%s3 + $0x30] sm:$0xff]
        %v882 = vld [vmem:[%s3 + $0x38] sm:$0xff]
        %v883 = vld [vmem:[%s856 + $0x1] sm:$0xff]
        %v884 = vld [vmem:[%s856 + $0x9] sm:$0xff]
        %v885 = vld [vmem:[%s856 + $0x11] sm:$0xff]
        %v886 = vld [vmem:[%s856 + $0x21] sm:$0xff]
        %v887 = vld [vmem:[%s856 + $0x29] sm:$0xff]
        %v888 = vld [vmem:[%s856 + $0x31] sm:$0xff]
        %v889 = vld [vmem:[%s856 + $0x41] sm:$0xff]
        %v890 = vld [vmem:[%s856 + $0x49] sm:$0xff]
        %v891 = vld [vmem:[%s856 + $0x51] sm:$0xff]
        %v892 = vld [vmem:[%s856 + $0x61] sm:$0xff]
        %v893 = vld [vmem:[%s856 + $0x69] sm:$0xff]
        %v894 = vld [vmem:[%s856 + $0x71] sm:$0xff]
        %v895 = vld [vmem:[%s856 + $0x81] sm:$0xff]
        %v896 = vld [vmem:[%s856 + $0x89] sm:$0xff]
        %v897 = vld [vmem:[%s856 + $0x91] sm:$0xff]
        %v898 = vld [vmem:[%s856 + $0xa1] sm:$0xff]
        %v899 = vld [vmem:[%s856 + $0xa9] sm:$0xff]
        %v900 = vld [vmem:[%s856 + $0xb1] sm:$0xff]
        %s901 = scalar_lea.vmem %s3, 64
        %v902 = vld [vmem:[%s901] sm:$0xff]
        %v903 = vld [vmem:[%s901 + $0x8] sm:$0xff]
        %v904 = vld [vmem:[%s901 + $0x10] sm:$0xff]
        %v905 = vld [vmem:[%s901 + $0x18] sm:$0xff]
        %v906 = vld [vmem:[%s901 + $0x20] sm:$0xff]
        %v907 = vld [vmem:[%s901 + $0x28] sm:$0xff]
        %v908 = vld [vmem:[%s901 + $0x30] sm:$0xff]
        %v909 = vld [vmem:[%s901 + $0x38] sm:$0xff]
        %vm910 = vcmask 523264
        %v912 = vsel %vm910, %v883, 0
        %v915 = vsel %vm910, %v884, 0
        %v918 = vsel %vm910, %v885, 0
        %v921 = vsel %vm910, %v886, 0
        %v924 = vsel %vm910, %v887, 0
        %v927 = vsel %vm910, %v888, 0
        %v930 = vsel %vm910, %v889, 0
        %v933 = vsel %vm910, %v890, 0
        %v936 = vsel %vm910, %v891, 0
        %v939 = vsel %vm910, %v892, 0
        %v942 = vsel %vm910, %v893, 0
        %v945 = vsel %vm910, %v894, 0
        %v948 = vsel %vm910, %v895, 0
        %v951 = vsel %vm910, %v896, 0
        %v954 = vsel %vm910, %v897, 0
        %v957 = vsel %vm910, %v898, 0
        %v960 = vsel %vm910, %v899, 0
        %v963 = vsel %vm910, %v900, 0
        %965 = vmatprep.subr.mxu0 0.0
        %966 = vmatpush1.msra.mxu0 0.0
        %967 = vmatprep.subr.mxu0 0.0
        %968 = vmatpush1.msra.mxu0 0.0
        %969 = vmatprep.subr.mxu0 0.0
        %970 = vmatpush1.msra.mxu0 0.0
        %971 = vmatprep.subr.mxu0 0.0
        %972 = vmatpush1.msra.mxu0 0.0
        %973 = vmatprep.subr.mxu0 0.0
        %974 = vmatpush1.msra.mxu0 0.0
        %975 = vmatprep.subr.mxu0 0.0
        %976 = vmatpush1.msra.mxu0 0.0
        %977 = vmatprep.subr.mxu0 0.0
        %978 = vmatpush1.msra.mxu0 0.0
        %979 = vmatprep.subr.mxu0 0.0
        %980 = vmatpush1.msra.mxu0 0.0
        %981 = vmatprep.subr.mxu0 0.0
        %982 = vmatpush1.msra.mxu0 %v909
        %983 = vmatprep.subr.mxu0 0.0
        %984 = vmatpush1.msra.mxu0 %v908
        %985 = vmatprep.subr.mxu0 0.0
        %986 = vmatpush1.msra.mxu0 %v907
        %987 = vmatprep.subr.mxu0 0.0
        %988 = vmatpush1.msra.mxu0 %v906
        %989 = vmatprep.subr.mxu0 0.0
        %990 = vmatpush1.msra.mxu0 %v905
        %991 = vmatprep.subr.mxu0 0.0
        %992 = vmatpush1.msra.mxu0 %v904
        %993 = vmatprep.subr.mxu0 0.0
        %994 = vmatpush1.msra.mxu0 %v903
        %995 = vmatprep.subr.mxu0 0.0
        %996 = vmatpush1.msra.mxu0 %v902
        %997 = vmatprep.subr.mxu0 0.0
        %998 = vmatpush2.msra.mxu0 0.0
        %999 = vmatprep.subr.mxu0 0.0
        %1000 = vmatpush2.msra.mxu0 0.0
        %1001 = vmatprep.subr.mxu0 0.0
        %1002 = vmatpush2.msra.mxu0 0.0
        %1003 = vmatprep.subr.mxu0 0.0
        %1004 = vmatpush2.msra.mxu0 0.0
        %1005 = vmatprep.subr.mxu0 0.0
        %1006 = vmatpush2.msra.mxu0 0.0
        %1007 = vmatprep.subr.mxu0 0.0
        %1008 = vmatpush2.msra.mxu0 0.0
        %1009 = vmatprep.subr.mxu0 0.0
        %1010 = vmatpush2.msra.mxu0 0.0
        %1011 = vmatprep.subr.mxu0 0.0
        %1012 = vmatpush2.msra.mxu0 0.0
        %1013 = vmatprep.subr.mxu0 0.0
        %1014 = vmatpush2.msra.mxu0 0.0
        %1015 = vmatprep.subr.mxu0 0.0
        %1016 = vmatpush2.msra.mxu0 0.0
        %1017 = vmatprep.subr.mxu0 0.0
        %1018 = vmatpush2.msra.mxu0 0.0
        %1019 = vmatprep.subr.mxu0 0.0
        %1020 = vmatpush2.msra.mxu0 0.0
        %1021 = vmatprep.subr.mxu0 0.0
        %1022 = vmatpush2.msra.mxu0 0.0
        %1023 = vmatprep.subr.mxu0 0.0
        %1024 = vmatpush2.msra.mxu0 0.0
        %1025 = vmatprep.subr.mxu0 0.0
        %1026 = vmatpush2.msra.mxu0 0.0
        %1027 = vmatprep.subr.mxu0 0.0
        %1028 = vmatpush2.msra.mxu0 0.0
        %1029 = vmatprep.mubr.f32.mxu0 0.0
        %1030 = vmatmul.mubr.f32.gmra.mxu0 %v912
        %v1031 = vpop.f32.mrf.mxu0
        %v1032 = vadd.f32 0.0, %v1031
        %v1033 = vpop.f32.mrf.mxu0
        %1034 = vmatprep.mubr.f32.mxu0 0.0
        %1035 = vmatmul.mubr.f32.gmra.mxu0 %v915
        %v1036 = vpop.f32.mrf.mxu0
        %v1037 = vadd.f32 0.0, %v1036
        %v1038 = vpop.f32.mrf.mxu0
        %1039 = vmatprep.mubr.f32.mxu0 0.0
        %1040 = vmatmul.mubr.f32.gmra.mxu0 %v918
        %v1041 = vpop.f32.mrf.mxu0
        %v1042 = vadd.f32 0.0, %v1041
        %v1043 = vpop.f32.mrf.mxu0
        %1044 = vmatprep.mubr.f32.mxu0 0.0
        %1045 = vmatmul.mubr.f32.gmra.mxu0 %v921
        %v1046 = vpop.f32.mrf.mxu0
        %v1047 = vadd.f32 0.0, %v1046
        %v1048 = vpop.f32.mrf.mxu0
        %1049 = vmatprep.mubr.f32.mxu0 0.0
        %1050 = vmatmul.mubr.f32.gmra.mxu0 %v924
        %v1051 = vpop.f32.mrf.mxu0
        %v1052 = vadd.f32 0.0, %v1051
        %v1053 = vpop.f32.mrf.mxu0
        %1054 = vmatprep.mubr.f32.mxu0 0.0
        %1055 = vmatmul.mubr.f32.gmra.mxu0 %v927
        %v1056 = vpop.f32.mrf.mxu0
        %v1057 = vadd.f32 0.0, %v1056
        %v1058 = vpop.f32.mrf.mxu0
        %1059 = vmatprep.mubr.f32.mxu0 0.0
        %1060 = vmatmul.mubr.f32.gmra.mxu0 %v930
        %v1061 = vpop.f32.mrf.mxu0
        %v1062 = vadd.f32 0.0, %v1061
        %v1063 = vpop.f32.mrf.mxu0
        %1064 = vmatprep.mubr.f32.mxu0 0.0
        %1065 = vmatmul.mubr.f32.gmra.mxu0 %v933
        %v1066 = vpop.f32.mrf.mxu0
        %v1067 = vadd.f32 0.0, %v1066
        %v1068 = vpop.f32.mrf.mxu0
        %1069 = vmatprep.mubr.f32.mxu0 0.0
        %1070 = vmatmul.mubr.f32.gmra.mxu0 %v936
        %v1071 = vpop.f32.mrf.mxu0
        %v1072 = vadd.f32 0.0, %v1071
        %v1073 = vpop.f32.mrf.mxu0
        %1074 = vmatprep.mubr.f32.mxu0 0.0
        %1075 = vmatmul.mubr.f32.gmra.mxu0 %v939
        %v1076 = vpop.f32.mrf.mxu0
        %v1077 = vadd.f32 0.0, %v1076
        %v1078 = vpop.f32.mrf.mxu0
        %1079 = vmatprep.mubr.f32.mxu0 0.0
        %1080 = vmatmul.mubr.f32.gmra.mxu0 %v942
        %v1081 = vpop.f32.mrf.mxu0
        %v1082 = vadd.f32 0.0, %v1081
        %v1083 = vpop.f32.mrf.mxu0
        %1084 = vmatprep.mubr.f32.mxu0 0.0
        %1085 = vmatmul.mubr.f32.gmra.mxu0 %v945
        %v1086 = vpop.f32.mrf.mxu0
        %v1087 = vadd.f32 0.0, %v1086
        %v1088 = vpop.f32.mrf.mxu0
        %1089 = vmatprep.mubr.f32.mxu0 0.0
        %1090 = vmatmul.mubr.f32.gmra.mxu0 %v948
        %v1091 = vpop.f32.mrf.mxu0
        %v1092 = vadd.f32 0.0, %v1091
        %v1093 = vpop.f32.mrf.mxu0
        %1094 = vmatprep.mubr.f32.mxu0 0.0
        %1095 = vmatmul.mubr.f32.gmra.mxu0 %v951
        %v1096 = vpop.f32.mrf.mxu0
        %v1097 = vadd.f32 0.0, %v1096
        %v1098 = vpop.f32.mrf.mxu0
        %1099 = vmatprep.mubr.f32.mxu0 0.0
        %1100 = vmatmul.mubr.f32.gmra.mxu0 %v954
        %v1101 = vpop.f32.mrf.mxu0
        %v1102 = vadd.f32 0.0, %v1101
        %v1103 = vpop.f32.mrf.mxu0
        %1104 = vmatprep.mubr.f32.mxu0 0.0
        %1105 = vmatmul.mubr.f32.gmra.mxu0 %v957
        %v1106 = vpop.f32.mrf.mxu0
        %v1107 = vadd.f32 0.0, %v1106
        %v1108 = vpop.f32.mrf.mxu0
        %1109 = vmatprep.mubr.f32.mxu0 0.0
        %1110 = vmatmul.mubr.f32.gmra.mxu0 %v960
        %v1111 = vpop.f32.mrf.mxu0
        %v1112 = vadd.f32 0.0, %v1111
        %v1113 = vpop.f32.mrf.mxu0
        %1114 = vmatprep.mubr.f32.mxu0 0.0
        %1115 = vmatmul.mubr.f32.gmra.mxu0 %v963
        %v1116 = vpop.f32.mrf.mxu0
        %v1117 = vadd.f32 0.0, %v1116
        %v1118 = vpop.f32.mrf.mxu0
        %1119 = vdwg.mxu0
        %v1121 = vsel %vm910, %v857, 0
        %v1124 = vsel %vm910, %v858, 0
        %v1127 = vsel %vm910, %v859, 0
        %v1130 = vsel %vm910, %v860, 0
        %v1133 = vsel %vm910, %v861, 0
        %v1136 = vsel %vm910, %v862, 0
        %v1139 = vsel %vm910, %v863, 0
        %v1142 = vsel %vm910, %v864, 0
        %v1145 = vsel %vm910, %v865, 0
        %v1148 = vsel %vm910, %v866, 0
        %v1151 = vsel %vm910, %v867, 0
        %v1154 = vsel %vm910, %v868, 0
        %v1157 = vsel %vm910, %v869, 0
        %v1160 = vsel %vm910, %v870, 0
        %v1163 = vsel %vm910, %v871, 0
        %v1166 = vsel %vm910, %v872, 0
        %v1169 = vsel %vm910, %v873, 0
        %v1172 = vsel %vm910, %v874, 0
        %1174 = vmatprep.subr.mxu0 0.0
        %1175 = vmatpush1.msra.mxu0 0.0
        %1176 = vmatprep.subr.mxu0 0.0
        %1177 = vmatpush1.msra.mxu0 0.0
        %1178 = vmatprep.subr.mxu0 0.0
        %1179 = vmatpush1.msra.mxu0 0.0
        %1180 = vmatprep.subr.mxu0 0.0
        %1181 = vmatpush1.msra.mxu0 0.0
        %1182 = vmatprep.subr.mxu0 0.0
        %1183 = vmatpush1.msra.mxu0 0.0
        %1184 = vmatprep.subr.mxu0 0.0
        %1185 = vmatpush1.msra.mxu0 0.0
        %1186 = vmatprep.subr.mxu0 0.0
        %1187 = vmatpush1.msra.mxu0 0.0
        %1188 = vmatprep.subr.mxu0 0.0
        %1189 = vmatpush1.msra.mxu0 0.0
        %1190 = vmatprep.subr.mxu0 0.0
        %1191 = vmatpush1.msra.mxu0 %v882
        %1192 = vmatprep.subr.mxu0 0.0
        %1193 = vmatpush1.msra.mxu0 %v881
        %1194 = vmatprep.subr.mxu0 0.0
        %1195 = vmatpush1.msra.mxu0 %v880
        %1196 = vmatprep.subr.mxu0 0.0
        %1197 = vmatpush1.msra.mxu0 %v879
        %1198 = vmatprep.subr.mxu0 0.0
        %1199 = vmatpush1.msra.mxu0 %v878
        %1200 = vmatprep.subr.mxu0 0.0
        %1201 = vmatpush1.msra.mxu0 %v877
        %1202 = vmatprep.subr.mxu0 0.0
        %1203 = vmatpush1.msra.mxu0 %v876
        %1204 = vmatprep.subr.mxu0 0.0
        %1205 = vmatpush1.msra.mxu0 %v875
        %1206 = vmatprep.subr.mxu0 0.0
        %1207 = vmatpush2.msra.mxu0 0.0
        %1208 = vmatprep.subr.mxu0 0.0
        %1209 = vmatpush2.msra.mxu0 0.0
        %1210 = vmatprep.subr.mxu0 0.0
        %1211 = vmatpush2.msra.mxu0 0.0
        %1212 = vmatprep.subr.mxu0 0.0
        %1213 = vmatpush2.msra.mxu0 0.0
        %1214 = vmatprep.subr.mxu0 0.0
        %1215 = vmatpush2.msra.mxu0 0.0
        %1216 = vmatprep.subr.mxu0 0.0
        %1217 = vmatpush2.msra.mxu0 0.0
        %1218 = vmatprep.subr.mxu0 0.0
        %1219 = vmatpush2.msra.mxu0 0.0
        %1220 = vmatprep.subr.mxu0 0.0
        %1221 = vmatpush2.msra.mxu0 0.0
        %1222 = vmatprep.subr.mxu0 0.0
        %1223 = vmatpush2.msra.mxu0 0.0
        %1224 = vmatprep.subr.mxu0 0.0
        %1225 = vmatpush2.msra.mxu0 0.0
        %1226 = vmatprep.subr.mxu0 0.0
        %1227 = vmatpush2.msra.mxu0 0.0
        %1228 = vmatprep.subr.mxu0 0.0
        %1229 = vmatpush2.msra.mxu0 0.0
        %1230 = vmatprep.subr.mxu0 0.0
        %1231 = vmatpush2.msra.mxu0 0.0
        %1232 = vmatprep.subr.mxu0 0.0
        %1233 = vmatpush2.msra.mxu0 0.0
        %1234 = vmatprep.subr.mxu0 0.0
        %1235 = vmatpush2.msra.mxu0 0.0
        %1236 = vmatprep.subr.mxu0 0.0
        %1237 = vmatpush2.msra.mxu0 0.0
        %1238 = vmatprep.mubr.f32.mxu0 0.0
        %1239 = vmatmul.mubr.f32.gmra.mxu0 %v1121
        %v1240 = vpop.f32.mrf.mxu0
        %v1241 = vadd.f32 %v1032, %v1240
        %v1242 = vpop.f32.mrf.mxu0
        %1243 = vmatprep.mubr.f32.mxu0 0.0
        %1244 = vmatmul.mubr.f32.gmra.mxu0 %v1124
        %v1245 = vpop.f32.mrf.mxu0
        %v1246 = vadd.f32 %v1037, %v1245
        %v1247 = vpop.f32.mrf.mxu0
        %1248 = vmatprep.mubr.f32.mxu0 0.0
        %1249 = vmatmul.mubr.f32.gmra.mxu0 %v1127
        %v1250 = vpop.f32.mrf.mxu0
        %v1251 = vadd.f32 %v1042, %v1250
        %v1252 = vpop.f32.mrf.mxu0
        %1253 = vmatprep.mubr.f32.mxu0 0.0
        %1254 = vmatmul.mubr.f32.gmra.mxu0 %v1130
        %v1255 = vpop.f32.mrf.mxu0
        %v1256 = vadd.f32 %v1047, %v1255
        %v1257 = vpop.f32.mrf.mxu0
        %1258 = vmatprep.mubr.f32.mxu0 0.0
        %1259 = vmatmul.mubr.f32.gmra.mxu0 %v1133
        %v1260 = vpop.f32.mrf.mxu0
        %v1261 = vadd.f32 %v1052, %v1260
        %v1262 = vpop.f32.mrf.mxu0
        %1263 = vmatprep.mubr.f32.mxu0 0.0
        %1264 = vmatmul.mubr.f32.gmra.mxu0 %v1136
        %v1265 = vpop.f32.mrf.mxu0
        %v1266 = vadd.f32 %v1057, %v1265
        %v1267 = vpop.f32.mrf.mxu0
        %1268 = vmatprep.mubr.f32.mxu0 0.0
        %1269 = vmatmul.mubr.f32.gmra.mxu0 %v1139
        %v1270 = vpop.f32.mrf.mxu0
        %v1271 = vadd.f32 %v1062, %v1270
        %v1272 = vpop.f32.mrf.mxu0
        %1273 = vmatprep.mubr.f32.mxu0 0.0
        %1274 = vmatmul.mubr.f32.gmra.mxu0 %v1142
        %v1275 = vpop.f32.mrf.mxu0
        %v1276 = vadd.f32 %v1067, %v1275
        %v1277 = vpop.f32.mrf.mxu0
        %1278 = vmatprep.mubr.f32.mxu0 0.0
        %1279 = vmatmul.mubr.f32.gmra.mxu0 %v1145
        %v1280 = vpop.f32.mrf.mxu0
        %v1281 = vadd.f32 %v1072, %v1280
        %v1282 = vpop.f32.mrf.mxu0
        %1283 = vmatprep.mubr.f32.mxu0 0.0
        %1284 = vmatmul.mubr.f32.gmra.mxu0 %v1148
        %v1285 = vpop.f32.mrf.mxu0
        %v1286 = vadd.f32 %v1077, %v1285
        %v1287 = vpop.f32.mrf.mxu0
        %1288 = vmatprep.mubr.f32.mxu0 0.0
        %1289 = vmatmul.mubr.f32.gmra.mxu0 %v1151
        %v1290 = vpop.f32.mrf.mxu0
        %v1291 = vadd.f32 %v1082, %v1290
        %v1292 = vpop.f32.mrf.mxu0
        %1293 = vmatprep.mubr.f32.mxu0 0.0
        %1294 = vmatmul.mubr.f32.gmra.mxu0 %v1154
        %v1295 = vpop.f32.mrf.mxu0
        %v1296 = vadd.f32 %v1087, %v1295
        %v1297 = vpop.f32.mrf.mxu0
        %1298 = vmatprep.mubr.f32.mxu0 0.0
        %1299 = vmatmul.mubr.f32.gmra.mxu0 %v1157
        %v1300 = vpop.f32.mrf.mxu0
        %v1301 = vadd.f32 %v1092, %v1300
        %v1302 = vpop.f32.mrf.mxu0
        %1303 = vmatprep.mubr.f32.mxu0 0.0
        %1304 = vmatmul.mubr.f32.gmra.mxu0 %v1160
        %v1305 = vpop.f32.mrf.mxu0
        %v1306 = vadd.f32 %v1097, %v1305
        %v1307 = vpop.f32.mrf.mxu0
        %1308 = vmatprep.mubr.f32.mxu0 0.0
        %1309 = vmatmul.mubr.f32.gmra.mxu0 %v1163
        %v1310 = vpop.f32.mrf.mxu0
        %v1311 = vadd.f32 %v1102, %v1310
        %v1312 = vpop.f32.mrf.mxu0
        %1313 = vmatprep.mubr.f32.mxu0 0.0
        %1314 = vmatmul.mubr.f32.gmra.mxu0 %v1166
        %v1315 = vpop.f32.mrf.mxu0
        %v1316 = vadd.f32 %v1107, %v1315
        %v1317 = vpop.f32.mrf.mxu0
        %1318 = vmatprep.mubr.f32.mxu0 0.0
        %1319 = vmatmul.mubr.f32.gmra.mxu0 %v1169
        %v1320 = vpop.f32.mrf.mxu0
        %v1321 = vadd.f32 %v1112, %v1320
        %v1322 = vpop.f32.mrf.mxu0
        %1323 = vmatprep.mubr.f32.mxu0 0.0
        %1324 = vmatmul.mubr.f32.gmra.mxu0 %v1172
        %v1325 = vpop.f32.mrf.mxu0
        %v1326 = vadd.f32 %v1117, %v1325
        %v1327 = vpop.f32.mrf.mxu0
        %1328 = vdwg.mxu0
        %v1329 = vld [vmem:[%s856 + $0x2] sm:$0xff]
        %v1330 = vld [vmem:[%s856 + $0xa] sm:$0xff]
        %v1331 = vld [vmem:[%s856 + $0x12] sm:$0xff]
        %v1332 = vld [vmem:[%s856 + $0x22] sm:$0xff]
        %v1333 = vld [vmem:[%s856 + $0x2a] sm:$0xff]
        %v1334 = vld [vmem:[%s856 + $0x32] sm:$0xff]
        %v1335 = vld [vmem:[%s856 + $0x42] sm:$0xff]
        %v1336 = vld [vmem:[%s856 + $0x4a] sm:$0xff]
        %v1337 = vld [vmem:[%s856 + $0x52] sm:$0xff]
        %v1338 = vld [vmem:[%s856 + $0x62] sm:$0xff]
        %v1339 = vld [vmem:[%s856 + $0x6a] sm:$0xff]
        %v1340 = vld [vmem:[%s856 + $0x72] sm:$0xff]
        %v1341 = vld [vmem:[%s856 + $0x82] sm:$0xff]
        %v1342 = vld [vmem:[%s856 + $0x8a] sm:$0xff]
        %v1343 = vld [vmem:[%s856 + $0x92] sm:$0xff]
        %v1344 = vld [vmem:[%s856 + $0xa2] sm:$0xff]
        %v1345 = vld [vmem:[%s856 + $0xaa] sm:$0xff]
        %v1346 = vld [vmem:[%s856 + $0xb2] sm:$0xff]
        %s1347 = scalar_lea.vmem %s3, 128
        %v1348 = vld [vmem:[%s1347] sm:$0xff]
        %v1349 = vld [vmem:[%s1347 + $0x8] sm:$0xff]
        %v1350 = vld [vmem:[%s1347 + $0x10] sm:$0xff]
        %v1351 = vld [vmem:[%s1347 + $0x18] sm:$0xff]
        %v1352 = vld [vmem:[%s1347 + $0x20] sm:$0xff]
        %v1353 = vld [vmem:[%s1347 + $0x28] sm:$0xff]
        %v1354 = vld [vmem:[%s1347 + $0x30] sm:$0xff]
        %v1355 = vld [vmem:[%s1347 + $0x38] sm:$0xff]
        %v1357 = vsel %vm910, %v1329, 0
        %v1360 = vsel %vm910, %v1330, 0
        %v1363 = vsel %vm910, %v1331, 0
        %v1366 = vsel %vm910, %v1332, 0
        %v1369 = vsel %vm910, %v1333, 0
        %v1372 = vsel %vm910, %v1334, 0
        %v1375 = vsel %vm910, %v1335, 0
        %v1378 = vsel %vm910, %v1336, 0
        %v1381 = vsel %vm910, %v1337, 0
        %v1384 = vsel %vm910, %v1338, 0
        %v1387 = vsel %vm910, %v1339, 0
        %v1390 = vsel %vm910, %v1340, 0
        %v1393 = vsel %vm910, %v1341, 0
        %v1396 = vsel %vm910, %v1342, 0
        %v1399 = vsel %vm910, %v1343, 0
        %v1402 = vsel %vm910, %v1344, 0
        %v1405 = vsel %vm910, %v1345, 0
        %v1408 = vsel %vm910, %v1346, 0
        %1410 = vmatprep.subr.mxu0 0.0
        %1411 = vmatpush1.msra.mxu0 0.0
        %1412 = vmatprep.subr.mxu0 0.0
        %1413 = vmatpush1.msra.mxu0 0.0
        %1414 = vmatprep.subr.mxu0 0.0
        %1415 = vmatpush1.msra.mxu0 0.0
        %1416 = vmatprep.subr.mxu0 0.0
        %1417 = vmatpush1.msra.mxu0 0.0
        %1418 = vmatprep.subr.mxu0 0.0
        %1419 = vmatpush1.msra.mxu0 0.0
        %1420 = vmatprep.subr.mxu0 0.0
        %1421 = vmatpush1.msra.mxu0 0.0
        %1422 = vmatprep.subr.mxu0 0.0
        %1423 = vmatpush1.msra.mxu0 0.0
        %1424 = vmatprep.subr.mxu0 0.0
        %1425 = vmatpush1.msra.mxu0 0.0
        %1426 = vmatprep.subr.mxu0 0.0
        %1427 = vmatpush1.msra.mxu0 %v1355
        %1428 = vmatprep.subr.mxu0 0.0
        %1429 = vmatpush1.msra.mxu0 %v1354
        %1430 = vmatprep.subr.mxu0 0.0
        %1431 = vmatpush1.msra.mxu0 %v1353
        %1432 = vmatprep.subr.mxu0 0.0
        %1433 = vmatpush1.msra.mxu0 %v1352
        %1434 = vmatprep.subr.mxu0 0.0
        %1435 = vmatpush1.msra.mxu0 %v1351
        %1436 = vmatprep.subr.mxu0 0.0
        %1437 = vmatpush1.msra.mxu0 %v1350
        %1438 = vmatprep.subr.mxu0 0.0
        %1439 = vmatpush1.msra.mxu0 %v1349
        %1440 = vmatprep.subr.mxu0 0.0
        %1441 = vmatpush1.msra.mxu0 %v1348
        %1442 = vmatprep.subr.mxu0 0.0
        %1443 = vmatpush2.msra.mxu0 0.0
        %1444 = vmatprep.subr.mxu0 0.0
        %1445 = vmatpush2.msra.mxu0 0.0
        %1446 = vmatprep.subr.mxu0 0.0
        %1447 = vmatpush2.msra.mxu0 0.0
        %1448 = vmatprep.subr.mxu0 0.0
        %1449 = vmatpush2.msra.mxu0 0.0
        %1450 = vmatprep.subr.mxu0 0.0
        %1451 = vmatpush2.msra.mxu0 0.0
        %1452 = vmatprep.subr.mxu0 0.0
        %1453 = vmatpush2.msra.mxu0 0.0
        %1454 = vmatprep.subr.mxu0 0.0
        %1455 = vmatpush2.msra.mxu0 0.0
        %1456 = vmatprep.subr.mxu0 0.0
        %1457 = vmatpush2.msra.mxu0 0.0
        %1458 = vmatprep.subr.mxu0 0.0
        %1459 = vmatpush2.msra.mxu0 0.0
        %1460 = vmatprep.subr.mxu0 0.0
        %1461 = vmatpush2.msra.mxu0 0.0
        %1462 = vmatprep.subr.mxu0 0.0
        %1463 = vmatpush2.msra.mxu0 0.0
        %1464 = vmatprep.subr.mxu0 0.0
        %1465 = vmatpush2.msra.mxu0 0.0
        %1466 = vmatprep.subr.mxu0 0.0
        %1467 = vmatpush2.msra.mxu0 0.0
        %1468 = vmatprep.subr.mxu0 0.0
        %1469 = vmatpush2.msra.mxu0 0.0
        %1470 = vmatprep.subr.mxu0 0.0
        %1471 = vmatpush2.msra.mxu0 0.0
        %1472 = vmatprep.subr.mxu0 0.0
        %1473 = vmatpush2.msra.mxu0 0.0
        %1474 = vmatprep.mubr.f32.mxu0 0.0
        %1475 = vmatmul.mubr.f32.gmra.mxu0 %v1357
        %v1476 = vpop.f32.mrf.mxu0
        %v1477 = vadd.f32 0.0, %v1476
        %v1478 = vpop.f32.mrf.mxu0
        %1479 = vmatprep.mubr.f32.mxu0 0.0
        %1480 = vmatmul.mubr.f32.gmra.mxu0 %v1360
        %v1481 = vpop.f32.mrf.mxu0
        %v1482 = vadd.f32 0.0, %v1481
        %v1483 = vpop.f32.mrf.mxu0
        %1484 = vmatprep.mubr.f32.mxu0 0.0
        %1485 = vmatmul.mubr.f32.gmra.mxu0 %v1363
        %v1486 = vpop.f32.mrf.mxu0
        %v1487 = vadd.f32 0.0, %v1486
        %v1488 = vpop.f32.mrf.mxu0
        %1489 = vmatprep.mubr.f32.mxu0 0.0
        %1490 = vmatmul.mubr.f32.gmra.mxu0 %v1366
        %v1491 = vpop.f32.mrf.mxu0
        %v1492 = vadd.f32 0.0, %v1491
        %v1493 = vpop.f32.mrf.mxu0
        %1494 = vmatprep.mubr.f32.mxu0 0.0
        %1495 = vmatmul.mubr.f32.gmra.mxu0 %v1369
        %v1496 = vpop.f32.mrf.mxu0
        %v1497 = vadd.f32 0.0, %v1496
        %v1498 = vpop.f32.mrf.mxu0
        %1499 = vmatprep.mubr.f32.mxu0 0.0
        %1500 = vmatmul.mubr.f32.gmra.mxu0 %v1372
        %v1501 = vpop.f32.mrf.mxu0
        %v1502 = vadd.f32 0.0, %v1501
        %v1503 = vpop.f32.mrf.mxu0
        %1504 = vmatprep.mubr.f32.mxu0 0.0
        %1505 = vmatmul.mubr.f32.gmra.mxu0 %v1375
        %v1506 = vpop.f32.mrf.mxu0
        %v1507 = vadd.f32 0.0, %v1506
        %v1508 = vpop.f32.mrf.mxu0
        %1509 = vmatprep.mubr.f32.mxu0 0.0
        %1510 = vmatmul.mubr.f32.gmra.mxu0 %v1378
        %v1511 = vpop.f32.mrf.mxu0
        %v1512 = vadd.f32 0.0, %v1511
        %v1513 = vpop.f32.mrf.mxu0
        %1514 = vmatprep.mubr.f32.mxu0 0.0
        %1515 = vmatmul.mubr.f32.gmra.mxu0 %v1381
        %v1516 = vpop.f32.mrf.mxu0
        %v1517 = vadd.f32 0.0, %v1516
        %v1518 = vpop.f32.mrf.mxu0
        %1519 = vmatprep.mubr.f32.mxu0 0.0
        %1520 = vmatmul.mubr.f32.gmra.mxu0 %v1384
        %v1521 = vpop.f32.mrf.mxu0
        %v1522 = vadd.f32 0.0, %v1521
        %v1523 = vpop.f32.mrf.mxu0
        %1524 = vmatprep.mubr.f32.mxu0 0.0
        %1525 = vmatmul.mubr.f32.gmra.mxu0 %v1387
        %v1526 = vpop.f32.mrf.mxu0
        %v1527 = vadd.f32 0.0, %v1526
        %v1528 = vpop.f32.mrf.mxu0
        %1529 = vmatprep.mubr.f32.mxu0 0.0
        %1530 = vmatmul.mubr.f32.gmra.mxu0 %v1390
        %v1531 = vpop.f32.mrf.mxu0
        %v1532 = vadd.f32 0.0, %v1531
        %v1533 = vpop.f32.mrf.mxu0
        %1534 = vmatprep.mubr.f32.mxu0 0.0
        %1535 = vmatmul.mubr.f32.gmra.mxu0 %v1393
        %v1536 = vpop.f32.mrf.mxu0
        %v1537 = vadd.f32 0.0, %v1536
        %v1538 = vpop.f32.mrf.mxu0
        %1539 = vmatprep.mubr.f32.mxu0 0.0
        %1540 = vmatmul.mubr.f32.gmra.mxu0 %v1396
        %v1541 = vpop.f32.mrf.mxu0
        %v1542 = vadd.f32 0.0, %v1541
        %v1543 = vpop.f32.mrf.mxu0
        %1544 = vmatprep.mubr.f32.mxu0 0.0
        %1545 = vmatmul.mubr.f32.gmra.mxu0 %v1399
        %v1546 = vpop.f32.mrf.mxu0
        %v1547 = vadd.f32 0.0, %v1546
        %v1548 = vpop.f32.mrf.mxu0
        %1549 = vmatprep.mubr.f32.mxu0 0.0
        %1550 = vmatmul.mubr.f32.gmra.mxu0 %v1402
        %v1551 = vpop.f32.mrf.mxu0
        %v1552 = vadd.f32 0.0, %v1551
        %v1553 = vpop.f32.mrf.mxu0
        %1554 = vmatprep.mubr.f32.mxu0 0.0
        %1555 = vmatmul.mubr.f32.gmra.mxu0 %v1405
        %v1556 = vpop.f32.mrf.mxu0
        %v1557 = vadd.f32 0.0, %v1556
        %v1558 = vpop.f32.mrf.mxu0
        %1559 = vmatprep.mubr.f32.mxu0 0.0
        %1560 = vmatmul.mubr.f32.gmra.mxu0 %v1408
        %v1561 = vpop.f32.mrf.mxu0
        %v1562 = vadd.f32 0.0, %v1561
        %v1563 = vpop.f32.mrf.mxu0
        %1564 = vdwg.mxu0
        %v1565 = vadd.f32 %v1241, %v1477
        %v1566 = vadd.f32 %v1246, %v1482
        %v1567 = vadd.f32 %v1251, %v1487
        %v1568 = vadd.f32 %v1256, %v1492
        %v1569 = vadd.f32 %v1261, %v1497
        %v1570 = vadd.f32 %v1266, %v1502
        %v1571 = vadd.f32 %v1271, %v1507
        %v1572 = vadd.f32 %v1276, %v1512
        %v1573 = vadd.f32 %v1281, %v1517
        %v1574 = vadd.f32 %v1286, %v1522
        %v1575 = vadd.f32 %v1291, %v1527
        %v1576 = vadd.f32 %v1296, %v1532
        %v1577 = vadd.f32 %v1301, %v1537
        %v1578 = vadd.f32 %v1306, %v1542
        %v1579 = vadd.f32 %v1311, %v1547
        %v1580 = vadd.f32 %v1316, %v1552
        %v1581 = vadd.f32 %v1321, %v1557
        %v1582 = vadd.f32 %v1326, %v1562
        %s1583 = sadd.s32 %s854, 1
        %s1584 = smul.u32 %s1583, 32
        %s1585 = scalar_lea.vmem [#allocation2], %s1584
        %v1586 = vld [vmem:[%s1585] sm:$0xff]
        %v1587 = vld [vmem:[%s1585 + $0x8] sm:$0xff]
        %v1588 = vld [vmem:[%s1585 + $0x10] sm:$0xff]
        %v1589 = vld [vmem:[%s1585 + $0x20] sm:$0xff]
        %v1590 = vld [vmem:[%s1585 + $0x28] sm:$0xff]
        %v1591 = vld [vmem:[%s1585 + $0x30] sm:$0xff]
        %v1592 = vld [vmem:[%s1585 + $0x40] sm:$0xff]
        %v1593 = vld [vmem:[%s1585 + $0x48] sm:$0xff]
        %v1594 = vld [vmem:[%s1585 + $0x50] sm:$0xff]
        %v1595 = vld [vmem:[%s1585 + $0x60] sm:$0xff]
        %v1596 = vld [vmem:[%s1585 + $0x68] sm:$0xff]
        %v1597 = vld [vmem:[%s1585 + $0x70] sm:$0xff]
        %v1598 = vld [vmem:[%s1585 + $0x80] sm:$0xff]
        %v1599 = vld [vmem:[%s1585 + $0x88] sm:$0xff]
        %v1600 = vld [vmem:[%s1585 + $0x90] sm:$0xff]
        %v1601 = vld [vmem:[%s1585 + $0xa0] sm:$0xff]
        %v1602 = vld [vmem:[%s1585 + $0xa8] sm:$0xff]
        %v1603 = vld [vmem:[%s1585 + $0xb0] sm:$0xff]
        %s1604 = scalar_lea.vmem %s3, 192
        %v1605 = vld [vmem:[%s1604] sm:$0xff]
        %v1606 = vld [vmem:[%s1604 + $0x8] sm:$0xff]
        %v1607 = vld [vmem:[%s1604 + $0x10] sm:$0xff]
        %v1608 = vld [vmem:[%s1604 + $0x18] sm:$0xff]
        %v1609 = vld [vmem:[%s1604 + $0x20] sm:$0xff]
        %v1610 = vld [vmem:[%s1604 + $0x28] sm:$0xff]
        %v1611 = vld [vmem:[%s1604 + $0x30] sm:$0xff]
        %v1612 = vld [vmem:[%s1604 + $0x38] sm:$0xff]
        %v1614 = vsel %vm910, %v1586, 0
        %v1617 = vsel %vm910, %v1587, 0
        %v1620 = vsel %vm910, %v1588, 0
        %v1623 = vsel %vm910, %v1589, 0
        %v1626 = vsel %vm910, %v1590, 0
        %v1629 = vsel %vm910, %v1591, 0
        %v1632 = vsel %vm910, %v1592, 0
        %v1635 = vsel %vm910, %v1593, 0
        %v1638 = vsel %vm910, %v1594, 0
        %v1641 = vsel %vm910, %v1595, 0
        %v1644 = vsel %vm910, %v1596, 0
        %v1647 = vsel %vm910, %v1597, 0
        %v1650 = vsel %vm910, %v1598, 0
        %v1653 = vsel %vm910, %v1599, 0
        %v1656 = vsel %vm910, %v1600, 0
        %v1659 = vsel %vm910, %v1601, 0
        %v1662 = vsel %vm910, %v1602, 0
        %v1665 = vsel %vm910, %v1603, 0
        %1667 = vmatprep.subr.mxu0 0.0
        %1668 = vmatpush1.msra.mxu0 0.0
        %1669 = vmatprep.subr.mxu0 0.0
        %1670 = vmatpush1.msra.mxu0 0.0
        %1671 = vmatprep.subr.mxu0 0.0
        %1672 = vmatpush1.msra.mxu0 0.0
        %1673 = vmatprep.subr.mxu0 0.0
        %1674 = vmatpush1.msra.mxu0 0.0
        %1675 = vmatprep.subr.mxu0 0.0
        %1676 = vmatpush1.msra.mxu0 0.0
        %1677 = vmatprep.subr.mxu0 0.0
        %1678 = vmatpush1.msra.mxu0 0.0
        %1679 = vmatprep.subr.mxu0 0.0
        %1680 = vmatpush1.msra.mxu0 0.0
        %1681 = vmatprep.subr.mxu0 0.0
        %1682 = vmatpush1.msra.mxu0 0.0
        %1683 = vmatprep.subr.mxu0 0.0
        %1684 = vmatpush1.msra.mxu0 %v1612
        %1685 = vmatprep.subr.mxu0 0.0
        %1686 = vmatpush1.msra.mxu0 %v1611
        %1687 = vmatprep.subr.mxu0 0.0
        %1688 = vmatpush1.msra.mxu0 %v1610
        %1689 = vmatprep.subr.mxu0 0.0
        %1690 = vmatpush1.msra.mxu0 %v1609
        %1691 = vmatprep.subr.mxu0 0.0
        %1692 = vmatpush1.msra.mxu0 %v1608
        %1693 = vmatprep.subr.mxu0 0.0
        %1694 = vmatpush1.msra.mxu0 %v1607
        %1695 = vmatprep.subr.mxu0 0.0
        %1696 = vmatpush1.msra.mxu0 %v1606
        %1697 = vmatprep.subr.mxu0 0.0
        %1698 = vmatpush1.msra.mxu0 %v1605
        %1699 = vmatprep.subr.mxu0 0.0
        %1700 = vmatpush2.msra.mxu0 0.0
        %1701 = vmatprep.subr.mxu0 0.0
        %1702 = vmatpush2.msra.mxu0 0.0
        %1703 = vmatprep.subr.mxu0 0.0
        %1704 = vmatpush2.msra.mxu0 0.0
        %1705 = vmatprep.subr.mxu0 0.0
        %1706 = vmatpush2.msra.mxu0 0.0
        %1707 = vmatprep.subr.mxu0 0.0
        %1708 = vmatpush2.msra.mxu0 0.0
        %1709 = vmatprep.subr.mxu0 0.0
        %1710 = vmatpush2.msra.mxu0 0.0
        %1711 = vmatprep.subr.mxu0 0.0
        %1712 = vmatpush2.msra.mxu0 0.0
        %1713 = vmatprep.subr.mxu0 0.0
        %1714 = vmatpush2.msra.mxu0 0.0
        %1715 = vmatprep.subr.mxu0 0.0
        %1716 = vmatpush2.msra.mxu0 0.0
        %1717 = vmatprep.subr.mxu0 0.0
        %1718 = vmatpush2.msra.mxu0 0.0
        %1719 = vmatprep.subr.mxu0 0.0
        %1720 = vmatpush2.msra.mxu0 0.0
        %1721 = vmatprep.subr.mxu0 0.0
        %1722 = vmatpush2.msra.mxu0 0.0
        %1723 = vmatprep.subr.mxu0 0.0
        %1724 = vmatpush2.msra.mxu0 0.0
        %1725 = vmatprep.subr.mxu0 0.0
        %1726 = vmatpush2.msra.mxu0 0.0
        %1727 = vmatprep.subr.mxu0 0.0
        %1728 = vmatpush2.msra.mxu0 0.0
        %1729 = vmatprep.subr.mxu0 0.0
        %1730 = vmatpush2.msra.mxu0 0.0
        %1731 = vmatprep.mubr.f32.mxu0 0.0
        %1732 = vmatmul.mubr.f32.gmra.mxu0 %v1614
        %v1733 = vpop.f32.mrf.mxu0
        %v1734 = vadd.f32 0.0, %v1733
        %v1735 = vpop.f32.mrf.mxu0
        %1736 = vmatprep.mubr.f32.mxu0 0.0
        %1737 = vmatmul.mubr.f32.gmra.mxu0 %v1617
        %v1738 = vpop.f32.mrf.mxu0
        %v1739 = vadd.f32 0.0, %v1738
        %v1740 = vpop.f32.mrf.mxu0
        %1741 = vmatprep.mubr.f32.mxu0 0.0
        %1742 = vmatmul.mubr.f32.gmra.mxu0 %v1620
        %v1743 = vpop.f32.mrf.mxu0
        %v1744 = vadd.f32 0.0, %v1743
        %v1745 = vpop.f32.mrf.mxu0
        %1746 = vmatprep.mubr.f32.mxu0 0.0
        %1747 = vmatmul.mubr.f32.gmra.mxu0 %v1623
        %v1748 = vpop.f32.mrf.mxu0
        %v1749 = vadd.f32 0.0, %v1748
        %v1750 = vpop.f32.mrf.mxu0
        %1751 = vmatprep.mubr.f32.mxu0 0.0
        %1752 = vmatmul.mubr.f32.gmra.mxu0 %v1626
        %v1753 = vpop.f32.mrf.mxu0
        %v1754 = vadd.f32 0.0, %v1753
        %v1755 = vpop.f32.mrf.mxu0
        %1756 = vmatprep.mubr.f32.mxu0 0.0
        %1757 = vmatmul.mubr.f32.gmra.mxu0 %v1629
        %v1758 = vpop.f32.mrf.mxu0
        %v1759 = vadd.f32 0.0, %v1758
        %v1760 = vpop.f32.mrf.mxu0
        %1761 = vmatprep.mubr.f32.mxu0 0.0
        %1762 = vmatmul.mubr.f32.gmra.mxu0 %v1632
        %v1763 = vpop.f32.mrf.mxu0
        %v1764 = vadd.f32 0.0, %v1763
        %v1765 = vpop.f32.mrf.mxu0
        %1766 = vmatprep.mubr.f32.mxu0 0.0
        %1767 = vmatmul.mubr.f32.gmra.mxu0 %v1635
        %v1768 = vpop.f32.mrf.mxu0
        %v1769 = vadd.f32 0.0, %v1768
        %v1770 = vpop.f32.mrf.mxu0
        %1771 = vmatprep.mubr.f32.mxu0 0.0
        %1772 = vmatmul.mubr.f32.gmra.mxu0 %v1638
        %v1773 = vpop.f32.mrf.mxu0
        %v1774 = vadd.f32 0.0, %v1773
        %v1775 = vpop.f32.mrf.mxu0
        %1776 = vmatprep.mubr.f32.mxu0 0.0
        %1777 = vmatmul.mubr.f32.gmra.mxu0 %v1641
        %v1778 = vpop.f32.mrf.mxu0
        %v1779 = vadd.f32 0.0, %v1778
        %v1780 = vpop.f32.mrf.mxu0
        %1781 = vmatprep.mubr.f32.mxu0 0.0
        %1782 = vmatmul.mubr.f32.gmra.mxu0 %v1644
        %v1783 = vpop.f32.mrf.mxu0
        %v1784 = vadd.f32 0.0, %v1783
        %v1785 = vpop.f32.mrf.mxu0
        %1786 = vmatprep.mubr.f32.mxu0 0.0
        %1787 = vmatmul.mubr.f32.gmra.mxu0 %v1647
        %v1788 = vpop.f32.mrf.mxu0
        %v1789 = vadd.f32 0.0, %v1788
        %v1790 = vpop.f32.mrf.mxu0
        %1791 = vmatprep.mubr.f32.mxu0 0.0
        %1792 = vmatmul.mubr.f32.gmra.mxu0 %v1650
        %v1793 = vpop.f32.mrf.mxu0
        %v1794 = vadd.f32 0.0, %v1793
        %v1795 = vpop.f32.mrf.mxu0
        %1796 = vmatprep.mubr.f32.mxu0 0.0
        %1797 = vmatmul.mubr.f32.gmra.mxu0 %v1653
        %v1798 = vpop.f32.mrf.mxu0
        %v1799 = vadd.f32 0.0, %v1798
        %v1800 = vpop.f32.mrf.mxu0
        %1801 = vmatprep.mubr.f32.mxu0 0.0
        %1802 = vmatmul.mubr.f32.gmra.mxu0 %v1656
        %v1803 = vpop.f32.mrf.mxu0
        %v1804 = vadd.f32 0.0, %v1803
        %v1805 = vpop.f32.mrf.mxu0
        %1806 = vmatprep.mubr.f32.mxu0 0.0
        %1807 = vmatmul.mubr.f32.gmra.mxu0 %v1659
        %v1808 = vpop.f32.mrf.mxu0
        %v1809 = vadd.f32 0.0, %v1808
        %v1810 = vpop.f32.mrf.mxu0
        %1811 = vmatprep.mubr.f32.mxu0 0.0
        %1812 = vmatmul.mubr.f32.gmra.mxu0 %v1662
        %v1813 = vpop.f32.mrf.mxu0
        %v1814 = vadd.f32 0.0, %v1813
        %v1815 = vpop.f32.mrf.mxu0
        %1816 = vmatprep.mubr.f32.mxu0 0.0
        %1817 = vmatmul.mubr.f32.gmra.mxu0 %v1665
        %v1818 = vpop.f32.mrf.mxu0
        %v1819 = vadd.f32 0.0, %v1818
        %v1820 = vpop.f32.mrf.mxu0
        %1821 = vdwg.mxu0
        %v1822 = vadd.f32 %v1565, %v1734
        %v1823 = vadd.f32 %v1566, %v1739
        %v1824 = vadd.f32 %v1567, %v1744
        %v1825 = vadd.f32 %v1568, %v1749
        %v1826 = vadd.f32 %v1569, %v1754
        %v1827 = vadd.f32 %v1570, %v1759
        %v1828 = vadd.f32 %v1571, %v1764
        %v1829 = vadd.f32 %v1572, %v1769
        %v1830 = vadd.f32 %v1573, %v1774
        %v1831 = vadd.f32 %v1574, %v1779
        %v1832 = vadd.f32 %v1575, %v1784
        %v1833 = vadd.f32 %v1576, %v1789
        %v1834 = vadd.f32 %v1577, %v1794
        %v1835 = vadd.f32 %v1578, %v1799
        %v1836 = vadd.f32 %v1579, %v1804
        %v1837 = vadd.f32 %v1580, %v1809
        %v1838 = vadd.f32 %v1581, %v1814
        %v1839 = vadd.f32 %v1582, %v1819
        %v1840 = vld [vmem:[%s1585 + $0x1] sm:$0xff]
        %v1841 = vld [vmem:[%s1585 + $0x9] sm:$0xff]
        %v1842 = vld [vmem:[%s1585 + $0x11] sm:$0xff]
        %v1843 = vld [vmem:[%s1585 + $0x21] sm:$0xff]
        %v1844 = vld [vmem:[%s1585 + $0x29] sm:$0xff]
        %v1845 = vld [vmem:[%s1585 + $0x31] sm:$0xff]
        %v1846 = vld [vmem:[%s1585 + $0x41] sm:$0xff]
        %v1847 = vld [vmem:[%s1585 + $0x49] sm:$0xff]
        %v1848 = vld [vmem:[%s1585 + $0x51] sm:$0xff]
        %v1849 = vld [vmem:[%s1585 + $0x61] sm:$0xff]
        %v1850 = vld [vmem:[%s1585 + $0x69] sm:$0xff]
        %v1851 = vld [vmem:[%s1585 + $0x71] sm:$0xff]
        %v1852 = vld [vmem:[%s1585 + $0x81] sm:$0xff]
        %v1853 = vld [vmem:[%s1585 + $0x89] sm:$0xff]
        %v1854 = vld [vmem:[%s1585 + $0x91] sm:$0xff]
        %v1855 = vld [vmem:[%s1585 + $0xa1] sm:$0xff]
        %v1856 = vld [vmem:[%s1585 + $0xa9] sm:$0xff]
        %v1857 = vld [vmem:[%s1585 + $0xb1] sm:$0xff]
        %s1858 = scalar_lea.vmem %s3, 256
        %v1859 = vld [vmem:[%s1858] sm:$0xff]
        %v1860 = vld [vmem:[%s1858 + $0x8] sm:$0xff]
        %v1861 = vld [vmem:[%s1858 + $0x10] sm:$0xff]
        %v1862 = vld [vmem:[%s1858 + $0x18] sm:$0xff]
        %v1863 = vld [vmem:[%s1858 + $0x20] sm:$0xff]
        %v1864 = vld [vmem:[%s1858 + $0x28] sm:$0xff]
        %v1865 = vld [vmem:[%s1858 + $0x30] sm:$0xff]
        %v1866 = vld [vmem:[%s1858 + $0x38] sm:$0xff]
        %v1868 = vsel %vm910, %v1840, 0
        %v1871 = vsel %vm910, %v1841, 0
        %v1874 = vsel %vm910, %v1842, 0
        %v1877 = vsel %vm910, %v1843, 0
        %v1880 = vsel %vm910, %v1844, 0
        %v1883 = vsel %vm910, %v1845, 0
        %v1886 = vsel %vm910, %v1846, 0
        %v1889 = vsel %vm910, %v1847, 0
        %v1892 = vsel %vm910, %v1848, 0
        %v1895 = vsel %vm910, %v1849, 0
        %v1898 = vsel %vm910, %v1850, 0
        %v1901 = vsel %vm910, %v1851, 0
        %v1904 = vsel %vm910, %v1852, 0
        %v1907 = vsel %vm910, %v1853, 0
        %v1910 = vsel %vm910, %v1854, 0
        %v1913 = vsel %vm910, %v1855, 0
        %v1916 = vsel %vm910, %v1856, 0
        %v1919 = vsel %vm910, %v1857, 0
        %1921 = vmatprep.subr.mxu0 0.0
        %1922 = vmatpush1.msra.mxu0 0.0
        %1923 = vmatprep.subr.mxu0 0.0
        %1924 = vmatpush1.msra.mxu0 0.0
        %1925 = vmatprep.subr.mxu0 0.0
        %1926 = vmatpush1.msra.mxu0 0.0
        %1927 = vmatprep.subr.mxu0 0.0
        %1928 = vmatpush1.msra.mxu0 0.0
        %1929 = vmatprep.subr.mxu0 0.0
        %1930 = vmatpush1.msra.mxu0 0.0
        %1931 = vmatprep.subr.mxu0 0.0
        %1932 = vmatpush1.msra.mxu0 0.0
        %1933 = vmatprep.subr.mxu0 0.0
        %1934 = vmatpush1.msra.mxu0 0.0
        %1935 = vmatprep.subr.mxu0 0.0
        %1936 = vmatpush1.msra.mxu0 0.0
        %1937 = vmatprep.subr.mxu0 0.0
        %1938 = vmatpush1.msra.mxu0 %v1866
        %1939 = vmatprep.subr.mxu0 0.0
        %1940 = vmatpush1.msra.mxu0 %v1865
        %1941 = vmatprep.subr.mxu0 0.0
        %1942 = vmatpush1.msra.mxu0 %v1864
        %1943 = vmatprep.subr.mxu0 0.0
        %1944 = vmatpush1.msra.mxu0 %v1863
        %1945 = vmatprep.subr.mxu0 0.0
        %1946 = vmatpush1.msra.mxu0 %v1862
        %1947 = vmatprep.subr.mxu0 0.0
        %1948 = vmatpush1.msra.mxu0 %v1861
        %1949 = vmatprep.subr.mxu0 0.0
        %1950 = vmatpush1.msra.mxu0 %v1860
        %1951 = vmatprep.subr.mxu0 0.0
        %1952 = vmatpush1.msra.mxu0 %v1859
        %1953 = vmatprep.subr.mxu0 0.0
        %1954 = vmatpush2.msra.mxu0 0.0
        %1955 = vmatprep.subr.mxu0 0.0
        %1956 = vmatpush2.msra.mxu0 0.0
        %1957 = vmatprep.subr.mxu0 0.0
        %1958 = vmatpush2.msra.mxu0 0.0
        %1959 = vmatprep.subr.mxu0 0.0
        %1960 = vmatpush2.msra.mxu0 0.0
        %1961 = vmatprep.subr.mxu0 0.0
        %1962 = vmatpush2.msra.mxu0 0.0
        %1963 = vmatprep.subr.mxu0 0.0
        %1964 = vmatpush2.msra.mxu0 0.0
        %1965 = vmatprep.subr.mxu0 0.0
        %1966 = vmatpush2.msra.mxu0 0.0
        %1967 = vmatprep.subr.mxu0 0.0
        %1968 = vmatpush2.msra.mxu0 0.0
        %1969 = vmatprep.subr.mxu0 0.0
        %1970 = vmatpush2.msra.mxu0 0.0
        %1971 = vmatprep.subr.mxu0 0.0
        %1972 = vmatpush2.msra.mxu0 0.0
        %1973 = vmatprep.subr.mxu0 0.0
        %1974 = vmatpush2.msra.mxu0 0.0
        %1975 = vmatprep.subr.mxu0 0.0
        %1976 = vmatpush2.msra.mxu0 0.0
        %1977 = vmatprep.subr.mxu0 0.0
        %1978 = vmatpush2.msra.mxu0 0.0
        %1979 = vmatprep.subr.mxu0 0.0
        %1980 = vmatpush2.msra.mxu0 0.0
        %1981 = vmatprep.subr.mxu0 0.0
        %1982 = vmatpush2.msra.mxu0 0.0
        %1983 = vmatprep.subr.mxu0 0.0
        %1984 = vmatpush2.msra.mxu0 0.0
        %1985 = vmatprep.mubr.f32.mxu0 0.0
        %1986 = vmatmul.mubr.f32.gmra.mxu0 %v1868
        %v1987 = vpop.f32.mrf.mxu0
        %v1988 = vadd.f32 0.0, %v1987
        %v1989 = vpop.f32.mrf.mxu0
        %1990 = vmatprep.mubr.f32.mxu0 0.0
        %1991 = vmatmul.mubr.f32.gmra.mxu0 %v1871
        %v1992 = vpop.f32.mrf.mxu0
        %v1993 = vadd.f32 0.0, %v1992
        %v1994 = vpop.f32.mrf.mxu0
        %1995 = vmatprep.mubr.f32.mxu0 0.0
        %1996 = vmatmul.mubr.f32.gmra.mxu0 %v1874
        %v1997 = vpop.f32.mrf.mxu0
        %v1998 = vadd.f32 0.0, %v1997
        %v1999 = vpop.f32.mrf.mxu0
        %2000 = vmatprep.mubr.f32.mxu0 0.0
        %2001 = vmatmul.mubr.f32.gmra.mxu0 %v1877
        %v2002 = vpop.f32.mrf.mxu0
        %v2003 = vadd.f32 0.0, %v2002
        %v2004 = vpop.f32.mrf.mxu0
        %2005 = vmatprep.mubr.f32.mxu0 0.0
        %2006 = vmatmul.mubr.f32.gmra.mxu0 %v1880
        %v2007 = vpop.f32.mrf.mxu0
        %v2008 = vadd.f32 0.0, %v2007
        %v2009 = vpop.f32.mrf.mxu0
        %2010 = vmatprep.mubr.f32.mxu0 0.0
        %2011 = vmatmul.mubr.f32.gmra.mxu0 %v1883
        %v2012 = vpop.f32.mrf.mxu0
        %v2013 = vadd.f32 0.0, %v2012
        %v2014 = vpop.f32.mrf.mxu0
        %2015 = vmatprep.mubr.f32.mxu0 0.0
        %2016 = vmatmul.mubr.f32.gmra.mxu0 %v1886
        %v2017 = vpop.f32.mrf.mxu0
        %v2018 = vadd.f32 0.0, %v2017
        %v2019 = vpop.f32.mrf.mxu0
        %2020 = vmatprep.mubr.f32.mxu0 0.0
        %2021 = vmatmul.mubr.f32.gmra.mxu0 %v1889
        %v2022 = vpop.f32.mrf.mxu0
        %v2023 = vadd.f32 0.0, %v2022
        %v2024 = vpop.f32.mrf.mxu0
        %2025 = vmatprep.mubr.f32.mxu0 0.0
        %2026 = vmatmul.mubr.f32.gmra.mxu0 %v1892
        %v2027 = vpop.f32.mrf.mxu0
        %v2028 = vadd.f32 0.0, %v2027
        %v2029 = vpop.f32.mrf.mxu0
        %2030 = vmatprep.mubr.f32.mxu0 0.0
        %2031 = vmatmul.mubr.f32.gmra.mxu0 %v1895
        %v2032 = vpop.f32.mrf.mxu0
        %v2033 = vadd.f32 0.0, %v2032
        %v2034 = vpop.f32.mrf.mxu0
        %2035 = vmatprep.mubr.f32.mxu0 0.0
        %2036 = vmatmul.mubr.f32.gmra.mxu0 %v1898
        %v2037 = vpop.f32.mrf.mxu0
        %v2038 = vadd.f32 0.0, %v2037
        %v2039 = vpop.f32.mrf.mxu0
        %2040 = vmatprep.mubr.f32.mxu0 0.0
        %2041 = vmatmul.mubr.f32.gmra.mxu0 %v1901
        %v2042 = vpop.f32.mrf.mxu0
        %v2043 = vadd.f32 0.0, %v2042
        %v2044 = vpop.f32.mrf.mxu0
        %2045 = vmatprep.mubr.f32.mxu0 0.0
        %2046 = vmatmul.mubr.f32.gmra.mxu0 %v1904
        %v2047 = vpop.f32.mrf.mxu0
        %v2048 = vadd.f32 0.0, %v2047
        %v2049 = vpop.f32.mrf.mxu0
        %2050 = vmatprep.mubr.f32.mxu0 0.0
        %2051 = vmatmul.mubr.f32.gmra.mxu0 %v1907
        %v2052 = vpop.f32.mrf.mxu0
        %v2053 = vadd.f32 0.0, %v2052
        %v2054 = vpop.f32.mrf.mxu0
        %2055 = vmatprep.mubr.f32.mxu0 0.0
        %2056 = vmatmul.mubr.f32.gmra.mxu0 %v1910
        %v2057 = vpop.f32.mrf.mxu0
        %v2058 = vadd.f32 0.0, %v2057
        %v2059 = vpop.f32.mrf.mxu0
        %2060 = vmatprep.mubr.f32.mxu0 0.0
        %2061 = vmatmul.mubr.f32.gmra.mxu0 %v1913
        %v2062 = vpop.f32.mrf.mxu0
        %v2063 = vadd.f32 0.0, %v2062
        %v2064 = vpop.f32.mrf.mxu0
        %2065 = vmatprep.mubr.f32.mxu0 0.0
        %2066 = vmatmul.mubr.f32.gmra.mxu0 %v1916
        %v2067 = vpop.f32.mrf.mxu0
        %v2068 = vadd.f32 0.0, %v2067
        %v2069 = vpop.f32.mrf.mxu0
        %2070 = vmatprep.mubr.f32.mxu0 0.0
        %2071 = vmatmul.mubr.f32.gmra.mxu0 %v1919
        %v2072 = vpop.f32.mrf.mxu0
        %v2073 = vadd.f32 0.0, %v2072
        %v2074 = vpop.f32.mrf.mxu0
        %2075 = vdwg.mxu0
        %v2076 = vadd.f32 %v1822, %v1988
        %v2077 = vadd.f32 %v1823, %v1993
        %v2078 = vadd.f32 %v1824, %v1998
        %v2079 = vadd.f32 %v1825, %v2003
        %v2080 = vadd.f32 %v1826, %v2008
        %v2081 = vadd.f32 %v1827, %v2013
        %v2082 = vadd.f32 %v1828, %v2018
        %v2083 = vadd.f32 %v1829, %v2023
        %v2084 = vadd.f32 %v1830, %v2028
        %v2085 = vadd.f32 %v1831, %v2033
        %v2086 = vadd.f32 %v1832, %v2038
        %v2087 = vadd.f32 %v1833, %v2043
        %v2088 = vadd.f32 %v1834, %v2048
        %v2089 = vadd.f32 %v1835, %v2053
        %v2090 = vadd.f32 %v1836, %v2058
        %v2091 = vadd.f32 %v1837, %v2063
        %v2092 = vadd.f32 %v1838, %v2068
        %v2093 = vadd.f32 %v1839, %v2073
        %v2094 = vld [vmem:[%s1585 + $0x2] sm:$0xff]
        %v2095 = vld [vmem:[%s1585 + $0xa] sm:$0xff]
        %v2096 = vld [vmem:[%s1585 + $0x12] sm:$0xff]
        %v2097 = vld [vmem:[%s1585 + $0x22] sm:$0xff]
        %v2098 = vld [vmem:[%s1585 + $0x2a] sm:$0xff]
        %v2099 = vld [vmem:[%s1585 + $0x32] sm:$0xff]
        %v2100 = vld [vmem:[%s1585 + $0x42] sm:$0xff]
        %v2101 = vld [vmem:[%s1585 + $0x4a] sm:$0xff]
        %v2102 = vld [vmem:[%s1585 + $0x52] sm:$0xff]
        %v2103 = vld [vmem:[%s1585 + $0x62] sm:$0xff]
        %v2104 = vld [vmem:[%s1585 + $0x6a] sm:$0xff]
        %v2105 = vld [vmem:[%s1585 + $0x72] sm:$0xff]
        %v2106 = vld [vmem:[%s1585 + $0x82] sm:$0xff]
        %v2107 = vld [vmem:[%s1585 + $0x8a] sm:$0xff]
        %v2108 = vld [vmem:[%s1585 + $0x92] sm:$0xff]
        %v2109 = vld [vmem:[%s1585 + $0xa2] sm:$0xff]
        %v2110 = vld [vmem:[%s1585 + $0xaa] sm:$0xff]
        %v2111 = vld [vmem:[%s1585 + $0xb2] sm:$0xff]
        %s2112 = scalar_lea.vmem %s3, 320
        %v2113 = vld [vmem:[%s2112] sm:$0xff]
        %v2114 = vld [vmem:[%s2112 + $0x8] sm:$0xff]
        %v2115 = vld [vmem:[%s2112 + $0x10] sm:$0xff]
        %v2116 = vld [vmem:[%s2112 + $0x18] sm:$0xff]
        %v2117 = vld [vmem:[%s2112 + $0x20] sm:$0xff]
        %v2118 = vld [vmem:[%s2112 + $0x28] sm:$0xff]
        %v2119 = vld [vmem:[%s2112 + $0x30] sm:$0xff]
        %v2120 = vld [vmem:[%s2112 + $0x38] sm:$0xff]
        %v2122 = vsel %vm910, %v2094, 0
        %v2125 = vsel %vm910, %v2095, 0
        %v2128 = vsel %vm910, %v2096, 0
        %v2131 = vsel %vm910, %v2097, 0
        %v2134 = vsel %vm910, %v2098, 0
        %v2137 = vsel %vm910, %v2099, 0
        %v2140 = vsel %vm910, %v2100, 0
        %v2143 = vsel %vm910, %v2101, 0
        %v2146 = vsel %vm910, %v2102, 0
        %v2149 = vsel %vm910, %v2103, 0
        %v2152 = vsel %vm910, %v2104, 0
        %v2155 = vsel %vm910, %v2105, 0
        %v2158 = vsel %vm910, %v2106, 0
        %v2161 = vsel %vm910, %v2107, 0
        %v2164 = vsel %vm910, %v2108, 0
        %v2167 = vsel %vm910, %v2109, 0
        %v2170 = vsel %vm910, %v2110, 0
        %v2173 = vsel %vm910, %v2111, 0
        %2175 = vmatprep.subr.mxu0 0.0
        %2176 = vmatpush1.msra.mxu0 0.0
        %2177 = vmatprep.subr.mxu0 0.0
        %2178 = vmatpush1.msra.mxu0 0.0
        %2179 = vmatprep.subr.mxu0 0.0
        %2180 = vmatpush1.msra.mxu0 0.0
        %2181 = vmatprep.subr.mxu0 0.0
        %2182 = vmatpush1.msra.mxu0 0.0
        %2183 = vmatprep.subr.mxu0 0.0
        %2184 = vmatpush1.msra.mxu0 0.0
        %2185 = vmatprep.subr.mxu0 0.0
        %2186 = vmatpush1.msra.mxu0 0.0
        %2187 = vmatprep.subr.mxu0 0.0
        %2188 = vmatpush1.msra.mxu0 0.0
        %2189 = vmatprep.subr.mxu0 0.0
        %2190 = vmatpush1.msra.mxu0 0.0
        %2191 = vmatprep.subr.mxu0 0.0
        %2192 = vmatpush1.msra.mxu0 %v2120
        %2193 = vmatprep.subr.mxu0 0.0
        %2194 = vmatpush1.msra.mxu0 %v2119
        %2195 = vmatprep.subr.mxu0 0.0
        %2196 = vmatpush1.msra.mxu0 %v2118
        %2197 = vmatprep.subr.mxu0 0.0
        %2198 = vmatpush1.msra.mxu0 %v2117
        %2199 = vmatprep.subr.mxu0 0.0
        %2200 = vmatpush1.msra.mxu0 %v2116
        %2201 = vmatprep.subr.mxu0 0.0
        %2202 = vmatpush1.msra.mxu0 %v2115
        %2203 = vmatprep.subr.mxu0 0.0
        %2204 = vmatpush1.msra.mxu0 %v2114
        %2205 = vmatprep.subr.mxu0 0.0
        %2206 = vmatpush1.msra.mxu0 %v2113
        %2207 = vmatprep.subr.mxu0 0.0
        %2208 = vmatpush2.msra.mxu0 0.0
        %2209 = vmatprep.subr.mxu0 0.0
        %2210 = vmatpush2.msra.mxu0 0.0
        %2211 = vmatprep.subr.mxu0 0.0
        %2212 = vmatpush2.msra.mxu0 0.0
        %2213 = vmatprep.subr.mxu0 0.0
        %2214 = vmatpush2.msra.mxu0 0.0
        %2215 = vmatprep.subr.mxu0 0.0
        %2216 = vmatpush2.msra.mxu0 0.0
        %2217 = vmatprep.subr.mxu0 0.0
        %2218 = vmatpush2.msra.mxu0 0.0
        %2219 = vmatprep.subr.mxu0 0.0
        %2220 = vmatpush2.msra.mxu0 0.0
        %2221 = vmatprep.subr.mxu0 0.0
        %2222 = vmatpush2.msra.mxu0 0.0
        %2223 = vmatprep.subr.mxu0 0.0
        %2224 = vmatpush2.msra.mxu0 0.0
        %2225 = vmatprep.subr.mxu0 0.0
        %2226 = vmatpush2.msra.mxu0 0.0
        %2227 = vmatprep.subr.mxu0 0.0
        %2228 = vmatpush2.msra.mxu0 0.0
        %2229 = vmatprep.subr.mxu0 0.0
        %2230 = vmatpush2.msra.mxu0 0.0
        %2231 = vmatprep.subr.mxu0 0.0
        %2232 = vmatpush2.msra.mxu0 0.0
        %2233 = vmatprep.subr.mxu0 0.0
        %2234 = vmatpush2.msra.mxu0 0.0
        %2235 = vmatprep.subr.mxu0 0.0
        %2236 = vmatpush2.msra.mxu0 0.0
        %2237 = vmatprep.subr.mxu0 0.0
        %2238 = vmatpush2.msra.mxu0 0.0
        %2239 = vmatprep.mubr.f32.mxu0 0.0
        %2240 = vmatmul.mubr.f32.gmra.mxu0 %v2122
        %v2241 = vpop.f32.mrf.mxu0
        %v2242 = vadd.f32 0.0, %v2241
        %v2243 = vpop.f32.mrf.mxu0
        %2244 = vmatprep.mubr.f32.mxu0 0.0
        %2245 = vmatmul.mubr.f32.gmra.mxu0 %v2125
        %v2246 = vpop.f32.mrf.mxu0
        %v2247 = vadd.f32 0.0, %v2246
        %v2248 = vpop.f32.mrf.mxu0
        %2249 = vmatprep.mubr.f32.mxu0 0.0
        %2250 = vmatmul.mubr.f32.gmra.mxu0 %v2128
        %v2251 = vpop.f32.mrf.mxu0
        %v2252 = vadd.f32 0.0, %v2251
        %v2253 = vpop.f32.mrf.mxu0
        %2254 = vmatprep.mubr.f32.mxu0 0.0
        %2255 = vmatmul.mubr.f32.gmra.mxu0 %v2131
        %v2256 = vpop.f32.mrf.mxu0
        %v2257 = vadd.f32 0.0, %v2256
        %v2258 = vpop.f32.mrf.mxu0
        %2259 = vmatprep.mubr.f32.mxu0 0.0
        %2260 = vmatmul.mubr.f32.gmra.mxu0 %v2134
        %v2261 = vpop.f32.mrf.mxu0
        %v2262 = vadd.f32 0.0, %v2261
        %v2263 = vpop.f32.mrf.mxu0
        %2264 = vmatprep.mubr.f32.mxu0 0.0
        %2265 = vmatmul.mubr.f32.gmra.mxu0 %v2137
        %v2266 = vpop.f32.mrf.mxu0
        %v2267 = vadd.f32 0.0, %v2266
        %v2268 = vpop.f32.mrf.mxu0
        %2269 = vmatprep.mubr.f32.mxu0 0.0
        %2270 = vmatmul.mubr.f32.gmra.mxu0 %v2140
        %v2271 = vpop.f32.mrf.mxu0
        %v2272 = vadd.f32 0.0, %v2271
        %v2273 = vpop.f32.mrf.mxu0
        %2274 = vmatprep.mubr.f32.mxu0 0.0
        %2275 = vmatmul.mubr.f32.gmra.mxu0 %v2143
        %v2276 = vpop.f32.mrf.mxu0
        %v2277 = vadd.f32 0.0, %v2276
        %v2278 = vpop.f32.mrf.mxu0
        %2279 = vmatprep.mubr.f32.mxu0 0.0
        %2280 = vmatmul.mubr.f32.gmra.mxu0 %v2146
        %v2281 = vpop.f32.mrf.mxu0
        %v2282 = vadd.f32 0.0, %v2281
        %v2283 = vpop.f32.mrf.mxu0
        %2284 = vmatprep.mubr.f32.mxu0 0.0
        %2285 = vmatmul.mubr.f32.gmra.mxu0 %v2149
        %v2286 = vpop.f32.mrf.mxu0
        %v2287 = vadd.f32 0.0, %v2286
        %v2288 = vpop.f32.mrf.mxu0
        %2289 = vmatprep.mubr.f32.mxu0 0.0
        %2290 = vmatmul.mubr.f32.gmra.mxu0 %v2152
        %v2291 = vpop.f32.mrf.mxu0
        %v2292 = vadd.f32 0.0, %v2291
        %v2293 = vpop.f32.mrf.mxu0
        %2294 = vmatprep.mubr.f32.mxu0 0.0
        %2295 = vmatmul.mubr.f32.gmra.mxu0 %v2155
        %v2296 = vpop.f32.mrf.mxu0
        %v2297 = vadd.f32 0.0, %v2296
        %v2298 = vpop.f32.mrf.mxu0
        %2299 = vmatprep.mubr.f32.mxu0 0.0
        %2300 = vmatmul.mubr.f32.gmra.mxu0 %v2158
        %v2301 = vpop.f32.mrf.mxu0
        %v2302 = vadd.f32 0.0, %v2301
        %v2303 = vpop.f32.mrf.mxu0
        %2304 = vmatprep.mubr.f32.mxu0 0.0
        %2305 = vmatmul.mubr.f32.gmra.mxu0 %v2161
        %v2306 = vpop.f32.mrf.mxu0
        %v2307 = vadd.f32 0.0, %v2306
        %v2308 = vpop.f32.mrf.mxu0
        %2309 = vmatprep.mubr.f32.mxu0 0.0
        %2310 = vmatmul.mubr.f32.gmra.mxu0 %v2164
        %v2311 = vpop.f32.mrf.mxu0
        %v2312 = vadd.f32 0.0, %v2311
        %v2313 = vpop.f32.mrf.mxu0
        %2314 = vmatprep.mubr.f32.mxu0 0.0
        %2315 = vmatmul.mubr.f32.gmra.mxu0 %v2167
        %v2316 = vpop.f32.mrf.mxu0
        %v2317 = vadd.f32 0.0, %v2316
        %v2318 = vpop.f32.mrf.mxu0
        %2319 = vmatprep.mubr.f32.mxu0 0.0
        %2320 = vmatmul.mubr.f32.gmra.mxu0 %v2170
        %v2321 = vpop.f32.mrf.mxu0
        %v2322 = vadd.f32 0.0, %v2321
        %v2323 = vpop.f32.mrf.mxu0
        %2324 = vmatprep.mubr.f32.mxu0 0.0
        %2325 = vmatmul.mubr.f32.gmra.mxu0 %v2173
        %v2326 = vpop.f32.mrf.mxu0
        %v2327 = vadd.f32 0.0, %v2326
        %v2328 = vpop.f32.mrf.mxu0
        %2329 = vdwg.mxu0
        %v2330 = vadd.f32 %v2076, %v2242
        %v2331 = vadd.f32 %v2077, %v2247
        %v2332 = vadd.f32 %v2078, %v2252
        %v2333 = vadd.f32 %v2079, %v2257
        %v2334 = vadd.f32 %v2080, %v2262
        %v2335 = vadd.f32 %v2081, %v2267
        %v2336 = vadd.f32 %v2082, %v2272
        %v2337 = vadd.f32 %v2083, %v2277
        %v2338 = vadd.f32 %v2084, %v2282
        %v2339 = vadd.f32 %v2085, %v2287
        %v2340 = vadd.f32 %v2086, %v2292
        %v2341 = vadd.f32 %v2087, %v2297
        %v2342 = vadd.f32 %v2088, %v2302
        %v2343 = vadd.f32 %v2089, %v2307
        %v2344 = vadd.f32 %v2090, %v2312
        %v2345 = vadd.f32 %v2091, %v2317
        %v2346 = vadd.f32 %v2092, %v2322
        %v2347 = vadd.f32 %v2093, %v2327
        %s2348 = sadd.s32 %s854, 2
        %s2349 = smul.u32 %s2348, 32
        %s2350 = scalar_lea.vmem [#allocation2], %s2349
        %v2351 = vld [vmem:[%s2350] sm:$0xff]
        %v2352 = vld [vmem:[%s2350 + $0x8] sm:$0xff]
        %v2353 = vld [vmem:[%s2350 + $0x10] sm:$0xff]
        %v2354 = vld [vmem:[%s2350 + $0x20] sm:$0xff]
        %v2355 = vld [vmem:[%s2350 + $0x28] sm:$0xff]
        %v2356 = vld [vmem:[%s2350 + $0x30] sm:$0xff]
        %v2357 = vld [vmem:[%s2350 + $0x40] sm:$0xff]
        %v2358 = vld [vmem:[%s2350 + $0x48] sm:$0xff]
        %v2359 = vld [vmem:[%s2350 + $0x50] sm:$0xff]
        %v2360 = vld [vmem:[%s2350 + $0x60] sm:$0xff]
        %v2361 = vld [vmem:[%s2350 + $0x68] sm:$0xff]
        %v2362 = vld [vmem:[%s2350 + $0x70] sm:$0xff]
        %v2363 = vld [vmem:[%s2350 + $0x80] sm:$0xff]
        %v2364 = vld [vmem:[%s2350 + $0x88] sm:$0xff]
        %v2365 = vld [vmem:[%s2350 + $0x90] sm:$0xff]
        %v2366 = vld [vmem:[%s2350 + $0xa0] sm:$0xff]
        %v2367 = vld [vmem:[%s2350 + $0xa8] sm:$0xff]
        %v2368 = vld [vmem:[%s2350 + $0xb0] sm:$0xff]
        %s2369 = scalar_lea.vmem %s3, 384
        %v2370 = vld [vmem:[%s2369] sm:$0xff]
        %v2371 = vld [vmem:[%s2369 + $0x8] sm:$0xff]
        %v2372 = vld [vmem:[%s2369 + $0x10] sm:$0xff]
        %v2373 = vld [vmem:[%s2369 + $0x18] sm:$0xff]
        %v2374 = vld [vmem:[%s2369 + $0x20] sm:$0xff]
        %v2375 = vld [vmem:[%s2369 + $0x28] sm:$0xff]
        %v2376 = vld [vmem:[%s2369 + $0x30] sm:$0xff]
        %v2377 = vld [vmem:[%s2369 + $0x38] sm:$0xff]
        %v2379 = vsel %vm910, %v2351, 0
        %v2382 = vsel %vm910, %v2352, 0
        %v2385 = vsel %vm910, %v2353, 0
        %v2388 = vsel %vm910, %v2354, 0
        %v2391 = vsel %vm910, %v2355, 0
        %v2394 = vsel %vm910, %v2356, 0
        %v2397 = vsel %vm910, %v2357, 0
        %v2400 = vsel %vm910, %v2358, 0
        %v2403 = vsel %vm910, %v2359, 0
        %v2406 = vsel %vm910, %v2360, 0
        %v2409 = vsel %vm910, %v2361, 0
        %v2412 = vsel %vm910, %v2362, 0
        %v2415 = vsel %vm910, %v2363, 0
        %v2418 = vsel %vm910, %v2364, 0
        %v2421 = vsel %vm910, %v2365, 0
        %v2424 = vsel %vm910, %v2366, 0
        %v2427 = vsel %vm910, %v2367, 0
        %v2430 = vsel %vm910, %v2368, 0
        %2432 = vmatprep.subr.mxu0 0.0
        %2433 = vmatpush1.msra.mxu0 0.0
        %2434 = vmatprep.subr.mxu0 0.0
        %2435 = vmatpush1.msra.mxu0 0.0
        %2436 = vmatprep.subr.mxu0 0.0
        %2437 = vmatpush1.msra.mxu0 0.0
        %2438 = vmatprep.subr.mxu0 0.0
        %2439 = vmatpush1.msra.mxu0 0.0
        %2440 = vmatprep.subr.mxu0 0.0
        %2441 = vmatpush1.msra.mxu0 0.0
        %2442 = vmatprep.subr.mxu0 0.0
        %2443 = vmatpush1.msra.mxu0 0.0
        %2444 = vmatprep.subr.mxu0 0.0
        %2445 = vmatpush1.msra.mxu0 0.0
        %2446 = vmatprep.subr.mxu0 0.0
        %2447 = vmatpush1.msra.mxu0 0.0
        %2448 = vmatprep.subr.mxu0 0.0
        %2449 = vmatpush1.msra.mxu0 %v2377
        %2450 = vmatprep.subr.mxu0 0.0
        %2451 = vmatpush1.msra.mxu0 %v2376
        %2452 = vmatprep.subr.mxu0 0.0
        %2453 = vmatpush1.msra.mxu0 %v2375
        %2454 = vmatprep.subr.mxu0 0.0
        %2455 = vmatpush1.msra.mxu0 %v2374
        %2456 = vmatprep.subr.mxu0 0.0
        %2457 = vmatpush1.msra.mxu0 %v2373
        %2458 = vmatprep.subr.mxu0 0.0
        %2459 = vmatpush1.msra.mxu0 %v2372
        %2460 = vmatprep.subr.mxu0 0.0
        %2461 = vmatpush1.msra.mxu0 %v2371
        %2462 = vmatprep.subr.mxu0 0.0
        %2463 = vmatpush1.msra.mxu0 %v2370
        %2464 = vmatprep.subr.mxu0 0.0
        %2465 = vmatpush2.msra.mxu0 0.0
        %2466 = vmatprep.subr.mxu0 0.0
        %2467 = vmatpush2.msra.mxu0 0.0
        %2468 = vmatprep.subr.mxu0 0.0
        %2469 = vmatpush2.msra.mxu0 0.0
        %2470 = vmatprep.subr.mxu0 0.0
        %2471 = vmatpush2.msra.mxu0 0.0
        %2472 = vmatprep.subr.mxu0 0.0
        %2473 = vmatpush2.msra.mxu0 0.0
        %2474 = vmatprep.subr.mxu0 0.0
        %2475 = vmatpush2.msra.mxu0 0.0
        %2476 = vmatprep.subr.mxu0 0.0
        %2477 = vmatpush2.msra.mxu0 0.0
        %2478 = vmatprep.subr.mxu0 0.0
        %2479 = vmatpush2.msra.mxu0 0.0
        %2480 = vmatprep.subr.mxu0 0.0
        %2481 = vmatpush2.msra.mxu0 0.0
        %2482 = vmatprep.subr.mxu0 0.0
        %2483 = vmatpush2.msra.mxu0 0.0
        %2484 = vmatprep.subr.mxu0 0.0
        %2485 = vmatpush2.msra.mxu0 0.0
        %2486 = vmatprep.subr.mxu0 0.0
        %2487 = vmatpush2.msra.mxu0 0.0
        %2488 = vmatprep.subr.mxu0 0.0
        %2489 = vmatpush2.msra.mxu0 0.0
        %2490 = vmatprep.subr.mxu0 0.0
        %2491 = vmatpush2.msra.mxu0 0.0
        %2492 = vmatprep.subr.mxu0 0.0
        %2493 = vmatpush2.msra.mxu0 0.0
        %2494 = vmatprep.subr.mxu0 0.0
        %2495 = vmatpush2.msra.mxu0 0.0
        %2496 = vmatprep.mubr.f32.mxu0 0.0
        %2497 = vmatmul.mubr.f32.gmra.mxu0 %v2379
        %v2498 = vpop.f32.mrf.mxu0
        %v2499 = vadd.f32 0.0, %v2498
        %v2500 = vpop.f32.mrf.mxu0
        %2501 = vmatprep.mubr.f32.mxu0 0.0
        %2502 = vmatmul.mubr.f32.gmra.mxu0 %v2382
        %v2503 = vpop.f32.mrf.mxu0
        %v2504 = vadd.f32 0.0, %v2503
        %v2505 = vpop.f32.mrf.mxu0
        %2506 = vmatprep.mubr.f32.mxu0 0.0
        %2507 = vmatmul.mubr.f32.gmra.mxu0 %v2385
        %v2508 = vpop.f32.mrf.mxu0
        %v2509 = vadd.f32 0.0, %v2508
        %v2510 = vpop.f32.mrf.mxu0
        %2511 = vmatprep.mubr.f32.mxu0 0.0
        %2512 = vmatmul.mubr.f32.gmra.mxu0 %v2388
        %v2513 = vpop.f32.mrf.mxu0
        %v2514 = vadd.f32 0.0, %v2513
        %v2515 = vpop.f32.mrf.mxu0
        %2516 = vmatprep.mubr.f32.mxu0 0.0
        %2517 = vmatmul.mubr.f32.gmra.mxu0 %v2391
        %v2518 = vpop.f32.mrf.mxu0
        %v2519 = vadd.f32 0.0, %v2518
        %v2520 = vpop.f32.mrf.mxu0
        %2521 = vmatprep.mubr.f32.mxu0 0.0
        %2522 = vmatmul.mubr.f32.gmra.mxu0 %v2394
        %v2523 = vpop.f32.mrf.mxu0
        %v2524 = vadd.f32 0.0, %v2523
        %v2525 = vpop.f32.mrf.mxu0
        %2526 = vmatprep.mubr.f32.mxu0 0.0
        %2527 = vmatmul.mubr.f32.gmra.mxu0 %v2397
        %v2528 = vpop.f32.mrf.mxu0
        %v2529 = vadd.f32 0.0, %v2528
        %v2530 = vpop.f32.mrf.mxu0
        %2531 = vmatprep.mubr.f32.mxu0 0.0
        %2532 = vmatmul.mubr.f32.gmra.mxu0 %v2400
        %v2533 = vpop.f32.mrf.mxu0
        %v2534 = vadd.f32 0.0, %v2533
        %v2535 = vpop.f32.mrf.mxu0
        %2536 = vmatprep.mubr.f32.mxu0 0.0
        %2537 = vmatmul.mubr.f32.gmra.mxu0 %v2403
        %v2538 = vpop.f32.mrf.mxu0
        %v2539 = vadd.f32 0.0, %v2538
        %v2540 = vpop.f32.mrf.mxu0
        %2541 = vmatprep.mubr.f32.mxu0 0.0
        %2542 = vmatmul.mubr.f32.gmra.mxu0 %v2406
        %v2543 = vpop.f32.mrf.mxu0
        %v2544 = vadd.f32 0.0, %v2543
        %v2545 = vpop.f32.mrf.mxu0
        %2546 = vmatprep.mubr.f32.mxu0 0.0
        %2547 = vmatmul.mubr.f32.gmra.mxu0 %v2409
        %v2548 = vpop.f32.mrf.mxu0
        %v2549 = vadd.f32 0.0, %v2548
        %v2550 = vpop.f32.mrf.mxu0
        %2551 = vmatprep.mubr.f32.mxu0 0.0
        %2552 = vmatmul.mubr.f32.gmra.mxu0 %v2412
        %v2553 = vpop.f32.mrf.mxu0
        %v2554 = vadd.f32 0.0, %v2553
        %v2555 = vpop.f32.mrf.mxu0
        %2556 = vmatprep.mubr.f32.mxu0 0.0
        %2557 = vmatmul.mubr.f32.gmra.mxu0 %v2415
        %v2558 = vpop.f32.mrf.mxu0
        %v2559 = vadd.f32 0.0, %v2558
        %v2560 = vpop.f32.mrf.mxu0
        %2561 = vmatprep.mubr.f32.mxu0 0.0
        %2562 = vmatmul.mubr.f32.gmra.mxu0 %v2418
        %v2563 = vpop.f32.mrf.mxu0
        %v2564 = vadd.f32 0.0, %v2563
        %v2565 = vpop.f32.mrf.mxu0
        %2566 = vmatprep.mubr.f32.mxu0 0.0
        %2567 = vmatmul.mubr.f32.gmra.mxu0 %v2421
        %v2568 = vpop.f32.mrf.mxu0
        %v2569 = vadd.f32 0.0, %v2568
        %v2570 = vpop.f32.mrf.mxu0
        %2571 = vmatprep.mubr.f32.mxu0 0.0
        %2572 = vmatmul.mubr.f32.gmra.mxu0 %v2424
        %v2573 = vpop.f32.mrf.mxu0
        %v2574 = vadd.f32 0.0, %v2573
        %v2575 = vpop.f32.mrf.mxu0
        %2576 = vmatprep.mubr.f32.mxu0 0.0
        %2577 = vmatmul.mubr.f32.gmra.mxu0 %v2427
        %v2578 = vpop.f32.mrf.mxu0
        %v2579 = vadd.f32 0.0, %v2578
        %v2580 = vpop.f32.mrf.mxu0
        %2581 = vmatprep.mubr.f32.mxu0 0.0
        %2582 = vmatmul.mubr.f32.gmra.mxu0 %v2430
        %v2583 = vpop.f32.mrf.mxu0
        %v2584 = vadd.f32 0.0, %v2583
        %v2585 = vpop.f32.mrf.mxu0
        %2586 = vdwg.mxu0
        %v2587 = vadd.f32 %v2330, %v2499
        %v2588 = vadd.f32 %v2331, %v2504
        %v2589 = vadd.f32 %v2332, %v2509
        %v2590 = vadd.f32 %v2333, %v2514
        %v2591 = vadd.f32 %v2334, %v2519
        %v2592 = vadd.f32 %v2335, %v2524
        %v2593 = vadd.f32 %v2336, %v2529
        %v2594 = vadd.f32 %v2337, %v2534
        %v2595 = vadd.f32 %v2338, %v2539
        %v2596 = vadd.f32 %v2339, %v2544
        %v2597 = vadd.f32 %v2340, %v2549
        %v2598 = vadd.f32 %v2341, %v2554
        %v2599 = vadd.f32 %v2342, %v2559
        %v2600 = vadd.f32 %v2343, %v2564
        %v2601 = vadd.f32 %v2344, %v2569
        %v2602 = vadd.f32 %v2345, %v2574
        %v2603 = vadd.f32 %v2346, %v2579
        %v2604 = vadd.f32 %v2347, %v2584
        %v2605 = vld [vmem:[%s2350 + $0x1] sm:$0xff]
        %v2606 = vld [vmem:[%s2350 + $0x9] sm:$0xff]
        %v2607 = vld [vmem:[%s2350 + $0x11] sm:$0xff]
        %v2608 = vld [vmem:[%s2350 + $0x21] sm:$0xff]
        %v2609 = vld [vmem:[%s2350 + $0x29] sm:$0xff]
        %v2610 = vld [vmem:[%s2350 + $0x31] sm:$0xff]
        %v2611 = vld [vmem:[%s2350 + $0x41] sm:$0xff]
        %v2612 = vld [vmem:[%s2350 + $0x49] sm:$0xff]
        %v2613 = vld [vmem:[%s2350 + $0x51] sm:$0xff]
        %v2614 = vld [vmem:[%s2350 + $0x61] sm:$0xff]
        %v2615 = vld [vmem:[%s2350 + $0x69] sm:$0xff]
        %v2616 = vld [vmem:[%s2350 + $0x71] sm:$0xff]
        %v2617 = vld [vmem:[%s2350 + $0x81] sm:$0xff]
        %v2618 = vld [vmem:[%s2350 + $0x89] sm:$0xff]
        %v2619 = vld [vmem:[%s2350 + $0x91] sm:$0xff]
        %v2620 = vld [vmem:[%s2350 + $0xa1] sm:$0xff]
        %v2621 = vld [vmem:[%s2350 + $0xa9] sm:$0xff]
        %v2622 = vld [vmem:[%s2350 + $0xb1] sm:$0xff]
        %s2623 = scalar_lea.vmem %s3, 448
        %v2624 = vld [vmem:[%s2623] sm:$0xff]
        %v2625 = vld [vmem:[%s2623 + $0x8] sm:$0xff]
        %v2626 = vld [vmem:[%s2623 + $0x10] sm:$0xff]
        %v2627 = vld [vmem:[%s2623 + $0x18] sm:$0xff]
        %v2628 = vld [vmem:[%s2623 + $0x20] sm:$0xff]
        %v2629 = vld [vmem:[%s2623 + $0x28] sm:$0xff]
        %v2630 = vld [vmem:[%s2623 + $0x30] sm:$0xff]
        %v2631 = vld [vmem:[%s2623 + $0x38] sm:$0xff]
        %v2633 = vsel %vm910, %v2605, 0
        %v2636 = vsel %vm910, %v2606, 0
        %v2639 = vsel %vm910, %v2607, 0
        %v2642 = vsel %vm910, %v2608, 0
        %v2645 = vsel %vm910, %v2609, 0
        %v2648 = vsel %vm910, %v2610, 0
        %v2651 = vsel %vm910, %v2611, 0
        %v2654 = vsel %vm910, %v2612, 0
        %v2657 = vsel %vm910, %v2613, 0
        %v2660 = vsel %vm910, %v2614, 0
        %v2663 = vsel %vm910, %v2615, 0
        %v2666 = vsel %vm910, %v2616, 0
        %v2669 = vsel %vm910, %v2617, 0
        %v2672 = vsel %vm910, %v2618, 0
        %v2675 = vsel %vm910, %v2619, 0
        %v2678 = vsel %vm910, %v2620, 0
        %v2681 = vsel %vm910, %v2621, 0
        %v2684 = vsel %vm910, %v2622, 0
        %2686 = vmatprep.subr.mxu0 0.0
        %2687 = vmatpush1.msra.mxu0 0.0
        %2688 = vmatprep.subr.mxu0 0.0
        %2689 = vmatpush1.msra.mxu0 0.0
        %2690 = vmatprep.subr.mxu0 0.0
        %2691 = vmatpush1.msra.mxu0 0.0
        %2692 = vmatprep.subr.mxu0 0.0
        %2693 = vmatpush1.msra.mxu0 0.0
        %2694 = vmatprep.subr.mxu0 0.0
        %2695 = vmatpush1.msra.mxu0 0.0
        %2696 = vmatprep.subr.mxu0 0.0
        %2697 = vmatpush1.msra.mxu0 0.0
        %2698 = vmatprep.subr.mxu0 0.0
        %2699 = vmatpush1.msra.mxu0 0.0
        %2700 = vmatprep.subr.mxu0 0.0
        %2701 = vmatpush1.msra.mxu0 0.0
        %2702 = vmatprep.subr.mxu0 0.0
        %2703 = vmatpush1.msra.mxu0 %v2631
        %2704 = vmatprep.subr.mxu0 0.0
        %2705 = vmatpush1.msra.mxu0 %v2630
        %2706 = vmatprep.subr.mxu0 0.0
        %2707 = vmatpush1.msra.mxu0 %v2629
        %2708 = vmatprep.subr.mxu0 0.0
        %2709 = vmatpush1.msra.mxu0 %v2628
        %2710 = vmatprep.subr.mxu0 0.0
        %2711 = vmatpush1.msra.mxu0 %v2627
        %2712 = vmatprep.subr.mxu0 0.0
        %2713 = vmatpush1.msra.mxu0 %v2626
        %2714 = vmatprep.subr.mxu0 0.0
        %2715 = vmatpush1.msra.mxu0 %v2625
        %2716 = vmatprep.subr.mxu0 0.0
        %2717 = vmatpush1.msra.mxu0 %v2624
        %2718 = vmatprep.subr.mxu0 0.0
        %2719 = vmatpush2.msra.mxu0 0.0
        %2720 = vmatprep.subr.mxu0 0.0
        %2721 = vmatpush2.msra.mxu0 0.0
        %2722 = vmatprep.subr.mxu0 0.0
        %2723 = vmatpush2.msra.mxu0 0.0
        %2724 = vmatprep.subr.mxu0 0.0
        %2725 = vmatpush2.msra.mxu0 0.0
        %2726 = vmatprep.subr.mxu0 0.0
        %2727 = vmatpush2.msra.mxu0 0.0
        %2728 = vmatprep.subr.mxu0 0.0
        %2729 = vmatpush2.msra.mxu0 0.0
        %2730 = vmatprep.subr.mxu0 0.0
        %2731 = vmatpush2.msra.mxu0 0.0
        %2732 = vmatprep.subr.mxu0 0.0
        %2733 = vmatpush2.msra.mxu0 0.0
        %2734 = vmatprep.subr.mxu0 0.0
        %2735 = vmatpush2.msra.mxu0 0.0
        %2736 = vmatprep.subr.mxu0 0.0
        %2737 = vmatpush2.msra.mxu0 0.0
        %2738 = vmatprep.subr.mxu0 0.0
        %2739 = vmatpush2.msra.mxu0 0.0
        %2740 = vmatprep.subr.mxu0 0.0
        %2741 = vmatpush2.msra.mxu0 0.0
        %2742 = vmatprep.subr.mxu0 0.0
        %2743 = vmatpush2.msra.mxu0 0.0
        %2744 = vmatprep.subr.mxu0 0.0
        %2745 = vmatpush2.msra.mxu0 0.0
        %2746 = vmatprep.subr.mxu0 0.0
        %2747 = vmatpush2.msra.mxu0 0.0
        %2748 = vmatprep.subr.mxu0 0.0
        %2749 = vmatpush2.msra.mxu0 0.0
        %2750 = vmatprep.mubr.f32.mxu0 0.0
        %2751 = vmatmul.mubr.f32.gmra.mxu0 %v2633
        %v2752 = vpop.f32.mrf.mxu0
        %v2753 = vadd.f32 0.0, %v2752
        %v2754 = vpop.f32.mrf.mxu0
        %2755 = vmatprep.mubr.f32.mxu0 0.0
        %2756 = vmatmul.mubr.f32.gmra.mxu0 %v2636
        %v2757 = vpop.f32.mrf.mxu0
        %v2758 = vadd.f32 0.0, %v2757
        %v2759 = vpop.f32.mrf.mxu0
        %2760 = vmatprep.mubr.f32.mxu0 0.0
        %2761 = vmatmul.mubr.f32.gmra.mxu0 %v2639
        %v2762 = vpop.f32.mrf.mxu0
        %v2763 = vadd.f32 0.0, %v2762
        %v2764 = vpop.f32.mrf.mxu0
        %2765 = vmatprep.mubr.f32.mxu0 0.0
        %2766 = vmatmul.mubr.f32.gmra.mxu0 %v2642
        %v2767 = vpop.f32.mrf.mxu0
        %v2768 = vadd.f32 0.0, %v2767
        %v2769 = vpop.f32.mrf.mxu0
        %2770 = vmatprep.mubr.f32.mxu0 0.0
        %2771 = vmatmul.mubr.f32.gmra.mxu0 %v2645
        %v2772 = vpop.f32.mrf.mxu0
        %v2773 = vadd.f32 0.0, %v2772
        %v2774 = vpop.f32.mrf.mxu0
        %2775 = vmatprep.mubr.f32.mxu0 0.0
        %2776 = vmatmul.mubr.f32.gmra.mxu0 %v2648
        %v2777 = vpop.f32.mrf.mxu0
        %v2778 = vadd.f32 0.0, %v2777
        %v2779 = vpop.f32.mrf.mxu0
        %2780 = vmatprep.mubr.f32.mxu0 0.0
        %2781 = vmatmul.mubr.f32.gmra.mxu0 %v2651
        %v2782 = vpop.f32.mrf.mxu0
        %v2783 = vadd.f32 0.0, %v2782
        %v2784 = vpop.f32.mrf.mxu0
        %2785 = vmatprep.mubr.f32.mxu0 0.0
        %2786 = vmatmul.mubr.f32.gmra.mxu0 %v2654
        %v2787 = vpop.f32.mrf.mxu0
        %v2788 = vadd.f32 0.0, %v2787
        %v2789 = vpop.f32.mrf.mxu0
        %2790 = vmatprep.mubr.f32.mxu0 0.0
        %2791 = vmatmul.mubr.f32.gmra.mxu0 %v2657
        %v2792 = vpop.f32.mrf.mxu0
        %v2793 = vadd.f32 0.0, %v2792
        %v2794 = vpop.f32.mrf.mxu0
        %2795 = vmatprep.mubr.f32.mxu0 0.0
        %2796 = vmatmul.mubr.f32.gmra.mxu0 %v2660
        %v2797 = vpop.f32.mrf.mxu0
        %v2798 = vadd.f32 0.0, %v2797
        %v2799 = vpop.f32.mrf.mxu0
        %2800 = vmatprep.mubr.f32.mxu0 0.0
        %2801 = vmatmul.mubr.f32.gmra.mxu0 %v2663
        %v2802 = vpop.f32.mrf.mxu0
        %v2803 = vadd.f32 0.0, %v2802
        %v2804 = vpop.f32.mrf.mxu0
        %2805 = vmatprep.mubr.f32.mxu0 0.0
        %2806 = vmatmul.mubr.f32.gmra.mxu0 %v2666
        %v2807 = vpop.f32.mrf.mxu0
        %v2808 = vadd.f32 0.0, %v2807
        %v2809 = vpop.f32.mrf.mxu0
        %2810 = vmatprep.mubr.f32.mxu0 0.0
        %2811 = vmatmul.mubr.f32.gmra.mxu0 %v2669
        %v2812 = vpop.f32.mrf.mxu0
        %v2813 = vadd.f32 0.0, %v2812
        %v2814 = vpop.f32.mrf.mxu0
        %2815 = vmatprep.mubr.f32.mxu0 0.0
        %2816 = vmatmul.mubr.f32.gmra.mxu0 %v2672
        %v2817 = vpop.f32.mrf.mxu0
        %v2818 = vadd.f32 0.0, %v2817
        %v2819 = vpop.f32.mrf.mxu0
        %2820 = vmatprep.mubr.f32.mxu0 0.0
        %2821 = vmatmul.mubr.f32.gmra.mxu0 %v2675
        %v2822 = vpop.f32.mrf.mxu0
        %v2823 = vadd.f32 0.0, %v2822
        %v2824 = vpop.f32.mrf.mxu0
        %2825 = vmatprep.mubr.f32.mxu0 0.0
        %2826 = vmatmul.mubr.f32.gmra.mxu0 %v2678
        %v2827 = vpop.f32.mrf.mxu0
        %v2828 = vadd.f32 0.0, %v2827
        %v2829 = vpop.f32.mrf.mxu0
        %2830 = vmatprep.mubr.f32.mxu0 0.0
        %2831 = vmatmul.mubr.f32.gmra.mxu0 %v2681
        %v2832 = vpop.f32.mrf.mxu0
        %v2833 = vadd.f32 0.0, %v2832
        %v2834 = vpop.f32.mrf.mxu0
        %2835 = vmatprep.mubr.f32.mxu0 0.0
        %2836 = vmatmul.mubr.f32.gmra.mxu0 %v2684
        %v2837 = vpop.f32.mrf.mxu0
        %v2838 = vadd.f32 0.0, %v2837
        %v2839 = vpop.f32.mrf.mxu0
        %2840 = vdwg.mxu0
        %v2841 = vadd.f32 %v2587, %v2753
        %v2842 = vadd.f32 %v2588, %v2758
        %v2843 = vadd.f32 %v2589, %v2763
        %v2844 = vadd.f32 %v2590, %v2768
        %v2845 = vadd.f32 %v2591, %v2773
        %v2846 = vadd.f32 %v2592, %v2778
        %v2847 = vadd.f32 %v2593, %v2783
        %v2848 = vadd.f32 %v2594, %v2788
        %v2849 = vadd.f32 %v2595, %v2793
        %v2850 = vadd.f32 %v2596, %v2798
        %v2851 = vadd.f32 %v2597, %v2803
        %v2852 = vadd.f32 %v2598, %v2808
        %v2853 = vadd.f32 %v2599, %v2813
        %v2854 = vadd.f32 %v2600, %v2818
        %v2855 = vadd.f32 %v2601, %v2823
        %v2856 = vadd.f32 %v2602, %v2828
        %v2857 = vadd.f32 %v2603, %v2833
        %v2858 = vadd.f32 %v2604, %v2838
        %v2859 = vld [vmem:[%s2350 + $0x2] sm:$0xff]
        %v2860 = vld [vmem:[%s2350 + $0xa] sm:$0xff]
        %v2861 = vld [vmem:[%s2350 + $0x12] sm:$0xff]
        %v2862 = vld [vmem:[%s2350 + $0x22] sm:$0xff]
        %v2863 = vld [vmem:[%s2350 + $0x2a] sm:$0xff]
        %v2864 = vld [vmem:[%s2350 + $0x32] sm:$0xff]
        %v2865 = vld [vmem:[%s2350 + $0x42] sm:$0xff]
        %v2866 = vld [vmem:[%s2350 + $0x4a] sm:$0xff]
        %v2867 = vld [vmem:[%s2350 + $0x52] sm:$0xff]
        %v2868 = vld [vmem:[%s2350 + $0x62] sm:$0xff]
        %v2869 = vld [vmem:[%s2350 + $0x6a] sm:$0xff]
        %v2870 = vld [vmem:[%s2350 + $0x72] sm:$0xff]
        %v2871 = vld [vmem:[%s2350 + $0x82] sm:$0xff]
        %v2872 = vld [vmem:[%s2350 + $0x8a] sm:$0xff]
        %v2873 = vld [vmem:[%s2350 + $0x92] sm:$0xff]
        %v2874 = vld [vmem:[%s2350 + $0xa2] sm:$0xff]
        %v2875 = vld [vmem:[%s2350 + $0xaa] sm:$0xff]
        %v2876 = vld [vmem:[%s2350 + $0xb2] sm:$0xff]
        %s2877 = scalar_lea.vmem %s3, 512
        %v2878 = vld [vmem:[%s2877] sm:$0xff]
        %v2879 = vld [vmem:[%s2877 + $0x8] sm:$0xff]
        %v2880 = vld [vmem:[%s2877 + $0x10] sm:$0xff]
        %v2881 = vld [vmem:[%s2877 + $0x18] sm:$0xff]
        %v2882 = vld [vmem:[%s2877 + $0x20] sm:$0xff]
        %v2883 = vld [vmem:[%s2877 + $0x28] sm:$0xff]
        %v2884 = vld [vmem:[%s2877 + $0x30] sm:$0xff]
        %v2885 = vld [vmem:[%s2877 + $0x38] sm:$0xff]
        %v2887 = vsel %vm910, %v2859, 0
        %v2890 = vsel %vm910, %v2860, 0
        %v2893 = vsel %vm910, %v2861, 0
        %v2896 = vsel %vm910, %v2862, 0
        %v2899 = vsel %vm910, %v2863, 0
        %v2902 = vsel %vm910, %v2864, 0
        %v2905 = vsel %vm910, %v2865, 0
        %v2908 = vsel %vm910, %v2866, 0
        %v2911 = vsel %vm910, %v2867, 0
        %v2914 = vsel %vm910, %v2868, 0
        %v2917 = vsel %vm910, %v2869, 0
        %v2920 = vsel %vm910, %v2870, 0
        %v2923 = vsel %vm910, %v2871, 0
        %v2926 = vsel %vm910, %v2872, 0
        %v2929 = vsel %vm910, %v2873, 0
        %v2932 = vsel %vm910, %v2874, 0
        %v2935 = vsel %vm910, %v2875, 0
        %v2938 = vsel %vm910, %v2876, 0
        %2940 = vmatprep.subr.mxu0 0.0
        %2941 = vmatpush1.msra.mxu0 0.0
        %2942 = vmatprep.subr.mxu0 0.0
        %2943 = vmatpush1.msra.mxu0 0.0
        %2944 = vmatprep.subr.mxu0 0.0
        %2945 = vmatpush1.msra.mxu0 0.0
        %2946 = vmatprep.subr.mxu0 0.0
        %2947 = vmatpush1.msra.mxu0 0.0
        %2948 = vmatprep.subr.mxu0 0.0
        %2949 = vmatpush1.msra.mxu0 0.0
        %2950 = vmatprep.subr.mxu0 0.0
        %2951 = vmatpush1.msra.mxu0 0.0
        %2952 = vmatprep.subr.mxu0 0.0
        %2953 = vmatpush1.msra.mxu0 0.0
        %2954 = vmatprep.subr.mxu0 0.0
        %2955 = vmatpush1.msra.mxu0 0.0
        %2956 = vmatprep.subr.mxu0 0.0
        %2957 = vmatpush1.msra.mxu0 %v2885
        %2958 = vmatprep.subr.mxu0 0.0
        %2959 = vmatpush1.msra.mxu0 %v2884
        %2960 = vmatprep.subr.mxu0 0.0
        %2961 = vmatpush1.msra.mxu0 %v2883
        %2962 = vmatprep.subr.mxu0 0.0
        %2963 = vmatpush1.msra.mxu0 %v2882
        %2964 = vmatprep.subr.mxu0 0.0
        %2965 = vmatpush1.msra.mxu0 %v2881
        %2966 = vmatprep.subr.mxu0 0.0
        %2967 = vmatpush1.msra.mxu0 %v2880
        %2968 = vmatprep.subr.mxu0 0.0
        %2969 = vmatpush1.msra.mxu0 %v2879
        %2970 = vmatprep.subr.mxu0 0.0
        %2971 = vmatpush1.msra.mxu0 %v2878
        %2972 = vmatprep.subr.mxu0 0.0
        %2973 = vmatpush2.msra.mxu0 0.0
        %2974 = vmatprep.subr.mxu0 0.0
        %2975 = vmatpush2.msra.mxu0 0.0
        %2976 = vmatprep.subr.mxu0 0.0
        %2977 = vmatpush2.msra.mxu0 0.0
        %2978 = vmatprep.subr.mxu0 0.0
        %2979 = vmatpush2.msra.mxu0 0.0
        %2980 = vmatprep.subr.mxu0 0.0
        %2981 = vmatpush2.msra.mxu0 0.0
        %2982 = vmatprep.subr.mxu0 0.0
        %2983 = vmatpush2.msra.mxu0 0.0
        %2984 = vmatprep.subr.mxu0 0.0
        %2985 = vmatpush2.msra.mxu0 0.0
        %2986 = vmatprep.subr.mxu0 0.0
        %2987 = vmatpush2.msra.mxu0 0.0
        %2988 = vmatprep.subr.mxu0 0.0
        %2989 = vmatpush2.msra.mxu0 0.0
        %2990 = vmatprep.subr.mxu0 0.0
        %2991 = vmatpush2.msra.mxu0 0.0
        %2992 = vmatprep.subr.mxu0 0.0
        %2993 = vmatpush2.msra.mxu0 0.0
        %2994 = vmatprep.subr.mxu0 0.0
        %2995 = vmatpush2.msra.mxu0 0.0
        %2996 = vmatprep.subr.mxu0 0.0
        %2997 = vmatpush2.msra.mxu0 0.0
        %2998 = vmatprep.subr.mxu0 0.0
        %2999 = vmatpush2.msra.mxu0 0.0
        %3000 = vmatprep.subr.mxu0 0.0
        %3001 = vmatpush2.msra.mxu0 0.0
        %3002 = vmatprep.subr.mxu0 0.0
        %3003 = vmatpush2.msra.mxu0 0.0
        %3004 = vmatprep.mubr.f32.mxu0 0.0
        %3005 = vmatmul.mubr.f32.gmra.mxu0 %v2887
        %v3006 = vpop.f32.mrf.mxu0
        %v3007 = vadd.f32 0.0, %v3006
        %v3008 = vpop.f32.mrf.mxu0
        %3009 = vmatprep.mubr.f32.mxu0 0.0
        %3010 = vmatmul.mubr.f32.gmra.mxu0 %v2890
        %v3011 = vpop.f32.mrf.mxu0
        %v3012 = vadd.f32 0.0, %v3011
        %v3013 = vpop.f32.mrf.mxu0
        %3014 = vmatprep.mubr.f32.mxu0 0.0
        %3015 = vmatmul.mubr.f32.gmra.mxu0 %v2893
        %v3016 = vpop.f32.mrf.mxu0
        %v3017 = vadd.f32 0.0, %v3016
        %v3018 = vpop.f32.mrf.mxu0
        %3019 = vmatprep.mubr.f32.mxu0 0.0
        %3020 = vmatmul.mubr.f32.gmra.mxu0 %v2896
        %v3021 = vpop.f32.mrf.mxu0
        %v3022 = vadd.f32 0.0, %v3021
        %v3023 = vpop.f32.mrf.mxu0
        %3024 = vmatprep.mubr.f32.mxu0 0.0
        %3025 = vmatmul.mubr.f32.gmra.mxu0 %v2899
        %v3026 = vpop.f32.mrf.mxu0
        %v3027 = vadd.f32 0.0, %v3026
        %v3028 = vpop.f32.mrf.mxu0
        %3029 = vmatprep.mubr.f32.mxu0 0.0
        %3030 = vmatmul.mubr.f32.gmra.mxu0 %v2902
        %v3031 = vpop.f32.mrf.mxu0
        %v3032 = vadd.f32 0.0, %v3031
        %v3033 = vpop.f32.mrf.mxu0
        %3034 = vmatprep.mubr.f32.mxu0 0.0
        %3035 = vmatmul.mubr.f32.gmra.mxu0 %v2905
        %v3036 = vpop.f32.mrf.mxu0
        %v3037 = vadd.f32 0.0, %v3036
        %v3038 = vpop.f32.mrf.mxu0
        %3039 = vmatprep.mubr.f32.mxu0 0.0
        %3040 = vmatmul.mubr.f32.gmra.mxu0 %v2908
        %v3041 = vpop.f32.mrf.mxu0
        %v3042 = vadd.f32 0.0, %v3041
        %v3043 = vpop.f32.mrf.mxu0
        %3044 = vmatprep.mubr.f32.mxu0 0.0
        %3045 = vmatmul.mubr.f32.gmra.mxu0 %v2911
        %v3046 = vpop.f32.mrf.mxu0
        %v3047 = vadd.f32 0.0, %v3046
        %v3048 = vpop.f32.mrf.mxu0
        %3049 = vmatprep.mubr.f32.mxu0 0.0
        %3050 = vmatmul.mubr.f32.gmra.mxu0 %v2914
        %v3051 = vpop.f32.mrf.mxu0
        %v3052 = vadd.f32 0.0, %v3051
        %v3053 = vpop.f32.mrf.mxu0
        %3054 = vmatprep.mubr.f32.mxu0 0.0
        %3055 = vmatmul.mubr.f32.gmra.mxu0 %v2917
        %v3056 = vpop.f32.mrf.mxu0
        %v3057 = vadd.f32 0.0, %v3056
        %v3058 = vpop.f32.mrf.mxu0
        %3059 = vmatprep.mubr.f32.mxu0 0.0
        %3060 = vmatmul.mubr.f32.gmra.mxu0 %v2920
        %v3061 = vpop.f32.mrf.mxu0
        %v3062 = vadd.f32 0.0, %v3061
        %v3063 = vpop.f32.mrf.mxu0
        %3064 = vmatprep.mubr.f32.mxu0 0.0
        %3065 = vmatmul.mubr.f32.gmra.mxu0 %v2923
        %v3066 = vpop.f32.mrf.mxu0
        %v3067 = vadd.f32 0.0, %v3066
        %v3068 = vpop.f32.mrf.mxu0
        %3069 = vmatprep.mubr.f32.mxu0 0.0
        %3070 = vmatmul.mubr.f32.gmra.mxu0 %v2926
        %v3071 = vpop.f32.mrf.mxu0
        %v3072 = vadd.f32 0.0, %v3071
        %v3073 = vpop.f32.mrf.mxu0
        %3074 = vmatprep.mubr.f32.mxu0 0.0
        %3075 = vmatmul.mubr.f32.gmra.mxu0 %v2929
        %v3076 = vpop.f32.mrf.mxu0
        %v3077 = vadd.f32 0.0, %v3076
        %v3078 = vpop.f32.mrf.mxu0
        %3079 = vmatprep.mubr.f32.mxu0 0.0
        %3080 = vmatmul.mubr.f32.gmra.mxu0 %v2932
        %v3081 = vpop.f32.mrf.mxu0
        %v3082 = vadd.f32 0.0, %v3081
        %v3083 = vpop.f32.mrf.mxu0
        %3084 = vmatprep.mubr.f32.mxu0 0.0
        %3085 = vmatmul.mubr.f32.gmra.mxu0 %v2935
        %v3086 = vpop.f32.mrf.mxu0
        %v3087 = vadd.f32 0.0, %v3086
        %v3088 = vpop.f32.mrf.mxu0
        %3089 = vmatprep.mubr.f32.mxu0 0.0
        %3090 = vmatmul.mubr.f32.gmra.mxu0 %v2938
        %v3091 = vpop.f32.mrf.mxu0
        %v3092 = vadd.f32 0.0, %v3091
        %v3093 = vpop.f32.mrf.mxu0
        %3094 = vdwg.mxu0
        %v3095 = vadd.f32 %v2841, %v3007
        %v3096 = vadd.f32 %v2842, %v3012
        %v3097 = vadd.f32 %v2843, %v3017
        %v3098 = vadd.f32 %v2844, %v3022
        %v3099 = vadd.f32 %v2845, %v3027
        %v3100 = vadd.f32 %v2846, %v3032
        %v3101 = vadd.f32 %v2847, %v3037
        %v3102 = vadd.f32 %v2848, %v3042
        %v3103 = vadd.f32 %v2849, %v3047
        %v3104 = vadd.f32 %v2850, %v3052
        %v3105 = vadd.f32 %v2851, %v3057
        %v3106 = vadd.f32 %v2852, %v3062
        %v3107 = vadd.f32 %v2853, %v3067
        %v3108 = vadd.f32 %v2854, %v3072
        %v3109 = vadd.f32 %v2855, %v3077
        %v3110 = vadd.f32 %v2856, %v3082
        %v3111 = vadd.f32 %v2857, %v3087
        %v3112 = vadd.f32 %v2858, %v3092
        %v3113 = vld [vmem:[%s4] sm:$0x1]
        %v3115 = vlaneseq
        %v3116 = vshrl.u32 %v3115, 7
        %v3117 = vsub.s32 0, %v3116
        %v3118 = vrot.slane %v3113, %v3117
        %v3120 = vadd.f32 %v3095, %v3118
        %v3121 = vadd.f32 %v3096, %v3118
        %v3122 = vadd.f32 %v3097, %v3118
        %v3123 = vadd.f32 %v3098, %v3118
        %v3124 = vadd.f32 %v3099, %v3118
        %v3125 = vadd.f32 %v3100, %v3118
        %v3126 = vadd.f32 %v3101, %v3118
        %v3127 = vadd.f32 %v3102, %v3118
        %v3128 = vadd.f32 %v3103, %v3118
        %v3129 = vadd.f32 %v3104, %v3118
        %v3130 = vadd.f32 %v3105, %v3118
        %v3131 = vadd.f32 %v3106, %v3118
        %v3132 = vadd.f32 %v3107, %v3118
        %v3133 = vadd.f32 %v3108, %v3118
        %v3134 = vadd.f32 %v3109, %v3118
        %v3135 = vadd.f32 %v3110, %v3118
        %v3136 = vadd.f32 %v3111, %v3118
        %v3137 = vadd.f32 %v3112, %v3118
        %v3138 = vmax.f32 %v3120, 0.0
        %v3139 = vmax.f32 %v3121, 0.0
        %v3140 = vmax.f32 %v3122, 0.0
        %v3141 = vmax.f32 %v3123, 0.0
        %v3142 = vmax.f32 %v3124, 0.0
        %v3143 = vmax.f32 %v3125, 0.0
        %v3144 = vmax.f32 %v3126, 0.0
        %v3145 = vmax.f32 %v3127, 0.0
        %v3146 = vmax.f32 %v3128, 0.0
        %v3147 = vmax.f32 %v3129, 0.0
        %v3148 = vmax.f32 %v3130, 0.0
        %v3149 = vmax.f32 %v3131, 0.0
        %v3150 = vmax.f32 %v3132, 0.0
        %v3151 = vmax.f32 %v3133, 0.0
        %v3152 = vmax.f32 %v3134, 0.0
        %v3153 = vmax.f32 %v3135, 0.0
        %v3154 = vmax.f32 %v3136, 0.0
        %v3155 = vmax.f32 %v3137, 0.0
        %s3156 = scalar_lea.vmem [#allocation4], %s855
        %vm3157 = vcmask 785408
        %3158 = vst.msk [vmem:[%s3156] sm:$0xff] %vm3157, %v3138
        %3159 = vst.msk [vmem:[%s3156 + $0x8] sm:$0xff] %vm3157, %v3139
        %3160 = vst.msk [vmem:[%s3156 + $0x10] sm:$0xff] %vm3157, %v3140
        %3161 = vst.msk [vmem:[%s3156 + $0x20] sm:$0xff] %vm3157, %v3141
        %3162 = vst.msk [vmem:[%s3156 + $0x28] sm:$0xff] %vm3157, %v3142
        %3163 = vst.msk [vmem:[%s3156 + $0x30] sm:$0xff] %vm3157, %v3143
        %3164 = vst.msk [vmem:[%s3156 + $0x40] sm:$0xff] %vm3157, %v3144
        %3165 = vst.msk [vmem:[%s3156 + $0x48] sm:$0xff] %vm3157, %v3145
        %3166 = vst.msk [vmem:[%s3156 + $0x50] sm:$0xff] %vm3157, %v3146
        %3167 = vst.msk [vmem:[%s3156 + $0x60] sm:$0xff] %vm3157, %v3147
        %3168 = vst.msk [vmem:[%s3156 + $0x68] sm:$0xff] %vm3157, %v3148
        %3169 = vst.msk [vmem:[%s3156 + $0x70] sm:$0xff] %vm3157, %v3149
        %3170 = vst.msk [vmem:[%s3156 + $0x80] sm:$0xff] %vm3157, %v3150
        %3171 = vst.msk [vmem:[%s3156 + $0x88] sm:$0xff] %vm3157, %v3151
        %3172 = vst.msk [vmem:[%s3156 + $0x90] sm:$0xff] %vm3157, %v3152
        %3173 = vst.msk [vmem:[%s3156 + $0xa0] sm:$0xff] %vm3157, %v3153
        %3174 = vst.msk [vmem:[%s3156 + $0xa8] sm:$0xff] %vm3157, %v3154
        %3175 = vst.msk [vmem:[%s3156 + $0xb0] sm:$0xff] %vm3157, %v3155
      $region88: #{mixed_4a.1} parent=75 // loop_footer
        %s853 = sadd.s32 1, %s849
      $region89: #{mixed_4a.1} parent=75 // loop_footer_branch
        %848 = sbr.rel target = $region85
      $region90: #{mixed_4a.1} parent=75 // loop_exit
        _
      %s3176 = scalar_lea.vmem [#allocation4], 96
      %v3177 = vld [vmem:[%s3176 + $0x3] sm:$0xff]
      %v3178 = vld [vmem:[%s3176 + $0xb] sm:$0x1]
      %v3179 = vld [vmem:[%s3176 + $0x23] sm:$0xff]
      %v3180 = vld [vmem:[%s3176 + $0x2b] sm:$0x1]
      %v3181 = vld [vmem:[%s3176 + $0x43] sm:$0xff]
      %v3182 = vld [vmem:[%s3176 + $0x4b] sm:$0x1]
      %v3183 = vld [vmem:[%s3176 + $0x63] sm:$0xff]
      %v3184 = vld [vmem:[%s3176 + $0x6b] sm:$0x1]
      %v3185 = vld [vmem:[%s3176 + $0x83] sm:$0xff]
      %v3186 = vld [vmem:[%s3176 + $0x8b] sm:$0x1]
      %v3187 = vld [vmem:[%s3176 + $0xa3] sm:$0xff]
      %v3188 = vld [vmem:[%s3176 + $0xab] sm:$0x1]
      %v3189 = vld [vmem:[%s3176 + $0xc3] sm:$0xff]
      %v3190 = vld [vmem:[%s3176 + $0xcb] sm:$0x1]
      %v3191 = vld [vmem:[%s3176 + $0xe3] sm:$0xff]
      %v3192 = vld [vmem:[%s3176 + $0xeb] sm:$0x1]
      %v3193 = vld [vmem:[%s3176 + $0x103] sm:$0xff]
      %v3194 = vld [vmem:[%s3176 + $0x10b] sm:$0x1]
      %vm3195 = vcmask 785408
      %3196 = vst.msk [vmem:[%s502] sm:$0xff] %vm3195, %v3177
      %vm3197 = vcmask 778240
      %3198 = vst.msk [vmem:[%s502 + $0x8] sm:$0x1] %vm3197, %v3178
      %3199 = vst.msk [vmem:[%s502 + $0x10] sm:$0xff] %vm3195, %v3179
      %3200 = vst.msk [vmem:[%s502 + $0x18] sm:$0x1] %vm3197, %v3180
      %3201 = vst.msk [vmem:[%s502 + $0x20] sm:$0xff] %vm3195, %v3181
      %3202 = vst.msk [vmem:[%s502 + $0x28] sm:$0x1] %vm3197, %v3182
      %3203 = vst.msk [vmem:[%s502 + $0x30] sm:$0xff] %vm3195, %v3183
      %3204 = vst.msk [vmem:[%s502 + $0x38] sm:$0x1] %vm3197, %v3184
      %3205 = vst.msk [vmem:[%s502 + $0x40] sm:$0xff] %vm3195, %v3185
      %3206 = vst.msk [vmem:[%s502 + $0x48] sm:$0x1] %vm3197, %v3186
      %3207 = vst.msk [vmem:[%s502 + $0x50] sm:$0xff] %vm3195, %v3187
      %3208 = vst.msk [vmem:[%s502 + $0x58] sm:$0x1] %vm3197, %v3188
      %3209 = vst.msk [vmem:[%s502 + $0x60] sm:$0xff] %vm3195, %v3189
      %3210 = vst.msk [vmem:[%s502 + $0x68] sm:$0x1] %vm3197, %v3190
      %3211 = vst.msk [vmem:[%s502 + $0x70] sm:$0xff] %vm3195, %v3191
      %3212 = vst.msk [vmem:[%s502 + $0x78] sm:$0x1] %vm3197, %v3192
      %3213 = vst.msk [vmem:[%s502 + $0x80] sm:$0xff] %vm3195, %v3193
      %3214 = vst.msk [vmem:[%s502 + $0x88] sm:$0x1] %vm3197, %v3194
      loop: start=0, step=1, limit=3
      $region91: #{mixed_4a.1} parent=75 // loop_pre_header
        _
      $region92: #{mixed_4a.1} parent=75 // loop_header
        %s3216 = sphi 0, %s3220
        %p3217 = scmp.ge.s32.totalorder %s3216, 3
      $region93: #{mixed_4a.1} parent=75 // loop_header_branch
        %3219 = sbr.rel (%p3217) target = $region97
      $region94: #{mixed_4a.1} parent=75 // loop_body
        %s3221 = smul.u32 %s3216, 6
        %s3222 = smul.u32 %s3221, 8
        %s3223 = smul.addr %s3222, 8
        %s3224 = scalar_lea.vmem %s497, %s3223
        %v3225 = vld [vmem:[%s3224] sm:$0xff]
        %v3226 = vld [vmem:[%s3224 + $0x8] sm:$0xff]
        %v3227 = vld [vmem:[%s3224 + $0x10] sm:$0xff]
        %v3228 = vld [vmem:[%s3224 + $0x18] sm:$0xff]
        %v3229 = vld [vmem:[%s3224 + $0x20] sm:$0xff]
        %v3230 = vld [vmem:[%s3224 + $0x28] sm:$0xff]
        %v3231 = vld [vmem:[%s3224 + $0x40] sm:$0xff]
        %v3232 = vld [vmem:[%s3224 + $0x48] sm:$0xff]
        %v3233 = vld [vmem:[%s3224 + $0x50] sm:$0xff]
        %v3234 = vld [vmem:[%s3224 + $0x58] sm:$0xff]
        %v3235 = vld [vmem:[%s3224 + $0x60] sm:$0xff]
        %v3236 = vld [vmem:[%s3224 + $0x68] sm:$0xff]
        %v3237 = vld [vmem:[%s3224 + $0x80] sm:$0xff]
        %v3238 = vld [vmem:[%s3224 + $0x88] sm:$0xff]
        %v3239 = vld [vmem:[%s3224 + $0x90] sm:$0xff]
        %v3240 = vld [vmem:[%s3224 + $0x98] sm:$0xff]
        %v3241 = vld [vmem:[%s3224 + $0xa0] sm:$0xff]
        %v3242 = vld [vmem:[%s3224 + $0xa8] sm:$0xff]
        %v3243 = vld [vmem:[%s3224 + $0xc0] sm:$0xff]
        %v3244 = vld [vmem:[%s3224 + $0xc8] sm:$0xff]
        %v3245 = vld [vmem:[%s3224 + $0xd0] sm:$0xff]
        %v3246 = vld [vmem:[%s3224 + $0xd8] sm:$0xff]
        %v3247 = vld [vmem:[%s3224 + $0xe0] sm:$0xff]
        %v3248 = vld [vmem:[%s3224 + $0xe8] sm:$0xff]
        %v3249 = vld [vmem:[%s3224 + $0x100] sm:$0xff]
        %v3250 = vld [vmem:[%s3224 + $0x108] sm:$0xff]
        %v3251 = vld [vmem:[%s3224 + $0x110] sm:$0xff]
        %v3252 = vld [vmem:[%s3224 + $0x118] sm:$0xff]
        %v3253 = vld [vmem:[%s3224 + $0x120] sm:$0xff]
        %v3254 = vld [vmem:[%s3224 + $0x128] sm:$0xff]
        %v3255 = vld [vmem:[%s3224 + $0x140] sm:$0xff]
        %v3256 = vld [vmem:[%s3224 + $0x148] sm:$0xff]
        %v3257 = vld [vmem:[%s3224 + $0x150] sm:$0xff]
        %v3258 = vld [vmem:[%s3224 + $0x158] sm:$0xff]
        %v3259 = vld [vmem:[%s3224 + $0x160] sm:$0xff]
        %v3260 = vld [vmem:[%s3224 + $0x168] sm:$0xff]
        %v3261 = vld [vmem:[%s5] sm:$0xff]
        %v3262 = vld [vmem:[%s5 + $0x8] sm:$0xff]
        %v3263 = vld [vmem:[%s5 + $0x10] sm:$0xff]
        %v3264 = vld [vmem:[%s5 + $0x18] sm:$0xff]
        %v3265 = vld [vmem:[%s5 + $0x20] sm:$0xff]
        %v3266 = vld [vmem:[%s5 + $0x28] sm:$0xff]
        %v3267 = vld [vmem:[%s5 + $0x30] sm:$0xff]
        %v3268 = vld [vmem:[%s5 + $0x38] sm:$0xff]
        %v3269 = vld [vmem:[%s5 + $0x40] sm:$0xff]
        %v3270 = vld [vmem:[%s5 + $0x48] sm:$0xff]
        %v3271 = vld [vmem:[%s5 + $0x50] sm:$0xff]
        %v3272 = vld [vmem:[%s5 + $0x58] sm:$0xff]
        %v3273 = vld [vmem:[%s5 + $0x60] sm:$0xff]
        %v3274 = vld [vmem:[%s5 + $0x68] sm:$0xff]
        %v3275 = vld [vmem:[%s5 + $0x70] sm:$0xff]
        %v3276 = vld [vmem:[%s5 + $0x78] sm:$0xff]
        %v3277 = vld [vmem:[%s5 + $0x80] sm:$0xff]
        %v3278 = vld [vmem:[%s5 + $0x88] sm:$0xff]
        %v3279 = vld [vmem:[%s5 + $0x90] sm:$0xff]
        %v3280 = vld [vmem:[%s5 + $0x98] sm:$0xff]
        %v3281 = vld [vmem:[%s6] sm:$0x1]
        %v3283 = vlaneseq
        %v3284 = vshrl.u32 %v3283, 7
        %v3285 = vsub.s32 0, %v3284
        %v3286 = vrot.slane %v3281, %v3285
        %vm3288 = vcmask 261120
        %v3290 = vsel %vm3288, %v3226, 0
        %v3293 = vsel %vm3288, %v3228, 0
        %v3296 = vsel %vm3288, %v3230, 0
        %v3299 = vsel %vm3288, %v3232, 0
        %v3302 = vsel %vm3288, %v3234, 0
        %v3305 = vsel %vm3288, %v3236, 0
        %v3308 = vsel %vm3288, %v3238, 0
        %v3311 = vsel %vm3288, %v3240, 0
        %v3314 = vsel %vm3288, %v3242, 0
        %v3317 = vsel %vm3288, %v3244, 0
        %v3320 = vsel %vm3288, %v3246, 0
        %v3323 = vsel %vm3288, %v3248, 0
        %v3326 = vsel %vm3288, %v3250, 0
        %v3329 = vsel %vm3288, %v3252, 0
        %v3332 = vsel %vm3288, %v3254, 0
        %v3335 = vsel %vm3288, %v3256, 0
        %v3338 = vsel %vm3288, %v3258, 0
        %v3341 = vsel %vm3288, %v3260, 0
        %3343 = vmatprep.subr.mxu0 0.0
        %3344 = vmatpush1.msra.mxu0 %v3276
        %3345 = vmatprep.subr.mxu0 0.0
        %3346 = vmatpush1.msra.mxu0 %v3275
        %3347 = vmatprep.subr.mxu0 0.0
        %3348 = vmatpush1.msra.mxu0 %v3274
        %3349 = vmatprep.subr.mxu0 0.0
        %3350 = vmatpush1.msra.mxu0 %v3273
        %3351 = vmatprep.subr.mxu0 0.0
        %3352 = vmatpush1.msra.mxu0 %v3272
        %3353 = vmatprep.subr.mxu0 0.0
        %3354 = vmatpush1.msra.mxu0 %v3271
        %3355 = vmatprep.subr.mxu0 0.0
        %3356 = vmatpush1.msra.mxu0 %v3270
        %3357 = vmatprep.subr.mxu0 0.0
        %3358 = vmatpush1.msra.mxu0 %v3269
        %3359 = vmatprep.subr.mxu0 0.0
        %3360 = vmatpush1.msra.mxu0 %v3268
        %3361 = vmatprep.subr.mxu0 0.0
        %3362 = vmatpush1.msra.mxu0 %v3267
        %3363 = vmatprep.subr.mxu0 0.0
        %3364 = vmatpush1.msra.mxu0 %v3266
        %3365 = vmatprep.subr.mxu0 0.0
        %3366 = vmatpush1.msra.mxu0 %v3265
        %3367 = vmatprep.subr.mxu0 0.0
        %3368 = vmatpush1.msra.mxu0 %v3264
        %3369 = vmatprep.subr.mxu0 0.0
        %3370 = vmatpush1.msra.mxu0 %v3263
        %3371 = vmatprep.subr.mxu0 0.0
        %3372 = vmatpush1.msra.mxu0 %v3262
        %3373 = vmatprep.subr.mxu0 0.0
        %3374 = vmatpush1.msra.mxu0 %v3261
        %3375 = vmatprep.subr.mxu0 0.0
        %3376 = vmatpush2.msra.mxu0 0.0
        %3377 = vmatprep.subr.mxu0 0.0
        %3378 = vmatpush2.msra.mxu0 0.0
        %3379 = vmatprep.subr.mxu0 0.0
        %3380 = vmatpush2.msra.mxu0 0.0
        %3381 = vmatprep.subr.mxu0 0.0
        %3382 = vmatpush2.msra.mxu0 0.0
        %3383 = vmatprep.subr.mxu0 0.0
        %3384 = vmatpush2.msra.mxu0 0.0
        %3385 = vmatprep.subr.mxu0 0.0
        %3386 = vmatpush2.msra.mxu0 0.0
        %3387 = vmatprep.subr.mxu0 0.0
        %3388 = vmatpush2.msra.mxu0 0.0
        %3389 = vmatprep.subr.mxu0 0.0
        %3390 = vmatpush2.msra.mxu0 0.0
        %3391 = vmatprep.subr.mxu0 0.0
        %3392 = vmatpush2.msra.mxu0 0.0
        %3393 = vmatprep.subr.mxu0 0.0
        %3394 = vmatpush2.msra.mxu0 0.0
        %3395 = vmatprep.subr.mxu0 0.0
        %3396 = vmatpush2.msra.mxu0 0.0
        %3397 = vmatprep.subr.mxu0 0.0
        %3398 = vmatpush2.msra.mxu0 0.0
        %3399 = vmatprep.subr.mxu0 0.0
        %3400 = vmatpush2.msra.mxu0 %v3280
        %3401 = vmatprep.subr.mxu0 0.0
        %3402 = vmatpush2.msra.mxu0 %v3279
        %3403 = vmatprep.subr.mxu0 0.0
        %3404 = vmatpush2.msra.mxu0 %v3278
        %3405 = vmatprep.subr.mxu0 0.0
        %3406 = vmatpush2.msra.mxu0 %v3277
        %3407 = vmatprep.mubr.f32.mxu0 %v3290
        %3408 = vmatmul.mubr.f32.gmra.mxu0 %v3225
        %v3409 = vpop.f32.mrf.mxu0
        %v3410 = vadd.f32 %v3286, %v3409
        %v3411 = vpop.f32.mrf.mxu0
        %3412 = vmatprep.mubr.f32.mxu0 %v3293
        %3413 = vmatmul.mubr.f32.gmra.mxu0 %v3227
        %v3414 = vpop.f32.mrf.mxu0
        %v3415 = vadd.f32 %v3286, %v3414
        %v3416 = vpop.f32.mrf.mxu0
        %3417 = vmatprep.mubr.f32.mxu0 %v3296
        %3418 = vmatmul.mubr.f32.gmra.mxu0 %v3229
        %v3419 = vpop.f32.mrf.mxu0
        %v3420 = vadd.f32 %v3286, %v3419
        %v3421 = vpop.f32.mrf.mxu0
        %3422 = vmatprep.mubr.f32.mxu0 %v3299
        %3423 = vmatmul.mubr.f32.gmra.mxu0 %v3231
        %v3424 = vpop.f32.mrf.mxu0
        %v3425 = vadd.f32 %v3286, %v3424
        %v3426 = vpop.f32.mrf.mxu0
        %3427 = vmatprep.mubr.f32.mxu0 %v3302
        %3428 = vmatmul.mubr.f32.gmra.mxu0 %v3233
        %v3429 = vpop.f32.mrf.mxu0
        %v3430 = vadd.f32 %v3286, %v3429
        %v3431 = vpop.f32.mrf.mxu0
        %3432 = vmatprep.mubr.f32.mxu0 %v3305
        %3433 = vmatmul.mubr.f32.gmra.mxu0 %v3235
        %v3434 = vpop.f32.mrf.mxu0
        %v3435 = vadd.f32 %v3286, %v3434
        %v3436 = vpop.f32.mrf.mxu0
        %3437 = vmatprep.mubr.f32.mxu0 %v3308
        %3438 = vmatmul.mubr.f32.gmra.mxu0 %v3237
        %v3439 = vpop.f32.mrf.mxu0
        %v3440 = vadd.f32 %v3286, %v3439
        %v3441 = vpop.f32.mrf.mxu0
        %3442 = vmatprep.mubr.f32.mxu0 %v3311
        %3443 = vmatmul.mubr.f32.gmra.mxu0 %v3239
        %v3444 = vpop.f32.mrf.mxu0
        %v3445 = vadd.f32 %v3286, %v3444
        %v3446 = vpop.f32.mrf.mxu0
        %3447 = vmatprep.mubr.f32.mxu0 %v3314
        %3448 = vmatmul.mubr.f32.gmra.mxu0 %v3241
        %v3449 = vpop.f32.mrf.mxu0
        %v3450 = vadd.f32 %v3286, %v3449
        %v3451 = vpop.f32.mrf.mxu0
        %3452 = vmatprep.mubr.f32.mxu0 %v3317
        %3453 = vmatmul.mubr.f32.gmra.mxu0 %v3243
        %v3454 = vpop.f32.mrf.mxu0
        %v3455 = vadd.f32 %v3286, %v3454
        %v3456 = vpop.f32.mrf.mxu0
        %3457 = vmatprep.mubr.f32.mxu0 %v3320
        %3458 = vmatmul.mubr.f32.gmra.mxu0 %v3245
        %v3459 = vpop.f32.mrf.mxu0
        %v3460 = vadd.f32 %v3286, %v3459
        %v3461 = vpop.f32.mrf.mxu0
        %3462 = vmatprep.mubr.f32.mxu0 %v3323
        %3463 = vmatmul.mubr.f32.gmra.mxu0 %v3247
        %v3464 = vpop.f32.mrf.mxu0
        %v3465 = vadd.f32 %v3286, %v3464
        %v3466 = vpop.f32.mrf.mxu0
        %3467 = vmatprep.mubr.f32.mxu0 %v3326
        %3468 = vmatmul.mubr.f32.gmra.mxu0 %v3249
        %v3469 = vpop.f32.mrf.mxu0
        %v3470 = vadd.f32 %v3286, %v3469
        %v3471 = vpop.f32.mrf.mxu0
        %3472 = vmatprep.mubr.f32.mxu0 %v3329
        %3473 = vmatmul.mubr.f32.gmra.mxu0 %v3251
        %v3474 = vpop.f32.mrf.mxu0
        %v3475 = vadd.f32 %v3286, %v3474
        %v3476 = vpop.f32.mrf.mxu0
        %3477 = vmatprep.mubr.f32.mxu0 %v3332
        %3478 = vmatmul.mubr.f32.gmra.mxu0 %v3253
        %v3479 = vpop.f32.mrf.mxu0
        %v3480 = vadd.f32 %v3286, %v3479
        %v3481 = vpop.f32.mrf.mxu0
        %3482 = vmatprep.mubr.f32.mxu0 %v3335
        %3483 = vmatmul.mubr.f32.gmra.mxu0 %v3255
        %v3484 = vpop.f32.mrf.mxu0
        %v3485 = vadd.f32 %v3286, %v3484
        %v3486 = vpop.f32.mrf.mxu0
        %3487 = vmatprep.mubr.f32.mxu0 %v3338
        %3488 = vmatmul.mubr.f32.gmra.mxu0 %v3257
        %v3489 = vpop.f32.mrf.mxu0
        %v3490 = vadd.f32 %v3286, %v3489
        %v3491 = vpop.f32.mrf.mxu0
        %3492 = vmatprep.mubr.f32.mxu0 %v3341
        %3493 = vmatmul.mubr.f32.gmra.mxu0 %v3259
        %v3494 = vpop.f32.mrf.mxu0
        %v3495 = vadd.f32 %v3286, %v3494
        %v3496 = vpop.f32.mrf.mxu0
        %3497 = vdwg.mxu0
        %v3498 = vmax.f32 %v3410, 0.0
        %v3499 = vmax.f32 %v3415, 0.0
        %v3500 = vmax.f32 %v3420, 0.0
        %v3501 = vmax.f32 %v3425, 0.0
        %v3502 = vmax.f32 %v3430, 0.0
        %v3503 = vmax.f32 %v3435, 0.0
        %v3504 = vmax.f32 %v3440, 0.0
        %v3505 = vmax.f32 %v3445, 0.0
        %v3506 = vmax.f32 %v3450, 0.0
        %v3507 = vmax.f32 %v3455, 0.0
        %v3508 = vmax.f32 %v3460, 0.0
        %v3509 = vmax.f32 %v3465, 0.0
        %v3510 = vmax.f32 %v3470, 0.0
        %v3511 = vmax.f32 %v3475, 0.0
        %v3512 = vmax.f32 %v3480, 0.0
        %v3513 = vmax.f32 %v3485, 0.0
        %v3514 = vmax.f32 %v3490, 0.0
        %v3515 = vmax.f32 %v3495, 0.0
        %3517 = vset.pattern.permute.xlu0 0
        %3518 = vperm.xlu0 %3517, %v508
        %v3519 = vpop.permute.xlu0 %3518
        %3522 = vset.pattern.permute.xlu0 0
        %3523 = vperm.xlu0 %3522, %v509
        %v3524 = vpop.permute.xlu0 %3523
        %3527 = vset.pattern.permute.xlu0 0
        %3528 = vperm.xlu0 %3527, %v510
        %v3529 = vpop.permute.xlu0 %3528
        %3532 = vset.pattern.permute.xlu0 0
        %3533 = vperm.xlu0 %3532, %v511
        %v3534 = vpop.permute.xlu0 %3533
        %3537 = vset.pattern.permute.xlu0 0
        %3538 = vperm.xlu0 %3537, %v512
        %v3539 = vpop.permute.xlu0 %3538
        %3542 = vset.pattern.permute.xlu0 0
        %3543 = vperm.xlu0 %3542, %v513
        %v3544 = vpop.permute.xlu0 %3543
        %3547 = vset.pattern.permute.xlu0 0
        %3548 = vperm.xlu0 %3547, %v514
        %v3549 = vpop.permute.xlu0 %3548
        %3552 = vset.pattern.permute.xlu0 0
        %3553 = vperm.xlu0 %3552, %v515
        %v3554 = vpop.permute.xlu0 %3553
        %3557 = vset.pattern.permute.xlu0 0
        %3558 = vperm.xlu0 %3557, %v516
        %v3559 = vpop.permute.xlu0 %3558
        %3562 = vset.pattern.permute.xlu0 0
        %3563 = vperm.xlu0 %3562, %v517
        %v3564 = vpop.permute.xlu0 %3563
        %3567 = vset.pattern.permute.xlu0 0
        %3568 = vperm.xlu0 %3567, %v518
        %v3569 = vpop.permute.xlu0 %3568
        %3572 = vset.pattern.permute.xlu0 0
        %3573 = vperm.xlu0 %3572, %v519
        %v3574 = vpop.permute.xlu0 %3573
        %3577 = vset.pattern.permute.xlu0 0
        %3578 = vperm.xlu0 %3577, %v520
        %v3579 = vpop.permute.xlu0 %3578
        %3582 = vset.pattern.permute.xlu0 0
        %3583 = vperm.xlu0 %3582, %v521
        %v3584 = vpop.permute.xlu0 %3583
        %3587 = vset.pattern.permute.xlu0 0
        %3588 = vperm.xlu0 %3587, %v522
        %v3589 = vpop.permute.xlu0 %3588
        %3592 = vset.pattern.permute.xlu0 0
        %3593 = vperm.xlu0 %3592, %v523
        %v3594 = vpop.permute.xlu0 %3593
        %3597 = vset.pattern.permute.xlu0 0
        %3598 = vperm.xlu0 %3597, %v524
        %v3599 = vpop.permute.xlu0 %3598
        %3602 = vset.pattern.permute.xlu0 0
        %3603 = vperm.xlu0 %3602, %v525
        %v3604 = vpop.permute.xlu0 %3603
        %v3606 = vmul.f32 %v3498, %v3519
        %v3607 = vmul.f32 %v3499, %v3524
        %v3608 = vmul.f32 %v3500, %v3529
        %v3609 = vmul.f32 %v3501, %v3534
        %v3610 = vmul.f32 %v3502, %v3539
        %v3611 = vmul.f32 %v3503, %v3544
        %v3612 = vmul.f32 %v3504, %v3549
        %v3613 = vmul.f32 %v3505, %v3554
        %v3614 = vmul.f32 %v3506, %v3559
        %v3615 = vmul.f32 %v3507, %v3564
        %v3616 = vmul.f32 %v3508, %v3569
        %v3617 = vmul.f32 %v3509, %v3574
        %v3618 = vmul.f32 %v3510, %v3579
        %v3619 = vmul.f32 %v3511, %v3584
        %v3620 = vmul.f32 %v3512, %v3589
        %v3621 = vmul.f32 %v3513, %v3594
        %v3622 = vmul.f32 %v3514, %v3599
        %v3623 = vmul.f32 %v3515, %v3604
        %s3624 = smul.u32 %s3221, 32
        %s3625 = scalar_lea.vmem [#allocation2], %s3624
        %vm3626 = vcmask 523264
        %3627 = vst.msk [vmem:[%s3625] sm:$0xff] %vm3626, %v3606
        %3628 = vst.msk [vmem:[%s3625 + $0x8] sm:$0xff] %vm3626, %v3607
        %3629 = vst.msk [vmem:[%s3625 + $0x10] sm:$0xff] %vm3626, %v3608
        %3630 = vst.msk [vmem:[%s3625 + $0x20] sm:$0xff] %vm3626, %v3609
        %3631 = vst.msk [vmem:[%s3625 + $0x28] sm:$0xff] %vm3626, %v3610
        %3632 = vst.msk [vmem:[%s3625 + $0x30] sm:$0xff] %vm3626, %v3611
        %3633 = vst.msk [vmem:[%s3625 + $0x40] sm:$0xff] %vm3626, %v3612
        %3634 = vst.msk [vmem:[%s3625 + $0x48] sm:$0xff] %vm3626, %v3613
        %3635 = vst.msk [vmem:[%s3625 + $0x50] sm:$0xff] %vm3626, %v3614
        %3636 = vst.msk [vmem:[%s3625 + $0x60] sm:$0xff] %vm3626, %v3615
        %3637 = vst.msk [vmem:[%s3625 + $0x68] sm:$0xff] %vm3626, %v3616
        %3638 = vst.msk [vmem:[%s3625 + $0x70] sm:$0xff] %vm3626, %v3617
        %3639 = vst.msk [vmem:[%s3625 + $0x80] sm:$0xff] %vm3626, %v3618
        %3640 = vst.msk [vmem:[%s3625 + $0x88] sm:$0xff] %vm3626, %v3619
        %3641 = vst.msk [vmem:[%s3625 + $0x90] sm:$0xff] %vm3626, %v3620
        %3642 = vst.msk [vmem:[%s3625 + $0xa0] sm:$0xff] %vm3626, %v3621
        %3643 = vst.msk [vmem:[%s3625 + $0xa8] sm:$0xff] %vm3626, %v3622
        %3644 = vst.msk [vmem:[%s3625 + $0xb0] sm:$0xff] %vm3626, %v3623
      $region95: #{mixed_4a.1} parent=75 // loop_footer
        %s3220 = sadd.s32 1, %s3216
      $region96: #{mixed_4a.1} parent=75 // loop_footer_branch
        %3215 = sbr.rel target = $region92
      $region97: #{mixed_4a.1} parent=75 // loop_exit
        _
      loop: start=0, step=1, limit=3
      $region98: #{mixed_4a.1} parent=75 // loop_pre_header
        _
      $region99: #{mixed_4a.1} parent=75 // loop_header
        %s3646 = sphi 0, %s3650
        %p3647 = scmp.ge.s32.totalorder %s3646, 3
      $region100: #{mixed_4a.1} parent=75 // loop_header_branch
        %3649 = sbr.rel (%p3647) target = $region104
      $region101: #{mixed_4a.1} parent=75 // loop_body
        %s3651 = smul.u32 %s3646, 6
        %s3652 = smul.u32 %s3651, 32
        %s3653 = scalar_lea.vmem [#allocation2], %s3652
        %v3654 = vld [vmem:[%s3653] sm:$0xff]
        %v3655 = vld [vmem:[%s3653 + $0x8] sm:$0xff]
        %v3656 = vld [vmem:[%s3653 + $0x10] sm:$0xff]
        %v3657 = vld [vmem:[%s3653 + $0x20] sm:$0xff]
        %v3658 = vld [vmem:[%s3653 + $0x28] sm:$0xff]
        %v3659 = vld [vmem:[%s3653 + $0x30] sm:$0xff]
        %v3660 = vld [vmem:[%s3653 + $0x40] sm:$0xff]
        %v3661 = vld [vmem:[%s3653 + $0x48] sm:$0xff]
        %v3662 = vld [vmem:[%s3653 + $0x50] sm:$0xff]
        %v3663 = vld [vmem:[%s3653 + $0x60] sm:$0xff]
        %v3664 = vld [vmem:[%s3653 + $0x68] sm:$0xff]
        %v3665 = vld [vmem:[%s3653 + $0x70] sm:$0xff]
        %v3666 = vld [vmem:[%s3653 + $0x80] sm:$0xff]
        %v3667 = vld [vmem:[%s3653 + $0x88] sm:$0xff]
        %v3668 = vld [vmem:[%s3653 + $0x90] sm:$0xff]
        %v3669 = vld [vmem:[%s3653 + $0xa0] sm:$0xff]
        %v3670 = vld [vmem:[%s3653 + $0xa8] sm:$0xff]
        %v3671 = vld [vmem:[%s3653 + $0xb0] sm:$0xff]
        %v3672 = vld [vmem:[%s7] sm:$0xff]
        %v3673 = vld [vmem:[%s7 + $0x8] sm:$0xff]
        %v3674 = vld [vmem:[%s7 + $0x10] sm:$0xff]
        %v3675 = vld [vmem:[%s7 + $0x18] sm:$0xff]
        %v3676 = vld [vmem:[%s7 + $0x20] sm:$0xff]
        %v3677 = vld [vmem:[%s7 + $0x28] sm:$0xff]
        %v3678 = vld [vmem:[%s7 + $0x30] sm:$0xff]
        %v3679 = vld [vmem:[%s7 + $0x38] sm:$0xff]
        %v3680 = vld [vmem:[%s3653 + $0x1] sm:$0xff]
        %v3681 = vld [vmem:[%s3653 + $0x9] sm:$0xff]
        %v3682 = vld [vmem:[%s3653 + $0x11] sm:$0xff]
        %v3683 = vld [vmem:[%s3653 + $0x21] sm:$0xff]
        %v3684 = vld [vmem:[%s3653 + $0x29] sm:$0xff]
        %v3685 = vld [vmem:[%s3653 + $0x31] sm:$0xff]
        %v3686 = vld [vmem:[%s3653 + $0x41] sm:$0xff]
        %v3687 = vld [vmem:[%s3653 + $0x49] sm:$0xff]
        %v3688 = vld [vmem:[%s3653 + $0x51] sm:$0xff]
        %v3689 = vld [vmem:[%s3653 + $0x61] sm:$0xff]
        %v3690 = vld [vmem:[%s3653 + $0x69] sm:$0xff]
        %v3691 = vld [vmem:[%s3653 + $0x71] sm:$0xff]
        %v3692 = vld [vmem:[%s3653 + $0x81] sm:$0xff]
        %v3693 = vld [vmem:[%s3653 + $0x89] sm:$0xff]
        %v3694 = vld [vmem:[%s3653 + $0x91] sm:$0xff]
        %v3695 = vld [vmem:[%s3653 + $0xa1] sm:$0xff]
        %v3696 = vld [vmem:[%s3653 + $0xa9] sm:$0xff]
        %v3697 = vld [vmem:[%s3653 + $0xb1] sm:$0xff]
        %s3698 = scalar_lea.vmem %s7, 64
        %v3699 = vld [vmem:[%s3698] sm:$0xff]
        %v3700 = vld [vmem:[%s3698 + $0x8] sm:$0xff]
        %v3701 = vld [vmem:[%s3698 + $0x10] sm:$0xff]
        %v3702 = vld [vmem:[%s3698 + $0x18] sm:$0xff]
        %v3703 = vld [vmem:[%s3698 + $0x20] sm:$0xff]
        %v3704 = vld [vmem:[%s3698 + $0x28] sm:$0xff]
        %v3705 = vld [vmem:[%s3698 + $0x30] sm:$0xff]
        %v3706 = vld [vmem:[%s3698 + $0x38] sm:$0xff]
        %vm3707 = vcmask 523264
        %v3709 = vsel %vm3707, %v3680, 0
        %v3712 = vsel %vm3707, %v3681, 0
        %v3715 = vsel %vm3707, %v3682, 0
        %v3718 = vsel %vm3707, %v3683, 0
        %v3721 = vsel %vm3707, %v3684, 0
        %v3724 = vsel %vm3707, %v3685, 0
        %v3727 = vsel %vm3707, %v3686, 0
        %v3730 = vsel %vm3707, %v3687, 0
        %v3733 = vsel %vm3707, %v3688, 0
        %v3736 = vsel %vm3707, %v3689, 0
        %v3739 = vsel %vm3707, %v3690, 0
        %v3742 = vsel %vm3707, %v3691, 0
        %v3745 = vsel %vm3707, %v3692, 0
        %v3748 = vsel %vm3707, %v3693, 0
        %v3751 = vsel %vm3707, %v3694, 0
        %v3754 = vsel %vm3707, %v3695, 0
        %v3757 = vsel %vm3707, %v3696, 0
        %v3760 = vsel %vm3707, %v3697, 0
        %3762 = vmatprep.subr.mxu0 0.0
        %3763 = vmatpush1.msra.mxu0 0.0
        %3764 = vmatprep.subr.mxu0 0.0
        %3765 = vmatpush1.msra.mxu0 0.0
        %3766 = vmatprep.subr.mxu0 0.0
        %3767 = vmatpush1.msra.mxu0 0.0
        %3768 = vmatprep.subr.mxu0 0.0
        %3769 = vmatpush1.msra.mxu0 0.0
        %3770 = vmatprep.subr.mxu0 0.0
        %3771 = vmatpush1.msra.mxu0 0.0
        %3772 = vmatprep.subr.mxu0 0.0
        %3773 = vmatpush1.msra.mxu0 0.0
        %3774 = vmatprep.subr.mxu0 0.0
        %3775 = vmatpush1.msra.mxu0 0.0
        %3776 = vmatprep.subr.mxu0 0.0
        %3777 = vmatpush1.msra.mxu0 0.0
        %3778 = vmatprep.subr.mxu0 0.0
        %3779 = vmatpush1.msra.mxu0 %v3706
        %3780 = vmatprep.subr.mxu0 0.0
        %3781 = vmatpush1.msra.mxu0 %v3705
        %3782 = vmatprep.subr.mxu0 0.0
        %3783 = vmatpush1.msra.mxu0 %v3704
        %3784 = vmatprep.subr.mxu0 0.0
        %3785 = vmatpush1.msra.mxu0 %v3703
        %3786 = vmatprep.subr.mxu0 0.0
        %3787 = vmatpush1.msra.mxu0 %v3702
        %3788 = vmatprep.subr.mxu0 0.0
        %3789 = vmatpush1.msra.mxu0 %v3701
        %3790 = vmatprep.subr.mxu0 0.0
        %3791 = vmatpush1.msra.mxu0 %v3700
        %3792 = vmatprep.subr.mxu0 0.0
        %3793 = vmatpush1.msra.mxu0 %v3699
        %3794 = vmatprep.subr.mxu0 0.0
        %3795 = vmatpush2.msra.mxu0 0.0
        %3796 = vmatprep.subr.mxu0 0.0
        %3797 = vmatpush2.msra.mxu0 0.0
        %3798 = vmatprep.subr.mxu0 0.0
        %3799 = vmatpush2.msra.mxu0 0.0
        %3800 = vmatprep.subr.mxu0 0.0
        %3801 = vmatpush2.msra.mxu0 0.0
        %3802 = vmatprep.subr.mxu0 0.0
        %3803 = vmatpush2.msra.mxu0 0.0
        %3804 = vmatprep.subr.mxu0 0.0
        %3805 = vmatpush2.msra.mxu0 0.0
        %3806 = vmatprep.subr.mxu0 0.0
        %3807 = vmatpush2.msra.mxu0 0.0
        %3808 = vmatprep.subr.mxu0 0.0
        %3809 = vmatpush2.msra.mxu0 0.0
        %3810 = vmatprep.subr.mxu0 0.0
        %3811 = vmatpush2.msra.mxu0 0.0
        %3812 = vmatprep.subr.mxu0 0.0
        %3813 = vmatpush2.msra.mxu0 0.0
        %3814 = vmatprep.subr.mxu0 0.0
        %3815 = vmatpush2.msra.mxu0 0.0
        %3816 = vmatprep.subr.mxu0 0.0
        %3817 = vmatpush2.msra.mxu0 0.0
        %3818 = vmatprep.subr.mxu0 0.0
        %3819 = vmatpush2.msra.mxu0 0.0
        %3820 = vmatprep.subr.mxu0 0.0
        %3821 = vmatpush2.msra.mxu0 0.0
        %3822 = vmatprep.subr.mxu0 0.0
        %3823 = vmatpush2.msra.mxu0 0.0
        %3824 = vmatprep.subr.mxu0 0.0
        %3825 = vmatpush2.msra.mxu0 0.0
        %3826 = vmatprep.mubr.f32.mxu0 0.0
        %3827 = vmatmul.mubr.f32.gmra.mxu0 %v3709
        %v3828 = vpop.f32.mrf.mxu0
        %v3829 = vadd.f32 0.0, %v3828
        %v3830 = vpop.f32.mrf.mxu0
        %3831 = vmatprep.mubr.f32.mxu0 0.0
        %3832 = vmatmul.mubr.f32.gmra.mxu0 %v3712
        %v3833 = vpop.f32.mrf.mxu0
        %v3834 = vadd.f32 0.0, %v3833
        %v3835 = vpop.f32.mrf.mxu0
        %3836 = vmatprep.mubr.f32.mxu0 0.0
        %3837 = vmatmul.mubr.f32.gmra.mxu0 %v3715
        %v3838 = vpop.f32.mrf.mxu0
        %v3839 = vadd.f32 0.0, %v3838
        %v3840 = vpop.f32.mrf.mxu0
        %3841 = vmatprep.mubr.f32.mxu0 0.0
        %3842 = vmatmul.mubr.f32.gmra.mxu0 %v3718
        %v3843 = vpop.f32.mrf.mxu0
        %v3844 = vadd.f32 0.0, %v3843
        %v3845 = vpop.f32.mrf.mxu0
        %3846 = vmatprep.mubr.f32.mxu0 0.0
        %3847 = vmatmul.mubr.f32.gmra.mxu0 %v3721
        %v3848 = vpop.f32.mrf.mxu0
        %v3849 = vadd.f32 0.0, %v3848
        %v3850 = vpop.f32.mrf.mxu0
        %3851 = vmatprep.mubr.f32.mxu0 0.0
        %3852 = vmatmul.mubr.f32.gmra.mxu0 %v3724
        %v3853 = vpop.f32.mrf.mxu0
        %v3854 = vadd.f32 0.0, %v3853
        %v3855 = vpop.f32.mrf.mxu0
        %3856 = vmatprep.mubr.f32.mxu0 0.0
        %3857 = vmatmul.mubr.f32.gmra.mxu0 %v3727
        %v3858 = vpop.f32.mrf.mxu0
        %v3859 = vadd.f32 0.0, %v3858
        %v3860 = vpop.f32.mrf.mxu0
        %3861 = vmatprep.mubr.f32.mxu0 0.0
        %3862 = vmatmul.mubr.f32.gmra.mxu0 %v3730
        %v3863 = vpop.f32.mrf.mxu0
        %v3864 = vadd.f32 0.0, %v3863
        %v3865 = vpop.f32.mrf.mxu0
        %3866 = vmatprep.mubr.f32.mxu0 0.0
        %3867 = vmatmul.mubr.f32.gmra.mxu0 %v3733
        %v3868 = vpop.f32.mrf.mxu0
        %v3869 = vadd.f32 0.0, %v3868
        %v3870 = vpop.f32.mrf.mxu0
        %3871 = vmatprep.mubr.f32.mxu0 0.0
        %3872 = vmatmul.mubr.f32.gmra.mxu0 %v3736
        %v3873 = vpop.f32.mrf.mxu0
        %v3874 = vadd.f32 0.0, %v3873
        %v3875 = vpop.f32.mrf.mxu0
        %3876 = vmatprep.mubr.f32.mxu0 0.0
        %3877 = vmatmul.mubr.f32.gmra.mxu0 %v3739
        %v3878 = vpop.f32.mrf.mxu0
        %v3879 = vadd.f32 0.0, %v3878
        %v3880 = vpop.f32.mrf.mxu0
        %3881 = vmatprep.mubr.f32.mxu0 0.0
        %3882 = vmatmul.mubr.f32.gmra.mxu0 %v3742
        %v3883 = vpop.f32.mrf.mxu0
        %v3884 = vadd.f32 0.0, %v3883
        %v3885 = vpop.f32.mrf.mxu0
        %3886 = vmatprep.mubr.f32.mxu0 0.0
        %3887 = vmatmul.mubr.f32.gmra.mxu0 %v3745
        %v3888 = vpop.f32.mrf.mxu0
        %v3889 = vadd.f32 0.0, %v3888
        %v3890 = vpop.f32.mrf.mxu0
        %3891 = vmatprep.mubr.f32.mxu0 0.0
        %3892 = vmatmul.mubr.f32.gmra.mxu0 %v3748
        %v3893 = vpop.f32.mrf.mxu0
        %v3894 = vadd.f32 0.0, %v3893
        %v3895 = vpop.f32.mrf.mxu0
        %3896 = vmatprep.mubr.f32.mxu0 0.0
        %3897 = vmatmul.mubr.f32.gmra.mxu0 %v3751
        %v3898 = vpop.f32.mrf.mxu0
        %v3899 = vadd.f32 0.0, %v3898
        %v3900 = vpop.f32.mrf.mxu0
        %3901 = vmatprep.mubr.f32.mxu0 0.0
        %3902 = vmatmul.mubr.f32.gmra.mxu0 %v3754
        %v3903 = vpop.f32.mrf.mxu0
        %v3904 = vadd.f32 0.0, %v3903
        %v3905 = vpop.f32.mrf.mxu0
        %3906 = vmatprep.mubr.f32.mxu0 0.0
        %3907 = vmatmul.mubr.f32.gmra.mxu0 %v3757
        %v3908 = vpop.f32.mrf.mxu0
        %v3909 = vadd.f32 0.0, %v3908
        %v3910 = vpop.f32.mrf.mxu0
        %3911 = vmatprep.mubr.f32.mxu0 0.0
        %3912 = vmatmul.mubr.f32.gmra.mxu0 %v3760
        %v3913 = vpop.f32.mrf.mxu0
        %v3914 = vadd.f32 0.0, %v3913
        %v3915 = vpop.f32.mrf.mxu0
        %3916 = vdwg.mxu0
        %v3918 = vsel %vm3707, %v3654, 0
        %v3921 = vsel %vm3707, %v3655, 0
        %v3924 = vsel %vm3707, %v3656, 0
        %v3927 = vsel %vm3707, %v3657, 0
        %v3930 = vsel %vm3707, %v3658, 0
        %v3933 = vsel %vm3707, %v3659, 0
        %v3936 = vsel %vm3707, %v3660, 0
        %v3939 = vsel %vm3707, %v3661, 0
        %v3942 = vsel %vm3707, %v3662, 0
        %v3945 = vsel %vm3707, %v3663, 0
        %v3948 = vsel %vm3707, %v3664, 0
        %v3951 = vsel %vm3707, %v3665, 0
        %v3954 = vsel %vm3707, %v3666, 0
        %v3957 = vsel %vm3707, %v3667, 0
        %v3960 = vsel %vm3707, %v3668, 0
        %v3963 = vsel %vm3707, %v3669, 0
        %v3966 = vsel %vm3707, %v3670, 0
        %v3969 = vsel %vm3707, %v3671, 0
        %3971 = vmatprep.subr.mxu0 0.0
        %3972 = vmatpush1.msra.mxu0 0.0
        %3973 = vmatprep.subr.mxu0 0.0
        %3974 = vmatpush1.msra.mxu0 0.0
        %3975 = vmatprep.subr.mxu0 0.0
        %3976 = vmatpush1.msra.mxu0 0.0
        %3977 = vmatprep.subr.mxu0 0.0
        %3978 = vmatpush1.msra.mxu0 0.0
        %3979 = vmatprep.subr.mxu0 0.0
        %3980 = vmatpush1.msra.mxu0 0.0
        %3981 = vmatprep.subr.mxu0 0.0
        %3982 = vmatpush1.msra.mxu0 0.0
        %3983 = vmatprep.subr.mxu0 0.0
        %3984 = vmatpush1.msra.mxu0 0.0
        %3985 = vmatprep.subr.mxu0 0.0
        %3986 = vmatpush1.msra.mxu0 0.0
        %3987 = vmatprep.subr.mxu0 0.0
        %3988 = vmatpush1.msra.mxu0 %v3679
        %3989 = vmatprep.subr.mxu0 0.0
        %3990 = vmatpush1.msra.mxu0 %v3678
        %3991 = vmatprep.subr.mxu0 0.0
        %3992 = vmatpush1.msra.mxu0 %v3677
        %3993 = vmatprep.subr.mxu0 0.0
        %3994 = vmatpush1.msra.mxu0 %v3676
        %3995 = vmatprep.subr.mxu0 0.0
        %3996 = vmatpush1.msra.mxu0 %v3675
        %3997 = vmatprep.subr.mxu0 0.0
        %3998 = vmatpush1.msra.mxu0 %v3674
        %3999 = vmatprep.subr.mxu0 0.0
        %4000 = vmatpush1.msra.mxu0 %v3673
        %4001 = vmatprep.subr.mxu0 0.0
        %4002 = vmatpush1.msra.mxu0 %v3672
        %4003 = vmatprep.subr.mxu0 0.0
        %4004 = vmatpush2.msra.mxu0 0.0
        %4005 = vmatprep.subr.mxu0 0.0
        %4006 = vmatpush2.msra.mxu0 0.0
        %4007 = vmatprep.subr.mxu0 0.0
        %4008 = vmatpush2.msra.mxu0 0.0
        %4009 = vmatprep.subr.mxu0 0.0
        %4010 = vmatpush2.msra.mxu0 0.0
        %4011 = vmatprep.subr.mxu0 0.0
        %4012 = vmatpush2.msra.mxu0 0.0
        %4013 = vmatprep.subr.mxu0 0.0
        %4014 = vmatpush2.msra.mxu0 0.0
        %4015 = vmatprep.subr.mxu0 0.0
        %4016 = vmatpush2.msra.mxu0 0.0
        %4017 = vmatprep.subr.mxu0 0.0
        %4018 = vmatpush2.msra.mxu0 0.0
        %4019 = vmatprep.subr.mxu0 0.0
        %4020 = vmatpush2.msra.mxu0 0.0
        %4021 = vmatprep.subr.mxu0 0.0
        %4022 = vmatpush2.msra.mxu0 0.0
        %4023 = vmatprep.subr.mxu0 0.0
        %4024 = vmatpush2.msra.mxu0 0.0
        %4025 = vmatprep.subr.mxu0 0.0
        %4026 = vmatpush2.msra.mxu0 0.0
        %4027 = vmatprep.subr.mxu0 0.0
        %4028 = vmatpush2.msra.mxu0 0.0
        %4029 = vmatprep.subr.mxu0 0.0
        %4030 = vmatpush2.msra.mxu0 0.0
        %4031 = vmatprep.subr.mxu0 0.0
        %4032 = vmatpush2.msra.mxu0 0.0
        %4033 = vmatprep.subr.mxu0 0.0
        %4034 = vmatpush2.msra.mxu0 0.0
        %4035 = vmatprep.mubr.f32.mxu0 0.0
        %4036 = vmatmul.mubr.f32.gmra.mxu0 %v3918
        %v4037 = vpop.f32.mrf.mxu0
        %v4038 = vadd.f32 %v3829, %v4037
        %v4039 = vpop.f32.mrf.mxu0
        %4040 = vmatprep.mubr.f32.mxu0 0.0
        %4041 = vmatmul.mubr.f32.gmra.mxu0 %v3921
        %v4042 = vpop.f32.mrf.mxu0
        %v4043 = vadd.f32 %v3834, %v4042
        %v4044 = vpop.f32.mrf.mxu0
        %4045 = vmatprep.mubr.f32.mxu0 0.0
        %4046 = vmatmul.mubr.f32.gmra.mxu0 %v3924
        %v4047 = vpop.f32.mrf.mxu0
        %v4048 = vadd.f32 %v3839, %v4047
        %v4049 = vpop.f32.mrf.mxu0
        %4050 = vmatprep.mubr.f32.mxu0 0.0
        %4051 = vmatmul.mubr.f32.gmra.mxu0 %v3927
        %v4052 = vpop.f32.mrf.mxu0
        %v4053 = vadd.f32 %v3844, %v4052
        %v4054 = vpop.f32.mrf.mxu0
        %4055 = vmatprep.mubr.f32.mxu0 0.0
        %4056 = vmatmul.mubr.f32.gmra.mxu0 %v3930
        %v4057 = vpop.f32.mrf.mxu0
        %v4058 = vadd.f32 %v3849, %v4057
        %v4059 = vpop.f32.mrf.mxu0
        %4060 = vmatprep.mubr.f32.mxu0 0.0
        %4061 = vmatmul.mubr.f32.gmra.mxu0 %v3933
        %v4062 = vpop.f32.mrf.mxu0
        %v4063 = vadd.f32 %v3854, %v4062
        %v4064 = vpop.f32.mrf.mxu0
        %4065 = vmatprep.mubr.f32.mxu0 0.0
        %4066 = vmatmul.mubr.f32.gmra.mxu0 %v3936
        %v4067 = vpop.f32.mrf.mxu0
        %v4068 = vadd.f32 %v3859, %v4067
        %v4069 = vpop.f32.mrf.mxu0
        %4070 = vmatprep.mubr.f32.mxu0 0.0
        %4071 = vmatmul.mubr.f32.gmra.mxu0 %v3939
        %v4072 = vpop.f32.mrf.mxu0
        %v4073 = vadd.f32 %v3864, %v4072
        %v4074 = vpop.f32.mrf.mxu0
        %4075 = vmatprep.mubr.f32.mxu0 0.0
        %4076 = vmatmul.mubr.f32.gmra.mxu0 %v3942
        %v4077 = vpop.f32.mrf.mxu0
        %v4078 = vadd.f32 %v3869, %v4077
        %v4079 = vpop.f32.mrf.mxu0
        %4080 = vmatprep.mubr.f32.mxu0 0.0
        %4081 = vmatmul.mubr.f32.gmra.mxu0 %v3945
        %v4082 = vpop.f32.mrf.mxu0
        %v4083 = vadd.f32 %v3874, %v4082
        %v4084 = vpop.f32.mrf.mxu0
        %4085 = vmatprep.mubr.f32.mxu0 0.0
        %4086 = vmatmul.mubr.f32.gmra.mxu0 %v3948
        %v4087 = vpop.f32.mrf.mxu0
        %v4088 = vadd.f32 %v3879, %v4087
        %v4089 = vpop.f32.mrf.mxu0
        %4090 = vmatprep.mubr.f32.mxu0 0.0
        %4091 = vmatmul.mubr.f32.gmra.mxu0 %v3951
        %v4092 = vpop.f32.mrf.mxu0
        %v4093 = vadd.f32 %v3884, %v4092
        %v4094 = vpop.f32.mrf.mxu0
        %4095 = vmatprep.mubr.f32.mxu0 0.0
        %4096 = vmatmul.mubr.f32.gmra.mxu0 %v3954
        %v4097 = vpop.f32.mrf.mxu0
        %v4098 = vadd.f32 %v3889, %v4097
        %v4099 = vpop.f32.mrf.mxu0
        %4100 = vmatprep.mubr.f32.mxu0 0.0
        %4101 = vmatmul.mubr.f32.gmra.mxu0 %v3957
        %v4102 = vpop.f32.mrf.mxu0
        %v4103 = vadd.f32 %v3894, %v4102
        %v4104 = vpop.f32.mrf.mxu0
        %4105 = vmatprep.mubr.f32.mxu0 0.0
        %4106 = vmatmul.mubr.f32.gmra.mxu0 %v3960
        %v4107 = vpop.f32.mrf.mxu0
        %v4108 = vadd.f32 %v3899, %v4107
        %v4109 = vpop.f32.mrf.mxu0
        %4110 = vmatprep.mubr.f32.mxu0 0.0
        %4111 = vmatmul.mubr.f32.gmra.mxu0 %v3963
        %v4112 = vpop.f32.mrf.mxu0
        %v4113 = vadd.f32 %v3904, %v4112
        %v4114 = vpop.f32.mrf.mxu0
        %4115 = vmatprep.mubr.f32.mxu0 0.0
        %4116 = vmatmul.mubr.f32.gmra.mxu0 %v3966
        %v4117 = vpop.f32.mrf.mxu0
        %v4118 = vadd.f32 %v3909, %v4117
        %v4119 = vpop.f32.mrf.mxu0
        %4120 = vmatprep.mubr.f32.mxu0 0.0
        %4121 = vmatmul.mubr.f32.gmra.mxu0 %v3969
        %v4122 = vpop.f32.mrf.mxu0
        %v4123 = vadd.f32 %v3914, %v4122
        %v4124 = vpop.f32.mrf.mxu0
        %4125 = vdwg.mxu0
        %v4126 = vld [vmem:[%s3653 + $0x2] sm:$0xff]
        %v4127 = vld [vmem:[%s3653 + $0xa] sm:$0xff]
        %v4128 = vld [vmem:[%s3653 + $0x12] sm:$0xff]
        %v4129 = vld [vmem:[%s3653 + $0x22] sm:$0xff]
        %v4130 = vld [vmem:[%s3653 + $0x2a] sm:$0xff]
        %v4131 = vld [vmem:[%s3653 + $0x32] sm:$0xff]
        %v4132 = vld [vmem:[%s3653 + $0x42] sm:$0xff]
        %v4133 = vld [vmem:[%s3653 + $0x4a] sm:$0xff]
        %v4134 = vld [vmem:[%s3653 + $0x52] sm:$0xff]
        %v4135 = vld [vmem:[%s3653 + $0x62] sm:$0xff]
        %v4136 = vld [vmem:[%s3653 + $0x6a] sm:$0xff]
        %v4137 = vld [vmem:[%s3653 + $0x72] sm:$0xff]
        %v4138 = vld [vmem:[%s3653 + $0x82] sm:$0xff]
        %v4139 = vld [vmem:[%s3653 + $0x8a] sm:$0xff]
        %v4140 = vld [vmem:[%s3653 + $0x92] sm:$0xff]
        %v4141 = vld [vmem:[%s3653 + $0xa2] sm:$0xff]
        %v4142 = vld [vmem:[%s3653 + $0xaa] sm:$0xff]
        %v4143 = vld [vmem:[%s3653 + $0xb2] sm:$0xff]
        %s4144 = scalar_lea.vmem %s7, 128
        %v4145 = vld [vmem:[%s4144] sm:$0xff]
        %v4146 = vld [vmem:[%s4144 + $0x8] sm:$0xff]
        %v4147 = vld [vmem:[%s4144 + $0x10] sm:$0xff]
        %v4148 = vld [vmem:[%s4144 + $0x18] sm:$0xff]
        %v4149 = vld [vmem:[%s4144 + $0x20] sm:$0xff]
        %v4150 = vld [vmem:[%s4144 + $0x28] sm:$0xff]
        %v4151 = vld [vmem:[%s4144 + $0x30] sm:$0xff]
        %v4152 = vld [vmem:[%s4144 + $0x38] sm:$0xff]
        %v4154 = vsel %vm3707, %v4126, 0
        %v4157 = vsel %vm3707, %v4127, 0
        %v4160 = vsel %vm3707, %v4128, 0
        %v4163 = vsel %vm3707, %v4129, 0
        %v4166 = vsel %vm3707, %v4130, 0
        %v4169 = vsel %vm3707, %v4131, 0
        %v4172 = vsel %vm3707, %v4132, 0
        %v4175 = vsel %vm3707, %v4133, 0
        %v4178 = vsel %vm3707, %v4134, 0
        %v4181 = vsel %vm3707, %v4135, 0
        %v4184 = vsel %vm3707, %v4136, 0
        %v4187 = vsel %vm3707, %v4137, 0
        %v4190 = vsel %vm3707, %v4138, 0
        %v4193 = vsel %vm3707, %v4139, 0
        %v4196 = vsel %vm3707, %v4140, 0
        %v4199 = vsel %vm3707, %v4141, 0
        %v4202 = vsel %vm3707, %v4142, 0
        %v4205 = vsel %vm3707, %v4143, 0
        %4207 = vmatprep.subr.mxu0 0.0
        %4208 = vmatpush1.msra.mxu0 0.0
        %4209 = vmatprep.subr.mxu0 0.0
        %4210 = vmatpush1.msra.mxu0 0.0
        %4211 = vmatprep.subr.mxu0 0.0
        %4212 = vmatpush1.msra.mxu0 0.0
        %4213 = vmatprep.subr.mxu0 0.0
        %4214 = vmatpush1.msra.mxu0 0.0
        %4215 = vmatprep.subr.mxu0 0.0
        %4216 = vmatpush1.msra.mxu0 0.0
        %4217 = vmatprep.subr.mxu0 0.0
        %4218 = vmatpush1.msra.mxu0 0.0
        %4219 = vmatprep.subr.mxu0 0.0
        %4220 = vmatpush1.msra.mxu0 0.0
        %4221 = vmatprep.subr.mxu0 0.0
        %4222 = vmatpush1.msra.mxu0 0.0
        %4223 = vmatprep.subr.mxu0 0.0
        %4224 = vmatpush1.msra.mxu0 %v4152
        %4225 = vmatprep.subr.mxu0 0.0
        %4226 = vmatpush1.msra.mxu0 %v4151
        %4227 = vmatprep.subr.mxu0 0.0
        %4228 = vmatpush1.msra.mxu0 %v4150
        %4229 = vmatprep.subr.mxu0 0.0
        %4230 = vmatpush1.msra.mxu0 %v4149
        %4231 = vmatprep.subr.mxu0 0.0
        %4232 = vmatpush1.msra.mxu0 %v4148
        %4233 = vmatprep.subr.mxu0 0.0
        %4234 = vmatpush1.msra.mxu0 %v4147
        %4235 = vmatprep.subr.mxu0 0.0
        %4236 = vmatpush1.msra.mxu0 %v4146
        %4237 = vmatprep.subr.mxu0 0.0
        %4238 = vmatpush1.msra.mxu0 %v4145
        %4239 = vmatprep.subr.mxu0 0.0
        %4240 = vmatpush2.msra.mxu0 0.0
        %4241 = vmatprep.subr.mxu0 0.0
        %4242 = vmatpush2.msra.mxu0 0.0
        %4243 = vmatprep.subr.mxu0 0.0
        %4244 = vmatpush2.msra.mxu0 0.0
        %4245 = vmatprep.subr.mxu0 0.0
        %4246 = vmatpush2.msra.mxu0 0.0
        %4247 = vmatprep.subr.mxu0 0.0
        %4248 = vmatpush2.msra.mxu0 0.0
        %4249 = vmatprep.subr.mxu0 0.0
        %4250 = vmatpush2.msra.mxu0 0.0
        %4251 = vmatprep.subr.mxu0 0.0
        %4252 = vmatpush2.msra.mxu0 0.0
        %4253 = vmatprep.subr.mxu0 0.0
        %4254 = vmatpush2.msra.mxu0 0.0
        %4255 = vmatprep.subr.mxu0 0.0
        %4256 = vmatpush2.msra.mxu0 0.0
        %4257 = vmatprep.subr.mxu0 0.0
        %4258 = vmatpush2.msra.mxu0 0.0
        %4259 = vmatprep.subr.mxu0 0.0
        %4260 = vmatpush2.msra.mxu0 0.0
        %4261 = vmatprep.subr.mxu0 0.0
        %4262 = vmatpush2.msra.mxu0 0.0
        %4263 = vmatprep.subr.mxu0 0.0
        %4264 = vmatpush2.msra.mxu0 0.0
        %4265 = vmatprep.subr.mxu0 0.0
        %4266 = vmatpush2.msra.mxu0 0.0
        %4267 = vmatprep.subr.mxu0 0.0
        %4268 = vmatpush2.msra.mxu0 0.0
        %4269 = vmatprep.subr.mxu0 0.0
        %4270 = vmatpush2.msra.mxu0 0.0
        %4271 = vmatprep.mubr.f32.mxu0 0.0
        %4272 = vmatmul.mubr.f32.gmra.mxu0 %v4154
        %v4273 = vpop.f32.mrf.mxu0
        %v4274 = vadd.f32 0.0, %v4273
        %v4275 = vpop.f32.mrf.mxu0
        %4276 = vmatprep.mubr.f32.mxu0 0.0
        %4277 = vmatmul.mubr.f32.gmra.mxu0 %v4157
        %v4278 = vpop.f32.mrf.mxu0
        %v4279 = vadd.f32 0.0, %v4278
        %v4280 = vpop.f32.mrf.mxu0
        %4281 = vmatprep.mubr.f32.mxu0 0.0
        %4282 = vmatmul.mubr.f32.gmra.mxu0 %v4160
        %v4283 = vpop.f32.mrf.mxu0
        %v4284 = vadd.f32 0.0, %v4283
        %v4285 = vpop.f32.mrf.mxu0
        %4286 = vmatprep.mubr.f32.mxu0 0.0
        %4287 = vmatmul.mubr.f32.gmra.mxu0 %v4163
        %v4288 = vpop.f32.mrf.mxu0
        %v4289 = vadd.f32 0.0, %v4288
        %v4290 = vpop.f32.mrf.mxu0
        %4291 = vmatprep.mubr.f32.mxu0 0.0
        %4292 = vmatmul.mubr.f32.gmra.mxu0 %v4166
        %v4293 = vpop.f32.mrf.mxu0
        %v4294 = vadd.f32 0.0, %v4293
        %v4295 = vpop.f32.mrf.mxu0
        %4296 = vmatprep.mubr.f32.mxu0 0.0
        %4297 = vmatmul.mubr.f32.gmra.mxu0 %v4169
        %v4298 = vpop.f32.mrf.mxu0
        %v4299 = vadd.f32 0.0, %v4298
        %v4300 = vpop.f32.mrf.mxu0
        %4301 = vmatprep.mubr.f32.mxu0 0.0
        %4302 = vmatmul.mubr.f32.gmra.mxu0 %v4172
        %v4303 = vpop.f32.mrf.mxu0
        %v4304 = vadd.f32 0.0, %v4303
        %v4305 = vpop.f32.mrf.mxu0
        %4306 = vmatprep.mubr.f32.mxu0 0.0
        %4307 = vmatmul.mubr.f32.gmra.mxu0 %v4175
        %v4308 = vpop.f32.mrf.mxu0
        %v4309 = vadd.f32 0.0, %v4308
        %v4310 = vpop.f32.mrf.mxu0
        %4311 = vmatprep.mubr.f32.mxu0 0.0
        %4312 = vmatmul.mubr.f32.gmra.mxu0 %v4178
        %v4313 = vpop.f32.mrf.mxu0
        %v4314 = vadd.f32 0.0, %v4313
        %v4315 = vpop.f32.mrf.mxu0
        %4316 = vmatprep.mubr.f32.mxu0 0.0
        %4317 = vmatmul.mubr.f32.gmra.mxu0 %v4181
        %v4318 = vpop.f32.mrf.mxu0
        %v4319 = vadd.f32 0.0, %v4318
        %v4320 = vpop.f32.mrf.mxu0
        %4321 = vmatprep.mubr.f32.mxu0 0.0
        %4322 = vmatmul.mubr.f32.gmra.mxu0 %v4184
        %v4323 = vpop.f32.mrf.mxu0
        %v4324 = vadd.f32 0.0, %v4323
        %v4325 = vpop.f32.mrf.mxu0
        %4326 = vmatprep.mubr.f32.mxu0 0.0
        %4327 = vmatmul.mubr.f32.gmra.mxu0 %v4187
        %v4328 = vpop.f32.mrf.mxu0
        %v4329 = vadd.f32 0.0, %v4328
        %v4330 = vpop.f32.mrf.mxu0
        %4331 = vmatprep.mubr.f32.mxu0 0.0
        %4332 = vmatmul.mubr.f32.gmra.mxu0 %v4190
        %v4333 = vpop.f32.mrf.mxu0
        %v4334 = vadd.f32 0.0, %v4333
        %v4335 = vpop.f32.mrf.mxu0
        %4336 = vmatprep.mubr.f32.mxu0 0.0
        %4337 = vmatmul.mubr.f32.gmra.mxu0 %v4193
        %v4338 = vpop.f32.mrf.mxu0
        %v4339 = vadd.f32 0.0, %v4338
        %v4340 = vpop.f32.mrf.mxu0
        %4341 = vmatprep.mubr.f32.mxu0 0.0
        %4342 = vmatmul.mubr.f32.gmra.mxu0 %v4196
        %v4343 = vpop.f32.mrf.mxu0
        %v4344 = vadd.f32 0.0, %v4343
        %v4345 = vpop.f32.mrf.mxu0
        %4346 = vmatprep.mubr.f32.mxu0 0.0
        %4347 = vmatmul.mubr.f32.gmra.mxu0 %v4199
        %v4348 = vpop.f32.mrf.mxu0
        %v4349 = vadd.f32 0.0, %v4348
        %v4350 = vpop.f32.mrf.mxu0
        %4351 = vmatprep.mubr.f32.mxu0 0.0
        %4352 = vmatmul.mubr.f32.gmra.mxu0 %v4202
        %v4353 = vpop.f32.mrf.mxu0
        %v4354 = vadd.f32 0.0, %v4353
        %v4355 = vpop.f32.mrf.mxu0
        %4356 = vmatprep.mubr.f32.mxu0 0.0
        %4357 = vmatmul.mubr.f32.gmra.mxu0 %v4205
        %v4358 = vpop.f32.mrf.mxu0
        %v4359 = vadd.f32 0.0, %v4358
        %v4360 = vpop.f32.mrf.mxu0
        %4361 = vdwg.mxu0
        %v4362 = vadd.f32 %v4038, %v4274
        %v4363 = vadd.f32 %v4043, %v4279
        %v4364 = vadd.f32 %v4048, %v4284
        %v4365 = vadd.f32 %v4053, %v4289
        %v4366 = vadd.f32 %v4058, %v4294
        %v4367 = vadd.f32 %v4063, %v4299
        %v4368 = vadd.f32 %v4068, %v4304
        %v4369 = vadd.f32 %v4073, %v4309
        %v4370 = vadd.f32 %v4078, %v4314
        %v4371 = vadd.f32 %v4083, %v4319
        %v4372 = vadd.f32 %v4088, %v4324
        %v4373 = vadd.f32 %v4093, %v4329
        %v4374 = vadd.f32 %v4098, %v4334
        %v4375 = vadd.f32 %v4103, %v4339
        %v4376 = vadd.f32 %v4108, %v4344
        %v4377 = vadd.f32 %v4113, %v4349
        %v4378 = vadd.f32 %v4118, %v4354
        %v4379 = vadd.f32 %v4123, %v4359
        %v4380 = vld [vmem:[%s3653 + $0x3] sm:$0xff]
        %v4381 = vld [vmem:[%s3653 + $0xb] sm:$0xff]
        %v4382 = vld [vmem:[%s3653 + $0x13] sm:$0xff]
        %v4383 = vld [vmem:[%s3653 + $0x23] sm:$0xff]
        %v4384 = vld [vmem:[%s3653 + $0x2b] sm:$0xff]
        %v4385 = vld [vmem:[%s3653 + $0x33] sm:$0xff]
        %v4386 = vld [vmem:[%s3653 + $0x43] sm:$0xff]
        %v4387 = vld [vmem:[%s3653 + $0x4b] sm:$0xff]
        %v4388 = vld [vmem:[%s3653 + $0x53] sm:$0xff]
        %v4389 = vld [vmem:[%s3653 + $0x63] sm:$0xff]
        %v4390 = vld [vmem:[%s3653 + $0x6b] sm:$0xff]
        %v4391 = vld [vmem:[%s3653 + $0x73] sm:$0xff]
        %v4392 = vld [vmem:[%s3653 + $0x83] sm:$0xff]
        %v4393 = vld [vmem:[%s3653 + $0x8b] sm:$0xff]
        %v4394 = vld [vmem:[%s3653 + $0x93] sm:$0xff]
        %v4395 = vld [vmem:[%s3653 + $0xa3] sm:$0xff]
        %v4396 = vld [vmem:[%s3653 + $0xab] sm:$0xff]
        %v4397 = vld [vmem:[%s3653 + $0xb3] sm:$0xff]
        %s4398 = scalar_lea.vmem %s7, 192
        %v4399 = vld [vmem:[%s4398] sm:$0xff]
        %v4400 = vld [vmem:[%s4398 + $0x8] sm:$0xff]
        %v4401 = vld [vmem:[%s4398 + $0x10] sm:$0xff]
        %v4402 = vld [vmem:[%s4398 + $0x18] sm:$0xff]
        %v4403 = vld [vmem:[%s4398 + $0x20] sm:$0xff]
        %v4404 = vld [vmem:[%s4398 + $0x28] sm:$0xff]
        %v4405 = vld [vmem:[%s4398 + $0x30] sm:$0xff]
        %v4406 = vld [vmem:[%s4398 + $0x38] sm:$0xff]
        %v4408 = vsel %vm3707, %v4380, 0
        %v4411 = vsel %vm3707, %v4381, 0
        %v4414 = vsel %vm3707, %v4382, 0
        %v4417 = vsel %vm3707, %v4383, 0
        %v4420 = vsel %vm3707, %v4384, 0
        %v4423 = vsel %vm3707, %v4385, 0
        %v4426 = vsel %vm3707, %v4386, 0
        %v4429 = vsel %vm3707, %v4387, 0
        %v4432 = vsel %vm3707, %v4388, 0
        %v4435 = vsel %vm3707, %v4389, 0
        %v4438 = vsel %vm3707, %v4390, 0
        %v4441 = vsel %vm3707, %v4391, 0
        %v4444 = vsel %vm3707, %v4392, 0
        %v4447 = vsel %vm3707, %v4393, 0
        %v4450 = vsel %vm3707, %v4394, 0
        %v4453 = vsel %vm3707, %v4395, 0
        %v4456 = vsel %vm3707, %v4396, 0
        %v4459 = vsel %vm3707, %v4397, 0
        %4461 = vmatprep.subr.mxu0 0.0
        %4462 = vmatpush1.msra.mxu0 0.0
        %4463 = vmatprep.subr.mxu0 0.0
        %4464 = vmatpush1.msra.mxu0 0.0
        %4465 = vmatprep.subr.mxu0 0.0
        %4466 = vmatpush1.msra.mxu0 0.0
        %4467 = vmatprep.subr.mxu0 0.0
        %4468 = vmatpush1.msra.mxu0 0.0
        %4469 = vmatprep.subr.mxu0 0.0
        %4470 = vmatpush1.msra.mxu0 0.0
        %4471 = vmatprep.subr.mxu0 0.0
        %4472 = vmatpush1.msra.mxu0 0.0
        %4473 = vmatprep.subr.mxu0 0.0
        %4474 = vmatpush1.msra.mxu0 0.0
        %4475 = vmatprep.subr.mxu0 0.0
        %4476 = vmatpush1.msra.mxu0 0.0
        %4477 = vmatprep.subr.mxu0 0.0
        %4478 = vmatpush1.msra.mxu0 %v4406
        %4479 = vmatprep.subr.mxu0 0.0
        %4480 = vmatpush1.msra.mxu0 %v4405
        %4481 = vmatprep.subr.mxu0 0.0
        %4482 = vmatpush1.msra.mxu0 %v4404
        %4483 = vmatprep.subr.mxu0 0.0
        %4484 = vmatpush1.msra.mxu0 %v4403
        %4485 = vmatprep.subr.mxu0 0.0
        %4486 = vmatpush1.msra.mxu0 %v4402
        %4487 = vmatprep.subr.mxu0 0.0
        %4488 = vmatpush1.msra.mxu0 %v4401
        %4489 = vmatprep.subr.mxu0 0.0
        %4490 = vmatpush1.msra.mxu0 %v4400
        %4491 = vmatprep.subr.mxu0 0.0
        %4492 = vmatpush1.msra.mxu0 %v4399
        %4493 = vmatprep.subr.mxu0 0.0
        %4494 = vmatpush2.msra.mxu0 0.0
        %4495 = vmatprep.subr.mxu0 0.0
        %4496 = vmatpush2.msra.mxu0 0.0
        %4497 = vmatprep.subr.mxu0 0.0
        %4498 = vmatpush2.msra.mxu0 0.0
        %4499 = vmatprep.subr.mxu0 0.0
        %4500 = vmatpush2.msra.mxu0 0.0
        %4501 = vmatprep.subr.mxu0 0.0
        %4502 = vmatpush2.msra.mxu0 0.0
        %4503 = vmatprep.subr.mxu0 0.0
        %4504 = vmatpush2.msra.mxu0 0.0
        %4505 = vmatprep.subr.mxu0 0.0
        %4506 = vmatpush2.msra.mxu0 0.0
        %4507 = vmatprep.subr.mxu0 0.0
        %4508 = vmatpush2.msra.mxu0 0.0
        %4509 = vmatprep.subr.mxu0 0.0
        %4510 = vmatpush2.msra.mxu0 0.0
        %4511 = vmatprep.subr.mxu0 0.0
        %4512 = vmatpush2.msra.mxu0 0.0
        %4513 = vmatprep.subr.mxu0 0.0
        %4514 = vmatpush2.msra.mxu0 0.0
        %4515 = vmatprep.subr.mxu0 0.0
        %4516 = vmatpush2.msra.mxu0 0.0
        %4517 = vmatprep.subr.mxu0 0.0
        %4518 = vmatpush2.msra.mxu0 0.0
        %4519 = vmatprep.subr.mxu0 0.0
        %4520 = vmatpush2.msra.mxu0 0.0
        %4521 = vmatprep.subr.mxu0 0.0
        %4522 = vmatpush2.msra.mxu0 0.0
        %4523 = vmatprep.subr.mxu0 0.0
        %4524 = vmatpush2.msra.mxu0 0.0
        %4525 = vmatprep.mubr.f32.mxu0 0.0
        %4526 = vmatmul.mubr.f32.gmra.mxu0 %v4408
        %v4527 = vpop.f32.mrf.mxu0
        %v4528 = vadd.f32 0.0, %v4527
        %v4529 = vpop.f32.mrf.mxu0
        %4530 = vmatprep.mubr.f32.mxu0 0.0
        %4531 = vmatmul.mubr.f32.gmra.mxu0 %v4411
        %v4532 = vpop.f32.mrf.mxu0
        %v4533 = vadd.f32 0.0, %v4532
        %v4534 = vpop.f32.mrf.mxu0
        %4535 = vmatprep.mubr.f32.mxu0 0.0
        %4536 = vmatmul.mubr.f32.gmra.mxu0 %v4414
        %v4537 = vpop.f32.mrf.mxu0
        %v4538 = vadd.f32 0.0, %v4537
        %v4539 = vpop.f32.mrf.mxu0
        %4540 = vmatprep.mubr.f32.mxu0 0.0
        %4541 = vmatmul.mubr.f32.gmra.mxu0 %v4417
        %v4542 = vpop.f32.mrf.mxu0
        %v4543 = vadd.f32 0.0, %v4542
        %v4544 = vpop.f32.mrf.mxu0
        %4545 = vmatprep.mubr.f32.mxu0 0.0
        %4546 = vmatmul.mubr.f32.gmra.mxu0 %v4420
        %v4547 = vpop.f32.mrf.mxu0
        %v4548 = vadd.f32 0.0, %v4547
        %v4549 = vpop.f32.mrf.mxu0
        %4550 = vmatprep.mubr.f32.mxu0 0.0
        %4551 = vmatmul.mubr.f32.gmra.mxu0 %v4423
        %v4552 = vpop.f32.mrf.mxu0
        %v4553 = vadd.f32 0.0, %v4552
        %v4554 = vpop.f32.mrf.mxu0
        %4555 = vmatprep.mubr.f32.mxu0 0.0
        %4556 = vmatmul.mubr.f32.gmra.mxu0 %v4426
        %v4557 = vpop.f32.mrf.mxu0
        %v4558 = vadd.f32 0.0, %v4557
        %v4559 = vpop.f32.mrf.mxu0
        %4560 = vmatprep.mubr.f32.mxu0 0.0
        %4561 = vmatmul.mubr.f32.gmra.mxu0 %v4429
        %v4562 = vpop.f32.mrf.mxu0
        %v4563 = vadd.f32 0.0, %v4562
        %v4564 = vpop.f32.mrf.mxu0
        %4565 = vmatprep.mubr.f32.mxu0 0.0
        %4566 = vmatmul.mubr.f32.gmra.mxu0 %v4432
        %v4567 = vpop.f32.mrf.mxu0
        %v4568 = vadd.f32 0.0, %v4567
        %v4569 = vpop.f32.mrf.mxu0
        %4570 = vmatprep.mubr.f32.mxu0 0.0
        %4571 = vmatmul.mubr.f32.gmra.mxu0 %v4435
        %v4572 = vpop.f32.mrf.mxu0
        %v4573 = vadd.f32 0.0, %v4572
        %v4574 = vpop.f32.mrf.mxu0
        %4575 = vmatprep.mubr.f32.mxu0 0.0
        %4576 = vmatmul.mubr.f32.gmra.mxu0 %v4438
        %v4577 = vpop.f32.mrf.mxu0
        %v4578 = vadd.f32 0.0, %v4577
        %v4579 = vpop.f32.mrf.mxu0
        %4580 = vmatprep.mubr.f32.mxu0 0.0
        %4581 = vmatmul.mubr.f32.gmra.mxu0 %v4441
        %v4582 = vpop.f32.mrf.mxu0
        %v4583 = vadd.f32 0.0, %v4582
        %v4584 = vpop.f32.mrf.mxu0
        %4585 = vmatprep.mubr.f32.mxu0 0.0
        %4586 = vmatmul.mubr.f32.gmra.mxu0 %v4444
        %v4587 = vpop.f32.mrf.mxu0
        %v4588 = vadd.f32 0.0, %v4587
        %v4589 = vpop.f32.mrf.mxu0
        %4590 = vmatprep.mubr.f32.mxu0 0.0
        %4591 = vmatmul.mubr.f32.gmra.mxu0 %v4447
        %v4592 = vpop.f32.mrf.mxu0
        %v4593 = vadd.f32 0.0, %v4592
        %v4594 = vpop.f32.mrf.mxu0
        %4595 = vmatprep.mubr.f32.mxu0 0.0
        %4596 = vmatmul.mubr.f32.gmra.mxu0 %v4450
        %v4597 = vpop.f32.mrf.mxu0
        %v4598 = vadd.f32 0.0, %v4597
        %v4599 = vpop.f32.mrf.mxu0
        %4600 = vmatprep.mubr.f32.mxu0 0.0
        %4601 = vmatmul.mubr.f32.gmra.mxu0 %v4453
        %v4602 = vpop.f32.mrf.mxu0
        %v4603 = vadd.f32 0.0, %v4602
        %v4604 = vpop.f32.mrf.mxu0
        %4605 = vmatprep.mubr.f32.mxu0 0.0
        %4606 = vmatmul.mubr.f32.gmra.mxu0 %v4456
        %v4607 = vpop.f32.mrf.mxu0
        %v4608 = vadd.f32 0.0, %v4607
        %v4609 = vpop.f32.mrf.mxu0
        %4610 = vmatprep.mubr.f32.mxu0 0.0
        %4611 = vmatmul.mubr.f32.gmra.mxu0 %v4459
        %v4612 = vpop.f32.mrf.mxu0
        %v4613 = vadd.f32 0.0, %v4612
        %v4614 = vpop.f32.mrf.mxu0
        %4615 = vdwg.mxu0
        %v4616 = vadd.f32 %v4362, %v4528
        %v4617 = vadd.f32 %v4363, %v4533
        %v4618 = vadd.f32 %v4364, %v4538
        %v4619 = vadd.f32 %v4365, %v4543
        %v4620 = vadd.f32 %v4366, %v4548
        %v4621 = vadd.f32 %v4367, %v4553
        %v4622 = vadd.f32 %v4368, %v4558
        %v4623 = vadd.f32 %v4369, %v4563
        %v4624 = vadd.f32 %v4370, %v4568
        %v4625 = vadd.f32 %v4371, %v4573
        %v4626 = vadd.f32 %v4372, %v4578
        %v4627 = vadd.f32 %v4373, %v4583
        %v4628 = vadd.f32 %v4374, %v4588
        %v4629 = vadd.f32 %v4375, %v4593
        %v4630 = vadd.f32 %v4376, %v4598
        %v4631 = vadd.f32 %v4377, %v4603
        %v4632 = vadd.f32 %v4378, %v4608
        %v4633 = vadd.f32 %v4379, %v4613
        %v4634 = vld [vmem:[%s3653 + $0x4] sm:$0xff]
        %v4635 = vld [vmem:[%s3653 + $0xc] sm:$0xff]
        %v4636 = vld [vmem:[%s3653 + $0x14] sm:$0xff]
        %v4637 = vld [vmem:[%s3653 + $0x24] sm:$0xff]
        %v4638 = vld [vmem:[%s3653 + $0x2c] sm:$0xff]
        %v4639 = vld [vmem:[%s3653 + $0x34] sm:$0xff]
        %v4640 = vld [vmem:[%s3653 + $0x44] sm:$0xff]
        %v4641 = vld [vmem:[%s3653 + $0x4c] sm:$0xff]
        %v4642 = vld [vmem:[%s3653 + $0x54] sm:$0xff]
        %v4643 = vld [vmem:[%s3653 + $0x64] sm:$0xff]
        %v4644 = vld [vmem:[%s3653 + $0x6c] sm:$0xff]
        %v4645 = vld [vmem:[%s3653 + $0x74] sm:$0xff]
        %v4646 = vld [vmem:[%s3653 + $0x84] sm:$0xff]
        %v4647 = vld [vmem:[%s3653 + $0x8c] sm:$0xff]
        %v4648 = vld [vmem:[%s3653 + $0x94] sm:$0xff]
        %v4649 = vld [vmem:[%s3653 + $0xa4] sm:$0xff]
        %v4650 = vld [vmem:[%s3653 + $0xac] sm:$0xff]
        %v4651 = vld [vmem:[%s3653 + $0xb4] sm:$0xff]
        %s4652 = scalar_lea.vmem %s7, 256
        %v4653 = vld [vmem:[%s4652] sm:$0xff]
        %v4654 = vld [vmem:[%s4652 + $0x8] sm:$0xff]
        %v4655 = vld [vmem:[%s4652 + $0x10] sm:$0xff]
        %v4656 = vld [vmem:[%s4652 + $0x18] sm:$0xff]
        %v4657 = vld [vmem:[%s4652 + $0x20] sm:$0xff]
        %v4658 = vld [vmem:[%s4652 + $0x28] sm:$0xff]
        %v4659 = vld [vmem:[%s4652 + $0x30] sm:$0xff]
        %v4660 = vld [vmem:[%s4652 + $0x38] sm:$0xff]
        %v4662 = vsel %vm3707, %v4634, 0
        %v4665 = vsel %vm3707, %v4635, 0
        %v4668 = vsel %vm3707, %v4636, 0
        %v4671 = vsel %vm3707, %v4637, 0
        %v4674 = vsel %vm3707, %v4638, 0
        %v4677 = vsel %vm3707, %v4639, 0
        %v4680 = vsel %vm3707, %v4640, 0
        %v4683 = vsel %vm3707, %v4641, 0
        %v4686 = vsel %vm3707, %v4642, 0
        %v4689 = vsel %vm3707, %v4643, 0
        %v4692 = vsel %vm3707, %v4644, 0
        %v4695 = vsel %vm3707, %v4645, 0
        %v4698 = vsel %vm3707, %v4646, 0
        %v4701 = vsel %vm3707, %v4647, 0
        %v4704 = vsel %vm3707, %v4648, 0
        %v4707 = vsel %vm3707, %v4649, 0
        %v4710 = vsel %vm3707, %v4650, 0
        %v4713 = vsel %vm3707, %v4651, 0
        %4715 = vmatprep.subr.mxu0 0.0
        %4716 = vmatpush1.msra.mxu0 0.0
        %4717 = vmatprep.subr.mxu0 0.0
        %4718 = vmatpush1.msra.mxu0 0.0
        %4719 = vmatprep.subr.mxu0 0.0
        %4720 = vmatpush1.msra.mxu0 0.0
        %4721 = vmatprep.subr.mxu0 0.0
        %4722 = vmatpush1.msra.mxu0 0.0
        %4723 = vmatprep.subr.mxu0 0.0
        %4724 = vmatpush1.msra.mxu0 0.0
        %4725 = vmatprep.subr.mxu0 0.0
        %4726 = vmatpush1.msra.mxu0 0.0
        %4727 = vmatprep.subr.mxu0 0.0
        %4728 = vmatpush1.msra.mxu0 0.0
        %4729 = vmatprep.subr.mxu0 0.0
        %4730 = vmatpush1.msra.mxu0 0.0
        %4731 = vmatprep.subr.mxu0 0.0
        %4732 = vmatpush1.msra.mxu0 %v4660
        %4733 = vmatprep.subr.mxu0 0.0
        %4734 = vmatpush1.msra.mxu0 %v4659
        %4735 = vmatprep.subr.mxu0 0.0
        %4736 = vmatpush1.msra.mxu0 %v4658
        %4737 = vmatprep.subr.mxu0 0.0
        %4738 = vmatpush1.msra.mxu0 %v4657
        %4739 = vmatprep.subr.mxu0 0.0
        %4740 = vmatpush1.msra.mxu0 %v4656
        %4741 = vmatprep.subr.mxu0 0.0
        %4742 = vmatpush1.msra.mxu0 %v4655
        %4743 = vmatprep.subr.mxu0 0.0
        %4744 = vmatpush1.msra.mxu0 %v4654
        %4745 = vmatprep.subr.mxu0 0.0
        %4746 = vmatpush1.msra.mxu0 %v4653
        %4747 = vmatprep.subr.mxu0 0.0
        %4748 = vmatpush2.msra.mxu0 0.0
        %4749 = vmatprep.subr.mxu0 0.0
        %4750 = vmatpush2.msra.mxu0 0.0
        %4751 = vmatprep.subr.mxu0 0.0
        %4752 = vmatpush2.msra.mxu0 0.0
        %4753 = vmatprep.subr.mxu0 0.0
        %4754 = vmatpush2.msra.mxu0 0.0
        %4755 = vmatprep.subr.mxu0 0.0
        %4756 = vmatpush2.msra.mxu0 0.0
        %4757 = vmatprep.subr.mxu0 0.0
        %4758 = vmatpush2.msra.mxu0 0.0
        %4759 = vmatprep.subr.mxu0 0.0
        %4760 = vmatpush2.msra.mxu0 0.0
        %4761 = vmatprep.subr.mxu0 0.0
        %4762 = vmatpush2.msra.mxu0 0.0
        %4763 = vmatprep.subr.mxu0 0.0
        %4764 = vmatpush2.msra.mxu0 0.0
        %4765 = vmatprep.subr.mxu0 0.0
        %4766 = vmatpush2.msra.mxu0 0.0
        %4767 = vmatprep.subr.mxu0 0.0
        %4768 = vmatpush2.msra.mxu0 0.0
        %4769 = vmatprep.subr.mxu0 0.0
        %4770 = vmatpush2.msra.mxu0 0.0
        %4771 = vmatprep.subr.mxu0 0.0
        %4772 = vmatpush2.msra.mxu0 0.0
        %4773 = vmatprep.subr.mxu0 0.0
        %4774 = vmatpush2.msra.mxu0 0.0
        %4775 = vmatprep.subr.mxu0 0.0
        %4776 = vmatpush2.msra.mxu0 0.0
        %4777 = vmatprep.subr.mxu0 0.0
        %4778 = vmatpush2.msra.mxu0 0.0
        %4779 = vmatprep.mubr.f32.mxu0 0.0
        %4780 = vmatmul.mubr.f32.gmra.mxu0 %v4662
        %v4781 = vpop.f32.mrf.mxu0
        %v4782 = vadd.f32 0.0, %v4781
        %v4783 = vpop.f32.mrf.mxu0
        %4784 = vmatprep.mubr.f32.mxu0 0.0
        %4785 = vmatmul.mubr.f32.gmra.mxu0 %v4665
        %v4786 = vpop.f32.mrf.mxu0
        %v4787 = vadd.f32 0.0, %v4786
        %v4788 = vpop.f32.mrf.mxu0
        %4789 = vmatprep.mubr.f32.mxu0 0.0
        %4790 = vmatmul.mubr.f32.gmra.mxu0 %v4668
        %v4791 = vpop.f32.mrf.mxu0
        %v4792 = vadd.f32 0.0, %v4791
        %v4793 = vpop.f32.mrf.mxu0
        %4794 = vmatprep.mubr.f32.mxu0 0.0
        %4795 = vmatmul.mubr.f32.gmra.mxu0 %v4671
        %v4796 = vpop.f32.mrf.mxu0
        %v4797 = vadd.f32 0.0, %v4796
        %v4798 = vpop.f32.mrf.mxu0
        %4799 = vmatprep.mubr.f32.mxu0 0.0
        %4800 = vmatmul.mubr.f32.gmra.mxu0 %v4674
        %v4801 = vpop.f32.mrf.mxu0
        %v4802 = vadd.f32 0.0, %v4801
        %v4803 = vpop.f32.mrf.mxu0
        %4804 = vmatprep.mubr.f32.mxu0 0.0
        %4805 = vmatmul.mubr.f32.gmra.mxu0 %v4677
        %v4806 = vpop.f32.mrf.mxu0
        %v4807 = vadd.f32 0.0, %v4806
        %v4808 = vpop.f32.mrf.mxu0
        %4809 = vmatprep.mubr.f32.mxu0 0.0
        %4810 = vmatmul.mubr.f32.gmra.mxu0 %v4680
        %v4811 = vpop.f32.mrf.mxu0
        %v4812 = vadd.f32 0.0, %v4811
        %v4813 = vpop.f32.mrf.mxu0
        %4814 = vmatprep.mubr.f32.mxu0 0.0
        %4815 = vmatmul.mubr.f32.gmra.mxu0 %v4683
        %v4816 = vpop.f32.mrf.mxu0
        %v4817 = vadd.f32 0.0, %v4816
        %v4818 = vpop.f32.mrf.mxu0
        %4819 = vmatprep.mubr.f32.mxu0 0.0
        %4820 = vmatmul.mubr.f32.gmra.mxu0 %v4686
        %v4821 = vpop.f32.mrf.mxu0
        %v4822 = vadd.f32 0.0, %v4821
        %v4823 = vpop.f32.mrf.mxu0
        %4824 = vmatprep.mubr.f32.mxu0 0.0
        %4825 = vmatmul.mubr.f32.gmra.mxu0 %v4689
        %v4826 = vpop.f32.mrf.mxu0
        %v4827 = vadd.f32 0.0, %v4826
        %v4828 = vpop.f32.mrf.mxu0
        %4829 = vmatprep.mubr.f32.mxu0 0.0
        %4830 = vmatmul.mubr.f32.gmra.mxu0 %v4692
        %v4831 = vpop.f32.mrf.mxu0
        %v4832 = vadd.f32 0.0, %v4831
        %v4833 = vpop.f32.mrf.mxu0
        %4834 = vmatprep.mubr.f32.mxu0 0.0
        %4835 = vmatmul.mubr.f32.gmra.mxu0 %v4695
        %v4836 = vpop.f32.mrf.mxu0
        %v4837 = vadd.f32 0.0, %v4836
        %v4838 = vpop.f32.mrf.mxu0
        %4839 = vmatprep.mubr.f32.mxu0 0.0
        %4840 = vmatmul.mubr.f32.gmra.mxu0 %v4698
        %v4841 = vpop.f32.mrf.mxu0
        %v4842 = vadd.f32 0.0, %v4841
        %v4843 = vpop.f32.mrf.mxu0
        %4844 = vmatprep.mubr.f32.mxu0 0.0
        %4845 = vmatmul.mubr.f32.gmra.mxu0 %v4701
        %v4846 = vpop.f32.mrf.mxu0
        %v4847 = vadd.f32 0.0, %v4846
        %v4848 = vpop.f32.mrf.mxu0
        %4849 = vmatprep.mubr.f32.mxu0 0.0
        %4850 = vmatmul.mubr.f32.gmra.mxu0 %v4704
        %v4851 = vpop.f32.mrf.mxu0
        %v4852 = vadd.f32 0.0, %v4851
        %v4853 = vpop.f32.mrf.mxu0
        %4854 = vmatprep.mubr.f32.mxu0 0.0
        %4855 = vmatmul.mubr.f32.gmra.mxu0 %v4707
        %v4856 = vpop.f32.mrf.mxu0
        %v4857 = vadd.f32 0.0, %v4856
        %v4858 = vpop.f32.mrf.mxu0
        %4859 = vmatprep.mubr.f32.mxu0 0.0
        %4860 = vmatmul.mubr.f32.gmra.mxu0 %v4710
        %v4861 = vpop.f32.mrf.mxu0
        %v4862 = vadd.f32 0.0, %v4861
        %v4863 = vpop.f32.mrf.mxu0
        %4864 = vmatprep.mubr.f32.mxu0 0.0
        %4865 = vmatmul.mubr.f32.gmra.mxu0 %v4713
        %v4866 = vpop.f32.mrf.mxu0
        %v4867 = vadd.f32 0.0, %v4866
        %v4868 = vpop.f32.mrf.mxu0
        %4869 = vdwg.mxu0
        %v4870 = vadd.f32 %v4616, %v4782
        %v4871 = vadd.f32 %v4617, %v4787
        %v4872 = vadd.f32 %v4618, %v4792
        %v4873 = vadd.f32 %v4619, %v4797
        %v4874 = vadd.f32 %v4620, %v4802
        %v4875 = vadd.f32 %v4621, %v4807
        %v4876 = vadd.f32 %v4622, %v4812
        %v4877 = vadd.f32 %v4623, %v4817
        %v4878 = vadd.f32 %v4624, %v4822
        %v4879 = vadd.f32 %v4625, %v4827
        %v4880 = vadd.f32 %v4626, %v4832
        %v4881 = vadd.f32 %v4627, %v4837
        %v4882 = vadd.f32 %v4628, %v4842
        %v4883 = vadd.f32 %v4629, %v4847
        %v4884 = vadd.f32 %v4630, %v4852
        %v4885 = vadd.f32 %v4631, %v4857
        %v4886 = vadd.f32 %v4632, %v4862
        %v4887 = vadd.f32 %v4633, %v4867
        %v4888 = vld [vmem:[%s3653 + $0x5] sm:$0xff]
        %v4889 = vld [vmem:[%s3653 + $0xd] sm:$0xff]
        %v4890 = vld [vmem:[%s3653 + $0x15] sm:$0xff]
        %v4891 = vld [vmem:[%s3653 + $0x25] sm:$0xff]
        %v4892 = vld [vmem:[%s3653 + $0x2d] sm:$0xff]
        %v4893 = vld [vmem:[%s3653 + $0x35] sm:$0xff]
        %v4894 = vld [vmem:[%s3653 + $0x45] sm:$0xff]
        %v4895 = vld [vmem:[%s3653 + $0x4d] sm:$0xff]
        %v4896 = vld [vmem:[%s3653 + $0x55] sm:$0xff]
        %v4897 = vld [vmem:[%s3653 + $0x65] sm:$0xff]
        %v4898 = vld [vmem:[%s3653 + $0x6d] sm:$0xff]
        %v4899 = vld [vmem:[%s3653 + $0x75] sm:$0xff]
        %v4900 = vld [vmem:[%s3653 + $0x85] sm:$0xff]
        %v4901 = vld [vmem:[%s3653 + $0x8d] sm:$0xff]
        %v4902 = vld [vmem:[%s3653 + $0x95] sm:$0xff]
        %v4903 = vld [vmem:[%s3653 + $0xa5] sm:$0xff]
        %v4904 = vld [vmem:[%s3653 + $0xad] sm:$0xff]
        %v4905 = vld [vmem:[%s3653 + $0xb5] sm:$0xff]
        %s4906 = scalar_lea.vmem %s7, 320
        %v4907 = vld [vmem:[%s4906] sm:$0xff]
        %v4908 = vld [vmem:[%s4906 + $0x8] sm:$0xff]
        %v4909 = vld [vmem:[%s4906 + $0x10] sm:$0xff]
        %v4910 = vld [vmem:[%s4906 + $0x18] sm:$0xff]
        %v4911 = vld [vmem:[%s4906 + $0x20] sm:$0xff]
        %v4912 = vld [vmem:[%s4906 + $0x28] sm:$0xff]
        %v4913 = vld [vmem:[%s4906 + $0x30] sm:$0xff]
        %v4914 = vld [vmem:[%s4906 + $0x38] sm:$0xff]
        %v4916 = vsel %vm3707, %v4888, 0
        %v4919 = vsel %vm3707, %v4889, 0
        %v4922 = vsel %vm3707, %v4890, 0
        %v4925 = vsel %vm3707, %v4891, 0
        %v4928 = vsel %vm3707, %v4892, 0
        %v4931 = vsel %vm3707, %v4893, 0
        %v4934 = vsel %vm3707, %v4894, 0
        %v4937 = vsel %vm3707, %v4895, 0
        %v4940 = vsel %vm3707, %v4896, 0
        %v4943 = vsel %vm3707, %v4897, 0
        %v4946 = vsel %vm3707, %v4898, 0
        %v4949 = vsel %vm3707, %v4899, 0
        %v4952 = vsel %vm3707, %v4900, 0
        %v4955 = vsel %vm3707, %v4901, 0
        %v4958 = vsel %vm3707, %v4902, 0
        %v4961 = vsel %vm3707, %v4903, 0
        %v4964 = vsel %vm3707, %v4904, 0
        %v4967 = vsel %vm3707, %v4905, 0
        %4969 = vmatprep.subr.mxu0 0.0
        %4970 = vmatpush1.msra.mxu0 0.0
        %4971 = vmatprep.subr.mxu0 0.0
        %4972 = vmatpush1.msra.mxu0 0.0
        %4973 = vmatprep.subr.mxu0 0.0
        %4974 = vmatpush1.msra.mxu0 0.0
        %4975 = vmatprep.subr.mxu0 0.0
        %4976 = vmatpush1.msra.mxu0 0.0
        %4977 = vmatprep.subr.mxu0 0.0
        %4978 = vmatpush1.msra.mxu0 0.0
        %4979 = vmatprep.subr.mxu0 0.0
        %4980 = vmatpush1.msra.mxu0 0.0
        %4981 = vmatprep.subr.mxu0 0.0
        %4982 = vmatpush1.msra.mxu0 0.0
        %4983 = vmatprep.subr.mxu0 0.0
        %4984 = vmatpush1.msra.mxu0 0.0
        %4985 = vmatprep.subr.mxu0 0.0
        %4986 = vmatpush1.msra.mxu0 %v4914
        %4987 = vmatprep.subr.mxu0 0.0
        %4988 = vmatpush1.msra.mxu0 %v4913
        %4989 = vmatprep.subr.mxu0 0.0
        %4990 = vmatpush1.msra.mxu0 %v4912
        %4991 = vmatprep.subr.mxu0 0.0
        %4992 = vmatpush1.msra.mxu0 %v4911
        %4993 = vmatprep.subr.mxu0 0.0
        %4994 = vmatpush1.msra.mxu0 %v4910
        %4995 = vmatprep.subr.mxu0 0.0
        %4996 = vmatpush1.msra.mxu0 %v4909
        %4997 = vmatprep.subr.mxu0 0.0
        %4998 = vmatpush1.msra.mxu0 %v4908
        %4999 = vmatprep.subr.mxu0 0.0
        %5000 = vmatpush1.msra.mxu0 %v4907
        %5001 = vmatprep.subr.mxu0 0.0
        %5002 = vmatpush2.msra.mxu0 0.0
        %5003 = vmatprep.subr.mxu0 0.0
        %5004 = vmatpush2.msra.mxu0 0.0
        %5005 = vmatprep.subr.mxu0 0.0
        %5006 = vmatpush2.msra.mxu0 0.0
        %5007 = vmatprep.subr.mxu0 0.0
        %5008 = vmatpush2.msra.mxu0 0.0
        %5009 = vmatprep.subr.mxu0 0.0
        %5010 = vmatpush2.msra.mxu0 0.0
        %5011 = vmatprep.subr.mxu0 0.0
        %5012 = vmatpush2.msra.mxu0 0.0
        %5013 = vmatprep.subr.mxu0 0.0
        %5014 = vmatpush2.msra.mxu0 0.0
        %5015 = vmatprep.subr.mxu0 0.0
        %5016 = vmatpush2.msra.mxu0 0.0
        %5017 = vmatprep.subr.mxu0 0.0
        %5018 = vmatpush2.msra.mxu0 0.0
        %5019 = vmatprep.subr.mxu0 0.0
        %5020 = vmatpush2.msra.mxu0 0.0
        %5021 = vmatprep.subr.mxu0 0.0
        %5022 = vmatpush2.msra.mxu0 0.0
        %5023 = vmatprep.subr.mxu0 0.0
        %5024 = vmatpush2.msra.mxu0 0.0
        %5025 = vmatprep.subr.mxu0 0.0
        %5026 = vmatpush2.msra.mxu0 0.0
        %5027 = vmatprep.subr.mxu0 0.0
        %5028 = vmatpush2.msra.mxu0 0.0
        %5029 = vmatprep.subr.mxu0 0.0
        %5030 = vmatpush2.msra.mxu0 0.0
        %5031 = vmatprep.subr.mxu0 0.0
        %5032 = vmatpush2.msra.mxu0 0.0
        %5033 = vmatprep.mubr.f32.mxu0 0.0
        %5034 = vmatmul.mubr.f32.gmra.mxu0 %v4916
        %v5035 = vpop.f32.mrf.mxu0
        %v5036 = vadd.f32 0.0, %v5035
        %v5037 = vpop.f32.mrf.mxu0
        %5038 = vmatprep.mubr.f32.mxu0 0.0
        %5039 = vmatmul.mubr.f32.gmra.mxu0 %v4919
        %v5040 = vpop.f32.mrf.mxu0
        %v5041 = vadd.f32 0.0, %v5040
        %v5042 = vpop.f32.mrf.mxu0
        %5043 = vmatprep.mubr.f32.mxu0 0.0
        %5044 = vmatmul.mubr.f32.gmra.mxu0 %v4922
        %v5045 = vpop.f32.mrf.mxu0
        %v5046 = vadd.f32 0.0, %v5045
        %v5047 = vpop.f32.mrf.mxu0
        %5048 = vmatprep.mubr.f32.mxu0 0.0
        %5049 = vmatmul.mubr.f32.gmra.mxu0 %v4925
        %v5050 = vpop.f32.mrf.mxu0
        %v5051 = vadd.f32 0.0, %v5050
        %v5052 = vpop.f32.mrf.mxu0
        %5053 = vmatprep.mubr.f32.mxu0 0.0
        %5054 = vmatmul.mubr.f32.gmra.mxu0 %v4928
        %v5055 = vpop.f32.mrf.mxu0
        %v5056 = vadd.f32 0.0, %v5055
        %v5057 = vpop.f32.mrf.mxu0
        %5058 = vmatprep.mubr.f32.mxu0 0.0
        %5059 = vmatmul.mubr.f32.gmra.mxu0 %v4931
        %v5060 = vpop.f32.mrf.mxu0
        %v5061 = vadd.f32 0.0, %v5060
        %v5062 = vpop.f32.mrf.mxu0
        %5063 = vmatprep.mubr.f32.mxu0 0.0
        %5064 = vmatmul.mubr.f32.gmra.mxu0 %v4934
        %v5065 = vpop.f32.mrf.mxu0
        %v5066 = vadd.f32 0.0, %v5065
        %v5067 = vpop.f32.mrf.mxu0
        %5068 = vmatprep.mubr.f32.mxu0 0.0
        %5069 = vmatmul.mubr.f32.gmra.mxu0 %v4937
        %v5070 = vpop.f32.mrf.mxu0
        %v5071 = vadd.f32 0.0, %v5070
        %v5072 = vpop.f32.mrf.mxu0
        %5073 = vmatprep.mubr.f32.mxu0 0.0
        %5074 = vmatmul.mubr.f32.gmra.mxu0 %v4940
        %v5075 = vpop.f32.mrf.mxu0
        %v5076 = vadd.f32 0.0, %v5075
        %v5077 = vpop.f32.mrf.mxu0
        %5078 = vmatprep.mubr.f32.mxu0 0.0
        %5079 = vmatmul.mubr.f32.gmra.mxu0 %v4943
        %v5080 = vpop.f32.mrf.mxu0
        %v5081 = vadd.f32 0.0, %v5080
        %v5082 = vpop.f32.mrf.mxu0
        %5083 = vmatprep.mubr.f32.mxu0 0.0
        %5084 = vmatmul.mubr.f32.gmra.mxu0 %v4946
        %v5085 = vpop.f32.mrf.mxu0
        %v5086 = vadd.f32 0.0, %v5085
        %v5087 = vpop.f32.mrf.mxu0
        %5088 = vmatprep.mubr.f32.mxu0 0.0
        %5089 = vmatmul.mubr.f32.gmra.mxu0 %v4949
        %v5090 = vpop.f32.mrf.mxu0
        %v5091 = vadd.f32 0.0, %v5090
        %v5092 = vpop.f32.mrf.mxu0
        %5093 = vmatprep.mubr.f32.mxu0 0.0
        %5094 = vmatmul.mubr.f32.gmra.mxu0 %v4952
        %v5095 = vpop.f32.mrf.mxu0
        %v5096 = vadd.f32 0.0, %v5095
        %v5097 = vpop.f32.mrf.mxu0
        %5098 = vmatprep.mubr.f32.mxu0 0.0
        %5099 = vmatmul.mubr.f32.gmra.mxu0 %v4955
        %v5100 = vpop.f32.mrf.mxu0
        %v5101 = vadd.f32 0.0, %v5100
        %v5102 = vpop.f32.mrf.mxu0
        %5103 = vmatprep.mubr.f32.mxu0 0.0
        %5104 = vmatmul.mubr.f32.gmra.mxu0 %v4958
        %v5105 = vpop.f32.mrf.mxu0
        %v5106 = vadd.f32 0.0, %v5105
        %v5107 = vpop.f32.mrf.mxu0
        %5108 = vmatprep.mubr.f32.mxu0 0.0
        %5109 = vmatmul.mubr.f32.gmra.mxu0 %v4961
        %v5110 = vpop.f32.mrf.mxu0
        %v5111 = vadd.f32 0.0, %v5110
        %v5112 = vpop.f32.mrf.mxu0
        %5113 = vmatprep.mubr.f32.mxu0 0.0
        %5114 = vmatmul.mubr.f32.gmra.mxu0 %v4964
        %v5115 = vpop.f32.mrf.mxu0
        %v5116 = vadd.f32 0.0, %v5115
        %v5117 = vpop.f32.mrf.mxu0
        %5118 = vmatprep.mubr.f32.mxu0 0.0
        %5119 = vmatmul.mubr.f32.gmra.mxu0 %v4967
        %v5120 = vpop.f32.mrf.mxu0
        %v5121 = vadd.f32 0.0, %v5120
        %v5122 = vpop.f32.mrf.mxu0
        %5123 = vdwg.mxu0
        %v5124 = vadd.f32 %v4870, %v5036
        %v5125 = vadd.f32 %v4871, %v5041
        %v5126 = vadd.f32 %v4872, %v5046
        %v5127 = vadd.f32 %v4873, %v5051
        %v5128 = vadd.f32 %v4874, %v5056
        %v5129 = vadd.f32 %v4875, %v5061
        %v5130 = vadd.f32 %v4876, %v5066
        %v5131 = vadd.f32 %v4877, %v5071
        %v5132 = vadd.f32 %v4878, %v5076
        %v5133 = vadd.f32 %v4879, %v5081
        %v5134 = vadd.f32 %v4880, %v5086
        %v5135 = vadd.f32 %v4881, %v5091
        %v5136 = vadd.f32 %v4882, %v5096
        %v5137 = vadd.f32 %v4883, %v5101
        %v5138 = vadd.f32 %v4884, %v5106
        %v5139 = vadd.f32 %v4885, %v5111
        %v5140 = vadd.f32 %v4886, %v5116
        %v5141 = vadd.f32 %v4887, %v5121
        %v5142 = vld [vmem:[%s3653 + $0x6] sm:$0xff]
        %v5143 = vld [vmem:[%s3653 + $0xe] sm:$0xff]
        %v5144 = vld [vmem:[%s3653 + $0x16] sm:$0xff]
        %v5145 = vld [vmem:[%s3653 + $0x26] sm:$0xff]
        %v5146 = vld [vmem:[%s3653 + $0x2e] sm:$0xff]
        %v5147 = vld [vmem:[%s3653 + $0x36] sm:$0xff]
        %v5148 = vld [vmem:[%s3653 + $0x46] sm:$0xff]
        %v5149 = vld [vmem:[%s3653 + $0x4e] sm:$0xff]
        %v5150 = vld [vmem:[%s3653 + $0x56] sm:$0xff]
        %v5151 = vld [vmem:[%s3653 + $0x66] sm:$0xff]
        %v5152 = vld [vmem:[%s3653 + $0x6e] sm:$0xff]
        %v5153 = vld [vmem:[%s3653 + $0x76] sm:$0xff]
        %v5154 = vld [vmem:[%s3653 + $0x86] sm:$0xff]
        %v5155 = vld [vmem:[%s3653 + $0x8e] sm:$0xff]
        %v5156 = vld [vmem:[%s3653 + $0x96] sm:$0xff]
        %v5157 = vld [vmem:[%s3653 + $0xa6] sm:$0xff]
        %v5158 = vld [vmem:[%s3653 + $0xae] sm:$0xff]
        %v5159 = vld [vmem:[%s3653 + $0xb6] sm:$0xff]
        %s5160 = scalar_lea.vmem %s7, 384
        %v5161 = vld [vmem:[%s5160] sm:$0xff]
        %v5162 = vld [vmem:[%s5160 + $0x8] sm:$0xff]
        %v5163 = vld [vmem:[%s5160 + $0x10] sm:$0xff]
        %v5164 = vld [vmem:[%s5160 + $0x18] sm:$0xff]
        %v5165 = vld [vmem:[%s5160 + $0x20] sm:$0xff]
        %v5166 = vld [vmem:[%s5160 + $0x28] sm:$0xff]
        %v5167 = vld [vmem:[%s5160 + $0x30] sm:$0xff]
        %v5168 = vld [vmem:[%s5160 + $0x38] sm:$0xff]
        %v5170 = vsel %vm3707, %v5142, 0
        %v5173 = vsel %vm3707, %v5143, 0
        %v5176 = vsel %vm3707, %v5144, 0
        %v5179 = vsel %vm3707, %v5145, 0
        %v5182 = vsel %vm3707, %v5146, 0
        %v5185 = vsel %vm3707, %v5147, 0
        %v5188 = vsel %vm3707, %v5148, 0
        %v5191 = vsel %vm3707, %v5149, 0
        %v5194 = vsel %vm3707, %v5150, 0
        %v5197 = vsel %vm3707, %v5151, 0
        %v5200 = vsel %vm3707, %v5152, 0
        %v5203 = vsel %vm3707, %v5153, 0
        %v5206 = vsel %vm3707, %v5154, 0
        %v5209 = vsel %vm3707, %v5155, 0
        %v5212 = vsel %vm3707, %v5156, 0
        %v5215 = vsel %vm3707, %v5157, 0
        %v5218 = vsel %vm3707, %v5158, 0
        %v5221 = vsel %vm3707, %v5159, 0
        %5223 = vmatprep.subr.mxu0 0.0
        %5224 = vmatpush1.msra.mxu0 0.0
        %5225 = vmatprep.subr.mxu0 0.0
        %5226 = vmatpush1.msra.mxu0 0.0
        %5227 = vmatprep.subr.mxu0 0.0
        %5228 = vmatpush1.msra.mxu0 0.0
        %5229 = vmatprep.subr.mxu0 0.0
        %5230 = vmatpush1.msra.mxu0 0.0
        %5231 = vmatprep.subr.mxu0 0.0
        %5232 = vmatpush1.msra.mxu0 0.0
        %5233 = vmatprep.subr.mxu0 0.0
        %5234 = vmatpush1.msra.mxu0 0.0
        %5235 = vmatprep.subr.mxu0 0.0
        %5236 = vmatpush1.msra.mxu0 0.0
        %5237 = vmatprep.subr.mxu0 0.0
        %5238 = vmatpush1.msra.mxu0 0.0
        %5239 = vmatprep.subr.mxu0 0.0
        %5240 = vmatpush1.msra.mxu0 %v5168
        %5241 = vmatprep.subr.mxu0 0.0
        %5242 = vmatpush1.msra.mxu0 %v5167
        %5243 = vmatprep.subr.mxu0 0.0
        %5244 = vmatpush1.msra.mxu0 %v5166
        %5245 = vmatprep.subr.mxu0 0.0
        %5246 = vmatpush1.msra.mxu0 %v5165
        %5247 = vmatprep.subr.mxu0 0.0
        %5248 = vmatpush1.msra.mxu0 %v5164
        %5249 = vmatprep.subr.mxu0 0.0
        %5250 = vmatpush1.msra.mxu0 %v5163
        %5251 = vmatprep.subr.mxu0 0.0
        %5252 = vmatpush1.msra.mxu0 %v5162
        %5253 = vmatprep.subr.mxu0 0.0
        %5254 = vmatpush1.msra.mxu0 %v5161
        %5255 = vmatprep.subr.mxu0 0.0
        %5256 = vmatpush2.msra.mxu0 0.0
        %5257 = vmatprep.subr.mxu0 0.0
        %5258 = vmatpush2.msra.mxu0 0.0
        %5259 = vmatprep.subr.mxu0 0.0
        %5260 = vmatpush2.msra.mxu0 0.0
        %5261 = vmatprep.subr.mxu0 0.0
        %5262 = vmatpush2.msra.mxu0 0.0
        %5263 = vmatprep.subr.mxu0 0.0
        %5264 = vmatpush2.msra.mxu0 0.0
        %5265 = vmatprep.subr.mxu0 0.0
        %5266 = vmatpush2.msra.mxu0 0.0
        %5267 = vmatprep.subr.mxu0 0.0
        %5268 = vmatpush2.msra.mxu0 0.0
        %5269 = vmatprep.subr.mxu0 0.0
        %5270 = vmatpush2.msra.mxu0 0.0
        %5271 = vmatprep.subr.mxu0 0.0
        %5272 = vmatpush2.msra.mxu0 0.0
        %5273 = vmatprep.subr.mxu0 0.0
        %5274 = vmatpush2.msra.mxu0 0.0
        %5275 = vmatprep.subr.mxu0 0.0
        %5276 = vmatpush2.msra.mxu0 0.0
        %5277 = vmatprep.subr.mxu0 0.0
        %5278 = vmatpush2.msra.mxu0 0.0
        %5279 = vmatprep.subr.mxu0 0.0
        %5280 = vmatpush2.msra.mxu0 0.0
        %5281 = vmatprep.subr.mxu0 0.0
        %5282 = vmatpush2.msra.mxu0 0.0
        %5283 = vmatprep.subr.mxu0 0.0
        %5284 = vmatpush2.msra.mxu0 0.0
        %5285 = vmatprep.subr.mxu0 0.0
        %5286 = vmatpush2.msra.mxu0 0.0
        %5287 = vmatprep.mubr.f32.mxu0 0.0
        %5288 = vmatmul.mubr.f32.gmra.mxu0 %v5170
        %v5289 = vpop.f32.mrf.mxu0
        %v5290 = vadd.f32 0.0, %v5289
        %v5291 = vpop.f32.mrf.mxu0
        %5292 = vmatprep.mubr.f32.mxu0 0.0
        %5293 = vmatmul.mubr.f32.gmra.mxu0 %v5173
        %v5294 = vpop.f32.mrf.mxu0
        %v5295 = vadd.f32 0.0, %v5294
        %v5296 = vpop.f32.mrf.mxu0
        %5297 = vmatprep.mubr.f32.mxu0 0.0
        %5298 = vmatmul.mubr.f32.gmra.mxu0 %v5176
        %v5299 = vpop.f32.mrf.mxu0
        %v5300 = vadd.f32 0.0, %v5299
        %v5301 = vpop.f32.mrf.mxu0
        %5302 = vmatprep.mubr.f32.mxu0 0.0
        %5303 = vmatmul.mubr.f32.gmra.mxu0 %v5179
        %v5304 = vpop.f32.mrf.mxu0
        %v5305 = vadd.f32 0.0, %v5304
        %v5306 = vpop.f32.mrf.mxu0
        %5307 = vmatprep.mubr.f32.mxu0 0.0
        %5308 = vmatmul.mubr.f32.gmra.mxu0 %v5182
        %v5309 = vpop.f32.mrf.mxu0
        %v5310 = vadd.f32 0.0, %v5309
        %v5311 = vpop.f32.mrf.mxu0
        %5312 = vmatprep.mubr.f32.mxu0 0.0
        %5313 = vmatmul.mubr.f32.gmra.mxu0 %v5185
        %v5314 = vpop.f32.mrf.mxu0
        %v5315 = vadd.f32 0.0, %v5314
        %v5316 = vpop.f32.mrf.mxu0
        %5317 = vmatprep.mubr.f32.mxu0 0.0
        %5318 = vmatmul.mubr.f32.gmra.mxu0 %v5188
        %v5319 = vpop.f32.mrf.mxu0
        %v5320 = vadd.f32 0.0, %v5319
        %v5321 = vpop.f32.mrf.mxu0
        %5322 = vmatprep.mubr.f32.mxu0 0.0
        %5323 = vmatmul.mubr.f32.gmra.mxu0 %v5191
        %v5324 = vpop.f32.mrf.mxu0
        %v5325 = vadd.f32 0.0, %v5324
        %v5326 = vpop.f32.mrf.mxu0
        %5327 = vmatprep.mubr.f32.mxu0 0.0
        %5328 = vmatmul.mubr.f32.gmra.mxu0 %v5194
        %v5329 = vpop.f32.mrf.mxu0
        %v5330 = vadd.f32 0.0, %v5329
        %v5331 = vpop.f32.mrf.mxu0
        %5332 = vmatprep.mubr.f32.mxu0 0.0
        %5333 = vmatmul.mubr.f32.gmra.mxu0 %v5197
        %v5334 = vpop.f32.mrf.mxu0
        %v5335 = vadd.f32 0.0, %v5334
        %v5336 = vpop.f32.mrf.mxu0
        %5337 = vmatprep.mubr.f32.mxu0 0.0
        %5338 = vmatmul.mubr.f32.gmra.mxu0 %v5200
        %v5339 = vpop.f32.mrf.mxu0
        %v5340 = vadd.f32 0.0, %v5339
        %v5341 = vpop.f32.mrf.mxu0
        %5342 = vmatprep.mubr.f32.mxu0 0.0
        %5343 = vmatmul.mubr.f32.gmra.mxu0 %v5203
        %v5344 = vpop.f32.mrf.mxu0
        %v5345 = vadd.f32 0.0, %v5344
        %v5346 = vpop.f32.mrf.mxu0
        %5347 = vmatprep.mubr.f32.mxu0 0.0
        %5348 = vmatmul.mubr.f32.gmra.mxu0 %v5206
        %v5349 = vpop.f32.mrf.mxu0
        %v5350 = vadd.f32 0.0, %v5349
        %v5351 = vpop.f32.mrf.mxu0
        %5352 = vmatprep.mubr.f32.mxu0 0.0
        %5353 = vmatmul.mubr.f32.gmra.mxu0 %v5209
        %v5354 = vpop.f32.mrf.mxu0
        %v5355 = vadd.f32 0.0, %v5354
        %v5356 = vpop.f32.mrf.mxu0
        %5357 = vmatprep.mubr.f32.mxu0 0.0
        %5358 = vmatmul.mubr.f32.gmra.mxu0 %v5212
        %v5359 = vpop.f32.mrf.mxu0
        %v5360 = vadd.f32 0.0, %v5359
        %v5361 = vpop.f32.mrf.mxu0
        %5362 = vmatprep.mubr.f32.mxu0 0.0
        %5363 = vmatmul.mubr.f32.gmra.mxu0 %v5215
        %v5364 = vpop.f32.mrf.mxu0
        %v5365 = vadd.f32 0.0, %v5364
        %v5366 = vpop.f32.mrf.mxu0
        %5367 = vmatprep.mubr.f32.mxu0 0.0
        %5368 = vmatmul.mubr.f32.gmra.mxu0 %v5218
        %v5369 = vpop.f32.mrf.mxu0
        %v5370 = vadd.f32 0.0, %v5369
        %v5371 = vpop.f32.mrf.mxu0
        %5372 = vmatprep.mubr.f32.mxu0 0.0
        %5373 = vmatmul.mubr.f32.gmra.mxu0 %v5221
        %v5374 = vpop.f32.mrf.mxu0
        %v5375 = vadd.f32 0.0, %v5374
        %v5376 = vpop.f32.mrf.mxu0
        %5377 = vdwg.mxu0
        %v5378 = vadd.f32 %v5124, %v5290
        %v5379 = vadd.f32 %v5125, %v5295
        %v5380 = vadd.f32 %v5126, %v5300
        %v5381 = vadd.f32 %v5127, %v5305
        %v5382 = vadd.f32 %v5128, %v5310
        %v5383 = vadd.f32 %v5129, %v5315
        %v5384 = vadd.f32 %v5130, %v5320
        %v5385 = vadd.f32 %v5131, %v5325
        %v5386 = vadd.f32 %v5132, %v5330
        %v5387 = vadd.f32 %v5133, %v5335
        %v5388 = vadd.f32 %v5134, %v5340
        %v5389 = vadd.f32 %v5135, %v5345
        %v5390 = vadd.f32 %v5136, %v5350
        %v5391 = vadd.f32 %v5137, %v5355
        %v5392 = vadd.f32 %v5138, %v5360
        %v5393 = vadd.f32 %v5139, %v5365
        %v5394 = vadd.f32 %v5140, %v5370
        %v5395 = vadd.f32 %v5141, %v5375
        %v5396 = vld [vmem:[%s8] sm:$0x1]
        %v5398 = vlaneseq
        %v5399 = vshrl.u32 %v5398, 7
        %v5400 = vsub.s32 0, %v5399
        %v5401 = vrot.slane %v5396, %v5400
        %v5403 = vadd.f32 %v5378, %v5401
        %v5404 = vadd.f32 %v5379, %v5401
        %v5405 = vadd.f32 %v5380, %v5401
        %v5406 = vadd.f32 %v5381, %v5401
        %v5407 = vadd.f32 %v5382, %v5401
        %v5408 = vadd.f32 %v5383, %v5401
        %v5409 = vadd.f32 %v5384, %v5401
        %v5410 = vadd.f32 %v5385, %v5401
        %v5411 = vadd.f32 %v5386, %v5401
        %v5412 = vadd.f32 %v5387, %v5401
        %v5413 = vadd.f32 %v5388, %v5401
        %v5414 = vadd.f32 %v5389, %v5401
        %v5415 = vadd.f32 %v5390, %v5401
        %v5416 = vadd.f32 %v5391, %v5401
        %v5417 = vadd.f32 %v5392, %v5401
        %v5418 = vadd.f32 %v5393, %v5401
        %v5419 = vadd.f32 %v5394, %v5401
        %v5420 = vadd.f32 %v5395, %v5401
        %v5421 = vmax.f32 %v5403, 0.0
        %v5422 = vmax.f32 %v5404, 0.0
        %v5423 = vmax.f32 %v5405, 0.0
        %v5424 = vmax.f32 %v5406, 0.0
        %v5425 = vmax.f32 %v5407, 0.0
        %v5426 = vmax.f32 %v5408, 0.0
        %v5427 = vmax.f32 %v5409, 0.0
        %v5428 = vmax.f32 %v5410, 0.0
        %v5429 = vmax.f32 %v5411, 0.0
        %v5430 = vmax.f32 %v5412, 0.0
        %v5431 = vmax.f32 %v5413, 0.0
        %v5432 = vmax.f32 %v5414, 0.0
        %v5433 = vmax.f32 %v5415, 0.0
        %v5434 = vmax.f32 %v5416, 0.0
        %v5435 = vmax.f32 %v5417, 0.0
        %v5436 = vmax.f32 %v5418, 0.0
        %v5437 = vmax.f32 %v5419, 0.0
        %v5438 = vmax.f32 %v5420, 0.0
        %s5439 = scalar_lea.vmem [#allocation3], %s3652
        %5440 = vst.msk [vmem:[%s5439] sm:$0xff] %vm3707, %v5421
        %5441 = vst.msk [vmem:[%s5439 + $0x8] sm:$0xff] %vm3707, %v5422
        %5442 = vst.msk [vmem:[%s5439 + $0x10] sm:$0xff] %vm3707, %v5423
        %5443 = vst.msk [vmem:[%s5439 + $0x20] sm:$0xff] %vm3707, %v5424
        %5444 = vst.msk [vmem:[%s5439 + $0x28] sm:$0xff] %vm3707, %v5425
        %5445 = vst.msk [vmem:[%s5439 + $0x30] sm:$0xff] %vm3707, %v5426
        %5446 = vst.msk [vmem:[%s5439 + $0x40] sm:$0xff] %vm3707, %v5427
        %5447 = vst.msk [vmem:[%s5439 + $0x48] sm:$0xff] %vm3707, %v5428
        %5448 = vst.msk [vmem:[%s5439 + $0x50] sm:$0xff] %vm3707, %v5429
        %5449 = vst.msk [vmem:[%s5439 + $0x60] sm:$0xff] %vm3707, %v5430
        %5450 = vst.msk [vmem:[%s5439 + $0x68] sm:$0xff] %vm3707, %v5431
        %5451 = vst.msk [vmem:[%s5439 + $0x70] sm:$0xff] %vm3707, %v5432
        %5452 = vst.msk [vmem:[%s5439 + $0x80] sm:$0xff] %vm3707, %v5433
        %5453 = vst.msk [vmem:[%s5439 + $0x88] sm:$0xff] %vm3707, %v5434
        %5454 = vst.msk [vmem:[%s5439 + $0x90] sm:$0xff] %vm3707, %v5435
        %5455 = vst.msk [vmem:[%s5439 + $0xa0] sm:$0xff] %vm3707, %v5436
        %5456 = vst.msk [vmem:[%s5439 + $0xa8] sm:$0xff] %vm3707, %v5437
        %5457 = vst.msk [vmem:[%s5439 + $0xb0] sm:$0xff] %vm3707, %v5438
      $region102: #{mixed_4a.1} parent=75 // loop_footer
        %s3650 = sadd.s32 1, %s3646
      $region103: #{mixed_4a.1} parent=75 // loop_footer_branch
        %3645 = sbr.rel target = $region99
      $region104: #{mixed_4a.1} parent=75 // loop_exit
        _
      %vm5458 = vcmask 523264
      %5459 = vst.msk [vmem:[#allocation3] sm:$0xff] %vm5458, 0.0
      %5460 = vst.msk [vmem:[#allocation3 + $0x8] sm:$0xff] %vm5458, 0.0
      %5461 = vst.msk [vmem:[#allocation3 + $0x10] sm:$0xff] %vm5458, 0.0
      %5462 = vst.msk [vmem:[#allocation3 + $0x18] sm:$0xff] %vm5458, 0.0
      %5463 = vst.msk [vmem:[#allocation3 + $0x20] sm:$0xff] %vm5458, 0.0
      %5464 = vst.msk [vmem:[#allocation3 + $0x28] sm:$0xff] %vm5458, 0.0
      %5465 = vst.msk [vmem:[#allocation3 + $0x30] sm:$0xff] %vm5458, 0.0
      %5466 = vst.msk [vmem:[#allocation3 + $0x38] sm:$0xff] %vm5458, 0.0
      %5467 = vst.msk [vmem:[#allocation3 + $0x40] sm:$0xff] %vm5458, 0.0
      %5468 = vst.msk [vmem:[#allocation3 + $0x48] sm:$0xff] %vm5458, 0.0
      %5469 = vst.msk [vmem:[#allocation3 + $0x50] sm:$0xff] %vm5458, 0.0
      %5470 = vst.msk [vmem:[#allocation3 + $0x58] sm:$0xff] %vm5458, 0.0
      %s5471 = scalar_lea.vmem [#allocation3], 448
      %5472 = vst.msk [vmem:[%s5471] sm:$0xff] %vm5458, 0.0
      %5473 = vst.msk [vmem:[%s5471 + $0x8] sm:$0xff] %vm5458, 0.0
      %5474 = vst.msk [vmem:[%s5471 + $0x10] sm:$0xff] %vm5458, 0.0
      %5475 = vst.msk [vmem:[%s5471 + $0x18] sm:$0xff] %vm5458, 0.0
      %5476 = vst.msk [vmem:[%s5471 + $0x20] sm:$0xff] %vm5458, 0.0
      %5477 = vst.msk [vmem:[%s5471 + $0x28] sm:$0xff] %vm5458, 0.0
      %5478 = vst.msk [vmem:[%s5471 + $0x30] sm:$0xff] %vm5458, 0.0
      %5479 = vst.msk [vmem:[%s5471 + $0x38] sm:$0xff] %vm5458, 0.0
      %5480 = vst.msk [vmem:[%s5471 + $0x40] sm:$0xff] %vm5458, 0.0
      %5481 = vst.msk [vmem:[%s5471 + $0x48] sm:$0xff] %vm5458, 0.0
      %5482 = vst.msk [vmem:[%s5471 + $0x50] sm:$0xff] %vm5458, 0.0
      %5483 = vst.msk [vmem:[%s5471 + $0x58] sm:$0xff] %vm5458, 0.0
      loop: start=0, step=1, limit=3
      $region105: #{mixed_4a.1} parent=75 // loop_pre_header
        _
      $region106: #{mixed_4a.1} parent=75 // loop_header
        %s5485 = sphi 0, %s5489
        %p5486 = scmp.ge.s32.totalorder %s5485, 3
      $region107: #{mixed_4a.1} parent=75 // loop_header_branch
        %5488 = sbr.rel (%p5486) target = $region111
      $region108: #{mixed_4a.1} parent=75 // loop_body
        %s5490 = smul.u32 %s5485, 6
        %s5491 = smul.u32 %s5490, 32
        %s5492 = scalar_lea.vmem [#allocation3], %s5491
        %v5493 = vld [vmem:[%s5492] sm:$0xff]
        %v5494 = vld [vmem:[%s5492 + $0x8] sm:$0xff]
        %v5495 = vld [vmem:[%s5492 + $0x10] sm:$0xff]
        %v5496 = vld [vmem:[%s5492 + $0x20] sm:$0xff]
        %v5497 = vld [vmem:[%s5492 + $0x28] sm:$0xff]
        %v5498 = vld [vmem:[%s5492 + $0x30] sm:$0xff]
        %v5499 = vld [vmem:[%s5492 + $0x40] sm:$0xff]
        %v5500 = vld [vmem:[%s5492 + $0x48] sm:$0xff]
        %v5501 = vld [vmem:[%s5492 + $0x50] sm:$0xff]
        %v5502 = vld [vmem:[%s5492 + $0x60] sm:$0xff]
        %v5503 = vld [vmem:[%s5492 + $0x68] sm:$0xff]
        %v5504 = vld [vmem:[%s5492 + $0x70] sm:$0xff]
        %v5505 = vld [vmem:[%s5492 + $0x80] sm:$0xff]
        %v5506 = vld [vmem:[%s5492 + $0x88] sm:$0xff]
        %v5507 = vld [vmem:[%s5492 + $0x90] sm:$0xff]
        %v5508 = vld [vmem:[%s5492 + $0xa0] sm:$0xff]
        %v5509 = vld [vmem:[%s5492 + $0xa8] sm:$0xff]
        %v5510 = vld [vmem:[%s5492 + $0xb0] sm:$0xff]
        %v5511 = vld [vmem:[%s9] sm:$0xff]
        %v5512 = vld [vmem:[%s9 + $0x8] sm:$0xff]
        %v5513 = vld [vmem:[%s9 + $0x10] sm:$0xff]
        %v5514 = vld [vmem:[%s9 + $0x18] sm:$0xff]
        %v5515 = vld [vmem:[%s9 + $0x20] sm:$0xff]
        %v5516 = vld [vmem:[%s9 + $0x28] sm:$0xff]
        %v5517 = vld [vmem:[%s9 + $0x30] sm:$0xff]
        %v5518 = vld [vmem:[%s9 + $0x38] sm:$0xff]
        %s5519 = sadd.s32 %s5490, 1
        %s5520 = smul.u32 %s5519, 32
        %s5521 = scalar_lea.vmem [#allocation3], %s5520
        %v5522 = vld [vmem:[%s5521] sm:$0xff]
        %v5523 = vld [vmem:[%s5521 + $0x8] sm:$0xff]
        %v5524 = vld [vmem:[%s5521 + $0x10] sm:$0xff]
        %v5525 = vld [vmem:[%s5521 + $0x20] sm:$0xff]
        %v5526 = vld [vmem:[%s5521 + $0x28] sm:$0xff]
        %v5527 = vld [vmem:[%s5521 + $0x30] sm:$0xff]
        %v5528 = vld [vmem:[%s5521 + $0x40] sm:$0xff]
        %v5529 = vld [vmem:[%s5521 + $0x48] sm:$0xff]
        %v5530 = vld [vmem:[%s5521 + $0x50] sm:$0xff]
        %v5531 = vld [vmem:[%s5521 + $0x60] sm:$0xff]
        %v5532 = vld [vmem:[%s5521 + $0x68] sm:$0xff]
        %v5533 = vld [vmem:[%s5521 + $0x70] sm:$0xff]
        %v5534 = vld [vmem:[%s5521 + $0x80] sm:$0xff]
        %v5535 = vld [vmem:[%s5521 + $0x88] sm:$0xff]
        %v5536 = vld [vmem:[%s5521 + $0x90] sm:$0xff]
        %v5537 = vld [vmem:[%s5521 + $0xa0] sm:$0xff]
        %v5538 = vld [vmem:[%s5521 + $0xa8] sm:$0xff]
        %v5539 = vld [vmem:[%s5521 + $0xb0] sm:$0xff]
        %s5540 = scalar_lea.vmem %s9, 64
        %v5541 = vld [vmem:[%s5540] sm:$0xff]
        %v5542 = vld [vmem:[%s5540 + $0x8] sm:$0xff]
        %v5543 = vld [vmem:[%s5540 + $0x10] sm:$0xff]
        %v5544 = vld [vmem:[%s5540 + $0x18] sm:$0xff]
        %v5545 = vld [vmem:[%s5540 + $0x20] sm:$0xff]
        %v5546 = vld [vmem:[%s5540 + $0x28] sm:$0xff]
        %v5547 = vld [vmem:[%s5540 + $0x30] sm:$0xff]
        %v5548 = vld [vmem:[%s5540 + $0x38] sm:$0xff]
        %v5550 = vsel %vm5458, %v5522, 0
        %v5553 = vsel %vm5458, %v5523, 0
        %v5556 = vsel %vm5458, %v5524, 0
        %v5559 = vsel %vm5458, %v5525, 0
        %v5562 = vsel %vm5458, %v5526, 0
        %v5565 = vsel %vm5458, %v5527, 0
        %v5568 = vsel %vm5458, %v5528, 0
        %v5571 = vsel %vm5458, %v5529, 0
        %v5574 = vsel %vm5458, %v5530, 0
        %v5577 = vsel %vm5458, %v5531, 0
        %v5580 = vsel %vm5458, %v5532, 0
        %v5583 = vsel %vm5458, %v5533, 0
        %v5586 = vsel %vm5458, %v5534, 0
        %v5589 = vsel %vm5458, %v5535, 0
        %v5592 = vsel %vm5458, %v5536, 0
        %v5595 = vsel %vm5458, %v5537, 0
        %v5598 = vsel %vm5458, %v5538, 0
        %v5601 = vsel %vm5458, %v5539, 0
        %5603 = vmatprep.subr.mxu0 0.0
        %5604 = vmatpush1.msra.mxu0 0.0
        %5605 = vmatprep.subr.mxu0 0.0
        %5606 = vmatpush1.msra.mxu0 0.0
        %5607 = vmatprep.subr.mxu0 0.0
        %5608 = vmatpush1.msra.mxu0 0.0
        %5609 = vmatprep.subr.mxu0 0.0
        %5610 = vmatpush1.msra.mxu0 0.0
        %5611 = vmatprep.subr.mxu0 0.0
        %5612 = vmatpush1.msra.mxu0 0.0
        %5613 = vmatprep.subr.mxu0 0.0
        %5614 = vmatpush1.msra.mxu0 0.0
        %5615 = vmatprep.subr.mxu0 0.0
        %5616 = vmatpush1.msra.mxu0 0.0
        %5617 = vmatprep.subr.mxu0 0.0
        %5618 = vmatpush1.msra.mxu0 0.0
        %5619 = vmatprep.subr.mxu0 0.0
        %5620 = vmatpush1.msra.mxu0 %v5548
        %5621 = vmatprep.subr.mxu0 0.0
        %5622 = vmatpush1.msra.mxu0 %v5547
        %5623 = vmatprep.subr.mxu0 0.0
        %5624 = vmatpush1.msra.mxu0 %v5546
        %5625 = vmatprep.subr.mxu0 0.0
        %5626 = vmatpush1.msra.mxu0 %v5545
        %5627 = vmatprep.subr.mxu0 0.0
        %5628 = vmatpush1.msra.mxu0 %v5544
        %5629 = vmatprep.subr.mxu0 0.0
        %5630 = vmatpush1.msra.mxu0 %v5543
        %5631 = vmatprep.subr.mxu0 0.0
        %5632 = vmatpush1.msra.mxu0 %v5542
        %5633 = vmatprep.subr.mxu0 0.0
        %5634 = vmatpush1.msra.mxu0 %v5541
        %5635 = vmatprep.subr.mxu0 0.0
        %5636 = vmatpush2.msra.mxu0 0.0
        %5637 = vmatprep.subr.mxu0 0.0
        %5638 = vmatpush2.msra.mxu0 0.0
        %5639 = vmatprep.subr.mxu0 0.0
        %5640 = vmatpush2.msra.mxu0 0.0
        %5641 = vmatprep.subr.mxu0 0.0
        %5642 = vmatpush2.msra.mxu0 0.0
        %5643 = vmatprep.subr.mxu0 0.0
        %5644 = vmatpush2.msra.mxu0 0.0
        %5645 = vmatprep.subr.mxu0 0.0
        %5646 = vmatpush2.msra.mxu0 0.0
        %5647 = vmatprep.subr.mxu0 0.0
        %5648 = vmatpush2.msra.mxu0 0.0
        %5649 = vmatprep.subr.mxu0 0.0
        %5650 = vmatpush2.msra.mxu0 0.0
        %5651 = vmatprep.subr.mxu0 0.0
        %5652 = vmatpush2.msra.mxu0 0.0
        %5653 = vmatprep.subr.mxu0 0.0
        %5654 = vmatpush2.msra.mxu0 0.0
        %5655 = vmatprep.subr.mxu0 0.0
        %5656 = vmatpush2.msra.mxu0 0.0
        %5657 = vmatprep.subr.mxu0 0.0
        %5658 = vmatpush2.msra.mxu0 0.0
        %5659 = vmatprep.subr.mxu0 0.0
        %5660 = vmatpush2.msra.mxu0 0.0
        %5661 = vmatprep.subr.mxu0 0.0
        %5662 = vmatpush2.msra.mxu0 0.0
        %5663 = vmatprep.subr.mxu0 0.0
        %5664 = vmatpush2.msra.mxu0 0.0
        %5665 = vmatprep.subr.mxu0 0.0
        %5666 = vmatpush2.msra.mxu0 0.0
        %5667 = vmatprep.mubr.f32.mxu0 0.0
        %5668 = vmatmul.mubr.f32.gmra.mxu0 %v5550
        %v5669 = vpop.f32.mrf.mxu0
        %v5670 = vadd.f32 0.0, %v5669
        %v5671 = vpop.f32.mrf.mxu0
        %5672 = vmatprep.mubr.f32.mxu0 0.0
        %5673 = vmatmul.mubr.f32.gmra.mxu0 %v5553
        %v5674 = vpop.f32.mrf.mxu0
        %v5675 = vadd.f32 0.0, %v5674
        %v5676 = vpop.f32.mrf.mxu0
        %5677 = vmatprep.mubr.f32.mxu0 0.0
        %5678 = vmatmul.mubr.f32.gmra.mxu0 %v5556
        %v5679 = vpop.f32.mrf.mxu0
        %v5680 = vadd.f32 0.0, %v5679
        %v5681 = vpop.f32.mrf.mxu0
        %5682 = vmatprep.mubr.f32.mxu0 0.0
        %5683 = vmatmul.mubr.f32.gmra.mxu0 %v5559
        %v5684 = vpop.f32.mrf.mxu0
        %v5685 = vadd.f32 0.0, %v5684
        %v5686 = vpop.f32.mrf.mxu0
        %5687 = vmatprep.mubr.f32.mxu0 0.0
        %5688 = vmatmul.mubr.f32.gmra.mxu0 %v5562
        %v5689 = vpop.f32.mrf.mxu0
        %v5690 = vadd.f32 0.0, %v5689
        %v5691 = vpop.f32.mrf.mxu0
        %5692 = vmatprep.mubr.f32.mxu0 0.0
        %5693 = vmatmul.mubr.f32.gmra.mxu0 %v5565
        %v5694 = vpop.f32.mrf.mxu0
        %v5695 = vadd.f32 0.0, %v5694
        %v5696 = vpop.f32.mrf.mxu0
        %5697 = vmatprep.mubr.f32.mxu0 0.0
        %5698 = vmatmul.mubr.f32.gmra.mxu0 %v5568
        %v5699 = vpop.f32.mrf.mxu0
        %v5700 = vadd.f32 0.0, %v5699
        %v5701 = vpop.f32.mrf.mxu0
        %5702 = vmatprep.mubr.f32.mxu0 0.0
        %5703 = vmatmul.mubr.f32.gmra.mxu0 %v5571
        %v5704 = vpop.f32.mrf.mxu0
        %v5705 = vadd.f32 0.0, %v5704
        %v5706 = vpop.f32.mrf.mxu0
        %5707 = vmatprep.mubr.f32.mxu0 0.0
        %5708 = vmatmul.mubr.f32.gmra.mxu0 %v5574
        %v5709 = vpop.f32.mrf.mxu0
        %v5710 = vadd.f32 0.0, %v5709
        %v5711 = vpop.f32.mrf.mxu0
        %5712 = vmatprep.mubr.f32.mxu0 0.0
        %5713 = vmatmul.mubr.f32.gmra.mxu0 %v5577
        %v5714 = vpop.f32.mrf.mxu0
        %v5715 = vadd.f32 0.0, %v5714
        %v5716 = vpop.f32.mrf.mxu0
        %5717 = vmatprep.mubr.f32.mxu0 0.0
        %5718 = vmatmul.mubr.f32.gmra.mxu0 %v5580
        %v5719 = vpop.f32.mrf.mxu0
        %v5720 = vadd.f32 0.0, %v5719
        %v5721 = vpop.f32.mrf.mxu0
        %5722 = vmatprep.mubr.f32.mxu0 0.0
        %5723 = vmatmul.mubr.f32.gmra.mxu0 %v5583
        %v5724 = vpop.f32.mrf.mxu0
        %v5725 = vadd.f32 0.0, %v5724
        %v5726 = vpop.f32.mrf.mxu0
        %5727 = vmatprep.mubr.f32.mxu0 0.0
        %5728 = vmatmul.mubr.f32.gmra.mxu0 %v5586
        %v5729 = vpop.f32.mrf.mxu0
        %v5730 = vadd.f32 0.0, %v5729
        %v5731 = vpop.f32.mrf.mxu0
        %5732 = vmatprep.mubr.f32.mxu0 0.0
        %5733 = vmatmul.mubr.f32.gmra.mxu0 %v5589
        %v5734 = vpop.f32.mrf.mxu0
        %v5735 = vadd.f32 0.0, %v5734
        %v5736 = vpop.f32.mrf.mxu0
        %5737 = vmatprep.mubr.f32.mxu0 0.0
        %5738 = vmatmul.mubr.f32.gmra.mxu0 %v5592
        %v5739 = vpop.f32.mrf.mxu0
        %v5740 = vadd.f32 0.0, %v5739
        %v5741 = vpop.f32.mrf.mxu0
        %5742 = vmatprep.mubr.f32.mxu0 0.0
        %5743 = vmatmul.mubr.f32.gmra.mxu0 %v5595
        %v5744 = vpop.f32.mrf.mxu0
        %v5745 = vadd.f32 0.0, %v5744
        %v5746 = vpop.f32.mrf.mxu0
        %5747 = vmatprep.mubr.f32.mxu0 0.0
        %5748 = vmatmul.mubr.f32.gmra.mxu0 %v5598
        %v5749 = vpop.f32.mrf.mxu0
        %v5750 = vadd.f32 0.0, %v5749
        %v5751 = vpop.f32.mrf.mxu0
        %5752 = vmatprep.mubr.f32.mxu0 0.0
        %5753 = vmatmul.mubr.f32.gmra.mxu0 %v5601
        %v5754 = vpop.f32.mrf.mxu0
        %v5755 = vadd.f32 0.0, %v5754
        %v5756 = vpop.f32.mrf.mxu0
        %5757 = vdwg.mxu0
        %v5759 = vsel %vm5458, %v5493, 0
        %v5762 = vsel %vm5458, %v5494, 0
        %v5765 = vsel %vm5458, %v5495, 0
        %v5768 = vsel %vm5458, %v5496, 0
        %v5771 = vsel %vm5458, %v5497, 0
        %v5774 = vsel %vm5458, %v5498, 0
        %v5777 = vsel %vm5458, %v5499, 0
        %v5780 = vsel %vm5458, %v5500, 0
        %v5783 = vsel %vm5458, %v5501, 0
        %v5786 = vsel %vm5458, %v5502, 0
        %v5789 = vsel %vm5458, %v5503, 0
        %v5792 = vsel %vm5458, %v5504, 0
        %v5795 = vsel %vm5458, %v5505, 0
        %v5798 = vsel %vm5458, %v5506, 0
        %v5801 = vsel %vm5458, %v5507, 0
        %v5804 = vsel %vm5458, %v5508, 0
        %v5807 = vsel %vm5458, %v5509, 0
        %v5810 = vsel %vm5458, %v5510, 0
        %5812 = vmatprep.subr.mxu0 0.0
        %5813 = vmatpush1.msra.mxu0 0.0
        %5814 = vmatprep.subr.mxu0 0.0
        %5815 = vmatpush1.msra.mxu0 0.0
        %5816 = vmatprep.subr.mxu0 0.0
        %5817 = vmatpush1.msra.mxu0 0.0
        %5818 = vmatprep.subr.mxu0 0.0
        %5819 = vmatpush1.msra.mxu0 0.0
        %5820 = vmatprep.subr.mxu0 0.0
        %5821 = vmatpush1.msra.mxu0 0.0
        %5822 = vmatprep.subr.mxu0 0.0
        %5823 = vmatpush1.msra.mxu0 0.0
        %5824 = vmatprep.subr.mxu0 0.0
        %5825 = vmatpush1.msra.mxu0 0.0
        %5826 = vmatprep.subr.mxu0 0.0
        %5827 = vmatpush1.msra.mxu0 0.0
        %5828 = vmatprep.subr.mxu0 0.0
        %5829 = vmatpush1.msra.mxu0 %v5518
        %5830 = vmatprep.subr.mxu0 0.0
        %5831 = vmatpush1.msra.mxu0 %v5517
        %5832 = vmatprep.subr.mxu0 0.0
        %5833 = vmatpush1.msra.mxu0 %v5516
        %5834 = vmatprep.subr.mxu0 0.0
        %5835 = vmatpush1.msra.mxu0 %v5515
        %5836 = vmatprep.subr.mxu0 0.0
        %5837 = vmatpush1.msra.mxu0 %v5514
        %5838 = vmatprep.subr.mxu0 0.0
        %5839 = vmatpush1.msra.mxu0 %v5513
        %5840 = vmatprep.subr.mxu0 0.0
        %5841 = vmatpush1.msra.mxu0 %v5512
        %5842 = vmatprep.subr.mxu0 0.0
        %5843 = vmatpush1.msra.mxu0 %v5511
        %5844 = vmatprep.subr.mxu0 0.0
        %5845 = vmatpush2.msra.mxu0 0.0
        %5846 = vmatprep.subr.mxu0 0.0
        %5847 = vmatpush2.msra.mxu0 0.0
        %5848 = vmatprep.subr.mxu0 0.0
        %5849 = vmatpush2.msra.mxu0 0.0
        %5850 = vmatprep.subr.mxu0 0.0
        %5851 = vmatpush2.msra.mxu0 0.0
        %5852 = vmatprep.subr.mxu0 0.0
        %5853 = vmatpush2.msra.mxu0 0.0
        %5854 = vmatprep.subr.mxu0 0.0
        %5855 = vmatpush2.msra.mxu0 0.0
        %5856 = vmatprep.subr.mxu0 0.0
        %5857 = vmatpush2.msra.mxu0 0.0
        %5858 = vmatprep.subr.mxu0 0.0
        %5859 = vmatpush2.msra.mxu0 0.0
        %5860 = vmatprep.subr.mxu0 0.0
        %5861 = vmatpush2.msra.mxu0 0.0
        %5862 = vmatprep.subr.mxu0 0.0
        %5863 = vmatpush2.msra.mxu0 0.0
        %5864 = vmatprep.subr.mxu0 0.0
        %5865 = vmatpush2.msra.mxu0 0.0
        %5866 = vmatprep.subr.mxu0 0.0
        %5867 = vmatpush2.msra.mxu0 0.0
        %5868 = vmatprep.subr.mxu0 0.0
        %5869 = vmatpush2.msra.mxu0 0.0
        %5870 = vmatprep.subr.mxu0 0.0
        %5871 = vmatpush2.msra.mxu0 0.0
        %5872 = vmatprep.subr.mxu0 0.0
        %5873 = vmatpush2.msra.mxu0 0.0
        %5874 = vmatprep.subr.mxu0 0.0
        %5875 = vmatpush2.msra.mxu0 0.0
        %5876 = vmatprep.mubr.f32.mxu0 0.0
        %5877 = vmatmul.mubr.f32.gmra.mxu0 %v5759
        %v5878 = vpop.f32.mrf.mxu0
        %v5879 = vadd.f32 %v5670, %v5878
        %v5880 = vpop.f32.mrf.mxu0
        %5881 = vmatprep.mubr.f32.mxu0 0.0
        %5882 = vmatmul.mubr.f32.gmra.mxu0 %v5762
        %v5883 = vpop.f32.mrf.mxu0
        %v5884 = vadd.f32 %v5675, %v5883
        %v5885 = vpop.f32.mrf.mxu0
        %5886 = vmatprep.mubr.f32.mxu0 0.0
        %5887 = vmatmul.mubr.f32.gmra.mxu0 %v5765
        %v5888 = vpop.f32.mrf.mxu0
        %v5889 = vadd.f32 %v5680, %v5888
        %v5890 = vpop.f32.mrf.mxu0
        %5891 = vmatprep.mubr.f32.mxu0 0.0
        %5892 = vmatmul.mubr.f32.gmra.mxu0 %v5768
        %v5893 = vpop.f32.mrf.mxu0
        %v5894 = vadd.f32 %v5685, %v5893
        %v5895 = vpop.f32.mrf.mxu0
        %5896 = vmatprep.mubr.f32.mxu0 0.0
        %5897 = vmatmul.mubr.f32.gmra.mxu0 %v5771
        %v5898 = vpop.f32.mrf.mxu0
        %v5899 = vadd.f32 %v5690, %v5898
        %v5900 = vpop.f32.mrf.mxu0
        %5901 = vmatprep.mubr.f32.mxu0 0.0
        %5902 = vmatmul.mubr.f32.gmra.mxu0 %v5774
        %v5903 = vpop.f32.mrf.mxu0
        %v5904 = vadd.f32 %v5695, %v5903
        %v5905 = vpop.f32.mrf.mxu0
        %5906 = vmatprep.mubr.f32.mxu0 0.0
        %5907 = vmatmul.mubr.f32.gmra.mxu0 %v5777
        %v5908 = vpop.f32.mrf.mxu0
        %v5909 = vadd.f32 %v5700, %v5908
        %v5910 = vpop.f32.mrf.mxu0
        %5911 = vmatprep.mubr.f32.mxu0 0.0
        %5912 = vmatmul.mubr.f32.gmra.mxu0 %v5780
        %v5913 = vpop.f32.mrf.mxu0
        %v5914 = vadd.f32 %v5705, %v5913
        %v5915 = vpop.f32.mrf.mxu0
        %5916 = vmatprep.mubr.f32.mxu0 0.0
        %5917 = vmatmul.mubr.f32.gmra.mxu0 %v5783
        %v5918 = vpop.f32.mrf.mxu0
        %v5919 = vadd.f32 %v5710, %v5918
        %v5920 = vpop.f32.mrf.mxu0
        %5921 = vmatprep.mubr.f32.mxu0 0.0
        %5922 = vmatmul.mubr.f32.gmra.mxu0 %v5786
        %v5923 = vpop.f32.mrf.mxu0
        %v5924 = vadd.f32 %v5715, %v5923
        %v5925 = vpop.f32.mrf.mxu0
        %5926 = vmatprep.mubr.f32.mxu0 0.0
        %5927 = vmatmul.mubr.f32.gmra.mxu0 %v5789
        %v5928 = vpop.f32.mrf.mxu0
        %v5929 = vadd.f32 %v5720, %v5928
        %v5930 = vpop.f32.mrf.mxu0
        %5931 = vmatprep.mubr.f32.mxu0 0.0
        %5932 = vmatmul.mubr.f32.gmra.mxu0 %v5792
        %v5933 = vpop.f32.mrf.mxu0
        %v5934 = vadd.f32 %v5725, %v5933
        %v5935 = vpop.f32.mrf.mxu0
        %5936 = vmatprep.mubr.f32.mxu0 0.0
        %5937 = vmatmul.mubr.f32.gmra.mxu0 %v5795
        %v5938 = vpop.f32.mrf.mxu0
        %v5939 = vadd.f32 %v5730, %v5938
        %v5940 = vpop.f32.mrf.mxu0
        %5941 = vmatprep.mubr.f32.mxu0 0.0
        %5942 = vmatmul.mubr.f32.gmra.mxu0 %v5798
        %v5943 = vpop.f32.mrf.mxu0
        %v5944 = vadd.f32 %v5735, %v5943
        %v5945 = vpop.f32.mrf.mxu0
        %5946 = vmatprep.mubr.f32.mxu0 0.0
        %5947 = vmatmul.mubr.f32.gmra.mxu0 %v5801
        %v5948 = vpop.f32.mrf.mxu0
        %v5949 = vadd.f32 %v5740, %v5948
        %v5950 = vpop.f32.mrf.mxu0
        %5951 = vmatprep.mubr.f32.mxu0 0.0
        %5952 = vmatmul.mubr.f32.gmra.mxu0 %v5804
        %v5953 = vpop.f32.mrf.mxu0
        %v5954 = vadd.f32 %v5745, %v5953
        %v5955 = vpop.f32.mrf.mxu0
        %5956 = vmatprep.mubr.f32.mxu0 0.0
        %5957 = vmatmul.mubr.f32.gmra.mxu0 %v5807
        %v5958 = vpop.f32.mrf.mxu0
        %v5959 = vadd.f32 %v5750, %v5958
        %v5960 = vpop.f32.mrf.mxu0
        %5961 = vmatprep.mubr.f32.mxu0 0.0
        %5962 = vmatmul.mubr.f32.gmra.mxu0 %v5810
        %v5963 = vpop.f32.mrf.mxu0
        %v5964 = vadd.f32 %v5755, %v5963
        %v5965 = vpop.f32.mrf.mxu0
        %5966 = vdwg.mxu0
        %s5967 = sadd.s32 %s5490, 2
        %s5968 = smul.u32 %s5967, 32
        %s5969 = scalar_lea.vmem [#allocation3], %s5968
        %v5970 = vld [vmem:[%s5969] sm:$0xff]
        %v5971 = vld [vmem:[%s5969 + $0x8] sm:$0xff]
        %v5972 = vld [vmem:[%s5969 + $0x10] sm:$0xff]
        %v5973 = vld [vmem:[%s5969 + $0x20] sm:$0xff]
        %v5974 = vld [vmem:[%s5969 + $0x28] sm:$0xff]
        %v5975 = vld [vmem:[%s5969 + $0x30] sm:$0xff]
        %v5976 = vld [vmem:[%s5969 + $0x40] sm:$0xff]
        %v5977 = vld [vmem:[%s5969 + $0x48] sm:$0xff]
        %v5978 = vld [vmem:[%s5969 + $0x50] sm:$0xff]
        %v5979 = vld [vmem:[%s5969 + $0x60] sm:$0xff]
        %v5980 = vld [vmem:[%s5969 + $0x68] sm:$0xff]
        %v5981 = vld [vmem:[%s5969 + $0x70] sm:$0xff]
        %v5982 = vld [vmem:[%s5969 + $0x80] sm:$0xff]
        %v5983 = vld [vmem:[%s5969 + $0x88] sm:$0xff]
        %v5984 = vld [vmem:[%s5969 + $0x90] sm:$0xff]
        %v5985 = vld [vmem:[%s5969 + $0xa0] sm:$0xff]
        %v5986 = vld [vmem:[%s5969 + $0xa8] sm:$0xff]
        %v5987 = vld [vmem:[%s5969 + $0xb0] sm:$0xff]
        %s5988 = scalar_lea.vmem %s9, 128
        %v5989 = vld [vmem:[%s5988] sm:$0xff]
        %v5990 = vld [vmem:[%s5988 + $0x8] sm:$0xff]
        %v5991 = vld [vmem:[%s5988 + $0x10] sm:$0xff]
        %v5992 = vld [vmem:[%s5988 + $0x18] sm:$0xff]
        %v5993 = vld [vmem:[%s5988 + $0x20] sm:$0xff]
        %v5994 = vld [vmem:[%s5988 + $0x28] sm:$0xff]
        %v5995 = vld [vmem:[%s5988 + $0x30] sm:$0xff]
        %v5996 = vld [vmem:[%s5988 + $0x38] sm:$0xff]
        %v5998 = vsel %vm5458, %v5970, 0
        %v6001 = vsel %vm5458, %v5971, 0
        %v6004 = vsel %vm5458, %v5972, 0
        %v6007 = vsel %vm5458, %v5973, 0
        %v6010 = vsel %vm5458, %v5974, 0
        %v6013 = vsel %vm5458, %v5975, 0
        %v6016 = vsel %vm5458, %v5976, 0
        %v6019 = vsel %vm5458, %v5977, 0
        %v6022 = vsel %vm5458, %v5978, 0
        %v6025 = vsel %vm5458, %v5979, 0
        %v6028 = vsel %vm5458, %v5980, 0
        %v6031 = vsel %vm5458, %v5981, 0
        %v6034 = vsel %vm5458, %v5982, 0
        %v6037 = vsel %vm5458, %v5983, 0
        %v6040 = vsel %vm5458, %v5984, 0
        %v6043 = vsel %vm5458, %v5985, 0
        %v6046 = vsel %vm5458, %v5986, 0
        %v6049 = vsel %vm5458, %v5987, 0
        %6051 = vmatprep.subr.mxu0 0.0
        %6052 = vmatpush1.msra.mxu0 0.0
        %6053 = vmatprep.subr.mxu0 0.0
        %6054 = vmatpush1.msra.mxu0 0.0
        %6055 = vmatprep.subr.mxu0 0.0
        %6056 = vmatpush1.msra.mxu0 0.0
        %6057 = vmatprep.subr.mxu0 0.0
        %6058 = vmatpush1.msra.mxu0 0.0
        %6059 = vmatprep.subr.mxu0 0.0
        %6060 = vmatpush1.msra.mxu0 0.0
        %6061 = vmatprep.subr.mxu0 0.0
        %6062 = vmatpush1.msra.mxu0 0.0
        %6063 = vmatprep.subr.mxu0 0.0
        %6064 = vmatpush1.msra.mxu0 0.0
        %6065 = vmatprep.subr.mxu0 0.0
        %6066 = vmatpush1.msra.mxu0 0.0
        %6067 = vmatprep.subr.mxu0 0.0
        %6068 = vmatpush1.msra.mxu0 %v5996
        %6069 = vmatprep.subr.mxu0 0.0
        %6070 = vmatpush1.msra.mxu0 %v5995
        %6071 = vmatprep.subr.mxu0 0.0
        %6072 = vmatpush1.msra.mxu0 %v5994
        %6073 = vmatprep.subr.mxu0 0.0
        %6074 = vmatpush1.msra.mxu0 %v5993
        %6075 = vmatprep.subr.mxu0 0.0
        %6076 = vmatpush1.msra.mxu0 %v5992
        %6077 = vmatprep.subr.mxu0 0.0
        %6078 = vmatpush1.msra.mxu0 %v5991
        %6079 = vmatprep.subr.mxu0 0.0
        %6080 = vmatpush1.msra.mxu0 %v5990
        %6081 = vmatprep.subr.mxu0 0.0
        %6082 = vmatpush1.msra.mxu0 %v5989
        %6083 = vmatprep.subr.mxu0 0.0
        %6084 = vmatpush2.msra.mxu0 0.0
        %6085 = vmatprep.subr.mxu0 0.0
        %6086 = vmatpush2.msra.mxu0 0.0
        %6087 = vmatprep.subr.mxu0 0.0
        %6088 = vmatpush2.msra.mxu0 0.0
        %6089 = vmatprep.subr.mxu0 0.0
        %6090 = vmatpush2.msra.mxu0 0.0
        %6091 = vmatprep.subr.mxu0 0.0
        %6092 = vmatpush2.msra.mxu0 0.0
        %6093 = vmatprep.subr.mxu0 0.0
        %6094 = vmatpush2.msra.mxu0 0.0
        %6095 = vmatprep.subr.mxu0 0.0
        %6096 = vmatpush2.msra.mxu0 0.0
        %6097 = vmatprep.subr.mxu0 0.0
        %6098 = vmatpush2.msra.mxu0 0.0
        %6099 = vmatprep.subr.mxu0 0.0
        %6100 = vmatpush2.msra.mxu0 0.0
        %6101 = vmatprep.subr.mxu0 0.0
        %6102 = vmatpush2.msra.mxu0 0.0
        %6103 = vmatprep.subr.mxu0 0.0
        %6104 = vmatpush2.msra.mxu0 0.0
        %6105 = vmatprep.subr.mxu0 0.0
        %6106 = vmatpush2.msra.mxu0 0.0
        %6107 = vmatprep.subr.mxu0 0.0
        %6108 = vmatpush2.msra.mxu0 0.0
        %6109 = vmatprep.subr.mxu0 0.0
        %6110 = vmatpush2.msra.mxu0 0.0
        %6111 = vmatprep.subr.mxu0 0.0
        %6112 = vmatpush2.msra.mxu0 0.0
        %6113 = vmatprep.subr.mxu0 0.0
        %6114 = vmatpush2.msra.mxu0 0.0
        %6115 = vmatprep.mubr.f32.mxu0 0.0
        %6116 = vmatmul.mubr.f32.gmra.mxu0 %v5998
        %v6117 = vpop.f32.mrf.mxu0
        %v6118 = vadd.f32 0.0, %v6117
        %v6119 = vpop.f32.mrf.mxu0
        %6120 = vmatprep.mubr.f32.mxu0 0.0
        %6121 = vmatmul.mubr.f32.gmra.mxu0 %v6001
        %v6122 = vpop.f32.mrf.mxu0
        %v6123 = vadd.f32 0.0, %v6122
        %v6124 = vpop.f32.mrf.mxu0
        %6125 = vmatprep.mubr.f32.mxu0 0.0
        %6126 = vmatmul.mubr.f32.gmra.mxu0 %v6004
        %v6127 = vpop.f32.mrf.mxu0
        %v6128 = vadd.f32 0.0, %v6127
        %v6129 = vpop.f32.mrf.mxu0
        %6130 = vmatprep.mubr.f32.mxu0 0.0
        %6131 = vmatmul.mubr.f32.gmra.mxu0 %v6007
        %v6132 = vpop.f32.mrf.mxu0
        %v6133 = vadd.f32 0.0, %v6132
        %v6134 = vpop.f32.mrf.mxu0
        %6135 = vmatprep.mubr.f32.mxu0 0.0
        %6136 = vmatmul.mubr.f32.gmra.mxu0 %v6010
        %v6137 = vpop.f32.mrf.mxu0
        %v6138 = vadd.f32 0.0, %v6137
        %v6139 = vpop.f32.mrf.mxu0
        %6140 = vmatprep.mubr.f32.mxu0 0.0
        %6141 = vmatmul.mubr.f32.gmra.mxu0 %v6013
        %v6142 = vpop.f32.mrf.mxu0
        %v6143 = vadd.f32 0.0, %v6142
        %v6144 = vpop.f32.mrf.mxu0
        %6145 = vmatprep.mubr.f32.mxu0 0.0
        %6146 = vmatmul.mubr.f32.gmra.mxu0 %v6016
        %v6147 = vpop.f32.mrf.mxu0
        %v6148 = vadd.f32 0.0, %v6147
        %v6149 = vpop.f32.mrf.mxu0
        %6150 = vmatprep.mubr.f32.mxu0 0.0
        %6151 = vmatmul.mubr.f32.gmra.mxu0 %v6019
        %v6152 = vpop.f32.mrf.mxu0
        %v6153 = vadd.f32 0.0, %v6152
        %v6154 = vpop.f32.mrf.mxu0
        %6155 = vmatprep.mubr.f32.mxu0 0.0
        %6156 = vmatmul.mubr.f32.gmra.mxu0 %v6022
        %v6157 = vpop.f32.mrf.mxu0
        %v6158 = vadd.f32 0.0, %v6157
        %v6159 = vpop.f32.mrf.mxu0
        %6160 = vmatprep.mubr.f32.mxu0 0.0
        %6161 = vmatmul.mubr.f32.gmra.mxu0 %v6025
        %v6162 = vpop.f32.mrf.mxu0
        %v6163 = vadd.f32 0.0, %v6162
        %v6164 = vpop.f32.mrf.mxu0
        %6165 = vmatprep.mubr.f32.mxu0 0.0
        %6166 = vmatmul.mubr.f32.gmra.mxu0 %v6028
        %v6167 = vpop.f32.mrf.mxu0
        %v6168 = vadd.f32 0.0, %v6167
        %v6169 = vpop.f32.mrf.mxu0
        %6170 = vmatprep.mubr.f32.mxu0 0.0
        %6171 = vmatmul.mubr.f32.gmra.mxu0 %v6031
        %v6172 = vpop.f32.mrf.mxu0
        %v6173 = vadd.f32 0.0, %v6172
        %v6174 = vpop.f32.mrf.mxu0
        %6175 = vmatprep.mubr.f32.mxu0 0.0
        %6176 = vmatmul.mubr.f32.gmra.mxu0 %v6034
        %v6177 = vpop.f32.mrf.mxu0
        %v6178 = vadd.f32 0.0, %v6177
        %v6179 = vpop.f32.mrf.mxu0
        %6180 = vmatprep.mubr.f32.mxu0 0.0
        %6181 = vmatmul.mubr.f32.gmra.mxu0 %v6037
        %v6182 = vpop.f32.mrf.mxu0
        %v6183 = vadd.f32 0.0, %v6182
        %v6184 = vpop.f32.mrf.mxu0
        %6185 = vmatprep.mubr.f32.mxu0 0.0
        %6186 = vmatmul.mubr.f32.gmra.mxu0 %v6040
        %v6187 = vpop.f32.mrf.mxu0
        %v6188 = vadd.f32 0.0, %v6187
        %v6189 = vpop.f32.mrf.mxu0
        %6190 = vmatprep.mubr.f32.mxu0 0.0
        %6191 = vmatmul.mubr.f32.gmra.mxu0 %v6043
        %v6192 = vpop.f32.mrf.mxu0
        %v6193 = vadd.f32 0.0, %v6192
        %v6194 = vpop.f32.mrf.mxu0
        %6195 = vmatprep.mubr.f32.mxu0 0.0
        %6196 = vmatmul.mubr.f32.gmra.mxu0 %v6046
        %v6197 = vpop.f32.mrf.mxu0
        %v6198 = vadd.f32 0.0, %v6197
        %v6199 = vpop.f32.mrf.mxu0
        %6200 = vmatprep.mubr.f32.mxu0 0.0
        %6201 = vmatmul.mubr.f32.gmra.mxu0 %v6049
        %v6202 = vpop.f32.mrf.mxu0
        %v6203 = vadd.f32 0.0, %v6202
        %v6204 = vpop.f32.mrf.mxu0
        %6205 = vdwg.mxu0
        %v6206 = vadd.f32 %v5879, %v6118
        %v6207 = vadd.f32 %v5884, %v6123
        %v6208 = vadd.f32 %v5889, %v6128
        %v6209 = vadd.f32 %v5894, %v6133
        %v6210 = vadd.f32 %v5899, %v6138
        %v6211 = vadd.f32 %v5904, %v6143
        %v6212 = vadd.f32 %v5909, %v6148
        %v6213 = vadd.f32 %v5914, %v6153
        %v6214 = vadd.f32 %v5919, %v6158
        %v6215 = vadd.f32 %v5924, %v6163
        %v6216 = vadd.f32 %v5929, %v6168
        %v6217 = vadd.f32 %v5934, %v6173
        %v6218 = vadd.f32 %v5939, %v6178
        %v6219 = vadd.f32 %v5944, %v6183
        %v6220 = vadd.f32 %v5949, %v6188
        %v6221 = vadd.f32 %v5954, %v6193
        %v6222 = vadd.f32 %v5959, %v6198
        %v6223 = vadd.f32 %v5964, %v6203
        %s6224 = sadd.s32 %s5490, 3
        %s6225 = smul.u32 %s6224, 32
        %s6226 = scalar_lea.vmem [#allocation3], %s6225
        %v6227 = vld [vmem:[%s6226] sm:$0xff]
        %v6228 = vld [vmem:[%s6226 + $0x8] sm:$0xff]
        %v6229 = vld [vmem:[%s6226 + $0x10] sm:$0xff]
        %v6230 = vld [vmem:[%s6226 + $0x20] sm:$0xff]
        %v6231 = vld [vmem:[%s6226 + $0x28] sm:$0xff]
        %v6232 = vld [vmem:[%s6226 + $0x30] sm:$0xff]
        %v6233 = vld [vmem:[%s6226 + $0x40] sm:$0xff]
        %v6234 = vld [vmem:[%s6226 + $0x48] sm:$0xff]
        %v6235 = vld [vmem:[%s6226 + $0x50] sm:$0xff]
        %v6236 = vld [vmem:[%s6226 + $0x60] sm:$0xff]
        %v6237 = vld [vmem:[%s6226 + $0x68] sm:$0xff]
        %v6238 = vld [vmem:[%s6226 + $0x70] sm:$0xff]
        %v6239 = vld [vmem:[%s6226 + $0x80] sm:$0xff]
        %v6240 = vld [vmem:[%s6226 + $0x88] sm:$0xff]
        %v6241 = vld [vmem:[%s6226 + $0x90] sm:$0xff]
        %v6242 = vld [vmem:[%s6226 + $0xa0] sm:$0xff]
        %v6243 = vld [vmem:[%s6226 + $0xa8] sm:$0xff]
        %v6244 = vld [vmem:[%s6226 + $0xb0] sm:$0xff]
        %s6245 = scalar_lea.vmem %s9, 192
        %v6246 = vld [vmem:[%s6245] sm:$0xff]
        %v6247 = vld [vmem:[%s6245 + $0x8] sm:$0xff]
        %v6248 = vld [vmem:[%s6245 + $0x10] sm:$0xff]
        %v6249 = vld [vmem:[%s6245 + $0x18] sm:$0xff]
        %v6250 = vld [vmem:[%s6245 + $0x20] sm:$0xff]
        %v6251 = vld [vmem:[%s6245 + $0x28] sm:$0xff]
        %v6252 = vld [vmem:[%s6245 + $0x30] sm:$0xff]
        %v6253 = vld [vmem:[%s6245 + $0x38] sm:$0xff]
        %v6255 = vsel %vm5458, %v6227, 0
        %v6258 = vsel %vm5458, %v6228, 0
        %v6261 = vsel %vm5458, %v6229, 0
        %v6264 = vsel %vm5458, %v6230, 0
        %v6267 = vsel %vm5458, %v6231, 0
        %v6270 = vsel %vm5458, %v6232, 0
        %v6273 = vsel %vm5458, %v6233, 0
        %v6276 = vsel %vm5458, %v6234, 0
        %v6279 = vsel %vm5458, %v6235, 0
        %v6282 = vsel %vm5458, %v6236, 0
        %v6285 = vsel %vm5458, %v6237, 0
        %v6288 = vsel %vm5458, %v6238, 0
        %v6291 = vsel %vm5458, %v6239, 0
        %v6294 = vsel %vm5458, %v6240, 0
        %v6297 = vsel %vm5458, %v6241, 0
        %v6300 = vsel %vm5458, %v6242, 0
        %v6303 = vsel %vm5458, %v6243, 0
        %v6306 = vsel %vm5458, %v6244, 0
        %6308 = vmatprep.subr.mxu0 0.0
        %6309 = vmatpush1.msra.mxu0 0.0
        %6310 = vmatprep.subr.mxu0 0.0
        %6311 = vmatpush1.msra.mxu0 0.0
        %6312 = vmatprep.subr.mxu0 0.0
        %6313 = vmatpush1.msra.mxu0 0.0
        %6314 = vmatprep.subr.mxu0 0.0
        %6315 = vmatpush1.msra.mxu0 0.0
        %6316 = vmatprep.subr.mxu0 0.0
        %6317 = vmatpush1.msra.mxu0 0.0
        %6318 = vmatprep.subr.mxu0 0.0
        %6319 = vmatpush1.msra.mxu0 0.0
        %6320 = vmatprep.subr.mxu0 0.0
        %6321 = vmatpush1.msra.mxu0 0.0
        %6322 = vmatprep.subr.mxu0 0.0
        %6323 = vmatpush1.msra.mxu0 0.0
        %6324 = vmatprep.subr.mxu0 0.0
        %6325 = vmatpush1.msra.mxu0 %v6253
        %6326 = vmatprep.subr.mxu0 0.0
        %6327 = vmatpush1.msra.mxu0 %v6252
        %6328 = vmatprep.subr.mxu0 0.0
        %6329 = vmatpush1.msra.mxu0 %v6251
        %6330 = vmatprep.subr.mxu0 0.0
        %6331 = vmatpush1.msra.mxu0 %v6250
        %6332 = vmatprep.subr.mxu0 0.0
        %6333 = vmatpush1.msra.mxu0 %v6249
        %6334 = vmatprep.subr.mxu0 0.0
        %6335 = vmatpush1.msra.mxu0 %v6248
        %6336 = vmatprep.subr.mxu0 0.0
        %6337 = vmatpush1.msra.mxu0 %v6247
        %6338 = vmatprep.subr.mxu0 0.0
        %6339 = vmatpush1.msra.mxu0 %v6246
        %6340 = vmatprep.subr.mxu0 0.0
        %6341 = vmatpush2.msra.mxu0 0.0
        %6342 = vmatprep.subr.mxu0 0.0
        %6343 = vmatpush2.msra.mxu0 0.0
        %6344 = vmatprep.subr.mxu0 0.0
        %6345 = vmatpush2.msra.mxu0 0.0
        %6346 = vmatprep.subr.mxu0 0.0
        %6347 = vmatpush2.msra.mxu0 0.0
        %6348 = vmatprep.subr.mxu0 0.0
        %6349 = vmatpush2.msra.mxu0 0.0
        %6350 = vmatprep.subr.mxu0 0.0
        %6351 = vmatpush2.msra.mxu0 0.0
        %6352 = vmatprep.subr.mxu0 0.0
        %6353 = vmatpush2.msra.mxu0 0.0
        %6354 = vmatprep.subr.mxu0 0.0
        %6355 = vmatpush2.msra.mxu0 0.0
        %6356 = vmatprep.subr.mxu0 0.0
        %6357 = vmatpush2.msra.mxu0 0.0
        %6358 = vmatprep.subr.mxu0 0.0
        %6359 = vmatpush2.msra.mxu0 0.0
        %6360 = vmatprep.subr.mxu0 0.0
        %6361 = vmatpush2.msra.mxu0 0.0
        %6362 = vmatprep.subr.mxu0 0.0
        %6363 = vmatpush2.msra.mxu0 0.0
        %6364 = vmatprep.subr.mxu0 0.0
        %6365 = vmatpush2.msra.mxu0 0.0
        %6366 = vmatprep.subr.mxu0 0.0
        %6367 = vmatpush2.msra.mxu0 0.0
        %6368 = vmatprep.subr.mxu0 0.0
        %6369 = vmatpush2.msra.mxu0 0.0
        %6370 = vmatprep.subr.mxu0 0.0
        %6371 = vmatpush2.msra.mxu0 0.0
        %6372 = vmatprep.mubr.f32.mxu0 0.0
        %6373 = vmatmul.mubr.f32.gmra.mxu0 %v6255
        %v6374 = vpop.f32.mrf.mxu0
        %v6375 = vadd.f32 0.0, %v6374
        %v6376 = vpop.f32.mrf.mxu0
        %6377 = vmatprep.mubr.f32.mxu0 0.0
        %6378 = vmatmul.mubr.f32.gmra.mxu0 %v6258
        %v6379 = vpop.f32.mrf.mxu0
        %v6380 = vadd.f32 0.0, %v6379
        %v6381 = vpop.f32.mrf.mxu0
        %6382 = vmatprep.mubr.f32.mxu0 0.0
        %6383 = vmatmul.mubr.f32.gmra.mxu0 %v6261
        %v6384 = vpop.f32.mrf.mxu0
        %v6385 = vadd.f32 0.0, %v6384
        %v6386 = vpop.f32.mrf.mxu0
        %6387 = vmatprep.mubr.f32.mxu0 0.0
        %6388 = vmatmul.mubr.f32.gmra.mxu0 %v6264
        %v6389 = vpop.f32.mrf.mxu0
        %v6390 = vadd.f32 0.0, %v6389
        %v6391 = vpop.f32.mrf.mxu0
        %6392 = vmatprep.mubr.f32.mxu0 0.0
        %6393 = vmatmul.mubr.f32.gmra.mxu0 %v6267
        %v6394 = vpop.f32.mrf.mxu0
        %v6395 = vadd.f32 0.0, %v6394
        %v6396 = vpop.f32.mrf.mxu0
        %6397 = vmatprep.mubr.f32.mxu0 0.0
        %6398 = vmatmul.mubr.f32.gmra.mxu0 %v6270
        %v6399 = vpop.f32.mrf.mxu0
        %v6400 = vadd.f32 0.0, %v6399
        %v6401 = vpop.f32.mrf.mxu0
        %6402 = vmatprep.mubr.f32.mxu0 0.0
        %6403 = vmatmul.mubr.f32.gmra.mxu0 %v6273
        %v6404 = vpop.f32.mrf.mxu0
        %v6405 = vadd.f32 0.0, %v6404
        %v6406 = vpop.f32.mrf.mxu0
        %6407 = vmatprep.mubr.f32.mxu0 0.0
        %6408 = vmatmul.mubr.f32.gmra.mxu0 %v6276
        %v6409 = vpop.f32.mrf.mxu0
        %v6410 = vadd.f32 0.0, %v6409
        %v6411 = vpop.f32.mrf.mxu0
        %6412 = vmatprep.mubr.f32.mxu0 0.0
        %6413 = vmatmul.mubr.f32.gmra.mxu0 %v6279
        %v6414 = vpop.f32.mrf.mxu0
        %v6415 = vadd.f32 0.0, %v6414
        %v6416 = vpop.f32.mrf.mxu0
        %6417 = vmatprep.mubr.f32.mxu0 0.0
        %6418 = vmatmul.mubr.f32.gmra.mxu0 %v6282
        %v6419 = vpop.f32.mrf.mxu0
        %v6420 = vadd.f32 0.0, %v6419
        %v6421 = vpop.f32.mrf.mxu0
        %6422 = vmatprep.mubr.f32.mxu0 0.0
        %6423 = vmatmul.mubr.f32.gmra.mxu0 %v6285
        %v6424 = vpop.f32.mrf.mxu0
        %v6425 = vadd.f32 0.0, %v6424
        %v6426 = vpop.f32.mrf.mxu0
        %6427 = vmatprep.mubr.f32.mxu0 0.0
        %6428 = vmatmul.mubr.f32.gmra.mxu0 %v6288
        %v6429 = vpop.f32.mrf.mxu0
        %v6430 = vadd.f32 0.0, %v6429
        %v6431 = vpop.f32.mrf.mxu0
        %6432 = vmatprep.mubr.f32.mxu0 0.0
        %6433 = vmatmul.mubr.f32.gmra.mxu0 %v6291
        %v6434 = vpop.f32.mrf.mxu0
        %v6435 = vadd.f32 0.0, %v6434
        %v6436 = vpop.f32.mrf.mxu0
        %6437 = vmatprep.mubr.f32.mxu0 0.0
        %6438 = vmatmul.mubr.f32.gmra.mxu0 %v6294
        %v6439 = vpop.f32.mrf.mxu0
        %v6440 = vadd.f32 0.0, %v6439
        %v6441 = vpop.f32.mrf.mxu0
        %6442 = vmatprep.mubr.f32.mxu0 0.0
        %6443 = vmatmul.mubr.f32.gmra.mxu0 %v6297
        %v6444 = vpop.f32.mrf.mxu0
        %v6445 = vadd.f32 0.0, %v6444
        %v6446 = vpop.f32.mrf.mxu0
        %6447 = vmatprep.mubr.f32.mxu0 0.0
        %6448 = vmatmul.mubr.f32.gmra.mxu0 %v6300
        %v6449 = vpop.f32.mrf.mxu0
        %v6450 = vadd.f32 0.0, %v6449
        %v6451 = vpop.f32.mrf.mxu0
        %6452 = vmatprep.mubr.f32.mxu0 0.0
        %6453 = vmatmul.mubr.f32.gmra.mxu0 %v6303
        %v6454 = vpop.f32.mrf.mxu0
        %v6455 = vadd.f32 0.0, %v6454
        %v6456 = vpop.f32.mrf.mxu0
        %6457 = vmatprep.mubr.f32.mxu0 0.0
        %6458 = vmatmul.mubr.f32.gmra.mxu0 %v6306
        %v6459 = vpop.f32.mrf.mxu0
        %v6460 = vadd.f32 0.0, %v6459
        %v6461 = vpop.f32.mrf.mxu0
        %6462 = vdwg.mxu0
        %v6463 = vadd.f32 %v6206, %v6375
        %v6464 = vadd.f32 %v6207, %v6380
        %v6465 = vadd.f32 %v6208, %v6385
        %v6466 = vadd.f32 %v6209, %v6390
        %v6467 = vadd.f32 %v6210, %v6395
        %v6468 = vadd.f32 %v6211, %v6400
        %v6469 = vadd.f32 %v6212, %v6405
        %v6470 = vadd.f32 %v6213, %v6410
        %v6471 = vadd.f32 %v6214, %v6415
        %v6472 = vadd.f32 %v6215, %v6420
        %v6473 = vadd.f32 %v6216, %v6425
        %v6474 = vadd.f32 %v6217, %v6430
        %v6475 = vadd.f32 %v6218, %v6435
        %v6476 = vadd.f32 %v6219, %v6440
        %v6477 = vadd.f32 %v6220, %v6445
        %v6478 = vadd.f32 %v6221, %v6450
        %v6479 = vadd.f32 %v6222, %v6455
        %v6480 = vadd.f32 %v6223, %v6460
        %s6481 = sadd.s32 %s5490, 4
        %s6482 = smul.u32 %s6481, 32
        %s6483 = scalar_lea.vmem [#allocation3], %s6482
        %v6484 = vld [vmem:[%s6483] sm:$0xff]
        %v6485 = vld [vmem:[%s6483 + $0x8] sm:$0xff]
        %v6486 = vld [vmem:[%s6483 + $0x10] sm:$0xff]
        %v6487 = vld [vmem:[%s6483 + $0x20] sm:$0xff]
        %v6488 = vld [vmem:[%s6483 + $0x28] sm:$0xff]
        %v6489 = vld [vmem:[%s6483 + $0x30] sm:$0xff]
        %v6490 = vld [vmem:[%s6483 + $0x40] sm:$0xff]
        %v6491 = vld [vmem:[%s6483 + $0x48] sm:$0xff]
        %v6492 = vld [vmem:[%s6483 + $0x50] sm:$0xff]
        %v6493 = vld [vmem:[%s6483 + $0x60] sm:$0xff]
        %v6494 = vld [vmem:[%s6483 + $0x68] sm:$0xff]
        %v6495 = vld [vmem:[%s6483 + $0x70] sm:$0xff]
        %v6496 = vld [vmem:[%s6483 + $0x80] sm:$0xff]
        %v6497 = vld [vmem:[%s6483 + $0x88] sm:$0xff]
        %v6498 = vld [vmem:[%s6483 + $0x90] sm:$0xff]
        %v6499 = vld [vmem:[%s6483 + $0xa0] sm:$0xff]
        %v6500 = vld [vmem:[%s6483 + $0xa8] sm:$0xff]
        %v6501 = vld [vmem:[%s6483 + $0xb0] sm:$0xff]
        %s6502 = scalar_lea.vmem %s9, 256
        %v6503 = vld [vmem:[%s6502] sm:$0xff]
        %v6504 = vld [vmem:[%s6502 + $0x8] sm:$0xff]
        %v6505 = vld [vmem:[%s6502 + $0x10] sm:$0xff]
        %v6506 = vld [vmem:[%s6502 + $0x18] sm:$0xff]
        %v6507 = vld [vmem:[%s6502 + $0x20] sm:$0xff]
        %v6508 = vld [vmem:[%s6502 + $0x28] sm:$0xff]
        %v6509 = vld [vmem:[%s6502 + $0x30] sm:$0xff]
        %v6510 = vld [vmem:[%s6502 + $0x38] sm:$0xff]
        %v6512 = vsel %vm5458, %v6484, 0
        %v6515 = vsel %vm5458, %v6485, 0
        %v6518 = vsel %vm5458, %v6486, 0
        %v6521 = vsel %vm5458, %v6487, 0
        %v6524 = vsel %vm5458, %v6488, 0
        %v6527 = vsel %vm5458, %v6489, 0
        %v6530 = vsel %vm5458, %v6490, 0
        %v6533 = vsel %vm5458, %v6491, 0
        %v6536 = vsel %vm5458, %v6492, 0
        %v6539 = vsel %vm5458, %v6493, 0
        %v6542 = vsel %vm5458, %v6494, 0
        %v6545 = vsel %vm5458, %v6495, 0
        %v6548 = vsel %vm5458, %v6496, 0
        %v6551 = vsel %vm5458, %v6497, 0
        %v6554 = vsel %vm5458, %v6498, 0
        %v6557 = vsel %vm5458, %v6499, 0
        %v6560 = vsel %vm5458, %v6500, 0
        %v6563 = vsel %vm5458, %v6501, 0
        %6565 = vmatprep.subr.mxu0 0.0
        %6566 = vmatpush1.msra.mxu0 0.0
        %6567 = vmatprep.subr.mxu0 0.0
        %6568 = vmatpush1.msra.mxu0 0.0
        %6569 = vmatprep.subr.mxu0 0.0
        %6570 = vmatpush1.msra.mxu0 0.0
        %6571 = vmatprep.subr.mxu0 0.0
        %6572 = vmatpush1.msra.mxu0 0.0
        %6573 = vmatprep.subr.mxu0 0.0
        %6574 = vmatpush1.msra.mxu0 0.0
        %6575 = vmatprep.subr.mxu0 0.0
        %6576 = vmatpush1.msra.mxu0 0.0
        %6577 = vmatprep.subr.mxu0 0.0
        %6578 = vmatpush1.msra.mxu0 0.0
        %6579 = vmatprep.subr.mxu0 0.0
        %6580 = vmatpush1.msra.mxu0 0.0
        %6581 = vmatprep.subr.mxu0 0.0
        %6582 = vmatpush1.msra.mxu0 %v6510
        %6583 = vmatprep.subr.mxu0 0.0
        %6584 = vmatpush1.msra.mxu0 %v6509
        %6585 = vmatprep.subr.mxu0 0.0
        %6586 = vmatpush1.msra.mxu0 %v6508
        %6587 = vmatprep.subr.mxu0 0.0
        %6588 = vmatpush1.msra.mxu0 %v6507
        %6589 = vmatprep.subr.mxu0 0.0
        %6590 = vmatpush1.msra.mxu0 %v6506
        %6591 = vmatprep.subr.mxu0 0.0
        %6592 = vmatpush1.msra.mxu0 %v6505
        %6593 = vmatprep.subr.mxu0 0.0
        %6594 = vmatpush1.msra.mxu0 %v6504
        %6595 = vmatprep.subr.mxu0 0.0
        %6596 = vmatpush1.msra.mxu0 %v6503
        %6597 = vmatprep.subr.mxu0 0.0
        %6598 = vmatpush2.msra.mxu0 0.0
        %6599 = vmatprep.subr.mxu0 0.0
        %6600 = vmatpush2.msra.mxu0 0.0
        %6601 = vmatprep.subr.mxu0 0.0
        %6602 = vmatpush2.msra.mxu0 0.0
        %6603 = vmatprep.subr.mxu0 0.0
        %6604 = vmatpush2.msra.mxu0 0.0
        %6605 = vmatprep.subr.mxu0 0.0
        %6606 = vmatpush2.msra.mxu0 0.0
        %6607 = vmatprep.subr.mxu0 0.0
        %6608 = vmatpush2.msra.mxu0 0.0
        %6609 = vmatprep.subr.mxu0 0.0
        %6610 = vmatpush2.msra.mxu0 0.0
        %6611 = vmatprep.subr.mxu0 0.0
        %6612 = vmatpush2.msra.mxu0 0.0
        %6613 = vmatprep.subr.mxu0 0.0
        %6614 = vmatpush2.msra.mxu0 0.0
        %6615 = vmatprep.subr.mxu0 0.0
        %6616 = vmatpush2.msra.mxu0 0.0
        %6617 = vmatprep.subr.mxu0 0.0
        %6618 = vmatpush2.msra.mxu0 0.0
        %6619 = vmatprep.subr.mxu0 0.0
        %6620 = vmatpush2.msra.mxu0 0.0
        %6621 = vmatprep.subr.mxu0 0.0
        %6622 = vmatpush2.msra.mxu0 0.0
        %6623 = vmatprep.subr.mxu0 0.0
        %6624 = vmatpush2.msra.mxu0 0.0
        %6625 = vmatprep.subr.mxu0 0.0
        %6626 = vmatpush2.msra.mxu0 0.0
        %6627 = vmatprep.subr.mxu0 0.0
        %6628 = vmatpush2.msra.mxu0 0.0
        %6629 = vmatprep.mubr.f32.mxu0 0.0
        %6630 = vmatmul.mubr.f32.gmra.mxu0 %v6512
        %v6631 = vpop.f32.mrf.mxu0
        %v6632 = vadd.f32 0.0, %v6631
        %v6633 = vpop.f32.mrf.mxu0
        %6634 = vmatprep.mubr.f32.mxu0 0.0
        %6635 = vmatmul.mubr.f32.gmra.mxu0 %v6515
        %v6636 = vpop.f32.mrf.mxu0
        %v6637 = vadd.f32 0.0, %v6636
        %v6638 = vpop.f32.mrf.mxu0
        %6639 = vmatprep.mubr.f32.mxu0 0.0
        %6640 = vmatmul.mubr.f32.gmra.mxu0 %v6518
        %v6641 = vpop.f32.mrf.mxu0
        %v6642 = vadd.f32 0.0, %v6641
        %v6643 = vpop.f32.mrf.mxu0
        %6644 = vmatprep.mubr.f32.mxu0 0.0
        %6645 = vmatmul.mubr.f32.gmra.mxu0 %v6521
        %v6646 = vpop.f32.mrf.mxu0
        %v6647 = vadd.f32 0.0, %v6646
        %v6648 = vpop.f32.mrf.mxu0
        %6649 = vmatprep.mubr.f32.mxu0 0.0
        %6650 = vmatmul.mubr.f32.gmra.mxu0 %v6524
        %v6651 = vpop.f32.mrf.mxu0
        %v6652 = vadd.f32 0.0, %v6651
        %v6653 = vpop.f32.mrf.mxu0
        %6654 = vmatprep.mubr.f32.mxu0 0.0
        %6655 = vmatmul.mubr.f32.gmra.mxu0 %v6527
        %v6656 = vpop.f32.mrf.mxu0
        %v6657 = vadd.f32 0.0, %v6656
        %v6658 = vpop.f32.mrf.mxu0
        %6659 = vmatprep.mubr.f32.mxu0 0.0
        %6660 = vmatmul.mubr.f32.gmra.mxu0 %v6530
        %v6661 = vpop.f32.mrf.mxu0
        %v6662 = vadd.f32 0.0, %v6661
        %v6663 = vpop.f32.mrf.mxu0
        %6664 = vmatprep.mubr.f32.mxu0 0.0
        %6665 = vmatmul.mubr.f32.gmra.mxu0 %v6533
        %v6666 = vpop.f32.mrf.mxu0
        %v6667 = vadd.f32 0.0, %v6666
        %v6668 = vpop.f32.mrf.mxu0
        %6669 = vmatprep.mubr.f32.mxu0 0.0
        %6670 = vmatmul.mubr.f32.gmra.mxu0 %v6536
        %v6671 = vpop.f32.mrf.mxu0
        %v6672 = vadd.f32 0.0, %v6671
        %v6673 = vpop.f32.mrf.mxu0
        %6674 = vmatprep.mubr.f32.mxu0 0.0
        %6675 = vmatmul.mubr.f32.gmra.mxu0 %v6539
        %v6676 = vpop.f32.mrf.mxu0
        %v6677 = vadd.f32 0.0, %v6676
        %v6678 = vpop.f32.mrf.mxu0
        %6679 = vmatprep.mubr.f32.mxu0 0.0
        %6680 = vmatmul.mubr.f32.gmra.mxu0 %v6542
        %v6681 = vpop.f32.mrf.mxu0
        %v6682 = vadd.f32 0.0, %v6681
        %v6683 = vpop.f32.mrf.mxu0
        %6684 = vmatprep.mubr.f32.mxu0 0.0
        %6685 = vmatmul.mubr.f32.gmra.mxu0 %v6545
        %v6686 = vpop.f32.mrf.mxu0
        %v6687 = vadd.f32 0.0, %v6686
        %v6688 = vpop.f32.mrf.mxu0
        %6689 = vmatprep.mubr.f32.mxu0 0.0
        %6690 = vmatmul.mubr.f32.gmra.mxu0 %v6548
        %v6691 = vpop.f32.mrf.mxu0
        %v6692 = vadd.f32 0.0, %v6691
        %v6693 = vpop.f32.mrf.mxu0
        %6694 = vmatprep.mubr.f32.mxu0 0.0
        %6695 = vmatmul.mubr.f32.gmra.mxu0 %v6551
        %v6696 = vpop.f32.mrf.mxu0
        %v6697 = vadd.f32 0.0, %v6696
        %v6698 = vpop.f32.mrf.mxu0
        %6699 = vmatprep.mubr.f32.mxu0 0.0
        %6700 = vmatmul.mubr.f32.gmra.mxu0 %v6554
        %v6701 = vpop.f32.mrf.mxu0
        %v6702 = vadd.f32 0.0, %v6701
        %v6703 = vpop.f32.mrf.mxu0
        %6704 = vmatprep.mubr.f32.mxu0 0.0
        %6705 = vmatmul.mubr.f32.gmra.mxu0 %v6557
        %v6706 = vpop.f32.mrf.mxu0
        %v6707 = vadd.f32 0.0, %v6706
        %v6708 = vpop.f32.mrf.mxu0
        %6709 = vmatprep.mubr.f32.mxu0 0.0
        %6710 = vmatmul.mubr.f32.gmra.mxu0 %v6560
        %v6711 = vpop.f32.mrf.mxu0
        %v6712 = vadd.f32 0.0, %v6711
        %v6713 = vpop.f32.mrf.mxu0
        %6714 = vmatprep.mubr.f32.mxu0 0.0
        %6715 = vmatmul.mubr.f32.gmra.mxu0 %v6563
        %v6716 = vpop.f32.mrf.mxu0
        %v6717 = vadd.f32 0.0, %v6716
        %v6718 = vpop.f32.mrf.mxu0
        %6719 = vdwg.mxu0
        %v6720 = vadd.f32 %v6463, %v6632
        %v6721 = vadd.f32 %v6464, %v6637
        %v6722 = vadd.f32 %v6465, %v6642
        %v6723 = vadd.f32 %v6466, %v6647
        %v6724 = vadd.f32 %v6467, %v6652
        %v6725 = vadd.f32 %v6468, %v6657
        %v6726 = vadd.f32 %v6469, %v6662
        %v6727 = vadd.f32 %v6470, %v6667
        %v6728 = vadd.f32 %v6471, %v6672
        %v6729 = vadd.f32 %v6472, %v6677
        %v6730 = vadd.f32 %v6473, %v6682
        %v6731 = vadd.f32 %v6474, %v6687
        %v6732 = vadd.f32 %v6475, %v6692
        %v6733 = vadd.f32 %v6476, %v6697
        %v6734 = vadd.f32 %v6477, %v6702
        %v6735 = vadd.f32 %v6478, %v6707
        %v6736 = vadd.f32 %v6479, %v6712
        %v6737 = vadd.f32 %v6480, %v6717
        %s6738 = sadd.s32 %s5490, 5
        %s6739 = smul.u32 %s6738, 32
        %s6740 = scalar_lea.vmem [#allocation3], %s6739
        %v6741 = vld [vmem:[%s6740] sm:$0xff]
        %v6742 = vld [vmem:[%s6740 + $0x8] sm:$0xff]
        %v6743 = vld [vmem:[%s6740 + $0x10] sm:$0xff]
        %v6744 = vld [vmem:[%s6740 + $0x20] sm:$0xff]
        %v6745 = vld [vmem:[%s6740 + $0x28] sm:$0xff]
        %v6746 = vld [vmem:[%s6740 + $0x30] sm:$0xff]
        %v6747 = vld [vmem:[%s6740 + $0x40] sm:$0xff]
        %v6748 = vld [vmem:[%s6740 + $0x48] sm:$0xff]
        %v6749 = vld [vmem:[%s6740 + $0x50] sm:$0xff]
        %v6750 = vld [vmem:[%s6740 + $0x60] sm:$0xff]
        %v6751 = vld [vmem:[%s6740 + $0x68] sm:$0xff]
        %v6752 = vld [vmem:[%s6740 + $0x70] sm:$0xff]
        %v6753 = vld [vmem:[%s6740 + $0x80] sm:$0xff]
        %v6754 = vld [vmem:[%s6740 + $0x88] sm:$0xff]
        %v6755 = vld [vmem:[%s6740 + $0x90] sm:$0xff]
        %v6756 = vld [vmem:[%s6740 + $0xa0] sm:$0xff]
        %v6757 = vld [vmem:[%s6740 + $0xa8] sm:$0xff]
        %v6758 = vld [vmem:[%s6740 + $0xb0] sm:$0xff]
        %s6759 = scalar_lea.vmem %s9, 320
        %v6760 = vld [vmem:[%s6759] sm:$0xff]
        %v6761 = vld [vmem:[%s6759 + $0x8] sm:$0xff]
        %v6762 = vld [vmem:[%s6759 + $0x10] sm:$0xff]
        %v6763 = vld [vmem:[%s6759 + $0x18] sm:$0xff]
        %v6764 = vld [vmem:[%s6759 + $0x20] sm:$0xff]
        %v6765 = vld [vmem:[%s6759 + $0x28] sm:$0xff]
        %v6766 = vld [vmem:[%s6759 + $0x30] sm:$0xff]
        %v6767 = vld [vmem:[%s6759 + $0x38] sm:$0xff]
        %v6769 = vsel %vm5458, %v6741, 0
        %v6772 = vsel %vm5458, %v6742, 0
        %v6775 = vsel %vm5458, %v6743, 0
        %v6778 = vsel %vm5458, %v6744, 0
        %v6781 = vsel %vm5458, %v6745, 0
        %v6784 = vsel %vm5458, %v6746, 0
        %v6787 = vsel %vm5458, %v6747, 0
        %v6790 = vsel %vm5458, %v6748, 0
        %v6793 = vsel %vm5458, %v6749, 0
        %v6796 = vsel %vm5458, %v6750, 0
        %v6799 = vsel %vm5458, %v6751, 0
        %v6802 = vsel %vm5458, %v6752, 0
        %v6805 = vsel %vm5458, %v6753, 0
        %v6808 = vsel %vm5458, %v6754, 0
        %v6811 = vsel %vm5458, %v6755, 0
        %v6814 = vsel %vm5458, %v6756, 0
        %v6817 = vsel %vm5458, %v6757, 0
        %v6820 = vsel %vm5458, %v6758, 0
        %6822 = vmatprep.subr.mxu0 0.0
        %6823 = vmatpush1.msra.mxu0 0.0
        %6824 = vmatprep.subr.mxu0 0.0
        %6825 = vmatpush1.msra.mxu0 0.0
        %6826 = vmatprep.subr.mxu0 0.0
        %6827 = vmatpush1.msra.mxu0 0.0
        %6828 = vmatprep.subr.mxu0 0.0
        %6829 = vmatpush1.msra.mxu0 0.0
        %6830 = vmatprep.subr.mxu0 0.0
        %6831 = vmatpush1.msra.mxu0 0.0
        %6832 = vmatprep.subr.mxu0 0.0
        %6833 = vmatpush1.msra.mxu0 0.0
        %6834 = vmatprep.subr.mxu0 0.0
        %6835 = vmatpush1.msra.mxu0 0.0
        %6836 = vmatprep.subr.mxu0 0.0
        %6837 = vmatpush1.msra.mxu0 0.0
        %6838 = vmatprep.subr.mxu0 0.0
        %6839 = vmatpush1.msra.mxu0 %v6767
        %6840 = vmatprep.subr.mxu0 0.0
        %6841 = vmatpush1.msra.mxu0 %v6766
        %6842 = vmatprep.subr.mxu0 0.0
        %6843 = vmatpush1.msra.mxu0 %v6765
        %6844 = vmatprep.subr.mxu0 0.0
        %6845 = vmatpush1.msra.mxu0 %v6764
        %6846 = vmatprep.subr.mxu0 0.0
        %6847 = vmatpush1.msra.mxu0 %v6763
        %6848 = vmatprep.subr.mxu0 0.0
        %6849 = vmatpush1.msra.mxu0 %v6762
        %6850 = vmatprep.subr.mxu0 0.0
        %6851 = vmatpush1.msra.mxu0 %v6761
        %6852 = vmatprep.subr.mxu0 0.0
        %6853 = vmatpush1.msra.mxu0 %v6760
        %6854 = vmatprep.subr.mxu0 0.0
        %6855 = vmatpush2.msra.mxu0 0.0
        %6856 = vmatprep.subr.mxu0 0.0
        %6857 = vmatpush2.msra.mxu0 0.0
        %6858 = vmatprep.subr.mxu0 0.0
        %6859 = vmatpush2.msra.mxu0 0.0
        %6860 = vmatprep.subr.mxu0 0.0
        %6861 = vmatpush2.msra.mxu0 0.0
        %6862 = vmatprep.subr.mxu0 0.0
        %6863 = vmatpush2.msra.mxu0 0.0
        %6864 = vmatprep.subr.mxu0 0.0
        %6865 = vmatpush2.msra.mxu0 0.0
        %6866 = vmatprep.subr.mxu0 0.0
        %6867 = vmatpush2.msra.mxu0 0.0
        %6868 = vmatprep.subr.mxu0 0.0
        %6869 = vmatpush2.msra.mxu0 0.0
        %6870 = vmatprep.subr.mxu0 0.0
        %6871 = vmatpush2.msra.mxu0 0.0
        %6872 = vmatprep.subr.mxu0 0.0
        %6873 = vmatpush2.msra.mxu0 0.0
        %6874 = vmatprep.subr.mxu0 0.0
        %6875 = vmatpush2.msra.mxu0 0.0
        %6876 = vmatprep.subr.mxu0 0.0
        %6877 = vmatpush2.msra.mxu0 0.0
        %6878 = vmatprep.subr.mxu0 0.0
        %6879 = vmatpush2.msra.mxu0 0.0
        %6880 = vmatprep.subr.mxu0 0.0
        %6881 = vmatpush2.msra.mxu0 0.0
        %6882 = vmatprep.subr.mxu0 0.0
        %6883 = vmatpush2.msra.mxu0 0.0
        %6884 = vmatprep.subr.mxu0 0.0
        %6885 = vmatpush2.msra.mxu0 0.0
        %6886 = vmatprep.mubr.f32.mxu0 0.0
        %6887 = vmatmul.mubr.f32.gmra.mxu0 %v6769
        %v6888 = vpop.f32.mrf.mxu0
        %v6889 = vadd.f32 0.0, %v6888
        %v6890 = vpop.f32.mrf.mxu0
        %6891 = vmatprep.mubr.f32.mxu0 0.0
        %6892 = vmatmul.mubr.f32.gmra.mxu0 %v6772
        %v6893 = vpop.f32.mrf.mxu0
        %v6894 = vadd.f32 0.0, %v6893
        %v6895 = vpop.f32.mrf.mxu0
        %6896 = vmatprep.mubr.f32.mxu0 0.0
        %6897 = vmatmul.mubr.f32.gmra.mxu0 %v6775
        %v6898 = vpop.f32.mrf.mxu0
        %v6899 = vadd.f32 0.0, %v6898
        %v6900 = vpop.f32.mrf.mxu0
        %6901 = vmatprep.mubr.f32.mxu0 0.0
        %6902 = vmatmul.mubr.f32.gmra.mxu0 %v6778
        %v6903 = vpop.f32.mrf.mxu0
        %v6904 = vadd.f32 0.0, %v6903
        %v6905 = vpop.f32.mrf.mxu0
        %6906 = vmatprep.mubr.f32.mxu0 0.0
        %6907 = vmatmul.mubr.f32.gmra.mxu0 %v6781
        %v6908 = vpop.f32.mrf.mxu0
        %v6909 = vadd.f32 0.0, %v6908
        %v6910 = vpop.f32.mrf.mxu0
        %6911 = vmatprep.mubr.f32.mxu0 0.0
        %6912 = vmatmul.mubr.f32.gmra.mxu0 %v6784
        %v6913 = vpop.f32.mrf.mxu0
        %v6914 = vadd.f32 0.0, %v6913
        %v6915 = vpop.f32.mrf.mxu0
        %6916 = vmatprep.mubr.f32.mxu0 0.0
        %6917 = vmatmul.mubr.f32.gmra.mxu0 %v6787
        %v6918 = vpop.f32.mrf.mxu0
        %v6919 = vadd.f32 0.0, %v6918
        %v6920 = vpop.f32.mrf.mxu0
        %6921 = vmatprep.mubr.f32.mxu0 0.0
        %6922 = vmatmul.mubr.f32.gmra.mxu0 %v6790
        %v6923 = vpop.f32.mrf.mxu0
        %v6924 = vadd.f32 0.0, %v6923
        %v6925 = vpop.f32.mrf.mxu0
        %6926 = vmatprep.mubr.f32.mxu0 0.0
        %6927 = vmatmul.mubr.f32.gmra.mxu0 %v6793
        %v6928 = vpop.f32.mrf.mxu0
        %v6929 = vadd.f32 0.0, %v6928
        %v6930 = vpop.f32.mrf.mxu0
        %6931 = vmatprep.mubr.f32.mxu0 0.0
        %6932 = vmatmul.mubr.f32.gmra.mxu0 %v6796
        %v6933 = vpop.f32.mrf.mxu0
        %v6934 = vadd.f32 0.0, %v6933
        %v6935 = vpop.f32.mrf.mxu0
        %6936 = vmatprep.mubr.f32.mxu0 0.0
        %6937 = vmatmul.mubr.f32.gmra.mxu0 %v6799
        %v6938 = vpop.f32.mrf.mxu0
        %v6939 = vadd.f32 0.0, %v6938
        %v6940 = vpop.f32.mrf.mxu0
        %6941 = vmatprep.mubr.f32.mxu0 0.0
        %6942 = vmatmul.mubr.f32.gmra.mxu0 %v6802
        %v6943 = vpop.f32.mrf.mxu0
        %v6944 = vadd.f32 0.0, %v6943
        %v6945 = vpop.f32.mrf.mxu0
        %6946 = vmatprep.mubr.f32.mxu0 0.0
        %6947 = vmatmul.mubr.f32.gmra.mxu0 %v6805
        %v6948 = vpop.f32.mrf.mxu0
        %v6949 = vadd.f32 0.0, %v6948
        %v6950 = vpop.f32.mrf.mxu0
        %6951 = vmatprep.mubr.f32.mxu0 0.0
        %6952 = vmatmul.mubr.f32.gmra.mxu0 %v6808
        %v6953 = vpop.f32.mrf.mxu0
        %v6954 = vadd.f32 0.0, %v6953
        %v6955 = vpop.f32.mrf.mxu0
        %6956 = vmatprep.mubr.f32.mxu0 0.0
        %6957 = vmatmul.mubr.f32.gmra.mxu0 %v6811
        %v6958 = vpop.f32.mrf.mxu0
        %v6959 = vadd.f32 0.0, %v6958
        %v6960 = vpop.f32.mrf.mxu0
        %6961 = vmatprep.mubr.f32.mxu0 0.0
        %6962 = vmatmul.mubr.f32.gmra.mxu0 %v6814
        %v6963 = vpop.f32.mrf.mxu0
        %v6964 = vadd.f32 0.0, %v6963
        %v6965 = vpop.f32.mrf.mxu0
        %6966 = vmatprep.mubr.f32.mxu0 0.0
        %6967 = vmatmul.mubr.f32.gmra.mxu0 %v6817
        %v6968 = vpop.f32.mrf.mxu0
        %v6969 = vadd.f32 0.0, %v6968
        %v6970 = vpop.f32.mrf.mxu0
        %6971 = vmatprep.mubr.f32.mxu0 0.0
        %6972 = vmatmul.mubr.f32.gmra.mxu0 %v6820
        %v6973 = vpop.f32.mrf.mxu0
        %v6974 = vadd.f32 0.0, %v6973
        %v6975 = vpop.f32.mrf.mxu0
        %6976 = vdwg.mxu0
        %v6977 = vadd.f32 %v6720, %v6889
        %v6978 = vadd.f32 %v6721, %v6894
        %v6979 = vadd.f32 %v6722, %v6899
        %v6980 = vadd.f32 %v6723, %v6904
        %v6981 = vadd.f32 %v6724, %v6909
        %v6982 = vadd.f32 %v6725, %v6914
        %v6983 = vadd.f32 %v6726, %v6919
        %v6984 = vadd.f32 %v6727, %v6924
        %v6985 = vadd.f32 %v6728, %v6929
        %v6986 = vadd.f32 %v6729, %v6934
        %v6987 = vadd.f32 %v6730, %v6939
        %v6988 = vadd.f32 %v6731, %v6944
        %v6989 = vadd.f32 %v6732, %v6949
        %v6990 = vadd.f32 %v6733, %v6954
        %v6991 = vadd.f32 %v6734, %v6959
        %v6992 = vadd.f32 %v6735, %v6964
        %v6993 = vadd.f32 %v6736, %v6969
        %v6994 = vadd.f32 %v6737, %v6974
        %s6995 = sadd.s32 %s5490, 6
        %s6996 = smul.u32 %s6995, 32
        %s6997 = scalar_lea.vmem [#allocation3], %s6996
        %v6998 = vld [vmem:[%s6997] sm:$0xff]
        %v6999 = vld [vmem:[%s6997 + $0x8] sm:$0xff]
        %v7000 = vld [vmem:[%s6997 + $0x10] sm:$0xff]
        %v7001 = vld [vmem:[%s6997 + $0x20] sm:$0xff]
        %v7002 = vld [vmem:[%s6997 + $0x28] sm:$0xff]
        %v7003 = vld [vmem:[%s6997 + $0x30] sm:$0xff]
        %v7004 = vld [vmem:[%s6997 + $0x40] sm:$0xff]
        %v7005 = vld [vmem:[%s6997 + $0x48] sm:$0xff]
        %v7006 = vld [vmem:[%s6997 + $0x50] sm:$0xff]
        %v7007 = vld [vmem:[%s6997 + $0x60] sm:$0xff]
        %v7008 = vld [vmem:[%s6997 + $0x68] sm:$0xff]
        %v7009 = vld [vmem:[%s6997 + $0x70] sm:$0xff]
        %v7010 = vld [vmem:[%s6997 + $0x80] sm:$0xff]
        %v7011 = vld [vmem:[%s6997 + $0x88] sm:$0xff]
        %v7012 = vld [vmem:[%s6997 + $0x90] sm:$0xff]
        %v7013 = vld [vmem:[%s6997 + $0xa0] sm:$0xff]
        %v7014 = vld [vmem:[%s6997 + $0xa8] sm:$0xff]
        %v7015 = vld [vmem:[%s6997 + $0xb0] sm:$0xff]
        %s7016 = scalar_lea.vmem %s9, 384
        %v7017 = vld [vmem:[%s7016] sm:$0xff]
        %v7018 = vld [vmem:[%s7016 + $0x8] sm:$0xff]
        %v7019 = vld [vmem:[%s7016 + $0x10] sm:$0xff]
        %v7020 = vld [vmem:[%s7016 + $0x18] sm:$0xff]
        %v7021 = vld [vmem:[%s7016 + $0x20] sm:$0xff]
        %v7022 = vld [vmem:[%s7016 + $0x28] sm:$0xff]
        %v7023 = vld [vmem:[%s7016 + $0x30] sm:$0xff]
        %v7024 = vld [vmem:[%s7016 + $0x38] sm:$0xff]
        %v7026 = vsel %vm5458, %v6998, 0
        %v7029 = vsel %vm5458, %v6999, 0
        %v7032 = vsel %vm5458, %v7000, 0
        %v7035 = vsel %vm5458, %v7001, 0
        %v7038 = vsel %vm5458, %v7002, 0
        %v7041 = vsel %vm5458, %v7003, 0
        %v7044 = vsel %vm5458, %v7004, 0
        %v7047 = vsel %vm5458, %v7005, 0
        %v7050 = vsel %vm5458, %v7006, 0
        %v7053 = vsel %vm5458, %v7007, 0
        %v7056 = vsel %vm5458, %v7008, 0
        %v7059 = vsel %vm5458, %v7009, 0
        %v7062 = vsel %vm5458, %v7010, 0
        %v7065 = vsel %vm5458, %v7011, 0
        %v7068 = vsel %vm5458, %v7012, 0
        %v7071 = vsel %vm5458, %v7013, 0
        %v7074 = vsel %vm5458, %v7014, 0
        %v7077 = vsel %vm5458, %v7015, 0
        %7079 = vmatprep.subr.mxu0 0.0
        %7080 = vmatpush1.msra.mxu0 0.0
        %7081 = vmatprep.subr.mxu0 0.0
        %7082 = vmatpush1.msra.mxu0 0.0
        %7083 = vmatprep.subr.mxu0 0.0
        %7084 = vmatpush1.msra.mxu0 0.0
        %7085 = vmatprep.subr.mxu0 0.0
        %7086 = vmatpush1.msra.mxu0 0.0
        %7087 = vmatprep.subr.mxu0 0.0
        %7088 = vmatpush1.msra.mxu0 0.0
        %7089 = vmatprep.subr.mxu0 0.0
        %7090 = vmatpush1.msra.mxu0 0.0
        %7091 = vmatprep.subr.mxu0 0.0
        %7092 = vmatpush1.msra.mxu0 0.0
        %7093 = vmatprep.subr.mxu0 0.0
        %7094 = vmatpush1.msra.mxu0 0.0
        %7095 = vmatprep.subr.mxu0 0.0
        %7096 = vmatpush1.msra.mxu0 %v7024
        %7097 = vmatprep.subr.mxu0 0.0
        %7098 = vmatpush1.msra.mxu0 %v7023
        %7099 = vmatprep.subr.mxu0 0.0
        %7100 = vmatpush1.msra.mxu0 %v7022
        %7101 = vmatprep.subr.mxu0 0.0
        %7102 = vmatpush1.msra.mxu0 %v7021
        %7103 = vmatprep.subr.mxu0 0.0
        %7104 = vmatpush1.msra.mxu0 %v7020
        %7105 = vmatprep.subr.mxu0 0.0
        %7106 = vmatpush1.msra.mxu0 %v7019
        %7107 = vmatprep.subr.mxu0 0.0
        %7108 = vmatpush1.msra.mxu0 %v7018
        %7109 = vmatprep.subr.mxu0 0.0
        %7110 = vmatpush1.msra.mxu0 %v7017
        %7111 = vmatprep.subr.mxu0 0.0
        %7112 = vmatpush2.msra.mxu0 0.0
        %7113 = vmatprep.subr.mxu0 0.0
        %7114 = vmatpush2.msra.mxu0 0.0
        %7115 = vmatprep.subr.mxu0 0.0
        %7116 = vmatpush2.msra.mxu0 0.0
        %7117 = vmatprep.subr.mxu0 0.0
        %7118 = vmatpush2.msra.mxu0 0.0
        %7119 = vmatprep.subr.mxu0 0.0
        %7120 = vmatpush2.msra.mxu0 0.0
        %7121 = vmatprep.subr.mxu0 0.0
        %7122 = vmatpush2.msra.mxu0 0.0
        %7123 = vmatprep.subr.mxu0 0.0
        %7124 = vmatpush2.msra.mxu0 0.0
        %7125 = vmatprep.subr.mxu0 0.0
        %7126 = vmatpush2.msra.mxu0 0.0
        %7127 = vmatprep.subr.mxu0 0.0
        %7128 = vmatpush2.msra.mxu0 0.0
        %7129 = vmatprep.subr.mxu0 0.0
        %7130 = vmatpush2.msra.mxu0 0.0
        %7131 = vmatprep.subr.mxu0 0.0
        %7132 = vmatpush2.msra.mxu0 0.0
        %7133 = vmatprep.subr.mxu0 0.0
        %7134 = vmatpush2.msra.mxu0 0.0
        %7135 = vmatprep.subr.mxu0 0.0
        %7136 = vmatpush2.msra.mxu0 0.0
        %7137 = vmatprep.subr.mxu0 0.0
        %7138 = vmatpush2.msra.mxu0 0.0
        %7139 = vmatprep.subr.mxu0 0.0
        %7140 = vmatpush2.msra.mxu0 0.0
        %7141 = vmatprep.subr.mxu0 0.0
        %7142 = vmatpush2.msra.mxu0 0.0
        %7143 = vmatprep.mubr.f32.mxu0 0.0
        %7144 = vmatmul.mubr.f32.gmra.mxu0 %v7026
        %v7145 = vpop.f32.mrf.mxu0
        %v7146 = vadd.f32 0.0, %v7145
        %v7147 = vpop.f32.mrf.mxu0
        %7148 = vmatprep.mubr.f32.mxu0 0.0
        %7149 = vmatmul.mubr.f32.gmra.mxu0 %v7029
        %v7150 = vpop.f32.mrf.mxu0
        %v7151 = vadd.f32 0.0, %v7150
        %v7152 = vpop.f32.mrf.mxu0
        %7153 = vmatprep.mubr.f32.mxu0 0.0
        %7154 = vmatmul.mubr.f32.gmra.mxu0 %v7032
        %v7155 = vpop.f32.mrf.mxu0
        %v7156 = vadd.f32 0.0, %v7155
        %v7157 = vpop.f32.mrf.mxu0
        %7158 = vmatprep.mubr.f32.mxu0 0.0
        %7159 = vmatmul.mubr.f32.gmra.mxu0 %v7035
        %v7160 = vpop.f32.mrf.mxu0
        %v7161 = vadd.f32 0.0, %v7160
        %v7162 = vpop.f32.mrf.mxu0
        %7163 = vmatprep.mubr.f32.mxu0 0.0
        %7164 = vmatmul.mubr.f32.gmra.mxu0 %v7038
        %v7165 = vpop.f32.mrf.mxu0
        %v7166 = vadd.f32 0.0, %v7165
        %v7167 = vpop.f32.mrf.mxu0
        %7168 = vmatprep.mubr.f32.mxu0 0.0
        %7169 = vmatmul.mubr.f32.gmra.mxu0 %v7041
        %v7170 = vpop.f32.mrf.mxu0
        %v7171 = vadd.f32 0.0, %v7170
        %v7172 = vpop.f32.mrf.mxu0
        %7173 = vmatprep.mubr.f32.mxu0 0.0
        %7174 = vmatmul.mubr.f32.gmra.mxu0 %v7044
        %v7175 = vpop.f32.mrf.mxu0
        %v7176 = vadd.f32 0.0, %v7175
        %v7177 = vpop.f32.mrf.mxu0
        %7178 = vmatprep.mubr.f32.mxu0 0.0
        %7179 = vmatmul.mubr.f32.gmra.mxu0 %v7047
        %v7180 = vpop.f32.mrf.mxu0
        %v7181 = vadd.f32 0.0, %v7180
        %v7182 = vpop.f32.mrf.mxu0
        %7183 = vmatprep.mubr.f32.mxu0 0.0
        %7184 = vmatmul.mubr.f32.gmra.mxu0 %v7050
        %v7185 = vpop.f32.mrf.mxu0
        %v7186 = vadd.f32 0.0, %v7185
        %v7187 = vpop.f32.mrf.mxu0
        %7188 = vmatprep.mubr.f32.mxu0 0.0
        %7189 = vmatmul.mubr.f32.gmra.mxu0 %v7053
        %v7190 = vpop.f32.mrf.mxu0
        %v7191 = vadd.f32 0.0, %v7190
        %v7192 = vpop.f32.mrf.mxu0
        %7193 = vmatprep.mubr.f32.mxu0 0.0
        %7194 = vmatmul.mubr.f32.gmra.mxu0 %v7056
        %v7195 = vpop.f32.mrf.mxu0
        %v7196 = vadd.f32 0.0, %v7195
        %v7197 = vpop.f32.mrf.mxu0
        %7198 = vmatprep.mubr.f32.mxu0 0.0
        %7199 = vmatmul.mubr.f32.gmra.mxu0 %v7059
        %v7200 = vpop.f32.mrf.mxu0
        %v7201 = vadd.f32 0.0, %v7200
        %v7202 = vpop.f32.mrf.mxu0
        %7203 = vmatprep.mubr.f32.mxu0 0.0
        %7204 = vmatmul.mubr.f32.gmra.mxu0 %v7062
        %v7205 = vpop.f32.mrf.mxu0
        %v7206 = vadd.f32 0.0, %v7205
        %v7207 = vpop.f32.mrf.mxu0
        %7208 = vmatprep.mubr.f32.mxu0 0.0
        %7209 = vmatmul.mubr.f32.gmra.mxu0 %v7065
        %v7210 = vpop.f32.mrf.mxu0
        %v7211 = vadd.f32 0.0, %v7210
        %v7212 = vpop.f32.mrf.mxu0
        %7213 = vmatprep.mubr.f32.mxu0 0.0
        %7214 = vmatmul.mubr.f32.gmra.mxu0 %v7068
        %v7215 = vpop.f32.mrf.mxu0
        %v7216 = vadd.f32 0.0, %v7215
        %v7217 = vpop.f32.mrf.mxu0
        %7218 = vmatprep.mubr.f32.mxu0 0.0
        %7219 = vmatmul.mubr.f32.gmra.mxu0 %v7071
        %v7220 = vpop.f32.mrf.mxu0
        %v7221 = vadd.f32 0.0, %v7220
        %v7222 = vpop.f32.mrf.mxu0
        %7223 = vmatprep.mubr.f32.mxu0 0.0
        %7224 = vmatmul.mubr.f32.gmra.mxu0 %v7074
        %v7225 = vpop.f32.mrf.mxu0
        %v7226 = vadd.f32 0.0, %v7225
        %v7227 = vpop.f32.mrf.mxu0
        %7228 = vmatprep.mubr.f32.mxu0 0.0
        %7229 = vmatmul.mubr.f32.gmra.mxu0 %v7077
        %v7230 = vpop.f32.mrf.mxu0
        %v7231 = vadd.f32 0.0, %v7230
        %v7232 = vpop.f32.mrf.mxu0
        %7233 = vdwg.mxu0
        %v7234 = vadd.f32 %v6977, %v7146
        %v7235 = vadd.f32 %v6978, %v7151
        %v7236 = vadd.f32 %v6979, %v7156
        %v7237 = vadd.f32 %v6980, %v7161
        %v7238 = vadd.f32 %v6981, %v7166
        %v7239 = vadd.f32 %v6982, %v7171
        %v7240 = vadd.f32 %v6983, %v7176
        %v7241 = vadd.f32 %v6984, %v7181
        %v7242 = vadd.f32 %v6985, %v7186
        %v7243 = vadd.f32 %v6986, %v7191
        %v7244 = vadd.f32 %v6987, %v7196
        %v7245 = vadd.f32 %v6988, %v7201
        %v7246 = vadd.f32 %v6989, %v7206
        %v7247 = vadd.f32 %v6990, %v7211
        %v7248 = vadd.f32 %v6991, %v7216
        %v7249 = vadd.f32 %v6992, %v7221
        %v7250 = vadd.f32 %v6993, %v7226
        %v7251 = vadd.f32 %v6994, %v7231
        %v7252 = vld [vmem:[%s10] sm:$0x1]
        %v7254 = vlaneseq
        %v7255 = vshrl.u32 %v7254, 7
        %v7256 = vsub.s32 0, %v7255
        %v7257 = vrot.slane %v7252, %v7256
        %v7259 = vadd.f32 %v7234, %v7257
        %v7260 = vadd.f32 %v7235, %v7257
        %v7261 = vadd.f32 %v7236, %v7257
        %v7262 = vadd.f32 %v7237, %v7257
        %v7263 = vadd.f32 %v7238, %v7257
        %v7264 = vadd.f32 %v7239, %v7257
        %v7265 = vadd.f32 %v7240, %v7257
        %v7266 = vadd.f32 %v7241, %v7257
        %v7267 = vadd.f32 %v7242, %v7257
        %v7268 = vadd.f32 %v7243, %v7257
        %v7269 = vadd.f32 %v7244, %v7257
        %v7270 = vadd.f32 %v7245, %v7257
        %v7271 = vadd.f32 %v7246, %v7257
        %v7272 = vadd.f32 %v7247, %v7257
        %v7273 = vadd.f32 %v7248, %v7257
        %v7274 = vadd.f32 %v7249, %v7257
        %v7275 = vadd.f32 %v7250, %v7257
        %v7276 = vadd.f32 %v7251, %v7257
        %v7277 = vmax.f32 %v7259, 0.0
        %v7278 = vmax.f32 %v7260, 0.0
        %v7279 = vmax.f32 %v7261, 0.0
        %v7280 = vmax.f32 %v7262, 0.0
        %v7281 = vmax.f32 %v7263, 0.0
        %v7282 = vmax.f32 %v7264, 0.0
        %v7283 = vmax.f32 %v7265, 0.0
        %v7284 = vmax.f32 %v7266, 0.0
        %v7285 = vmax.f32 %v7267, 0.0
        %v7286 = vmax.f32 %v7268, 0.0
        %v7287 = vmax.f32 %v7269, 0.0
        %v7288 = vmax.f32 %v7270, 0.0
        %v7289 = vmax.f32 %v7271, 0.0
        %v7290 = vmax.f32 %v7272, 0.0
        %v7291 = vmax.f32 %v7273, 0.0
        %v7292 = vmax.f32 %v7274, 0.0
        %v7293 = vmax.f32 %v7275, 0.0
        %v7294 = vmax.f32 %v7276, 0.0
        %s7295 = scalar_lea.vmem [#allocation2], %s5491
        %7296 = vst.msk [vmem:[%s7295] sm:$0xff] %vm5458, %v7277
        %7297 = vst.msk [vmem:[%s7295 + $0x8] sm:$0xff] %vm5458, %v7278
        %7298 = vst.msk [vmem:[%s7295 + $0x10] sm:$0xff] %vm5458, %v7279
        %7299 = vst.msk [vmem:[%s7295 + $0x20] sm:$0xff] %vm5458, %v7280
        %7300 = vst.msk [vmem:[%s7295 + $0x28] sm:$0xff] %vm5458, %v7281
        %7301 = vst.msk [vmem:[%s7295 + $0x30] sm:$0xff] %vm5458, %v7282
        %7302 = vst.msk [vmem:[%s7295 + $0x40] sm:$0xff] %vm5458, %v7283
        %7303 = vst.msk [vmem:[%s7295 + $0x48] sm:$0xff] %vm5458, %v7284
        %7304 = vst.msk [vmem:[%s7295 + $0x50] sm:$0xff] %vm5458, %v7285
        %7305 = vst.msk [vmem:[%s7295 + $0x60] sm:$0xff] %vm5458, %v7286
        %7306 = vst.msk [vmem:[%s7295 + $0x68] sm:$0xff] %vm5458, %v7287
        %7307 = vst.msk [vmem:[%s7295 + $0x70] sm:$0xff] %vm5458, %v7288
        %7308 = vst.msk [vmem:[%s7295 + $0x80] sm:$0xff] %vm5458, %v7289
        %7309 = vst.msk [vmem:[%s7295 + $0x88] sm:$0xff] %vm5458, %v7290
        %7310 = vst.msk [vmem:[%s7295 + $0x90] sm:$0xff] %vm5458, %v7291
        %7311 = vst.msk [vmem:[%s7295 + $0xa0] sm:$0xff] %vm5458, %v7292
        %7312 = vst.msk [vmem:[%s7295 + $0xa8] sm:$0xff] %vm5458, %v7293
        %7313 = vst.msk [vmem:[%s7295 + $0xb0] sm:$0xff] %vm5458, %v7294
      $region109: #{mixed_4a.1} parent=75 // loop_footer
        %s5489 = sadd.s32 1, %s5485
      $region110: #{mixed_4a.1} parent=75 // loop_footer_branch
        %5484 = sbr.rel target = $region106
      $region111: #{mixed_4a.1} parent=75 // loop_exit
        _
      loop: start=0, step=1, limit=3
      $region112: #{mixed_4a.1} parent=75 // loop_pre_header
        _
      $region113: #{mixed_4a.1} parent=75 // loop_header
        %s7315 = sphi 0, %s7319
        %p7316 = scmp.ge.s32.totalorder %s7315, 3
      $region114: #{mixed_4a.1} parent=75 // loop_header_branch
        %7318 = sbr.rel (%p7316) target = $region118
      $region115: #{mixed_4a.1} parent=75 // loop_body
        %s7320 = smul.u32 %s7315, 6
        %s7321 = smul.u32 %s7320, 32
        %s7322 = scalar_lea.vmem [#allocation2], %s7321
        %v7323 = vld [vmem:[%s7322] sm:$0xff]
        %v7324 = vld [vmem:[%s7322 + $0x8] sm:$0xff]
        %v7325 = vld [vmem:[%s7322 + $0x10] sm:$0xff]
        %v7326 = vld [vmem:[%s7322 + $0x20] sm:$0xff]
        %v7327 = vld [vmem:[%s7322 + $0x28] sm:$0xff]
        %v7328 = vld [vmem:[%s7322 + $0x30] sm:$0xff]
        %v7329 = vld [vmem:[%s7322 + $0x40] sm:$0xff]
        %v7330 = vld [vmem:[%s7322 + $0x48] sm:$0xff]
        %v7331 = vld [vmem:[%s7322 + $0x50] sm:$0xff]
        %v7332 = vld [vmem:[%s7322 + $0x60] sm:$0xff]
        %v7333 = vld [vmem:[%s7322 + $0x68] sm:$0xff]
        %v7334 = vld [vmem:[%s7322 + $0x70] sm:$0xff]
        %v7335 = vld [vmem:[%s7322 + $0x80] sm:$0xff]
        %v7336 = vld [vmem:[%s7322 + $0x88] sm:$0xff]
        %v7337 = vld [vmem:[%s7322 + $0x90] sm:$0xff]
        %v7338 = vld [vmem:[%s7322 + $0xa0] sm:$0xff]
        %v7339 = vld [vmem:[%s7322 + $0xa8] sm:$0xff]
        %v7340 = vld [vmem:[%s7322 + $0xb0] sm:$0xff]
        %v7341 = vld [vmem:[%s11] sm:$0xff]
        %v7342 = vld [vmem:[%s11 + $0x8] sm:$0xff]
        %v7343 = vld [vmem:[%s11 + $0x10] sm:$0xff]
        %v7344 = vld [vmem:[%s11 + $0x18] sm:$0xff]
        %v7345 = vld [vmem:[%s11 + $0x20] sm:$0xff]
        %v7346 = vld [vmem:[%s11 + $0x28] sm:$0xff]
        %v7347 = vld [vmem:[%s11 + $0x30] sm:$0xff]
        %v7348 = vld [vmem:[%s11 + $0x38] sm:$0xff]
        %v7349 = vld [vmem:[%s7322 + $0x1] sm:$0xff]
        %v7350 = vld [vmem:[%s7322 + $0x9] sm:$0xff]
        %v7351 = vld [vmem:[%s7322 + $0x11] sm:$0xff]
        %v7352 = vld [vmem:[%s7322 + $0x21] sm:$0xff]
        %v7353 = vld [vmem:[%s7322 + $0x29] sm:$0xff]
        %v7354 = vld [vmem:[%s7322 + $0x31] sm:$0xff]
        %v7355 = vld [vmem:[%s7322 + $0x41] sm:$0xff]
        %v7356 = vld [vmem:[%s7322 + $0x49] sm:$0xff]
        %v7357 = vld [vmem:[%s7322 + $0x51] sm:$0xff]
        %v7358 = vld [vmem:[%s7322 + $0x61] sm:$0xff]
        %v7359 = vld [vmem:[%s7322 + $0x69] sm:$0xff]
        %v7360 = vld [vmem:[%s7322 + $0x71] sm:$0xff]
        %v7361 = vld [vmem:[%s7322 + $0x81] sm:$0xff]
        %v7362 = vld [vmem:[%s7322 + $0x89] sm:$0xff]
        %v7363 = vld [vmem:[%s7322 + $0x91] sm:$0xff]
        %v7364 = vld [vmem:[%s7322 + $0xa1] sm:$0xff]
        %v7365 = vld [vmem:[%s7322 + $0xa9] sm:$0xff]
        %v7366 = vld [vmem:[%s7322 + $0xb1] sm:$0xff]
        %s7367 = scalar_lea.vmem %s11, 64
        %v7368 = vld [vmem:[%s7367] sm:$0xff]
        %v7369 = vld [vmem:[%s7367 + $0x8] sm:$0xff]
        %v7370 = vld [vmem:[%s7367 + $0x10] sm:$0xff]
        %v7371 = vld [vmem:[%s7367 + $0x18] sm:$0xff]
        %v7372 = vld [vmem:[%s7367 + $0x20] sm:$0xff]
        %v7373 = vld [vmem:[%s7367 + $0x28] sm:$0xff]
        %v7374 = vld [vmem:[%s7367 + $0x30] sm:$0xff]
        %v7375 = vld [vmem:[%s7367 + $0x38] sm:$0xff]
        %v7377 = vsel %vm5458, %v7349, 0
        %v7380 = vsel %vm5458, %v7350, 0
        %v7383 = vsel %vm5458, %v7351, 0
        %v7386 = vsel %vm5458, %v7352, 0
        %v7389 = vsel %vm5458, %v7353, 0
        %v7392 = vsel %vm5458, %v7354, 0
        %v7395 = vsel %vm5458, %v7355, 0
        %v7398 = vsel %vm5458, %v7356, 0
        %v7401 = vsel %vm5458, %v7357, 0
        %v7404 = vsel %vm5458, %v7358, 0
        %v7407 = vsel %vm5458, %v7359, 0
        %v7410 = vsel %vm5458, %v7360, 0
        %v7413 = vsel %vm5458, %v7361, 0
        %v7416 = vsel %vm5458, %v7362, 0
        %v7419 = vsel %vm5458, %v7363, 0
        %v7422 = vsel %vm5458, %v7364, 0
        %v7425 = vsel %vm5458, %v7365, 0
        %v7428 = vsel %vm5458, %v7366, 0
        %7430 = vmatprep.subr.mxu0 0.0
        %7431 = vmatpush1.msra.mxu0 0.0
        %7432 = vmatprep.subr.mxu0 0.0
        %7433 = vmatpush1.msra.mxu0 0.0
        %7434 = vmatprep.subr.mxu0 0.0
        %7435 = vmatpush1.msra.mxu0 0.0
        %7436 = vmatprep.subr.mxu0 0.0
        %7437 = vmatpush1.msra.mxu0 0.0
        %7438 = vmatprep.subr.mxu0 0.0
        %7439 = vmatpush1.msra.mxu0 0.0
        %7440 = vmatprep.subr.mxu0 0.0
        %7441 = vmatpush1.msra.mxu0 0.0
        %7442 = vmatprep.subr.mxu0 0.0
        %7443 = vmatpush1.msra.mxu0 0.0
        %7444 = vmatprep.subr.mxu0 0.0
        %7445 = vmatpush1.msra.mxu0 0.0
        %7446 = vmatprep.subr.mxu0 0.0
        %7447 = vmatpush1.msra.mxu0 %v7375
        %7448 = vmatprep.subr.mxu0 0.0
        %7449 = vmatpush1.msra.mxu0 %v7374
        %7450 = vmatprep.subr.mxu0 0.0
        %7451 = vmatpush1.msra.mxu0 %v7373
        %7452 = vmatprep.subr.mxu0 0.0
        %7453 = vmatpush1.msra.mxu0 %v7372
        %7454 = vmatprep.subr.mxu0 0.0
        %7455 = vmatpush1.msra.mxu0 %v7371
        %7456 = vmatprep.subr.mxu0 0.0
        %7457 = vmatpush1.msra.mxu0 %v7370
        %7458 = vmatprep.subr.mxu0 0.0
        %7459 = vmatpush1.msra.mxu0 %v7369
        %7460 = vmatprep.subr.mxu0 0.0
        %7461 = vmatpush1.msra.mxu0 %v7368
        %7462 = vmatprep.subr.mxu0 0.0
        %7463 = vmatpush2.msra.mxu0 0.0
        %7464 = vmatprep.subr.mxu0 0.0
        %7465 = vmatpush2.msra.mxu0 0.0
        %7466 = vmatprep.subr.mxu0 0.0
        %7467 = vmatpush2.msra.mxu0 0.0
        %7468 = vmatprep.subr.mxu0 0.0
        %7469 = vmatpush2.msra.mxu0 0.0
        %7470 = vmatprep.subr.mxu0 0.0
        %7471 = vmatpush2.msra.mxu0 0.0
        %7472 = vmatprep.subr.mxu0 0.0
        %7473 = vmatpush2.msra.mxu0 0.0
        %7474 = vmatprep.subr.mxu0 0.0
        %7475 = vmatpush2.msra.mxu0 0.0
        %7476 = vmatprep.subr.mxu0 0.0
        %7477 = vmatpush2.msra.mxu0 0.0
        %7478 = vmatprep.subr.mxu0 0.0
        %7479 = vmatpush2.msra.mxu0 0.0
        %7480 = vmatprep.subr.mxu0 0.0
        %7481 = vmatpush2.msra.mxu0 0.0
        %7482 = vmatprep.subr.mxu0 0.0
        %7483 = vmatpush2.msra.mxu0 0.0
        %7484 = vmatprep.subr.mxu0 0.0
        %7485 = vmatpush2.msra.mxu0 0.0
        %7486 = vmatprep.subr.mxu0 0.0
        %7487 = vmatpush2.msra.mxu0 0.0
        %7488 = vmatprep.subr.mxu0 0.0
        %7489 = vmatpush2.msra.mxu0 0.0
        %7490 = vmatprep.subr.mxu0 0.0
        %7491 = vmatpush2.msra.mxu0 0.0
        %7492 = vmatprep.subr.mxu0 0.0
        %7493 = vmatpush2.msra.mxu0 0.0
        %7494 = vmatprep.mubr.f32.mxu0 0.0
        %7495 = vmatmul.mubr.f32.gmra.mxu0 %v7377
        %v7496 = vpop.f32.mrf.mxu0
        %v7497 = vadd.f32 0.0, %v7496
        %v7498 = vpop.f32.mrf.mxu0
        %7499 = vmatprep.mubr.f32.mxu0 0.0
        %7500 = vmatmul.mubr.f32.gmra.mxu0 %v7380
        %v7501 = vpop.f32.mrf.mxu0
        %v7502 = vadd.f32 0.0, %v7501
        %v7503 = vpop.f32.mrf.mxu0
        %7504 = vmatprep.mubr.f32.mxu0 0.0
        %7505 = vmatmul.mubr.f32.gmra.mxu0 %v7383
        %v7506 = vpop.f32.mrf.mxu0
        %v7507 = vadd.f32 0.0, %v7506
        %v7508 = vpop.f32.mrf.mxu0
        %7509 = vmatprep.mubr.f32.mxu0 0.0
        %7510 = vmatmul.mubr.f32.gmra.mxu0 %v7386
        %v7511 = vpop.f32.mrf.mxu0
        %v7512 = vadd.f32 0.0, %v7511
        %v7513 = vpop.f32.mrf.mxu0
        %7514 = vmatprep.mubr.f32.mxu0 0.0
        %7515 = vmatmul.mubr.f32.gmra.mxu0 %v7389
        %v7516 = vpop.f32.mrf.mxu0
        %v7517 = vadd.f32 0.0, %v7516
        %v7518 = vpop.f32.mrf.mxu0
        %7519 = vmatprep.mubr.f32.mxu0 0.0
        %7520 = vmatmul.mubr.f32.gmra.mxu0 %v7392
        %v7521 = vpop.f32.mrf.mxu0
        %v7522 = vadd.f32 0.0, %v7521
        %v7523 = vpop.f32.mrf.mxu0
        %7524 = vmatprep.mubr.f32.mxu0 0.0
        %7525 = vmatmul.mubr.f32.gmra.mxu0 %v7395
        %v7526 = vpop.f32.mrf.mxu0
        %v7527 = vadd.f32 0.0, %v7526
        %v7528 = vpop.f32.mrf.mxu0
        %7529 = vmatprep.mubr.f32.mxu0 0.0
        %7530 = vmatmul.mubr.f32.gmra.mxu0 %v7398
        %v7531 = vpop.f32.mrf.mxu0
        %v7532 = vadd.f32 0.0, %v7531
        %v7533 = vpop.f32.mrf.mxu0
        %7534 = vmatprep.mubr.f32.mxu0 0.0
        %7535 = vmatmul.mubr.f32.gmra.mxu0 %v7401
        %v7536 = vpop.f32.mrf.mxu0
        %v7537 = vadd.f32 0.0, %v7536
        %v7538 = vpop.f32.mrf.mxu0
        %7539 = vmatprep.mubr.f32.mxu0 0.0
        %7540 = vmatmul.mubr.f32.gmra.mxu0 %v7404
        %v7541 = vpop.f32.mrf.mxu0
        %v7542 = vadd.f32 0.0, %v7541
        %v7543 = vpop.f32.mrf.mxu0
        %7544 = vmatprep.mubr.f32.mxu0 0.0
        %7545 = vmatmul.mubr.f32.gmra.mxu0 %v7407
        %v7546 = vpop.f32.mrf.mxu0
        %v7547 = vadd.f32 0.0, %v7546
        %v7548 = vpop.f32.mrf.mxu0
        %7549 = vmatprep.mubr.f32.mxu0 0.0
        %7550 = vmatmul.mubr.f32.gmra.mxu0 %v7410
        %v7551 = vpop.f32.mrf.mxu0
        %v7552 = vadd.f32 0.0, %v7551
        %v7553 = vpop.f32.mrf.mxu0
        %7554 = vmatprep.mubr.f32.mxu0 0.0
        %7555 = vmatmul.mubr.f32.gmra.mxu0 %v7413
        %v7556 = vpop.f32.mrf.mxu0
        %v7557 = vadd.f32 0.0, %v7556
        %v7558 = vpop.f32.mrf.mxu0
        %7559 = vmatprep.mubr.f32.mxu0 0.0
        %7560 = vmatmul.mubr.f32.gmra.mxu0 %v7416
        %v7561 = vpop.f32.mrf.mxu0
        %v7562 = vadd.f32 0.0, %v7561
        %v7563 = vpop.f32.mrf.mxu0
        %7564 = vmatprep.mubr.f32.mxu0 0.0
        %7565 = vmatmul.mubr.f32.gmra.mxu0 %v7419
        %v7566 = vpop.f32.mrf.mxu0
        %v7567 = vadd.f32 0.0, %v7566
        %v7568 = vpop.f32.mrf.mxu0
        %7569 = vmatprep.mubr.f32.mxu0 0.0
        %7570 = vmatmul.mubr.f32.gmra.mxu0 %v7422
        %v7571 = vpop.f32.mrf.mxu0
        %v7572 = vadd.f32 0.0, %v7571
        %v7573 = vpop.f32.mrf.mxu0
        %7574 = vmatprep.mubr.f32.mxu0 0.0
        %7575 = vmatmul.mubr.f32.gmra.mxu0 %v7425
        %v7576 = vpop.f32.mrf.mxu0
        %v7577 = vadd.f32 0.0, %v7576
        %v7578 = vpop.f32.mrf.mxu0
        %7579 = vmatprep.mubr.f32.mxu0 0.0
        %7580 = vmatmul.mubr.f32.gmra.mxu0 %v7428
        %v7581 = vpop.f32.mrf.mxu0
        %v7582 = vadd.f32 0.0, %v7581
        %v7583 = vpop.f32.mrf.mxu0
        %7584 = vdwg.mxu0
        %v7586 = vsel %vm5458, %v7323, 0
        %v7589 = vsel %vm5458, %v7324, 0
        %v7592 = vsel %vm5458, %v7325, 0
        %v7595 = vsel %vm5458, %v7326, 0
        %v7598 = vsel %vm5458, %v7327, 0
        %v7601 = vsel %vm5458, %v7328, 0
        %v7604 = vsel %vm5458, %v7329, 0
        %v7607 = vsel %vm5458, %v7330, 0
        %v7610 = vsel %vm5458, %v7331, 0
        %v7613 = vsel %vm5458, %v7332, 0
        %v7616 = vsel %vm5458, %v7333, 0
        %v7619 = vsel %vm5458, %v7334, 0
        %v7622 = vsel %vm5458, %v7335, 0
        %v7625 = vsel %vm5458, %v7336, 0
        %v7628 = vsel %vm5458, %v7337, 0
        %v7631 = vsel %vm5458, %v7338, 0
        %v7634 = vsel %vm5458, %v7339, 0
        %v7637 = vsel %vm5458, %v7340, 0
        %7639 = vmatprep.subr.mxu0 0.0
        %7640 = vmatpush1.msra.mxu0 0.0
        %7641 = vmatprep.subr.mxu0 0.0
        %7642 = vmatpush1.msra.mxu0 0.0
        %7643 = vmatprep.subr.mxu0 0.0
        %7644 = vmatpush1.msra.mxu0 0.0
        %7645 = vmatprep.subr.mxu0 0.0
        %7646 = vmatpush1.msra.mxu0 0.0
        %7647 = vmatprep.subr.mxu0 0.0
        %7648 = vmatpush1.msra.mxu0 0.0
        %7649 = vmatprep.subr.mxu0 0.0
        %7650 = vmatpush1.msra.mxu0 0.0
        %7651 = vmatprep.subr.mxu0 0.0
        %7652 = vmatpush1.msra.mxu0 0.0
        %7653 = vmatprep.subr.mxu0 0.0
        %7654 = vmatpush1.msra.mxu0 0.0
        %7655 = vmatprep.subr.mxu0 0.0
        %7656 = vmatpush1.msra.mxu0 %v7348
        %7657 = vmatprep.subr.mxu0 0.0
        %7658 = vmatpush1.msra.mxu0 %v7347
        %7659 = vmatprep.subr.mxu0 0.0
        %7660 = vmatpush1.msra.mxu0 %v7346
        %7661 = vmatprep.subr.mxu0 0.0
        %7662 = vmatpush1.msra.mxu0 %v7345
        %7663 = vmatprep.subr.mxu0 0.0
        %7664 = vmatpush1.msra.mxu0 %v7344
        %7665 = vmatprep.subr.mxu0 0.0
        %7666 = vmatpush1.msra.mxu0 %v7343
        %7667 = vmatprep.subr.mxu0 0.0
        %7668 = vmatpush1.msra.mxu0 %v7342
        %7669 = vmatprep.subr.mxu0 0.0
        %7670 = vmatpush1.msra.mxu0 %v7341
        %7671 = vmatprep.subr.mxu0 0.0
        %7672 = vmatpush2.msra.mxu0 0.0
        %7673 = vmatprep.subr.mxu0 0.0
        %7674 = vmatpush2.msra.mxu0 0.0
        %7675 = vmatprep.subr.mxu0 0.0
        %7676 = vmatpush2.msra.mxu0 0.0
        %7677 = vmatprep.subr.mxu0 0.0
        %7678 = vmatpush2.msra.mxu0 0.0
        %7679 = vmatprep.subr.mxu0 0.0
        %7680 = vmatpush2.msra.mxu0 0.0
        %7681 = vmatprep.subr.mxu0 0.0
        %7682 = vmatpush2.msra.mxu0 0.0
        %7683 = vmatprep.subr.mxu0 0.0
        %7684 = vmatpush2.msra.mxu0 0.0
        %7685 = vmatprep.subr.mxu0 0.0
        %7686 = vmatpush2.msra.mxu0 0.0
        %7687 = vmatprep.subr.mxu0 0.0
        %7688 = vmatpush2.msra.mxu0 0.0
        %7689 = vmatprep.subr.mxu0 0.0
        %7690 = vmatpush2.msra.mxu0 0.0
        %7691 = vmatprep.subr.mxu0 0.0
        %7692 = vmatpush2.msra.mxu0 0.0
        %7693 = vmatprep.subr.mxu0 0.0
        %7694 = vmatpush2.msra.mxu0 0.0
        %7695 = vmatprep.subr.mxu0 0.0
        %7696 = vmatpush2.msra.mxu0 0.0
        %7697 = vmatprep.subr.mxu0 0.0
        %7698 = vmatpush2.msra.mxu0 0.0
        %7699 = vmatprep.subr.mxu0 0.0
        %7700 = vmatpush2.msra.mxu0 0.0
        %7701 = vmatprep.subr.mxu0 0.0
        %7702 = vmatpush2.msra.mxu0 0.0
        %7703 = vmatprep.mubr.f32.mxu0 0.0
        %7704 = vmatmul.mubr.f32.gmra.mxu0 %v7586
        %v7705 = vpop.f32.mrf.mxu0
        %v7706 = vadd.f32 %v7497, %v7705
        %v7707 = vpop.f32.mrf.mxu0
        %7708 = vmatprep.mubr.f32.mxu0 0.0
        %7709 = vmatmul.mubr.f32.gmra.mxu0 %v7589
        %v7710 = vpop.f32.mrf.mxu0
        %v7711 = vadd.f32 %v7502, %v7710
        %v7712 = vpop.f32.mrf.mxu0
        %7713 = vmatprep.mubr.f32.mxu0 0.0
        %7714 = vmatmul.mubr.f32.gmra.mxu0 %v7592
        %v7715 = vpop.f32.mrf.mxu0
        %v7716 = vadd.f32 %v7507, %v7715
        %v7717 = vpop.f32.mrf.mxu0
        %7718 = vmatprep.mubr.f32.mxu0 0.0
        %7719 = vmatmul.mubr.f32.gmra.mxu0 %v7595
        %v7720 = vpop.f32.mrf.mxu0
        %v7721 = vadd.f32 %v7512, %v7720
        %v7722 = vpop.f32.mrf.mxu0
        %7723 = vmatprep.mubr.f32.mxu0 0.0
        %7724 = vmatmul.mubr.f32.gmra.mxu0 %v7598
        %v7725 = vpop.f32.mrf.mxu0
        %v7726 = vadd.f32 %v7517, %v7725
        %v7727 = vpop.f32.mrf.mxu0
        %7728 = vmatprep.mubr.f32.mxu0 0.0
        %7729 = vmatmul.mubr.f32.gmra.mxu0 %v7601
        %v7730 = vpop.f32.mrf.mxu0
        %v7731 = vadd.f32 %v7522, %v7730
        %v7732 = vpop.f32.mrf.mxu0
        %7733 = vmatprep.mubr.f32.mxu0 0.0
        %7734 = vmatmul.mubr.f32.gmra.mxu0 %v7604
        %v7735 = vpop.f32.mrf.mxu0
        %v7736 = vadd.f32 %v7527, %v7735
        %v7737 = vpop.f32.mrf.mxu0
        %7738 = vmatprep.mubr.f32.mxu0 0.0
        %7739 = vmatmul.mubr.f32.gmra.mxu0 %v7607
        %v7740 = vpop.f32.mrf.mxu0
        %v7741 = vadd.f32 %v7532, %v7740
        %v7742 = vpop.f32.mrf.mxu0
        %7743 = vmatprep.mubr.f32.mxu0 0.0
        %7744 = vmatmul.mubr.f32.gmra.mxu0 %v7610
        %v7745 = vpop.f32.mrf.mxu0
        %v7746 = vadd.f32 %v7537, %v7745
        %v7747 = vpop.f32.mrf.mxu0
        %7748 = vmatprep.mubr.f32.mxu0 0.0
        %7749 = vmatmul.mubr.f32.gmra.mxu0 %v7613
        %v7750 = vpop.f32.mrf.mxu0
        %v7751 = vadd.f32 %v7542, %v7750
        %v7752 = vpop.f32.mrf.mxu0
        %7753 = vmatprep.mubr.f32.mxu0 0.0
        %7754 = vmatmul.mubr.f32.gmra.mxu0 %v7616
        %v7755 = vpop.f32.mrf.mxu0
        %v7756 = vadd.f32 %v7547, %v7755
        %v7757 = vpop.f32.mrf.mxu0
        %7758 = vmatprep.mubr.f32.mxu0 0.0
        %7759 = vmatmul.mubr.f32.gmra.mxu0 %v7619
        %v7760 = vpop.f32.mrf.mxu0
        %v7761 = vadd.f32 %v7552, %v7760
        %v7762 = vpop.f32.mrf.mxu0
        %7763 = vmatprep.mubr.f32.mxu0 0.0
        %7764 = vmatmul.mubr.f32.gmra.mxu0 %v7622
        %v7765 = vpop.f32.mrf.mxu0
        %v7766 = vadd.f32 %v7557, %v7765
        %v7767 = vpop.f32.mrf.mxu0
        %7768 = vmatprep.mubr.f32.mxu0 0.0
        %7769 = vmatmul.mubr.f32.gmra.mxu0 %v7625
        %v7770 = vpop.f32.mrf.mxu0
        %v7771 = vadd.f32 %v7562, %v7770
        %v7772 = vpop.f32.mrf.mxu0
        %7773 = vmatprep.mubr.f32.mxu0 0.0
        %7774 = vmatmul.mubr.f32.gmra.mxu0 %v7628
        %v7775 = vpop.f32.mrf.mxu0
        %v7776 = vadd.f32 %v7567, %v7775
        %v7777 = vpop.f32.mrf.mxu0
        %7778 = vmatprep.mubr.f32.mxu0 0.0
        %7779 = vmatmul.mubr.f32.gmra.mxu0 %v7631
        %v7780 = vpop.f32.mrf.mxu0
        %v7781 = vadd.f32 %v7572, %v7780
        %v7782 = vpop.f32.mrf.mxu0
        %7783 = vmatprep.mubr.f32.mxu0 0.0
        %7784 = vmatmul.mubr.f32.gmra.mxu0 %v7634
        %v7785 = vpop.f32.mrf.mxu0
        %v7786 = vadd.f32 %v7577, %v7785
        %v7787 = vpop.f32.mrf.mxu0
        %7788 = vmatprep.mubr.f32.mxu0 0.0
        %7789 = vmatmul.mubr.f32.gmra.mxu0 %v7637
        %v7790 = vpop.f32.mrf.mxu0
        %v7791 = vadd.f32 %v7582, %v7790
        %v7792 = vpop.f32.mrf.mxu0
        %7793 = vdwg.mxu0
        %v7794 = vld [vmem:[%s7322 + $0x2] sm:$0xff]
        %v7795 = vld [vmem:[%s7322 + $0xa] sm:$0xff]
        %v7796 = vld [vmem:[%s7322 + $0x12] sm:$0xff]
        %v7797 = vld [vmem:[%s7322 + $0x22] sm:$0xff]
        %v7798 = vld [vmem:[%s7322 + $0x2a] sm:$0xff]
        %v7799 = vld [vmem:[%s7322 + $0x32] sm:$0xff]
        %v7800 = vld [vmem:[%s7322 + $0x42] sm:$0xff]
        %v7801 = vld [vmem:[%s7322 + $0x4a] sm:$0xff]
        %v7802 = vld [vmem:[%s7322 + $0x52] sm:$0xff]
        %v7803 = vld [vmem:[%s7322 + $0x62] sm:$0xff]
        %v7804 = vld [vmem:[%s7322 + $0x6a] sm:$0xff]
        %v7805 = vld [vmem:[%s7322 + $0x72] sm:$0xff]
        %v7806 = vld [vmem:[%s7322 + $0x82] sm:$0xff]
        %v7807 = vld [vmem:[%s7322 + $0x8a] sm:$0xff]
        %v7808 = vld [vmem:[%s7322 + $0x92] sm:$0xff]
        %v7809 = vld [vmem:[%s7322 + $0xa2] sm:$0xff]
        %v7810 = vld [vmem:[%s7322 + $0xaa] sm:$0xff]
        %v7811 = vld [vmem:[%s7322 + $0xb2] sm:$0xff]
        %s7812 = scalar_lea.vmem %s11, 128
        %v7813 = vld [vmem:[%s7812] sm:$0xff]
        %v7814 = vld [vmem:[%s7812 + $0x8] sm:$0xff]
        %v7815 = vld [vmem:[%s7812 + $0x10] sm:$0xff]
        %v7816 = vld [vmem:[%s7812 + $0x18] sm:$0xff]
        %v7817 = vld [vmem:[%s7812 + $0x20] sm:$0xff]
        %v7818 = vld [vmem:[%s7812 + $0x28] sm:$0xff]
        %v7819 = vld [vmem:[%s7812 + $0x30] sm:$0xff]
        %v7820 = vld [vmem:[%s7812 + $0x38] sm:$0xff]
        %v7822 = vsel %vm5458, %v7794, 0
        %v7825 = vsel %vm5458, %v7795, 0
        %v7828 = vsel %vm5458, %v7796, 0
        %v7831 = vsel %vm5458, %v7797, 0
        %v7834 = vsel %vm5458, %v7798, 0
        %v7837 = vsel %vm5458, %v7799, 0
        %v7840 = vsel %vm5458, %v7800, 0
        %v7843 = vsel %vm5458, %v7801, 0
        %v7846 = vsel %vm5458, %v7802, 0
        %v7849 = vsel %vm5458, %v7803, 0
        %v7852 = vsel %vm5458, %v7804, 0
        %v7855 = vsel %vm5458, %v7805, 0
        %v7858 = vsel %vm5458, %v7806, 0
        %v7861 = vsel %vm5458, %v7807, 0
        %v7864 = vsel %vm5458, %v7808, 0
        %v7867 = vsel %vm5458, %v7809, 0
        %v7870 = vsel %vm5458, %v7810, 0
        %v7873 = vsel %vm5458, %v7811, 0
        %7875 = vmatprep.subr.mxu0 0.0
        %7876 = vmatpush1.msra.mxu0 0.0
        %7877 = vmatprep.subr.mxu0 0.0
        %7878 = vmatpush1.msra.mxu0 0.0
        %7879 = vmatprep.subr.mxu0 0.0
        %7880 = vmatpush1.msra.mxu0 0.0
        %7881 = vmatprep.subr.mxu0 0.0
        %7882 = vmatpush1.msra.mxu0 0.0
        %7883 = vmatprep.subr.mxu0 0.0
        %7884 = vmatpush1.msra.mxu0 0.0
        %7885 = vmatprep.subr.mxu0 0.0
        %7886 = vmatpush1.msra.mxu0 0.0
        %7887 = vmatprep.subr.mxu0 0.0
        %7888 = vmatpush1.msra.mxu0 0.0
        %7889 = vmatprep.subr.mxu0 0.0
        %7890 = vmatpush1.msra.mxu0 0.0
        %7891 = vmatprep.subr.mxu0 0.0
        %7892 = vmatpush1.msra.mxu0 %v7820
        %7893 = vmatprep.subr.mxu0 0.0
        %7894 = vmatpush1.msra.mxu0 %v7819
        %7895 = vmatprep.subr.mxu0 0.0
        %7896 = vmatpush1.msra.mxu0 %v7818
        %7897 = vmatprep.subr.mxu0 0.0
        %7898 = vmatpush1.msra.mxu0 %v7817
        %7899 = vmatprep.subr.mxu0 0.0
        %7900 = vmatpush1.msra.mxu0 %v7816
        %7901 = vmatprep.subr.mxu0 0.0
        %7902 = vmatpush1.msra.mxu0 %v7815
        %7903 = vmatprep.subr.mxu0 0.0
        %7904 = vmatpush1.msra.mxu0 %v7814
        %7905 = vmatprep.subr.mxu0 0.0
        %7906 = vmatpush1.msra.mxu0 %v7813
        %7907 = vmatprep.subr.mxu0 0.0
        %7908 = vmatpush2.msra.mxu0 0.0
        %7909 = vmatprep.subr.mxu0 0.0
        %7910 = vmatpush2.msra.mxu0 0.0
        %7911 = vmatprep.subr.mxu0 0.0
        %7912 = vmatpush2.msra.mxu0 0.0
        %7913 = vmatprep.subr.mxu0 0.0
        %7914 = vmatpush2.msra.mxu0 0.0
        %7915 = vmatprep.subr.mxu0 0.0
        %7916 = vmatpush2.msra.mxu0 0.0
        %7917 = vmatprep.subr.mxu0 0.0
        %7918 = vmatpush2.msra.mxu0 0.0
        %7919 = vmatprep.subr.mxu0 0.0
        %7920 = vmatpush2.msra.mxu0 0.0
        %7921 = vmatprep.subr.mxu0 0.0
        %7922 = vmatpush2.msra.mxu0 0.0
        %7923 = vmatprep.subr.mxu0 0.0
        %7924 = vmatpush2.msra.mxu0 0.0
        %7925 = vmatprep.subr.mxu0 0.0
        %7926 = vmatpush2.msra.mxu0 0.0
        %7927 = vmatprep.subr.mxu0 0.0
        %7928 = vmatpush2.msra.mxu0 0.0
        %7929 = vmatprep.subr.mxu0 0.0
        %7930 = vmatpush2.msra.mxu0 0.0
        %7931 = vmatprep.subr.mxu0 0.0
        %7932 = vmatpush2.msra.mxu0 0.0
        %7933 = vmatprep.subr.mxu0 0.0
        %7934 = vmatpush2.msra.mxu0 0.0
        %7935 = vmatprep.subr.mxu0 0.0
        %7936 = vmatpush2.msra.mxu0 0.0
        %7937 = vmatprep.subr.mxu0 0.0
        %7938 = vmatpush2.msra.mxu0 0.0
        %7939 = vmatprep.mubr.f32.mxu0 0.0
        %7940 = vmatmul.mubr.f32.gmra.mxu0 %v7822
        %v7941 = vpop.f32.mrf.mxu0
        %v7942 = vadd.f32 0.0, %v7941
        %v7943 = vpop.f32.mrf.mxu0
        %7944 = vmatprep.mubr.f32.mxu0 0.0
        %7945 = vmatmul.mubr.f32.gmra.mxu0 %v7825
        %v7946 = vpop.f32.mrf.mxu0
        %v7947 = vadd.f32 0.0, %v7946
        %v7948 = vpop.f32.mrf.mxu0
        %7949 = vmatprep.mubr.f32.mxu0 0.0
        %7950 = vmatmul.mubr.f32.gmra.mxu0 %v7828
        %v7951 = vpop.f32.mrf.mxu0
        %v7952 = vadd.f32 0.0, %v7951
        %v7953 = vpop.f32.mrf.mxu0
        %7954 = vmatprep.mubr.f32.mxu0 0.0
        %7955 = vmatmul.mubr.f32.gmra.mxu0 %v7831
        %v7956 = vpop.f32.mrf.mxu0
        %v7957 = vadd.f32 0.0, %v7956
        %v7958 = vpop.f32.mrf.mxu0
        %7959 = vmatprep.mubr.f32.mxu0 0.0
        %7960 = vmatmul.mubr.f32.gmra.mxu0 %v7834
        %v7961 = vpop.f32.mrf.mxu0
        %v7962 = vadd.f32 0.0, %v7961
        %v7963 = vpop.f32.mrf.mxu0
        %7964 = vmatprep.mubr.f32.mxu0 0.0
        %7965 = vmatmul.mubr.f32.gmra.mxu0 %v7837
        %v7966 = vpop.f32.mrf.mxu0
        %v7967 = vadd.f32 0.0, %v7966
        %v7968 = vpop.f32.mrf.mxu0
        %7969 = vmatprep.mubr.f32.mxu0 0.0
        %7970 = vmatmul.mubr.f32.gmra.mxu0 %v7840
        %v7971 = vpop.f32.mrf.mxu0
        %v7972 = vadd.f32 0.0, %v7971
        %v7973 = vpop.f32.mrf.mxu0
        %7974 = vmatprep.mubr.f32.mxu0 0.0
        %7975 = vmatmul.mubr.f32.gmra.mxu0 %v7843
        %v7976 = vpop.f32.mrf.mxu0
        %v7977 = vadd.f32 0.0, %v7976
        %v7978 = vpop.f32.mrf.mxu0
        %7979 = vmatprep.mubr.f32.mxu0 0.0
        %7980 = vmatmul.mubr.f32.gmra.mxu0 %v7846
        %v7981 = vpop.f32.mrf.mxu0
        %v7982 = vadd.f32 0.0, %v7981
        %v7983 = vpop.f32.mrf.mxu0
        %7984 = vmatprep.mubr.f32.mxu0 0.0
        %7985 = vmatmul.mubr.f32.gmra.mxu0 %v7849
        %v7986 = vpop.f32.mrf.mxu0
        %v7987 = vadd.f32 0.0, %v7986
        %v7988 = vpop.f32.mrf.mxu0
        %7989 = vmatprep.mubr.f32.mxu0 0.0
        %7990 = vmatmul.mubr.f32.gmra.mxu0 %v7852
        %v7991 = vpop.f32.mrf.mxu0
        %v7992 = vadd.f32 0.0, %v7991
        %v7993 = vpop.f32.mrf.mxu0
        %7994 = vmatprep.mubr.f32.mxu0 0.0
        %7995 = vmatmul.mubr.f32.gmra.mxu0 %v7855
        %v7996 = vpop.f32.mrf.mxu0
        %v7997 = vadd.f32 0.0, %v7996
        %v7998 = vpop.f32.mrf.mxu0
        %7999 = vmatprep.mubr.f32.mxu0 0.0
        %8000 = vmatmul.mubr.f32.gmra.mxu0 %v7858
        %v8001 = vpop.f32.mrf.mxu0
        %v8002 = vadd.f32 0.0, %v8001
        %v8003 = vpop.f32.mrf.mxu0
        %8004 = vmatprep.mubr.f32.mxu0 0.0
        %8005 = vmatmul.mubr.f32.gmra.mxu0 %v7861
        %v8006 = vpop.f32.mrf.mxu0
        %v8007 = vadd.f32 0.0, %v8006
        %v8008 = vpop.f32.mrf.mxu0
        %8009 = vmatprep.mubr.f32.mxu0 0.0
        %8010 = vmatmul.mubr.f32.gmra.mxu0 %v7864
        %v8011 = vpop.f32.mrf.mxu0
        %v8012 = vadd.f32 0.0, %v8011
        %v8013 = vpop.f32.mrf.mxu0
        %8014 = vmatprep.mubr.f32.mxu0 0.0
        %8015 = vmatmul.mubr.f32.gmra.mxu0 %v7867
        %v8016 = vpop.f32.mrf.mxu0
        %v8017 = vadd.f32 0.0, %v8016
        %v8018 = vpop.f32.mrf.mxu0
        %8019 = vmatprep.mubr.f32.mxu0 0.0
        %8020 = vmatmul.mubr.f32.gmra.mxu0 %v7870
        %v8021 = vpop.f32.mrf.mxu0
        %v8022 = vadd.f32 0.0, %v8021
        %v8023 = vpop.f32.mrf.mxu0
        %8024 = vmatprep.mubr.f32.mxu0 0.0
        %8025 = vmatmul.mubr.f32.gmra.mxu0 %v7873
        %v8026 = vpop.f32.mrf.mxu0
        %v8027 = vadd.f32 0.0, %v8026
        %v8028 = vpop.f32.mrf.mxu0
        %8029 = vdwg.mxu0
        %v8030 = vadd.f32 %v7706, %v7942
        %v8031 = vadd.f32 %v7711, %v7947
        %v8032 = vadd.f32 %v7716, %v7952
        %v8033 = vadd.f32 %v7721, %v7957
        %v8034 = vadd.f32 %v7726, %v7962
        %v8035 = vadd.f32 %v7731, %v7967
        %v8036 = vadd.f32 %v7736, %v7972
        %v8037 = vadd.f32 %v7741, %v7977
        %v8038 = vadd.f32 %v7746, %v7982
        %v8039 = vadd.f32 %v7751, %v7987
        %v8040 = vadd.f32 %v7756, %v7992
        %v8041 = vadd.f32 %v7761, %v7997
        %v8042 = vadd.f32 %v7766, %v8002
        %v8043 = vadd.f32 %v7771, %v8007
        %v8044 = vadd.f32 %v7776, %v8012
        %v8045 = vadd.f32 %v7781, %v8017
        %v8046 = vadd.f32 %v7786, %v8022
        %v8047 = vadd.f32 %v7791, %v8027
        %s8048 = sadd.s32 %s7320, 1
        %s8049 = smul.u32 %s8048, 32
        %s8050 = scalar_lea.vmem [#allocation2], %s8049
        %v8051 = vld [vmem:[%s8050] sm:$0xff]
        %v8052 = vld [vmem:[%s8050 + $0x8] sm:$0xff]
        %v8053 = vld [vmem:[%s8050 + $0x10] sm:$0xff]
        %v8054 = vld [vmem:[%s8050 + $0x20] sm:$0xff]
        %v8055 = vld [vmem:[%s8050 + $0x28] sm:$0xff]
        %v8056 = vld [vmem:[%s8050 + $0x30] sm:$0xff]
        %v8057 = vld [vmem:[%s8050 + $0x40] sm:$0xff]
        %v8058 = vld [vmem:[%s8050 + $0x48] sm:$0xff]
        %v8059 = vld [vmem:[%s8050 + $0x50] sm:$0xff]
        %v8060 = vld [vmem:[%s8050 + $0x60] sm:$0xff]
        %v8061 = vld [vmem:[%s8050 + $0x68] sm:$0xff]
        %v8062 = vld [vmem:[%s8050 + $0x70] sm:$0xff]
        %v8063 = vld [vmem:[%s8050 + $0x80] sm:$0xff]
        %v8064 = vld [vmem:[%s8050 + $0x88] sm:$0xff]
        %v8065 = vld [vmem:[%s8050 + $0x90] sm:$0xff]
        %v8066 = vld [vmem:[%s8050 + $0xa0] sm:$0xff]
        %v8067 = vld [vmem:[%s8050 + $0xa8] sm:$0xff]
        %v8068 = vld [vmem:[%s8050 + $0xb0] sm:$0xff]
        %s8069 = scalar_lea.vmem %s11, 192
        %v8070 = vld [vmem:[%s8069] sm:$0xff]
        %v8071 = vld [vmem:[%s8069 + $0x8] sm:$0xff]
        %v8072 = vld [vmem:[%s8069 + $0x10] sm:$0xff]
        %v8073 = vld [vmem:[%s8069 + $0x18] sm:$0xff]
        %v8074 = vld [vmem:[%s8069 + $0x20] sm:$0xff]
        %v8075 = vld [vmem:[%s8069 + $0x28] sm:$0xff]
        %v8076 = vld [vmem:[%s8069 + $0x30] sm:$0xff]
        %v8077 = vld [vmem:[%s8069 + $0x38] sm:$0xff]
        %v8079 = vsel %vm5458, %v8051, 0
        %v8082 = vsel %vm5458, %v8052, 0
        %v8085 = vsel %vm5458, %v8053, 0
        %v8088 = vsel %vm5458, %v8054, 0
        %v8091 = vsel %vm5458, %v8055, 0
        %v8094 = vsel %vm5458, %v8056, 0
        %v8097 = vsel %vm5458, %v8057, 0
        %v8100 = vsel %vm5458, %v8058, 0
        %v8103 = vsel %vm5458, %v8059, 0
        %v8106 = vsel %vm5458, %v8060, 0
        %v8109 = vsel %vm5458, %v8061, 0
        %v8112 = vsel %vm5458, %v8062, 0
        %v8115 = vsel %vm5458, %v8063, 0
        %v8118 = vsel %vm5458, %v8064, 0
        %v8121 = vsel %vm5458, %v8065, 0
        %v8124 = vsel %vm5458, %v8066, 0
        %v8127 = vsel %vm5458, %v8067, 0
        %v8130 = vsel %vm5458, %v8068, 0
        %8132 = vmatprep.subr.mxu0 0.0
        %8133 = vmatpush1.msra.mxu0 0.0
        %8134 = vmatprep.subr.mxu0 0.0
        %8135 = vmatpush1.msra.mxu0 0.0
        %8136 = vmatprep.subr.mxu0 0.0
        %8137 = vmatpush1.msra.mxu0 0.0
        %8138 = vmatprep.subr.mxu0 0.0
        %8139 = vmatpush1.msra.mxu0 0.0
        %8140 = vmatprep.subr.mxu0 0.0
        %8141 = vmatpush1.msra.mxu0 0.0
        %8142 = vmatprep.subr.mxu0 0.0
        %8143 = vmatpush1.msra.mxu0 0.0
        %8144 = vmatprep.subr.mxu0 0.0
        %8145 = vmatpush1.msra.mxu0 0.0
        %8146 = vmatprep.subr.mxu0 0.0
        %8147 = vmatpush1.msra.mxu0 0.0
        %8148 = vmatprep.subr.mxu0 0.0
        %8149 = vmatpush1.msra.mxu0 %v8077
        %8150 = vmatprep.subr.mxu0 0.0
        %8151 = vmatpush1.msra.mxu0 %v8076
        %8152 = vmatprep.subr.mxu0 0.0
        %8153 = vmatpush1.msra.mxu0 %v8075
        %8154 = vmatprep.subr.mxu0 0.0
        %8155 = vmatpush1.msra.mxu0 %v8074
        %8156 = vmatprep.subr.mxu0 0.0
        %8157 = vmatpush1.msra.mxu0 %v8073
        %8158 = vmatprep.subr.mxu0 0.0
        %8159 = vmatpush1.msra.mxu0 %v8072
        %8160 = vmatprep.subr.mxu0 0.0
        %8161 = vmatpush1.msra.mxu0 %v8071
        %8162 = vmatprep.subr.mxu0 0.0
        %8163 = vmatpush1.msra.mxu0 %v8070
        %8164 = vmatprep.subr.mxu0 0.0
        %8165 = vmatpush2.msra.mxu0 0.0
        %8166 = vmatprep.subr.mxu0 0.0
        %8167 = vmatpush2.msra.mxu0 0.0
        %8168 = vmatprep.subr.mxu0 0.0
        %8169 = vmatpush2.msra.mxu0 0.0
        %8170 = vmatprep.subr.mxu0 0.0
        %8171 = vmatpush2.msra.mxu0 0.0
        %8172 = vmatprep.subr.mxu0 0.0
        %8173 = vmatpush2.msra.mxu0 0.0
        %8174 = vmatprep.subr.mxu0 0.0
        %8175 = vmatpush2.msra.mxu0 0.0
        %8176 = vmatprep.subr.mxu0 0.0
        %8177 = vmatpush2.msra.mxu0 0.0
        %8178 = vmatprep.subr.mxu0 0.0
        %8179 = vmatpush2.msra.mxu0 0.0
        %8180 = vmatprep.subr.mxu0 0.0
        %8181 = vmatpush2.msra.mxu0 0.0
        %8182 = vmatprep.subr.mxu0 0.0
        %8183 = vmatpush2.msra.mxu0 0.0
        %8184 = vmatprep.subr.mxu0 0.0
        %8185 = vmatpush2.msra.mxu0 0.0
        %8186 = vmatprep.subr.mxu0 0.0
        %8187 = vmatpush2.msra.mxu0 0.0
        %8188 = vmatprep.subr.mxu0 0.0
        %8189 = vmatpush2.msra.mxu0 0.0
        %8190 = vmatprep.subr.mxu0 0.0
        %8191 = vmatpush2.msra.mxu0 0.0
        %8192 = vmatprep.subr.mxu0 0.0
        %8193 = vmatpush2.msra.mxu0 0.0
        %8194 = vmatprep.subr.mxu0 0.0
        %8195 = vmatpush2.msra.mxu0 0.0
        %8196 = vmatprep.mubr.f32.mxu0 0.0
        %8197 = vmatmul.mubr.f32.gmra.mxu0 %v8079
        %v8198 = vpop.f32.mrf.mxu0
        %v8199 = vadd.f32 0.0, %v8198
        %v8200 = vpop.f32.mrf.mxu0
        %8201 = vmatprep.mubr.f32.mxu0 0.0
        %8202 = vmatmul.mubr.f32.gmra.mxu0 %v8082
        %v8203 = vpop.f32.mrf.mxu0
        %v8204 = vadd.f32 0.0, %v8203
        %v8205 = vpop.f32.mrf.mxu0
        %8206 = vmatprep.mubr.f32.mxu0 0.0
        %8207 = vmatmul.mubr.f32.gmra.mxu0 %v8085
        %v8208 = vpop.f32.mrf.mxu0
        %v8209 = vadd.f32 0.0, %v8208
        %v8210 = vpop.f32.mrf.mxu0
        %8211 = vmatprep.mubr.f32.mxu0 0.0
        %8212 = vmatmul.mubr.f32.gmra.mxu0 %v8088
        %v8213 = vpop.f32.mrf.mxu0
        %v8214 = vadd.f32 0.0, %v8213
        %v8215 = vpop.f32.mrf.mxu0
        %8216 = vmatprep.mubr.f32.mxu0 0.0
        %8217 = vmatmul.mubr.f32.gmra.mxu0 %v8091
        %v8218 = vpop.f32.mrf.mxu0
        %v8219 = vadd.f32 0.0, %v8218
        %v8220 = vpop.f32.mrf.mxu0
        %8221 = vmatprep.mubr.f32.mxu0 0.0
        %8222 = vmatmul.mubr.f32.gmra.mxu0 %v8094
        %v8223 = vpop.f32.mrf.mxu0
        %v8224 = vadd.f32 0.0, %v8223
        %v8225 = vpop.f32.mrf.mxu0
        %8226 = vmatprep.mubr.f32.mxu0 0.0
        %8227 = vmatmul.mubr.f32.gmra.mxu0 %v8097
        %v8228 = vpop.f32.mrf.mxu0
        %v8229 = vadd.f32 0.0, %v8228
        %v8230 = vpop.f32.mrf.mxu0
        %8231 = vmatprep.mubr.f32.mxu0 0.0
        %8232 = vmatmul.mubr.f32.gmra.mxu0 %v8100
        %v8233 = vpop.f32.mrf.mxu0
        %v8234 = vadd.f32 0.0, %v8233
        %v8235 = vpop.f32.mrf.mxu0
        %8236 = vmatprep.mubr.f32.mxu0 0.0
        %8237 = vmatmul.mubr.f32.gmra.mxu0 %v8103
        %v8238 = vpop.f32.mrf.mxu0
        %v8239 = vadd.f32 0.0, %v8238
        %v8240 = vpop.f32.mrf.mxu0
        %8241 = vmatprep.mubr.f32.mxu0 0.0
        %8242 = vmatmul.mubr.f32.gmra.mxu0 %v8106
        %v8243 = vpop.f32.mrf.mxu0
        %v8244 = vadd.f32 0.0, %v8243
        %v8245 = vpop.f32.mrf.mxu0
        %8246 = vmatprep.mubr.f32.mxu0 0.0
        %8247 = vmatmul.mubr.f32.gmra.mxu0 %v8109
        %v8248 = vpop.f32.mrf.mxu0
        %v8249 = vadd.f32 0.0, %v8248
        %v8250 = vpop.f32.mrf.mxu0
        %8251 = vmatprep.mubr.f32.mxu0 0.0
        %8252 = vmatmul.mubr.f32.gmra.mxu0 %v8112
        %v8253 = vpop.f32.mrf.mxu0
        %v8254 = vadd.f32 0.0, %v8253
        %v8255 = vpop.f32.mrf.mxu0
        %8256 = vmatprep.mubr.f32.mxu0 0.0
        %8257 = vmatmul.mubr.f32.gmra.mxu0 %v8115
        %v8258 = vpop.f32.mrf.mxu0
        %v8259 = vadd.f32 0.0, %v8258
        %v8260 = vpop.f32.mrf.mxu0
        %8261 = vmatprep.mubr.f32.mxu0 0.0
        %8262 = vmatmul.mubr.f32.gmra.mxu0 %v8118
        %v8263 = vpop.f32.mrf.mxu0
        %v8264 = vadd.f32 0.0, %v8263
        %v8265 = vpop.f32.mrf.mxu0
        %8266 = vmatprep.mubr.f32.mxu0 0.0
        %8267 = vmatmul.mubr.f32.gmra.mxu0 %v8121
        %v8268 = vpop.f32.mrf.mxu0
        %v8269 = vadd.f32 0.0, %v8268
        %v8270 = vpop.f32.mrf.mxu0
        %8271 = vmatprep.mubr.f32.mxu0 0.0
        %8272 = vmatmul.mubr.f32.gmra.mxu0 %v8124
        %v8273 = vpop.f32.mrf.mxu0
        %v8274 = vadd.f32 0.0, %v8273
        %v8275 = vpop.f32.mrf.mxu0
        %8276 = vmatprep.mubr.f32.mxu0 0.0
        %8277 = vmatmul.mubr.f32.gmra.mxu0 %v8127
        %v8278 = vpop.f32.mrf.mxu0
        %v8279 = vadd.f32 0.0, %v8278
        %v8280 = vpop.f32.mrf.mxu0
        %8281 = vmatprep.mubr.f32.mxu0 0.0
        %8282 = vmatmul.mubr.f32.gmra.mxu0 %v8130
        %v8283 = vpop.f32.mrf.mxu0
        %v8284 = vadd.f32 0.0, %v8283
        %v8285 = vpop.f32.mrf.mxu0
        %8286 = vdwg.mxu0
        %v8287 = vadd.f32 %v8030, %v8199
        %v8288 = vadd.f32 %v8031, %v8204
        %v8289 = vadd.f32 %v8032, %v8209
        %v8290 = vadd.f32 %v8033, %v8214
        %v8291 = vadd.f32 %v8034, %v8219
        %v8292 = vadd.f32 %v8035, %v8224
        %v8293 = vadd.f32 %v8036, %v8229
        %v8294 = vadd.f32 %v8037, %v8234
        %v8295 = vadd.f32 %v8038, %v8239
        %v8296 = vadd.f32 %v8039, %v8244
        %v8297 = vadd.f32 %v8040, %v8249
        %v8298 = vadd.f32 %v8041, %v8254
        %v8299 = vadd.f32 %v8042, %v8259
        %v8300 = vadd.f32 %v8043, %v8264
        %v8301 = vadd.f32 %v8044, %v8269
        %v8302 = vadd.f32 %v8045, %v8274
        %v8303 = vadd.f32 %v8046, %v8279
        %v8304 = vadd.f32 %v8047, %v8284
        %v8305 = vld [vmem:[%s8050 + $0x1] sm:$0xff]
        %v8306 = vld [vmem:[%s8050 + $0x9] sm:$0xff]
        %v8307 = vld [vmem:[%s8050 + $0x11] sm:$0xff]
        %v8308 = vld [vmem:[%s8050 + $0x21] sm:$0xff]
        %v8309 = vld [vmem:[%s8050 + $0x29] sm:$0xff]
        %v8310 = vld [vmem:[%s8050 + $0x31] sm:$0xff]
        %v8311 = vld [vmem:[%s8050 + $0x41] sm:$0xff]
        %v8312 = vld [vmem:[%s8050 + $0x49] sm:$0xff]
        %v8313 = vld [vmem:[%s8050 + $0x51] sm:$0xff]
        %v8314 = vld [vmem:[%s8050 + $0x61] sm:$0xff]
        %v8315 = vld [vmem:[%s8050 + $0x69] sm:$0xff]
        %v8316 = vld [vmem:[%s8050 + $0x71] sm:$0xff]
        %v8317 = vld [vmem:[%s8050 + $0x81] sm:$0xff]
        %v8318 = vld [vmem:[%s8050 + $0x89] sm:$0xff]
        %v8319 = vld [vmem:[%s8050 + $0x91] sm:$0xff]
        %v8320 = vld [vmem:[%s8050 + $0xa1] sm:$0xff]
        %v8321 = vld [vmem:[%s8050 + $0xa9] sm:$0xff]
        %v8322 = vld [vmem:[%s8050 + $0xb1] sm:$0xff]
        %s8323 = scalar_lea.vmem %s11, 256
        %v8324 = vld [vmem:[%s8323] sm:$0xff]
        %v8325 = vld [vmem:[%s8323 + $0x8] sm:$0xff]
        %v8326 = vld [vmem:[%s8323 + $0x10] sm:$0xff]
        %v8327 = vld [vmem:[%s8323 + $0x18] sm:$0xff]
        %v8328 = vld [vmem:[%s8323 + $0x20] sm:$0xff]
        %v8329 = vld [vmem:[%s8323 + $0x28] sm:$0xff]
        %v8330 = vld [vmem:[%s8323 + $0x30] sm:$0xff]
        %v8331 = vld [vmem:[%s8323 + $0x38] sm:$0xff]
        %v8333 = vsel %vm5458, %v8305, 0
        %v8336 = vsel %vm5458, %v8306, 0
        %v8339 = vsel %vm5458, %v8307, 0
        %v8342 = vsel %vm5458, %v8308, 0
        %v8345 = vsel %vm5458, %v8309, 0
        %v8348 = vsel %vm5458, %v8310, 0
        %v8351 = vsel %vm5458, %v8311, 0
        %v8354 = vsel %vm5458, %v8312, 0
        %v8357 = vsel %vm5458, %v8313, 0
        %v8360 = vsel %vm5458, %v8314, 0
        %v8363 = vsel %vm5458, %v8315, 0
        %v8366 = vsel %vm5458, %v8316, 0
        %v8369 = vsel %vm5458, %v8317, 0
        %v8372 = vsel %vm5458, %v8318, 0
        %v8375 = vsel %vm5458, %v8319, 0
        %v8378 = vsel %vm5458, %v8320, 0
        %v8381 = vsel %vm5458, %v8321, 0
        %v8384 = vsel %vm5458, %v8322, 0
        %8386 = vmatprep.subr.mxu0 0.0
        %8387 = vmatpush1.msra.mxu0 0.0
        %8388 = vmatprep.subr.mxu0 0.0
        %8389 = vmatpush1.msra.mxu0 0.0
        %8390 = vmatprep.subr.mxu0 0.0
        %8391 = vmatpush1.msra.mxu0 0.0
        %8392 = vmatprep.subr.mxu0 0.0
        %8393 = vmatpush1.msra.mxu0 0.0
        %8394 = vmatprep.subr.mxu0 0.0
        %8395 = vmatpush1.msra.mxu0 0.0
        %8396 = vmatprep.subr.mxu0 0.0
        %8397 = vmatpush1.msra.mxu0 0.0
        %8398 = vmatprep.subr.mxu0 0.0
        %8399 = vmatpush1.msra.mxu0 0.0
        %8400 = vmatprep.subr.mxu0 0.0
        %8401 = vmatpush1.msra.mxu0 0.0
        %8402 = vmatprep.subr.mxu0 0.0
        %8403 = vmatpush1.msra.mxu0 %v8331
        %8404 = vmatprep.subr.mxu0 0.0
        %8405 = vmatpush1.msra.mxu0 %v8330
        %8406 = vmatprep.subr.mxu0 0.0
        %8407 = vmatpush1.msra.mxu0 %v8329
        %8408 = vmatprep.subr.mxu0 0.0
        %8409 = vmatpush1.msra.mxu0 %v8328
        %8410 = vmatprep.subr.mxu0 0.0
        %8411 = vmatpush1.msra.mxu0 %v8327
        %8412 = vmatprep.subr.mxu0 0.0
        %8413 = vmatpush1.msra.mxu0 %v8326
        %8414 = vmatprep.subr.mxu0 0.0
        %8415 = vmatpush1.msra.mxu0 %v8325
        %8416 = vmatprep.subr.mxu0 0.0
        %8417 = vmatpush1.msra.mxu0 %v8324
        %8418 = vmatprep.subr.mxu0 0.0
        %8419 = vmatpush2.msra.mxu0 0.0
        %8420 = vmatprep.subr.mxu0 0.0
        %8421 = vmatpush2.msra.mxu0 0.0
        %8422 = vmatprep.subr.mxu0 0.0
        %8423 = vmatpush2.msra.mxu0 0.0
        %8424 = vmatprep.subr.mxu0 0.0
        %8425 = vmatpush2.msra.mxu0 0.0
        %8426 = vmatprep.subr.mxu0 0.0
        %8427 = vmatpush2.msra.mxu0 0.0
        %8428 = vmatprep.subr.mxu0 0.0
        %8429 = vmatpush2.msra.mxu0 0.0
        %8430 = vmatprep.subr.mxu0 0.0
        %8431 = vmatpush2.msra.mxu0 0.0
        %8432 = vmatprep.subr.mxu0 0.0
        %8433 = vmatpush2.msra.mxu0 0.0
        %8434 = vmatprep.subr.mxu0 0.0
        %8435 = vmatpush2.msra.mxu0 0.0
        %8436 = vmatprep.subr.mxu0 0.0
        %8437 = vmatpush2.msra.mxu0 0.0
        %8438 = vmatprep.subr.mxu0 0.0
        %8439 = vmatpush2.msra.mxu0 0.0
        %8440 = vmatprep.subr.mxu0 0.0
        %8441 = vmatpush2.msra.mxu0 0.0
        %8442 = vmatprep.subr.mxu0 0.0
        %8443 = vmatpush2.msra.mxu0 0.0
        %8444 = vmatprep.subr.mxu0 0.0
        %8445 = vmatpush2.msra.mxu0 0.0
        %8446 = vmatprep.subr.mxu0 0.0
        %8447 = vmatpush2.msra.mxu0 0.0
        %8448 = vmatprep.subr.mxu0 0.0
        %8449 = vmatpush2.msra.mxu0 0.0
        %8450 = vmatprep.mubr.f32.mxu0 0.0
        %8451 = vmatmul.mubr.f32.gmra.mxu0 %v8333
        %v8452 = vpop.f32.mrf.mxu0
        %v8453 = vadd.f32 0.0, %v8452
        %v8454 = vpop.f32.mrf.mxu0
        %8455 = vmatprep.mubr.f32.mxu0 0.0
        %8456 = vmatmul.mubr.f32.gmra.mxu0 %v8336
        %v8457 = vpop.f32.mrf.mxu0
        %v8458 = vadd.f32 0.0, %v8457
        %v8459 = vpop.f32.mrf.mxu0
        %8460 = vmatprep.mubr.f32.mxu0 0.0
        %8461 = vmatmul.mubr.f32.gmra.mxu0 %v8339
        %v8462 = vpop.f32.mrf.mxu0
        %v8463 = vadd.f32 0.0, %v8462
        %v8464 = vpop.f32.mrf.mxu0
        %8465 = vmatprep.mubr.f32.mxu0 0.0
        %8466 = vmatmul.mubr.f32.gmra.mxu0 %v8342
        %v8467 = vpop.f32.mrf.mxu0
        %v8468 = vadd.f32 0.0, %v8467
        %v8469 = vpop.f32.mrf.mxu0
        %8470 = vmatprep.mubr.f32.mxu0 0.0
        %8471 = vmatmul.mubr.f32.gmra.mxu0 %v8345
        %v8472 = vpop.f32.mrf.mxu0
        %v8473 = vadd.f32 0.0, %v8472
        %v8474 = vpop.f32.mrf.mxu0
        %8475 = vmatprep.mubr.f32.mxu0 0.0
        %8476 = vmatmul.mubr.f32.gmra.mxu0 %v8348
        %v8477 = vpop.f32.mrf.mxu0
        %v8478 = vadd.f32 0.0, %v8477
        %v8479 = vpop.f32.mrf.mxu0
        %8480 = vmatprep.mubr.f32.mxu0 0.0
        %8481 = vmatmul.mubr.f32.gmra.mxu0 %v8351
        %v8482 = vpop.f32.mrf.mxu0
        %v8483 = vadd.f32 0.0, %v8482
        %v8484 = vpop.f32.mrf.mxu0
        %8485 = vmatprep.mubr.f32.mxu0 0.0
        %8486 = vmatmul.mubr.f32.gmra.mxu0 %v8354
        %v8487 = vpop.f32.mrf.mxu0
        %v8488 = vadd.f32 0.0, %v8487
        %v8489 = vpop.f32.mrf.mxu0
        %8490 = vmatprep.mubr.f32.mxu0 0.0
        %8491 = vmatmul.mubr.f32.gmra.mxu0 %v8357
        %v8492 = vpop.f32.mrf.mxu0
        %v8493 = vadd.f32 0.0, %v8492
        %v8494 = vpop.f32.mrf.mxu0
        %8495 = vmatprep.mubr.f32.mxu0 0.0
        %8496 = vmatmul.mubr.f32.gmra.mxu0 %v8360
        %v8497 = vpop.f32.mrf.mxu0
        %v8498 = vadd.f32 0.0, %v8497
        %v8499 = vpop.f32.mrf.mxu0
        %8500 = vmatprep.mubr.f32.mxu0 0.0
        %8501 = vmatmul.mubr.f32.gmra.mxu0 %v8363
        %v8502 = vpop.f32.mrf.mxu0
        %v8503 = vadd.f32 0.0, %v8502
        %v8504 = vpop.f32.mrf.mxu0
        %8505 = vmatprep.mubr.f32.mxu0 0.0
        %8506 = vmatmul.mubr.f32.gmra.mxu0 %v8366
        %v8507 = vpop.f32.mrf.mxu0
        %v8508 = vadd.f32 0.0, %v8507
        %v8509 = vpop.f32.mrf.mxu0
        %8510 = vmatprep.mubr.f32.mxu0 0.0
        %8511 = vmatmul.mubr.f32.gmra.mxu0 %v8369
        %v8512 = vpop.f32.mrf.mxu0
        %v8513 = vadd.f32 0.0, %v8512
        %v8514 = vpop.f32.mrf.mxu0
        %8515 = vmatprep.mubr.f32.mxu0 0.0
        %8516 = vmatmul.mubr.f32.gmra.mxu0 %v8372
        %v8517 = vpop.f32.mrf.mxu0
        %v8518 = vadd.f32 0.0, %v8517
        %v8519 = vpop.f32.mrf.mxu0
        %8520 = vmatprep.mubr.f32.mxu0 0.0
        %8521 = vmatmul.mubr.f32.gmra.mxu0 %v8375
        %v8522 = vpop.f32.mrf.mxu0
        %v8523 = vadd.f32 0.0, %v8522
        %v8524 = vpop.f32.mrf.mxu0
        %8525 = vmatprep.mubr.f32.mxu0 0.0
        %8526 = vmatmul.mubr.f32.gmra.mxu0 %v8378
        %v8527 = vpop.f32.mrf.mxu0
        %v8528 = vadd.f32 0.0, %v8527
        %v8529 = vpop.f32.mrf.mxu0
        %8530 = vmatprep.mubr.f32.mxu0 0.0
        %8531 = vmatmul.mubr.f32.gmra.mxu0 %v8381
        %v8532 = vpop.f32.mrf.mxu0
        %v8533 = vadd.f32 0.0, %v8532
        %v8534 = vpop.f32.mrf.mxu0
        %8535 = vmatprep.mubr.f32.mxu0 0.0
        %8536 = vmatmul.mubr.f32.gmra.mxu0 %v8384
        %v8537 = vpop.f32.mrf.mxu0
        %v8538 = vadd.f32 0.0, %v8537
        %v8539 = vpop.f32.mrf.mxu0
        %8540 = vdwg.mxu0
        %v8541 = vadd.f32 %v8287, %v8453
        %v8542 = vadd.f32 %v8288, %v8458
        %v8543 = vadd.f32 %v8289, %v8463
        %v8544 = vadd.f32 %v8290, %v8468
        %v8545 = vadd.f32 %v8291, %v8473
        %v8546 = vadd.f32 %v8292, %v8478
        %v8547 = vadd.f32 %v8293, %v8483
        %v8548 = vadd.f32 %v8294, %v8488
        %v8549 = vadd.f32 %v8295, %v8493
        %v8550 = vadd.f32 %v8296, %v8498
        %v8551 = vadd.f32 %v8297, %v8503
        %v8552 = vadd.f32 %v8298, %v8508
        %v8553 = vadd.f32 %v8299, %v8513
        %v8554 = vadd.f32 %v8300, %v8518
        %v8555 = vadd.f32 %v8301, %v8523
        %v8556 = vadd.f32 %v8302, %v8528
        %v8557 = vadd.f32 %v8303, %v8533
        %v8558 = vadd.f32 %v8304, %v8538
        %v8559 = vld [vmem:[%s8050 + $0x2] sm:$0xff]
        %v8560 = vld [vmem:[%s8050 + $0xa] sm:$0xff]
        %v8561 = vld [vmem:[%s8050 + $0x12] sm:$0xff]
        %v8562 = vld [vmem:[%s8050 + $0x22] sm:$0xff]
        %v8563 = vld [vmem:[%s8050 + $0x2a] sm:$0xff]
        %v8564 = vld [vmem:[%s8050 + $0x32] sm:$0xff]
        %v8565 = vld [vmem:[%s8050 + $0x42] sm:$0xff]
        %v8566 = vld [vmem:[%s8050 + $0x4a] sm:$0xff]
        %v8567 = vld [vmem:[%s8050 + $0x52] sm:$0xff]
        %v8568 = vld [vmem:[%s8050 + $0x62] sm:$0xff]
        %v8569 = vld [vmem:[%s8050 + $0x6a] sm:$0xff]
        %v8570 = vld [vmem:[%s8050 + $0x72] sm:$0xff]
        %v8571 = vld [vmem:[%s8050 + $0x82] sm:$0xff]
        %v8572 = vld [vmem:[%s8050 + $0x8a] sm:$0xff]
        %v8573 = vld [vmem:[%s8050 + $0x92] sm:$0xff]
        %v8574 = vld [vmem:[%s8050 + $0xa2] sm:$0xff]
        %v8575 = vld [vmem:[%s8050 + $0xaa] sm:$0xff]
        %v8576 = vld [vmem:[%s8050 + $0xb2] sm:$0xff]
        %s8577 = scalar_lea.vmem %s11, 320
        %v8578 = vld [vmem:[%s8577] sm:$0xff]
        %v8579 = vld [vmem:[%s8577 + $0x8] sm:$0xff]
        %v8580 = vld [vmem:[%s8577 + $0x10] sm:$0xff]
        %v8581 = vld [vmem:[%s8577 + $0x18] sm:$0xff]
        %v8582 = vld [vmem:[%s8577 + $0x20] sm:$0xff]
        %v8583 = vld [vmem:[%s8577 + $0x28] sm:$0xff]
        %v8584 = vld [vmem:[%s8577 + $0x30] sm:$0xff]
        %v8585 = vld [vmem:[%s8577 + $0x38] sm:$0xff]
        %v8587 = vsel %vm5458, %v8559, 0
        %v8590 = vsel %vm5458, %v8560, 0
        %v8593 = vsel %vm5458, %v8561, 0
        %v8596 = vsel %vm5458, %v8562, 0
        %v8599 = vsel %vm5458, %v8563, 0
        %v8602 = vsel %vm5458, %v8564, 0
        %v8605 = vsel %vm5458, %v8565, 0
        %v8608 = vsel %vm5458, %v8566, 0
        %v8611 = vsel %vm5458, %v8567, 0
        %v8614 = vsel %vm5458, %v8568, 0
        %v8617 = vsel %vm5458, %v8569, 0
        %v8620 = vsel %vm5458, %v8570, 0
        %v8623 = vsel %vm5458, %v8571, 0
        %v8626 = vsel %vm5458, %v8572, 0
        %v8629 = vsel %vm5458, %v8573, 0
        %v8632 = vsel %vm5458, %v8574, 0
        %v8635 = vsel %vm5458, %v8575, 0
        %v8638 = vsel %vm5458, %v8576, 0
        %8640 = vmatprep.subr.mxu0 0.0
        %8641 = vmatpush1.msra.mxu0 0.0
        %8642 = vmatprep.subr.mxu0 0.0
        %8643 = vmatpush1.msra.mxu0 0.0
        %8644 = vmatprep.subr.mxu0 0.0
        %8645 = vmatpush1.msra.mxu0 0.0
        %8646 = vmatprep.subr.mxu0 0.0
        %8647 = vmatpush1.msra.mxu0 0.0
        %8648 = vmatprep.subr.mxu0 0.0
        %8649 = vmatpush1.msra.mxu0 0.0
        %8650 = vmatprep.subr.mxu0 0.0
        %8651 = vmatpush1.msra.mxu0 0.0
        %8652 = vmatprep.subr.mxu0 0.0
        %8653 = vmatpush1.msra.mxu0 0.0
        %8654 = vmatprep.subr.mxu0 0.0
        %8655 = vmatpush1.msra.mxu0 0.0
        %8656 = vmatprep.subr.mxu0 0.0
        %8657 = vmatpush1.msra.mxu0 %v8585
        %8658 = vmatprep.subr.mxu0 0.0
        %8659 = vmatpush1.msra.mxu0 %v8584
        %8660 = vmatprep.subr.mxu0 0.0
        %8661 = vmatpush1.msra.mxu0 %v8583
        %8662 = vmatprep.subr.mxu0 0.0
        %8663 = vmatpush1.msra.mxu0 %v8582
        %8664 = vmatprep.subr.mxu0 0.0
        %8665 = vmatpush1.msra.mxu0 %v8581
        %8666 = vmatprep.subr.mxu0 0.0
        %8667 = vmatpush1.msra.mxu0 %v8580
        %8668 = vmatprep.subr.mxu0 0.0
        %8669 = vmatpush1.msra.mxu0 %v8579
        %8670 = vmatprep.subr.mxu0 0.0
        %8671 = vmatpush1.msra.mxu0 %v8578
        %8672 = vmatprep.subr.mxu0 0.0
        %8673 = vmatpush2.msra.mxu0 0.0
        %8674 = vmatprep.subr.mxu0 0.0
        %8675 = vmatpush2.msra.mxu0 0.0
        %8676 = vmatprep.subr.mxu0 0.0
        %8677 = vmatpush2.msra.mxu0 0.0
        %8678 = vmatprep.subr.mxu0 0.0
        %8679 = vmatpush2.msra.mxu0 0.0
        %8680 = vmatprep.subr.mxu0 0.0
        %8681 = vmatpush2.msra.mxu0 0.0
        %8682 = vmatprep.subr.mxu0 0.0
        %8683 = vmatpush2.msra.mxu0 0.0
        %8684 = vmatprep.subr.mxu0 0.0
        %8685 = vmatpush2.msra.mxu0 0.0
        %8686 = vmatprep.subr.mxu0 0.0
        %8687 = vmatpush2.msra.mxu0 0.0
        %8688 = vmatprep.subr.mxu0 0.0
        %8689 = vmatpush2.msra.mxu0 0.0
        %8690 = vmatprep.subr.mxu0 0.0
        %8691 = vmatpush2.msra.mxu0 0.0
        %8692 = vmatprep.subr.mxu0 0.0
        %8693 = vmatpush2.msra.mxu0 0.0
        %8694 = vmatprep.subr.mxu0 0.0
        %8695 = vmatpush2.msra.mxu0 0.0
        %8696 = vmatprep.subr.mxu0 0.0
        %8697 = vmatpush2.msra.mxu0 0.0
        %8698 = vmatprep.subr.mxu0 0.0
        %8699 = vmatpush2.msra.mxu0 0.0
        %8700 = vmatprep.subr.mxu0 0.0
        %8701 = vmatpush2.msra.mxu0 0.0
        %8702 = vmatprep.subr.mxu0 0.0
        %8703 = vmatpush2.msra.mxu0 0.0
        %8704 = vmatprep.mubr.f32.mxu0 0.0
        %8705 = vmatmul.mubr.f32.gmra.mxu0 %v8587
        %v8706 = vpop.f32.mrf.mxu0
        %v8707 = vadd.f32 0.0, %v8706
        %v8708 = vpop.f32.mrf.mxu0
        %8709 = vmatprep.mubr.f32.mxu0 0.0
        %8710 = vmatmul.mubr.f32.gmra.mxu0 %v8590
        %v8711 = vpop.f32.mrf.mxu0
        %v8712 = vadd.f32 0.0, %v8711
        %v8713 = vpop.f32.mrf.mxu0
        %8714 = vmatprep.mubr.f32.mxu0 0.0
        %8715 = vmatmul.mubr.f32.gmra.mxu0 %v8593
        %v8716 = vpop.f32.mrf.mxu0
        %v8717 = vadd.f32 0.0, %v8716
        %v8718 = vpop.f32.mrf.mxu0
        %8719 = vmatprep.mubr.f32.mxu0 0.0
        %8720 = vmatmul.mubr.f32.gmra.mxu0 %v8596
        %v8721 = vpop.f32.mrf.mxu0
        %v8722 = vadd.f32 0.0, %v8721
        %v8723 = vpop.f32.mrf.mxu0
        %8724 = vmatprep.mubr.f32.mxu0 0.0
        %8725 = vmatmul.mubr.f32.gmra.mxu0 %v8599
        %v8726 = vpop.f32.mrf.mxu0
        %v8727 = vadd.f32 0.0, %v8726
        %v8728 = vpop.f32.mrf.mxu0
        %8729 = vmatprep.mubr.f32.mxu0 0.0
        %8730 = vmatmul.mubr.f32.gmra.mxu0 %v8602
        %v8731 = vpop.f32.mrf.mxu0
        %v8732 = vadd.f32 0.0, %v8731
        %v8733 = vpop.f32.mrf.mxu0
        %8734 = vmatprep.mubr.f32.mxu0 0.0
        %8735 = vmatmul.mubr.f32.gmra.mxu0 %v8605
        %v8736 = vpop.f32.mrf.mxu0
        %v8737 = vadd.f32 0.0, %v8736
        %v8738 = vpop.f32.mrf.mxu0
        %8739 = vmatprep.mubr.f32.mxu0 0.0
        %8740 = vmatmul.mubr.f32.gmra.mxu0 %v8608
        %v8741 = vpop.f32.mrf.mxu0
        %v8742 = vadd.f32 0.0, %v8741
        %v8743 = vpop.f32.mrf.mxu0
        %8744 = vmatprep.mubr.f32.mxu0 0.0
        %8745 = vmatmul.mubr.f32.gmra.mxu0 %v8611
        %v8746 = vpop.f32.mrf.mxu0
        %v8747 = vadd.f32 0.0, %v8746
        %v8748 = vpop.f32.mrf.mxu0
        %8749 = vmatprep.mubr.f32.mxu0 0.0
        %8750 = vmatmul.mubr.f32.gmra.mxu0 %v8614
        %v8751 = vpop.f32.mrf.mxu0
        %v8752 = vadd.f32 0.0, %v8751
        %v8753 = vpop.f32.mrf.mxu0
        %8754 = vmatprep.mubr.f32.mxu0 0.0
        %8755 = vmatmul.mubr.f32.gmra.mxu0 %v8617
        %v8756 = vpop.f32.mrf.mxu0
        %v8757 = vadd.f32 0.0, %v8756
        %v8758 = vpop.f32.mrf.mxu0
        %8759 = vmatprep.mubr.f32.mxu0 0.0
        %8760 = vmatmul.mubr.f32.gmra.mxu0 %v8620
        %v8761 = vpop.f32.mrf.mxu0
        %v8762 = vadd.f32 0.0, %v8761
        %v8763 = vpop.f32.mrf.mxu0
        %8764 = vmatprep.mubr.f32.mxu0 0.0
        %8765 = vmatmul.mubr.f32.gmra.mxu0 %v8623
        %v8766 = vpop.f32.mrf.mxu0
        %v8767 = vadd.f32 0.0, %v8766
        %v8768 = vpop.f32.mrf.mxu0
        %8769 = vmatprep.mubr.f32.mxu0 0.0
        %8770 = vmatmul.mubr.f32.gmra.mxu0 %v8626
        %v8771 = vpop.f32.mrf.mxu0
        %v8772 = vadd.f32 0.0, %v8771
        %v8773 = vpop.f32.mrf.mxu0
        %8774 = vmatprep.mubr.f32.mxu0 0.0
        %8775 = vmatmul.mubr.f32.gmra.mxu0 %v8629
        %v8776 = vpop.f32.mrf.mxu0
        %v8777 = vadd.f32 0.0, %v8776
        %v8778 = vpop.f32.mrf.mxu0
        %8779 = vmatprep.mubr.f32.mxu0 0.0
        %8780 = vmatmul.mubr.f32.gmra.mxu0 %v8632
        %v8781 = vpop.f32.mrf.mxu0
        %v8782 = vadd.f32 0.0, %v8781
        %v8783 = vpop.f32.mrf.mxu0
        %8784 = vmatprep.mubr.f32.mxu0 0.0
        %8785 = vmatmul.mubr.f32.gmra.mxu0 %v8635
        %v8786 = vpop.f32.mrf.mxu0
        %v8787 = vadd.f32 0.0, %v8786
        %v8788 = vpop.f32.mrf.mxu0
        %8789 = vmatprep.mubr.f32.mxu0 0.0
        %8790 = vmatmul.mubr.f32.gmra.mxu0 %v8638
        %v8791 = vpop.f32.mrf.mxu0
        %v8792 = vadd.f32 0.0, %v8791
        %v8793 = vpop.f32.mrf.mxu0
        %8794 = vdwg.mxu0
        %v8795 = vadd.f32 %v8541, %v8707
        %v8796 = vadd.f32 %v8542, %v8712
        %v8797 = vadd.f32 %v8543, %v8717
        %v8798 = vadd.f32 %v8544, %v8722
        %v8799 = vadd.f32 %v8545, %v8727
        %v8800 = vadd.f32 %v8546, %v8732
        %v8801 = vadd.f32 %v8547, %v8737
        %v8802 = vadd.f32 %v8548, %v8742
        %v8803 = vadd.f32 %v8549, %v8747
        %v8804 = vadd.f32 %v8550, %v8752
        %v8805 = vadd.f32 %v8551, %v8757
        %v8806 = vadd.f32 %v8552, %v8762
        %v8807 = vadd.f32 %v8553, %v8767
        %v8808 = vadd.f32 %v8554, %v8772
        %v8809 = vadd.f32 %v8555, %v8777
        %v8810 = vadd.f32 %v8556, %v8782
        %v8811 = vadd.f32 %v8557, %v8787
        %v8812 = vadd.f32 %v8558, %v8792
        %s8813 = sadd.s32 %s7320, 2
        %s8814 = smul.u32 %s8813, 32
        %s8815 = scalar_lea.vmem [#allocation2], %s8814
        %v8816 = vld [vmem:[%s8815] sm:$0xff]
        %v8817 = vld [vmem:[%s8815 + $0x8] sm:$0xff]
        %v8818 = vld [vmem:[%s8815 + $0x10] sm:$0xff]
        %v8819 = vld [vmem:[%s8815 + $0x20] sm:$0xff]
        %v8820 = vld [vmem:[%s8815 + $0x28] sm:$0xff]
        %v8821 = vld [vmem:[%s8815 + $0x30] sm:$0xff]
        %v8822 = vld [vmem:[%s8815 + $0x40] sm:$0xff]
        %v8823 = vld [vmem:[%s8815 + $0x48] sm:$0xff]
        %v8824 = vld [vmem:[%s8815 + $0x50] sm:$0xff]
        %v8825 = vld [vmem:[%s8815 + $0x60] sm:$0xff]
        %v8826 = vld [vmem:[%s8815 + $0x68] sm:$0xff]
        %v8827 = vld [vmem:[%s8815 + $0x70] sm:$0xff]
        %v8828 = vld [vmem:[%s8815 + $0x80] sm:$0xff]
        %v8829 = vld [vmem:[%s8815 + $0x88] sm:$0xff]
        %v8830 = vld [vmem:[%s8815 + $0x90] sm:$0xff]
        %v8831 = vld [vmem:[%s8815 + $0xa0] sm:$0xff]
        %v8832 = vld [vmem:[%s8815 + $0xa8] sm:$0xff]
        %v8833 = vld [vmem:[%s8815 + $0xb0] sm:$0xff]
        %s8834 = scalar_lea.vmem %s11, 384
        %v8835 = vld [vmem:[%s8834] sm:$0xff]
        %v8836 = vld [vmem:[%s8834 + $0x8] sm:$0xff]
        %v8837 = vld [vmem:[%s8834 + $0x10] sm:$0xff]
        %v8838 = vld [vmem:[%s8834 + $0x18] sm:$0xff]
        %v8839 = vld [vmem:[%s8834 + $0x20] sm:$0xff]
        %v8840 = vld [vmem:[%s8834 + $0x28] sm:$0xff]
        %v8841 = vld [vmem:[%s8834 + $0x30] sm:$0xff]
        %v8842 = vld [vmem:[%s8834 + $0x38] sm:$0xff]
        %v8844 = vsel %vm5458, %v8816, 0
        %v8847 = vsel %vm5458, %v8817, 0
        %v8850 = vsel %vm5458, %v8818, 0
        %v8853 = vsel %vm5458, %v8819, 0
        %v8856 = vsel %vm5458, %v8820, 0
        %v8859 = vsel %vm5458, %v8821, 0
        %v8862 = vsel %vm5458, %v8822, 0
        %v8865 = vsel %vm5458, %v8823, 0
        %v8868 = vsel %vm5458, %v8824, 0
        %v8871 = vsel %vm5458, %v8825, 0
        %v8874 = vsel %vm5458, %v8826, 0
        %v8877 = vsel %vm5458, %v8827, 0
        %v8880 = vsel %vm5458, %v8828, 0
        %v8883 = vsel %vm5458, %v8829, 0
        %v8886 = vsel %vm5458, %v8830, 0
        %v8889 = vsel %vm5458, %v8831, 0
        %v8892 = vsel %vm5458, %v8832, 0
        %v8895 = vsel %vm5458, %v8833, 0
        %8897 = vmatprep.subr.mxu0 0.0
        %8898 = vmatpush1.msra.mxu0 0.0
        %8899 = vmatprep.subr.mxu0 0.0
        %8900 = vmatpush1.msra.mxu0 0.0
        %8901 = vmatprep.subr.mxu0 0.0
        %8902 = vmatpush1.msra.mxu0 0.0
        %8903 = vmatprep.subr.mxu0 0.0
        %8904 = vmatpush1.msra.mxu0 0.0
        %8905 = vmatprep.subr.mxu0 0.0
        %8906 = vmatpush1.msra.mxu0 0.0
        %8907 = vmatprep.subr.mxu0 0.0
        %8908 = vmatpush1.msra.mxu0 0.0
        %8909 = vmatprep.subr.mxu0 0.0
        %8910 = vmatpush1.msra.mxu0 0.0
        %8911 = vmatprep.subr.mxu0 0.0
        %8912 = vmatpush1.msra.mxu0 0.0
        %8913 = vmatprep.subr.mxu0 0.0
        %8914 = vmatpush1.msra.mxu0 %v8842
        %8915 = vmatprep.subr.mxu0 0.0
        %8916 = vmatpush1.msra.mxu0 %v8841
        %8917 = vmatprep.subr.mxu0 0.0
        %8918 = vmatpush1.msra.mxu0 %v8840
        %8919 = vmatprep.subr.mxu0 0.0
        %8920 = vmatpush1.msra.mxu0 %v8839
        %8921 = vmatprep.subr.mxu0 0.0
        %8922 = vmatpush1.msra.mxu0 %v8838
        %8923 = vmatprep.subr.mxu0 0.0
        %8924 = vmatpush1.msra.mxu0 %v8837
        %8925 = vmatprep.subr.mxu0 0.0
        %8926 = vmatpush1.msra.mxu0 %v8836
        %8927 = vmatprep.subr.mxu0 0.0
        %8928 = vmatpush1.msra.mxu0 %v8835
        %8929 = vmatprep.subr.mxu0 0.0
        %8930 = vmatpush2.msra.mxu0 0.0
        %8931 = vmatprep.subr.mxu0 0.0
        %8932 = vmatpush2.msra.mxu0 0.0
        %8933 = vmatprep.subr.mxu0 0.0
        %8934 = vmatpush2.msra.mxu0 0.0
        %8935 = vmatprep.subr.mxu0 0.0
        %8936 = vmatpush2.msra.mxu0 0.0
        %8937 = vmatprep.subr.mxu0 0.0
        %8938 = vmatpush2.msra.mxu0 0.0
        %8939 = vmatprep.subr.mxu0 0.0
        %8940 = vmatpush2.msra.mxu0 0.0
        %8941 = vmatprep.subr.mxu0 0.0
        %8942 = vmatpush2.msra.mxu0 0.0
        %8943 = vmatprep.subr.mxu0 0.0
        %8944 = vmatpush2.msra.mxu0 0.0
        %8945 = vmatprep.subr.mxu0 0.0
        %8946 = vmatpush2.msra.mxu0 0.0
        %8947 = vmatprep.subr.mxu0 0.0
        %8948 = vmatpush2.msra.mxu0 0.0
        %8949 = vmatprep.subr.mxu0 0.0
        %8950 = vmatpush2.msra.mxu0 0.0
        %8951 = vmatprep.subr.mxu0 0.0
        %8952 = vmatpush2.msra.mxu0 0.0
        %8953 = vmatprep.subr.mxu0 0.0
        %8954 = vmatpush2.msra.mxu0 0.0
        %8955 = vmatprep.subr.mxu0 0.0
        %8956 = vmatpush2.msra.mxu0 0.0
        %8957 = vmatprep.subr.mxu0 0.0
        %8958 = vmatpush2.msra.mxu0 0.0
        %8959 = vmatprep.subr.mxu0 0.0
        %8960 = vmatpush2.msra.mxu0 0.0
        %8961 = vmatprep.mubr.f32.mxu0 0.0
        %8962 = vmatmul.mubr.f32.gmra.mxu0 %v8844
        %v8963 = vpop.f32.mrf.mxu0
        %v8964 = vadd.f32 0.0, %v8963
        %v8965 = vpop.f32.mrf.mxu0
        %8966 = vmatprep.mubr.f32.mxu0 0.0
        %8967 = vmatmul.mubr.f32.gmra.mxu0 %v8847
        %v8968 = vpop.f32.mrf.mxu0
        %v8969 = vadd.f32 0.0, %v8968
        %v8970 = vpop.f32.mrf.mxu0
        %8971 = vmatprep.mubr.f32.mxu0 0.0
        %8972 = vmatmul.mubr.f32.gmra.mxu0 %v8850
        %v8973 = vpop.f32.mrf.mxu0
        %v8974 = vadd.f32 0.0, %v8973
        %v8975 = vpop.f32.mrf.mxu0
        %8976 = vmatprep.mubr.f32.mxu0 0.0
        %8977 = vmatmul.mubr.f32.gmra.mxu0 %v8853
        %v8978 = vpop.f32.mrf.mxu0
        %v8979 = vadd.f32 0.0, %v8978
        %v8980 = vpop.f32.mrf.mxu0
        %8981 = vmatprep.mubr.f32.mxu0 0.0
        %8982 = vmatmul.mubr.f32.gmra.mxu0 %v8856
        %v8983 = vpop.f32.mrf.mxu0
        %v8984 = vadd.f32 0.0, %v8983
        %v8985 = vpop.f32.mrf.mxu0
        %8986 = vmatprep.mubr.f32.mxu0 0.0
        %8987 = vmatmul.mubr.f32.gmra.mxu0 %v8859
        %v8988 = vpop.f32.mrf.mxu0
        %v8989 = vadd.f32 0.0, %v8988
        %v8990 = vpop.f32.mrf.mxu0
        %8991 = vmatprep.mubr.f32.mxu0 0.0
        %8992 = vmatmul.mubr.f32.gmra.mxu0 %v8862
        %v8993 = vpop.f32.mrf.mxu0
        %v8994 = vadd.f32 0.0, %v8993
        %v8995 = vpop.f32.mrf.mxu0
        %8996 = vmatprep.mubr.f32.mxu0 0.0
        %8997 = vmatmul.mubr.f32.gmra.mxu0 %v8865
        %v8998 = vpop.f32.mrf.mxu0
        %v8999 = vadd.f32 0.0, %v8998
        %v9000 = vpop.f32.mrf.mxu0
        %9001 = vmatprep.mubr.f32.mxu0 0.0
        %9002 = vmatmul.mubr.f32.gmra.mxu0 %v8868
        %v9003 = vpop.f32.mrf.mxu0
        %v9004 = vadd.f32 0.0, %v9003
        %v9005 = vpop.f32.mrf.mxu0
        %9006 = vmatprep.mubr.f32.mxu0 0.0
        %9007 = vmatmul.mubr.f32.gmra.mxu0 %v8871
        %v9008 = vpop.f32.mrf.mxu0
        %v9009 = vadd.f32 0.0, %v9008
        %v9010 = vpop.f32.mrf.mxu0
        %9011 = vmatprep.mubr.f32.mxu0 0.0
        %9012 = vmatmul.mubr.f32.gmra.mxu0 %v8874
        %v9013 = vpop.f32.mrf.mxu0
        %v9014 = vadd.f32 0.0, %v9013
        %v9015 = vpop.f32.mrf.mxu0
        %9016 = vmatprep.mubr.f32.mxu0 0.0
        %9017 = vmatmul.mubr.f32.gmra.mxu0 %v8877
        %v9018 = vpop.f32.mrf.mxu0
        %v9019 = vadd.f32 0.0, %v9018
        %v9020 = vpop.f32.mrf.mxu0
        %9021 = vmatprep.mubr.f32.mxu0 0.0
        %9022 = vmatmul.mubr.f32.gmra.mxu0 %v8880
        %v9023 = vpop.f32.mrf.mxu0
        %v9024 = vadd.f32 0.0, %v9023
        %v9025 = vpop.f32.mrf.mxu0
        %9026 = vmatprep.mubr.f32.mxu0 0.0
        %9027 = vmatmul.mubr.f32.gmra.mxu0 %v8883
        %v9028 = vpop.f32.mrf.mxu0
        %v9029 = vadd.f32 0.0, %v9028
        %v9030 = vpop.f32.mrf.mxu0
        %9031 = vmatprep.mubr.f32.mxu0 0.0
        %9032 = vmatmul.mubr.f32.gmra.mxu0 %v8886
        %v9033 = vpop.f32.mrf.mxu0
        %v9034 = vadd.f32 0.0, %v9033
        %v9035 = vpop.f32.mrf.mxu0
        %9036 = vmatprep.mubr.f32.mxu0 0.0
        %9037 = vmatmul.mubr.f32.gmra.mxu0 %v8889
        %v9038 = vpop.f32.mrf.mxu0
        %v9039 = vadd.f32 0.0, %v9038
        %v9040 = vpop.f32.mrf.mxu0
        %9041 = vmatprep.mubr.f32.mxu0 0.0
        %9042 = vmatmul.mubr.f32.gmra.mxu0 %v8892
        %v9043 = vpop.f32.mrf.mxu0
        %v9044 = vadd.f32 0.0, %v9043
        %v9045 = vpop.f32.mrf.mxu0
        %9046 = vmatprep.mubr.f32.mxu0 0.0
        %9047 = vmatmul.mubr.f32.gmra.mxu0 %v8895
        %v9048 = vpop.f32.mrf.mxu0
        %v9049 = vadd.f32 0.0, %v9048
        %v9050 = vpop.f32.mrf.mxu0
        %9051 = vdwg.mxu0
        %v9052 = vadd.f32 %v8795, %v8964
        %v9053 = vadd.f32 %v8796, %v8969
        %v9054 = vadd.f32 %v8797, %v8974
        %v9055 = vadd.f32 %v8798, %v8979
        %v9056 = vadd.f32 %v8799, %v8984
        %v9057 = vadd.f32 %v8800, %v8989
        %v9058 = vadd.f32 %v8801, %v8994
        %v9059 = vadd.f32 %v8802, %v8999
        %v9060 = vadd.f32 %v8803, %v9004
        %v9061 = vadd.f32 %v8804, %v9009
        %v9062 = vadd.f32 %v8805, %v9014
        %v9063 = vadd.f32 %v8806, %v9019
        %v9064 = vadd.f32 %v8807, %v9024
        %v9065 = vadd.f32 %v8808, %v9029
        %v9066 = vadd.f32 %v8809, %v9034
        %v9067 = vadd.f32 %v8810, %v9039
        %v9068 = vadd.f32 %v8811, %v9044
        %v9069 = vadd.f32 %v8812, %v9049
        %v9070 = vld [vmem:[%s8815 + $0x1] sm:$0xff]
        %v9071 = vld [vmem:[%s8815 + $0x9] sm:$0xff]
        %v9072 = vld [vmem:[%s8815 + $0x11] sm:$0xff]
        %v9073 = vld [vmem:[%s8815 + $0x21] sm:$0xff]
        %v9074 = vld [vmem:[%s8815 + $0x29] sm:$0xff]
        %v9075 = vld [vmem:[%s8815 + $0x31] sm:$0xff]
        %v9076 = vld [vmem:[%s8815 + $0x41] sm:$0xff]
        %v9077 = vld [vmem:[%s8815 + $0x49] sm:$0xff]
        %v9078 = vld [vmem:[%s8815 + $0x51] sm:$0xff]
        %v9079 = vld [vmem:[%s8815 + $0x61] sm:$0xff]
        %v9080 = vld [vmem:[%s8815 + $0x69] sm:$0xff]
        %v9081 = vld [vmem:[%s8815 + $0x71] sm:$0xff]
        %v9082 = vld [vmem:[%s8815 + $0x81] sm:$0xff]
        %v9083 = vld [vmem:[%s8815 + $0x89] sm:$0xff]
        %v9084 = vld [vmem:[%s8815 + $0x91] sm:$0xff]
        %v9085 = vld [vmem:[%s8815 + $0xa1] sm:$0xff]
        %v9086 = vld [vmem:[%s8815 + $0xa9] sm:$0xff]
        %v9087 = vld [vmem:[%s8815 + $0xb1] sm:$0xff]
        %s9088 = scalar_lea.vmem %s11, 448
        %v9089 = vld [vmem:[%s9088] sm:$0xff]
        %v9090 = vld [vmem:[%s9088 + $0x8] sm:$0xff]
        %v9091 = vld [vmem:[%s9088 + $0x10] sm:$0xff]
        %v9092 = vld [vmem:[%s9088 + $0x18] sm:$0xff]
        %v9093 = vld [vmem:[%s9088 + $0x20] sm:$0xff]
        %v9094 = vld [vmem:[%s9088 + $0x28] sm:$0xff]
        %v9095 = vld [vmem:[%s9088 + $0x30] sm:$0xff]
        %v9096 = vld [vmem:[%s9088 + $0x38] sm:$0xff]
        %v9098 = vsel %vm5458, %v9070, 0
        %v9101 = vsel %vm5458, %v9071, 0
        %v9104 = vsel %vm5458, %v9072, 0
        %v9107 = vsel %vm5458, %v9073, 0
        %v9110 = vsel %vm5458, %v9074, 0
        %v9113 = vsel %vm5458, %v9075, 0
        %v9116 = vsel %vm5458, %v9076, 0
        %v9119 = vsel %vm5458, %v9077, 0
        %v9122 = vsel %vm5458, %v9078, 0
        %v9125 = vsel %vm5458, %v9079, 0
        %v9128 = vsel %vm5458, %v9080, 0
        %v9131 = vsel %vm5458, %v9081, 0
        %v9134 = vsel %vm5458, %v9082, 0
        %v9137 = vsel %vm5458, %v9083, 0
        %v9140 = vsel %vm5458, %v9084, 0
        %v9143 = vsel %vm5458, %v9085, 0
        %v9146 = vsel %vm5458, %v9086, 0
        %v9149 = vsel %vm5458, %v9087, 0
        %9151 = vmatprep.subr.mxu0 0.0
        %9152 = vmatpush1.msra.mxu0 0.0
        %9153 = vmatprep.subr.mxu0 0.0
        %9154 = vmatpush1.msra.mxu0 0.0
        %9155 = vmatprep.subr.mxu0 0.0
        %9156 = vmatpush1.msra.mxu0 0.0
        %9157 = vmatprep.subr.mxu0 0.0
        %9158 = vmatpush1.msra.mxu0 0.0
        %9159 = vmatprep.subr.mxu0 0.0
        %9160 = vmatpush1.msra.mxu0 0.0
        %9161 = vmatprep.subr.mxu0 0.0
        %9162 = vmatpush1.msra.mxu0 0.0
        %9163 = vmatprep.subr.mxu0 0.0
        %9164 = vmatpush1.msra.mxu0 0.0
        %9165 = vmatprep.subr.mxu0 0.0
        %9166 = vmatpush1.msra.mxu0 0.0
        %9167 = vmatprep.subr.mxu0 0.0
        %9168 = vmatpush1.msra.mxu0 %v9096
        %9169 = vmatprep.subr.mxu0 0.0
        %9170 = vmatpush1.msra.mxu0 %v9095
        %9171 = vmatprep.subr.mxu0 0.0
        %9172 = vmatpush1.msra.mxu0 %v9094
        %9173 = vmatprep.subr.mxu0 0.0
        %9174 = vmatpush1.msra.mxu0 %v9093
        %9175 = vmatprep.subr.mxu0 0.0
        %9176 = vmatpush1.msra.mxu0 %v9092
        %9177 = vmatprep.subr.mxu0 0.0
        %9178 = vmatpush1.msra.mxu0 %v9091
        %9179 = vmatprep.subr.mxu0 0.0
        %9180 = vmatpush1.msra.mxu0 %v9090
        %9181 = vmatprep.subr.mxu0 0.0
        %9182 = vmatpush1.msra.mxu0 %v9089
        %9183 = vmatprep.subr.mxu0 0.0
        %9184 = vmatpush2.msra.mxu0 0.0
        %9185 = vmatprep.subr.mxu0 0.0
        %9186 = vmatpush2.msra.mxu0 0.0
        %9187 = vmatprep.subr.mxu0 0.0
        %9188 = vmatpush2.msra.mxu0 0.0
        %9189 = vmatprep.subr.mxu0 0.0
        %9190 = vmatpush2.msra.mxu0 0.0
        %9191 = vmatprep.subr.mxu0 0.0
        %9192 = vmatpush2.msra.mxu0 0.0
        %9193 = vmatprep.subr.mxu0 0.0
        %9194 = vmatpush2.msra.mxu0 0.0
        %9195 = vmatprep.subr.mxu0 0.0
        %9196 = vmatpush2.msra.mxu0 0.0
        %9197 = vmatprep.subr.mxu0 0.0
        %9198 = vmatpush2.msra.mxu0 0.0
        %9199 = vmatprep.subr.mxu0 0.0
        %9200 = vmatpush2.msra.mxu0 0.0
        %9201 = vmatprep.subr.mxu0 0.0
        %9202 = vmatpush2.msra.mxu0 0.0
        %9203 = vmatprep.subr.mxu0 0.0
        %9204 = vmatpush2.msra.mxu0 0.0
        %9205 = vmatprep.subr.mxu0 0.0
        %9206 = vmatpush2.msra.mxu0 0.0
        %9207 = vmatprep.subr.mxu0 0.0
        %9208 = vmatpush2.msra.mxu0 0.0
        %9209 = vmatprep.subr.mxu0 0.0
        %9210 = vmatpush2.msra.mxu0 0.0
        %9211 = vmatprep.subr.mxu0 0.0
        %9212 = vmatpush2.msra.mxu0 0.0
        %9213 = vmatprep.subr.mxu0 0.0
        %9214 = vmatpush2.msra.mxu0 0.0
        %9215 = vmatprep.mubr.f32.mxu0 0.0
        %9216 = vmatmul.mubr.f32.gmra.mxu0 %v9098
        %v9217 = vpop.f32.mrf.mxu0
        %v9218 = vadd.f32 0.0, %v9217
        %v9219 = vpop.f32.mrf.mxu0
        %9220 = vmatprep.mubr.f32.mxu0 0.0
        %9221 = vmatmul.mubr.f32.gmra.mxu0 %v9101
        %v9222 = vpop.f32.mrf.mxu0
        %v9223 = vadd.f32 0.0, %v9222
        %v9224 = vpop.f32.mrf.mxu0
        %9225 = vmatprep.mubr.f32.mxu0 0.0
        %9226 = vmatmul.mubr.f32.gmra.mxu0 %v9104
        %v9227 = vpop.f32.mrf.mxu0
        %v9228 = vadd.f32 0.0, %v9227
        %v9229 = vpop.f32.mrf.mxu0
        %9230 = vmatprep.mubr.f32.mxu0 0.0
        %9231 = vmatmul.mubr.f32.gmra.mxu0 %v9107
        %v9232 = vpop.f32.mrf.mxu0
        %v9233 = vadd.f32 0.0, %v9232
        %v9234 = vpop.f32.mrf.mxu0
        %9235 = vmatprep.mubr.f32.mxu0 0.0
        %9236 = vmatmul.mubr.f32.gmra.mxu0 %v9110
        %v9237 = vpop.f32.mrf.mxu0
        %v9238 = vadd.f32 0.0, %v9237
        %v9239 = vpop.f32.mrf.mxu0
        %9240 = vmatprep.mubr.f32.mxu0 0.0
        %9241 = vmatmul.mubr.f32.gmra.mxu0 %v9113
        %v9242 = vpop.f32.mrf.mxu0
        %v9243 = vadd.f32 0.0, %v9242
        %v9244 = vpop.f32.mrf.mxu0
        %9245 = vmatprep.mubr.f32.mxu0 0.0
        %9246 = vmatmul.mubr.f32.gmra.mxu0 %v9116
        %v9247 = vpop.f32.mrf.mxu0
        %v9248 = vadd.f32 0.0, %v9247
        %v9249 = vpop.f32.mrf.mxu0
        %9250 = vmatprep.mubr.f32.mxu0 0.0
        %9251 = vmatmul.mubr.f32.gmra.mxu0 %v9119
        %v9252 = vpop.f32.mrf.mxu0
        %v9253 = vadd.f32 0.0, %v9252
        %v9254 = vpop.f32.mrf.mxu0
        %9255 = vmatprep.mubr.f32.mxu0 0.0
        %9256 = vmatmul.mubr.f32.gmra.mxu0 %v9122
        %v9257 = vpop.f32.mrf.mxu0
        %v9258 = vadd.f32 0.0, %v9257
        %v9259 = vpop.f32.mrf.mxu0
        %9260 = vmatprep.mubr.f32.mxu0 0.0
        %9261 = vmatmul.mubr.f32.gmra.mxu0 %v9125
        %v9262 = vpop.f32.mrf.mxu0
        %v9263 = vadd.f32 0.0, %v9262
        %v9264 = vpop.f32.mrf.mxu0
        %9265 = vmatprep.mubr.f32.mxu0 0.0
        %9266 = vmatmul.mubr.f32.gmra.mxu0 %v9128
        %v9267 = vpop.f32.mrf.mxu0
        %v9268 = vadd.f32 0.0, %v9267
        %v9269 = vpop.f32.mrf.mxu0
        %9270 = vmatprep.mubr.f32.mxu0 0.0
        %9271 = vmatmul.mubr.f32.gmra.mxu0 %v9131
        %v9272 = vpop.f32.mrf.mxu0
        %v9273 = vadd.f32 0.0, %v9272
        %v9274 = vpop.f32.mrf.mxu0
        %9275 = vmatprep.mubr.f32.mxu0 0.0
        %9276 = vmatmul.mubr.f32.gmra.mxu0 %v9134
        %v9277 = vpop.f32.mrf.mxu0
        %v9278 = vadd.f32 0.0, %v9277
        %v9279 = vpop.f32.mrf.mxu0
        %9280 = vmatprep.mubr.f32.mxu0 0.0
        %9281 = vmatmul.mubr.f32.gmra.mxu0 %v9137
        %v9282 = vpop.f32.mrf.mxu0
        %v9283 = vadd.f32 0.0, %v9282
        %v9284 = vpop.f32.mrf.mxu0
        %9285 = vmatprep.mubr.f32.mxu0 0.0
        %9286 = vmatmul.mubr.f32.gmra.mxu0 %v9140
        %v9287 = vpop.f32.mrf.mxu0
        %v9288 = vadd.f32 0.0, %v9287
        %v9289 = vpop.f32.mrf.mxu0
        %9290 = vmatprep.mubr.f32.mxu0 0.0
        %9291 = vmatmul.mubr.f32.gmra.mxu0 %v9143
        %v9292 = vpop.f32.mrf.mxu0
        %v9293 = vadd.f32 0.0, %v9292
        %v9294 = vpop.f32.mrf.mxu0
        %9295 = vmatprep.mubr.f32.mxu0 0.0
        %9296 = vmatmul.mubr.f32.gmra.mxu0 %v9146
        %v9297 = vpop.f32.mrf.mxu0
        %v9298 = vadd.f32 0.0, %v9297
        %v9299 = vpop.f32.mrf.mxu0
        %9300 = vmatprep.mubr.f32.mxu0 0.0
        %9301 = vmatmul.mubr.f32.gmra.mxu0 %v9149
        %v9302 = vpop.f32.mrf.mxu0
        %v9303 = vadd.f32 0.0, %v9302
        %v9304 = vpop.f32.mrf.mxu0
        %9305 = vdwg.mxu0
        %v9306 = vadd.f32 %v9052, %v9218
        %v9307 = vadd.f32 %v9053, %v9223
        %v9308 = vadd.f32 %v9054, %v9228
        %v9309 = vadd.f32 %v9055, %v9233
        %v9310 = vadd.f32 %v9056, %v9238
        %v9311 = vadd.f32 %v9057, %v9243
        %v9312 = vadd.f32 %v9058, %v9248
        %v9313 = vadd.f32 %v9059, %v9253
        %v9314 = vadd.f32 %v9060, %v9258
        %v9315 = vadd.f32 %v9061, %v9263
        %v9316 = vadd.f32 %v9062, %v9268
        %v9317 = vadd.f32 %v9063, %v9273
        %v9318 = vadd.f32 %v9064, %v9278
        %v9319 = vadd.f32 %v9065, %v9283
        %v9320 = vadd.f32 %v9066, %v9288
        %v9321 = vadd.f32 %v9067, %v9293
        %v9322 = vadd.f32 %v9068, %v9298
        %v9323 = vadd.f32 %v9069, %v9303
        %v9324 = vld [vmem:[%s8815 + $0x2] sm:$0xff]
        %v9325 = vld [vmem:[%s8815 + $0xa] sm:$0xff]
        %v9326 = vld [vmem:[%s8815 + $0x12] sm:$0xff]
        %v9327 = vld [vmem:[%s8815 + $0x22] sm:$0xff]
        %v9328 = vld [vmem:[%s8815 + $0x2a] sm:$0xff]
        %v9329 = vld [vmem:[%s8815 + $0x32] sm:$0xff]
        %v9330 = vld [vmem:[%s8815 + $0x42] sm:$0xff]
        %v9331 = vld [vmem:[%s8815 + $0x4a] sm:$0xff]
        %v9332 = vld [vmem:[%s8815 + $0x52] sm:$0xff]
        %v9333 = vld [vmem:[%s8815 + $0x62] sm:$0xff]
        %v9334 = vld [vmem:[%s8815 + $0x6a] sm:$0xff]
        %v9335 = vld [vmem:[%s8815 + $0x72] sm:$0xff]
        %v9336 = vld [vmem:[%s8815 + $0x82] sm:$0xff]
        %v9337 = vld [vmem:[%s8815 + $0x8a] sm:$0xff]
        %v9338 = vld [vmem:[%s8815 + $0x92] sm:$0xff]
        %v9339 = vld [vmem:[%s8815 + $0xa2] sm:$0xff]
        %v9340 = vld [vmem:[%s8815 + $0xaa] sm:$0xff]
        %v9341 = vld [vmem:[%s8815 + $0xb2] sm:$0xff]
        %s9342 = scalar_lea.vmem %s11, 512
        %v9343 = vld [vmem:[%s9342] sm:$0xff]
        %v9344 = vld [vmem:[%s9342 + $0x8] sm:$0xff]
        %v9345 = vld [vmem:[%s9342 + $0x10] sm:$0xff]
        %v9346 = vld [vmem:[%s9342 + $0x18] sm:$0xff]
        %v9347 = vld [vmem:[%s9342 + $0x20] sm:$0xff]
        %v9348 = vld [vmem:[%s9342 + $0x28] sm:$0xff]
        %v9349 = vld [vmem:[%s9342 + $0x30] sm:$0xff]
        %v9350 = vld [vmem:[%s9342 + $0x38] sm:$0xff]
        %v9352 = vsel %vm5458, %v9324, 0
        %v9355 = vsel %vm5458, %v9325, 0
        %v9358 = vsel %vm5458, %v9326, 0
        %v9361 = vsel %vm5458, %v9327, 0
        %v9364 = vsel %vm5458, %v9328, 0
        %v9367 = vsel %vm5458, %v9329, 0
        %v9370 = vsel %vm5458, %v9330, 0
        %v9373 = vsel %vm5458, %v9331, 0
        %v9376 = vsel %vm5458, %v9332, 0
        %v9379 = vsel %vm5458, %v9333, 0
        %v9382 = vsel %vm5458, %v9334, 0
        %v9385 = vsel %vm5458, %v9335, 0
        %v9388 = vsel %vm5458, %v9336, 0
        %v9391 = vsel %vm5458, %v9337, 0
        %v9394 = vsel %vm5458, %v9338, 0
        %v9397 = vsel %vm5458, %v9339, 0
        %v9400 = vsel %vm5458, %v9340, 0
        %v9403 = vsel %vm5458, %v9341, 0
        %9405 = vmatprep.subr.mxu0 0.0
        %9406 = vmatpush1.msra.mxu0 0.0
        %9407 = vmatprep.subr.mxu0 0.0
        %9408 = vmatpush1.msra.mxu0 0.0
        %9409 = vmatprep.subr.mxu0 0.0
        %9410 = vmatpush1.msra.mxu0 0.0
        %9411 = vmatprep.subr.mxu0 0.0
        %9412 = vmatpush1.msra.mxu0 0.0
        %9413 = vmatprep.subr.mxu0 0.0
        %9414 = vmatpush1.msra.mxu0 0.0
        %9415 = vmatprep.subr.mxu0 0.0
        %9416 = vmatpush1.msra.mxu0 0.0
        %9417 = vmatprep.subr.mxu0 0.0
        %9418 = vmatpush1.msra.mxu0 0.0
        %9419 = vmatprep.subr.mxu0 0.0
        %9420 = vmatpush1.msra.mxu0 0.0
        %9421 = vmatprep.subr.mxu0 0.0
        %9422 = vmatpush1.msra.mxu0 %v9350
        %9423 = vmatprep.subr.mxu0 0.0
        %9424 = vmatpush1.msra.mxu0 %v9349
        %9425 = vmatprep.subr.mxu0 0.0
        %9426 = vmatpush1.msra.mxu0 %v9348
        %9427 = vmatprep.subr.mxu0 0.0
        %9428 = vmatpush1.msra.mxu0 %v9347
        %9429 = vmatprep.subr.mxu0 0.0
        %9430 = vmatpush1.msra.mxu0 %v9346
        %9431 = vmatprep.subr.mxu0 0.0
        %9432 = vmatpush1.msra.mxu0 %v9345
        %9433 = vmatprep.subr.mxu0 0.0
        %9434 = vmatpush1.msra.mxu0 %v9344
        %9435 = vmatprep.subr.mxu0 0.0
        %9436 = vmatpush1.msra.mxu0 %v9343
        %9437 = vmatprep.subr.mxu0 0.0
        %9438 = vmatpush2.msra.mxu0 0.0
        %9439 = vmatprep.subr.mxu0 0.0
        %9440 = vmatpush2.msra.mxu0 0.0
        %9441 = vmatprep.subr.mxu0 0.0
        %9442 = vmatpush2.msra.mxu0 0.0
        %9443 = vmatprep.subr.mxu0 0.0
        %9444 = vmatpush2.msra.mxu0 0.0
        %9445 = vmatprep.subr.mxu0 0.0
        %9446 = vmatpush2.msra.mxu0 0.0
        %9447 = vmatprep.subr.mxu0 0.0
        %9448 = vmatpush2.msra.mxu0 0.0
        %9449 = vmatprep.subr.mxu0 0.0
        %9450 = vmatpush2.msra.mxu0 0.0
        %9451 = vmatprep.subr.mxu0 0.0
        %9452 = vmatpush2.msra.mxu0 0.0
        %9453 = vmatprep.subr.mxu0 0.0
        %9454 = vmatpush2.msra.mxu0 0.0
        %9455 = vmatprep.subr.mxu0 0.0
        %9456 = vmatpush2.msra.mxu0 0.0
        %9457 = vmatprep.subr.mxu0 0.0
        %9458 = vmatpush2.msra.mxu0 0.0
        %9459 = vmatprep.subr.mxu0 0.0
        %9460 = vmatpush2.msra.mxu0 0.0
        %9461 = vmatprep.subr.mxu0 0.0
        %9462 = vmatpush2.msra.mxu0 0.0
        %9463 = vmatprep.subr.mxu0 0.0
        %9464 = vmatpush2.msra.mxu0 0.0
        %9465 = vmatprep.subr.mxu0 0.0
        %9466 = vmatpush2.msra.mxu0 0.0
        %9467 = vmatprep.subr.mxu0 0.0
        %9468 = vmatpush2.msra.mxu0 0.0
        %9469 = vmatprep.mubr.f32.mxu0 0.0
        %9470 = vmatmul.mubr.f32.gmra.mxu0 %v9352
        %v9471 = vpop.f32.mrf.mxu0
        %v9472 = vadd.f32 0.0, %v9471
        %v9473 = vpop.f32.mrf.mxu0
        %9474 = vmatprep.mubr.f32.mxu0 0.0
        %9475 = vmatmul.mubr.f32.gmra.mxu0 %v9355
        %v9476 = vpop.f32.mrf.mxu0
        %v9477 = vadd.f32 0.0, %v9476
        %v9478 = vpop.f32.mrf.mxu0
        %9479 = vmatprep.mubr.f32.mxu0 0.0
        %9480 = vmatmul.mubr.f32.gmra.mxu0 %v9358
        %v9481 = vpop.f32.mrf.mxu0
        %v9482 = vadd.f32 0.0, %v9481
        %v9483 = vpop.f32.mrf.mxu0
        %9484 = vmatprep.mubr.f32.mxu0 0.0
        %9485 = vmatmul.mubr.f32.gmra.mxu0 %v9361
        %v9486 = vpop.f32.mrf.mxu0
        %v9487 = vadd.f32 0.0, %v9486
        %v9488 = vpop.f32.mrf.mxu0
        %9489 = vmatprep.mubr.f32.mxu0 0.0
        %9490 = vmatmul.mubr.f32.gmra.mxu0 %v9364
        %v9491 = vpop.f32.mrf.mxu0
        %v9492 = vadd.f32 0.0, %v9491
        %v9493 = vpop.f32.mrf.mxu0
        %9494 = vmatprep.mubr.f32.mxu0 0.0
        %9495 = vmatmul.mubr.f32.gmra.mxu0 %v9367
        %v9496 = vpop.f32.mrf.mxu0
        %v9497 = vadd.f32 0.0, %v9496
        %v9498 = vpop.f32.mrf.mxu0
        %9499 = vmatprep.mubr.f32.mxu0 0.0
        %9500 = vmatmul.mubr.f32.gmra.mxu0 %v9370
        %v9501 = vpop.f32.mrf.mxu0
        %v9502 = vadd.f32 0.0, %v9501
        %v9503 = vpop.f32.mrf.mxu0
        %9504 = vmatprep.mubr.f32.mxu0 0.0
        %9505 = vmatmul.mubr.f32.gmra.mxu0 %v9373
        %v9506 = vpop.f32.mrf.mxu0
        %v9507 = vadd.f32 0.0, %v9506
        %v9508 = vpop.f32.mrf.mxu0
        %9509 = vmatprep.mubr.f32.mxu0 0.0
        %9510 = vmatmul.mubr.f32.gmra.mxu0 %v9376
        %v9511 = vpop.f32.mrf.mxu0
        %v9512 = vadd.f32 0.0, %v9511
        %v9513 = vpop.f32.mrf.mxu0
        %9514 = vmatprep.mubr.f32.mxu0 0.0
        %9515 = vmatmul.mubr.f32.gmra.mxu0 %v9379
        %v9516 = vpop.f32.mrf.mxu0
        %v9517 = vadd.f32 0.0, %v9516
        %v9518 = vpop.f32.mrf.mxu0
        %9519 = vmatprep.mubr.f32.mxu0 0.0
        %9520 = vmatmul.mubr.f32.gmra.mxu0 %v9382
        %v9521 = vpop.f32.mrf.mxu0
        %v9522 = vadd.f32 0.0, %v9521
        %v9523 = vpop.f32.mrf.mxu0
        %9524 = vmatprep.mubr.f32.mxu0 0.0
        %9525 = vmatmul.mubr.f32.gmra.mxu0 %v9385
        %v9526 = vpop.f32.mrf.mxu0
        %v9527 = vadd.f32 0.0, %v9526
        %v9528 = vpop.f32.mrf.mxu0
        %9529 = vmatprep.mubr.f32.mxu0 0.0
        %9530 = vmatmul.mubr.f32.gmra.mxu0 %v9388
        %v9531 = vpop.f32.mrf.mxu0
        %v9532 = vadd.f32 0.0, %v9531
        %v9533 = vpop.f32.mrf.mxu0
        %9534 = vmatprep.mubr.f32.mxu0 0.0
        %9535 = vmatmul.mubr.f32.gmra.mxu0 %v9391
        %v9536 = vpop.f32.mrf.mxu0
        %v9537 = vadd.f32 0.0, %v9536
        %v9538 = vpop.f32.mrf.mxu0
        %9539 = vmatprep.mubr.f32.mxu0 0.0
        %9540 = vmatmul.mubr.f32.gmra.mxu0 %v9394
        %v9541 = vpop.f32.mrf.mxu0
        %v9542 = vadd.f32 0.0, %v9541
        %v9543 = vpop.f32.mrf.mxu0
        %9544 = vmatprep.mubr.f32.mxu0 0.0
        %9545 = vmatmul.mubr.f32.gmra.mxu0 %v9397
        %v9546 = vpop.f32.mrf.mxu0
        %v9547 = vadd.f32 0.0, %v9546
        %v9548 = vpop.f32.mrf.mxu0
        %9549 = vmatprep.mubr.f32.mxu0 0.0
        %9550 = vmatmul.mubr.f32.gmra.mxu0 %v9400
        %v9551 = vpop.f32.mrf.mxu0
        %v9552 = vadd.f32 0.0, %v9551
        %v9553 = vpop.f32.mrf.mxu0
        %9554 = vmatprep.mubr.f32.mxu0 0.0
        %9555 = vmatmul.mubr.f32.gmra.mxu0 %v9403
        %v9556 = vpop.f32.mrf.mxu0
        %v9557 = vadd.f32 0.0, %v9556
        %v9558 = vpop.f32.mrf.mxu0
        %9559 = vdwg.mxu0
        %v9560 = vadd.f32 %v9306, %v9472
        %v9561 = vadd.f32 %v9307, %v9477
        %v9562 = vadd.f32 %v9308, %v9482
        %v9563 = vadd.f32 %v9309, %v9487
        %v9564 = vadd.f32 %v9310, %v9492
        %v9565 = vadd.f32 %v9311, %v9497
        %v9566 = vadd.f32 %v9312, %v9502
        %v9567 = vadd.f32 %v9313, %v9507
        %v9568 = vadd.f32 %v9314, %v9512
        %v9569 = vadd.f32 %v9315, %v9517
        %v9570 = vadd.f32 %v9316, %v9522
        %v9571 = vadd.f32 %v9317, %v9527
        %v9572 = vadd.f32 %v9318, %v9532
        %v9573 = vadd.f32 %v9319, %v9537
        %v9574 = vadd.f32 %v9320, %v9542
        %v9575 = vadd.f32 %v9321, %v9547
        %v9576 = vadd.f32 %v9322, %v9552
        %v9577 = vadd.f32 %v9323, %v9557
        %v9578 = vld [vmem:[%s12] sm:$0x1]
        %v9580 = vlaneseq
        %v9581 = vshrl.u32 %v9580, 7
        %v9582 = vsub.s32 0, %v9581
        %v9583 = vrot.slane %v9578, %v9582
        %v9585 = vadd.f32 %v9560, %v9583
        %v9586 = vadd.f32 %v9561, %v9583
        %v9587 = vadd.f32 %v9562, %v9583
        %v9588 = vadd.f32 %v9563, %v9583
        %v9589 = vadd.f32 %v9564, %v9583
        %v9590 = vadd.f32 %v9565, %v9583
        %v9591 = vadd.f32 %v9566, %v9583
        %v9592 = vadd.f32 %v9567, %v9583
        %v9593 = vadd.f32 %v9568, %v9583
        %v9594 = vadd.f32 %v9569, %v9583
        %v9595 = vadd.f32 %v9570, %v9583
        %v9596 = vadd.f32 %v9571, %v9583
        %v9597 = vadd.f32 %v9572, %v9583
        %v9598 = vadd.f32 %v9573, %v9583
        %v9599 = vadd.f32 %v9574, %v9583
        %v9600 = vadd.f32 %v9575, %v9583
        %v9601 = vadd.f32 %v9576, %v9583
        %v9602 = vadd.f32 %v9577, %v9583
        %v9603 = vmax.f32 %v9585, 0.0
        %v9604 = vmax.f32 %v9586, 0.0
        %v9605 = vmax.f32 %v9587, 0.0
        %v9606 = vmax.f32 %v9588, 0.0
        %v9607 = vmax.f32 %v9589, 0.0
        %v9608 = vmax.f32 %v9590, 0.0
        %v9609 = vmax.f32 %v9591, 0.0
        %v9610 = vmax.f32 %v9592, 0.0
        %v9611 = vmax.f32 %v9593, 0.0
        %v9612 = vmax.f32 %v9594, 0.0
        %v9613 = vmax.f32 %v9595, 0.0
        %v9614 = vmax.f32 %v9596, 0.0
        %v9615 = vmax.f32 %v9597, 0.0
        %v9616 = vmax.f32 %v9598, 0.0
        %v9617 = vmax.f32 %v9599, 0.0
        %v9618 = vmax.f32 %v9600, 0.0
        %v9619 = vmax.f32 %v9601, 0.0
        %v9620 = vmax.f32 %v9602, 0.0
        %s9621 = scalar_lea.vmem [#allocation4], %s7321
        %9622 = vst.msk [vmem:[%s9621] sm:$0xff] %vm3195, %v9603
        %9623 = vst.msk [vmem:[%s9621 + $0x8] sm:$0xff] %vm3195, %v9604
        %9624 = vst.msk [vmem:[%s9621 + $0x10] sm:$0xff] %vm3195, %v9605
        %9625 = vst.msk [vmem:[%s9621 + $0x20] sm:$0xff] %vm3195, %v9606
        %9626 = vst.msk [vmem:[%s9621 + $0x28] sm:$0xff] %vm3195, %v9607
        %9627 = vst.msk [vmem:[%s9621 + $0x30] sm:$0xff] %vm3195, %v9608
        %9628 = vst.msk [vmem:[%s9621 + $0x40] sm:$0xff] %vm3195, %v9609
        %9629 = vst.msk [vmem:[%s9621 + $0x48] sm:$0xff] %vm3195, %v9610
        %9630 = vst.msk [vmem:[%s9621 + $0x50] sm:$0xff] %vm3195, %v9611
        %9631 = vst.msk [vmem:[%s9621 + $0x60] sm:$0xff] %vm3195, %v9612
        %9632 = vst.msk [vmem:[%s9621 + $0x68] sm:$0xff] %vm3195, %v9613
        %9633 = vst.msk [vmem:[%s9621 + $0x70] sm:$0xff] %vm3195, %v9614
        %9634 = vst.msk [vmem:[%s9621 + $0x80] sm:$0xff] %vm3195, %v9615
        %9635 = vst.msk [vmem:[%s9621 + $0x88] sm:$0xff] %vm3195, %v9616
        %9636 = vst.msk [vmem:[%s9621 + $0x90] sm:$0xff] %vm3195, %v9617
        %9637 = vst.msk [vmem:[%s9621 + $0xa0] sm:$0xff] %vm3195, %v9618
        %9638 = vst.msk [vmem:[%s9621 + $0xa8] sm:$0xff] %vm3195, %v9619
        %9639 = vst.msk [vmem:[%s9621 + $0xb0] sm:$0xff] %vm3195, %v9620
      $region116: #{mixed_4a.1} parent=75 // loop_footer
        %s7319 = sadd.s32 1, %s7315
      $region117: #{mixed_4a.1} parent=75 // loop_footer_branch
        %7314 = sbr.rel target = $region113
      $region118: #{mixed_4a.1} parent=75 // loop_exit
        _
      %v9640 = vld [vmem:[#allocation4] sm:$0xff]
      %v9641 = vld [vmem:[#allocation4 + $0x8] sm:$0x1]
      %v9642 = vld [vmem:[#allocation4 + $0x20] sm:$0xff]
      %v9643 = vld [vmem:[#allocation4 + $0x28] sm:$0x1]
      %v9644 = vld [vmem:[#allocation4 + $0x40] sm:$0xff]
      %v9645 = vld [vmem:[#allocation4 + $0x48] sm:$0x1]
      %v9646 = vld [vmem:[#allocation4 + $0x60] sm:$0xff]
      %v9647 = vld [vmem:[#allocation4 + $0x68] sm:$0x1]
      %v9648 = vld [vmem:[#allocation4 + $0x80] sm:$0xff]
      %v9649 = vld [vmem:[#allocation4 + $0x88] sm:$0x1]
      %v9650 = vld [vmem:[#allocation4 + $0xa0] sm:$0xff]
      %v9651 = vld [vmem:[#allocation4 + $0xa8] sm:$0x1]
      %v9652 = vld [vmem:[#allocation4 + $0xc0] sm:$0xff]
      %v9653 = vld [vmem:[#allocation4 + $0xc8] sm:$0x1]
      %v9654 = vld [vmem:[#allocation4 + $0xe0] sm:$0xff]
      %v9655 = vld [vmem:[#allocation4 + $0xe8] sm:$0x1]
      %v9656 = vld [vmem:[#allocation4 + $0x100] sm:$0xff]
      %v9657 = vld [vmem:[#allocation4 + $0x108] sm:$0x1]
      %9658 = vst.msk [vmem:[%s507] sm:$0xff] %vm3195, %v9640
      %9659 = vst.msk [vmem:[%s507 + $0x8] sm:$0x1] %vm3197, %v9641
      %9660 = vst.msk [vmem:[%s507 + $0x10] sm:$0xff] %vm3195, %v9642
      %9661 = vst.msk [vmem:[%s507 + $0x18] sm:$0x1] %vm3197, %v9643
      %9662 = vst.msk [vmem:[%s507 + $0x20] sm:$0xff] %vm3195, %v9644
      %9663 = vst.msk [vmem:[%s507 + $0x28] sm:$0x1] %vm3197, %v9645
      %9664 = vst.msk [vmem:[%s507 + $0x30] sm:$0xff] %vm3195, %v9646
      %9665 = vst.msk [vmem:[%s507 + $0x38] sm:$0x1] %vm3197, %v9647
      %9666 = vst.msk [vmem:[%s507 + $0x40] sm:$0xff] %vm3195, %v9648
      %9667 = vst.msk [vmem:[%s507 + $0x48] sm:$0x1] %vm3197, %v9649
      %9668 = vst.msk [vmem:[%s507 + $0x50] sm:$0xff] %vm3195, %v9650
      %9669 = vst.msk [vmem:[%s507 + $0x58] sm:$0x1] %vm3197, %v9651
      %9670 = vst.msk [vmem:[%s507 + $0x60] sm:$0xff] %vm3195, %v9652
      %9671 = vst.msk [vmem:[%s507 + $0x68] sm:$0x1] %vm3197, %v9653
      %9672 = vst.msk [vmem:[%s507 + $0x70] sm:$0xff] %vm3195, %v9654
      %9673 = vst.msk [vmem:[%s507 + $0x78] sm:$0x1] %vm3197, %v9655
      %9674 = vst.msk [vmem:[%s507 + $0x80] sm:$0xff] %vm3195, %v9656
      %9675 = vst.msk [vmem:[%s507 + $0x88] sm:$0x1] %vm3197, %v9657
      %p9676 = scmp.lt.s32.totalorder %s27, 1
      %s9677 = scalar_select %p9676, %s27, 1
      %s9678 = smul.addr %s9677, 18
      %s9679 = smul.addr %s9678, 8
      %s9680 = scalar_lea.vmem %s14, %s9679
      %p9681 = scmp.lt.s32.totalorder %s27, 1
      %s9682 = scalar_select %p9681, %s27, 1
      %s9683 = smul.addr %s9682, 18
      %s9684 = smul.addr %s9683, 8
      %s9685 = scalar_lea.vmem %s15, %s9684
      // Predicated region
      $region119: #{mixed_4a.1} parent=75 // pred_check
        %p9686 = pneg %p344
      $region120: #{mixed_4a.1} parent=75 // pred_check_branch
        %9688 = sbr.rel (%p9686) target = $region122
      $region121: #{mixed_4a.1} parent=75 // pred_region
        _
      $region122: #{mixed_4a.1} parent=75 // pred_fallthru
        _
      // Predicated region
      $region123: #{mixed_4a.1} parent=75 // pred_check
        %p9689 = pneg %p370
      $region124: #{mixed_4a.1} parent=75 // pred_check_branch
        %9691 = sbr.rel (%p9689) target = $region126
      $region125: #{mixed_4a.1} parent=75 // pred_region
        _
      $region126: #{mixed_4a.1} parent=75 // pred_fallthru
        _
    $region76: #{mixed_4a.1} parent=5 // pred_fallthru
      _
    %p9692 = scmp.le.s32.totalorder 2, %s22
    // Predicated region
    $region127: #{mixed_4a.1} parent=5 // pred_check
      %p9693 = pneg %p9692
    $region128: #{mixed_4a.1} parent=5 // pred_check_branch
      %9695 = sbr.rel (%p9693) target = $region130
    $region129: #{mixed_4a.1} parent=5 // pred_region
      %s9696 = ssub.s32 %s22, 2
      // Predicated region
      $region131: #{mixed_4a.1} parent=129 // pred_check
        %p9697 = pneg %p350
      $region132: #{mixed_4a.1} parent=129 // pred_check_branch
        %9699 = sbr.rel (%p9697) target = $region134
      $region133: #{mixed_4a.1} parent=129 // pred_region
        %p9700 = scmp.lt.s32.totalorder %s28, 1
        %s9701 = scalar_select %p9700, %s28, 1
        %s9702 = smul.addr %s9701, 18
        %s9703 = smul.addr %s9702, 8
        %s9704 = scalar_lea.vmem %s14, %s9703
      $region134: #{mixed_4a.1} parent=129 // pred_fallthru
        _
      // Predicated region
      $region135: #{mixed_4a.1} parent=129 // pred_check
        %p9705 = pneg %p376
      $region136: #{mixed_4a.1} parent=129 // pred_check_branch
        %9707 = sbr.rel (%p9705) target = $region138
      $region137: #{mixed_4a.1} parent=129 // pred_region
        %p9708 = scmp.lt.s32.totalorder %s28, 1
        %s9709 = scalar_select %p9708, %s28, 1
        %s9710 = smul.addr %s9709, 18
        %s9711 = smul.addr %s9710, 8
        %s9712 = scalar_lea.vmem %s15, %s9711
      $region138: #{mixed_4a.1} parent=129 // pred_fallthru
        _
    $region130: #{mixed_4a.1} parent=5 // pred_fallthru
      _
  $region6: #{mixed_4a.1} parent=0 // loop_footer
    %s26 = sadd.s32 1, %s22
  $region7: #{mixed_4a.1} parent=0 // loop_footer_branch
    %21 = sbr.rel target = $region3
  $region8: #{mixed_4a.1} parent=0 // loop_exit
    _

</llo_original>
